<compile_context>
chip_gen: v6e
topology: v6e:2x2x1
jax: 0.10.0
libtpu: 0.0.40
codegen_flags: <defaults>
</compile_context>

<pallas_src>
import jax
import jax.numpy as jnp
from jax.experimental import pallas as pl
from jax.experimental.pallas import tpu as pltpu

LEAK = 0.2  # nn.LeakyReLU(0.2)


def _round_up(v, m):
    return (v + m - 1) // m * m


def _make_kernel(*, nB, H, W, Cin, Pp, Wc, stride, identity_shortcut,
                 full_fuse, compute_dtype):
    Hp = H + 2                                  # conv2 zero-padded-input rows
    Ho = (H - 1) // stride + 1                  # output rows
    cd = compute_dtype

    def kernel(*refs):
        if identity_shortcut:
            x_ref, w1_ref, b1_ref, w2_ref, b2_ref, out_ref = refs
            ws_ref = bs_ref = None
        else:
            x_ref, w1_ref, b1_ref, w2_ref, b2_ref, ws_ref, bs_ref, out_ref = refs

        x_all = x_ref[...]                                           # (nB, H, W, Cin) f32
        a_all = jnp.where(x_all >= 0.0, x_all, LEAK * x_all).astype(cd)  # bn1=Id; lrelu

        # constants hoisted out of the per-sample loop
        zl = jnp.zeros((H, 2, Cin), cd)                 # left 2-col zero pad
        zr = jnp.zeros((H, Wc - W, Cin), cd)            # right pad (ring + 8-alignment)
        zt = jnp.zeros((2, Wc + 2, Cin), cd)            # top/bottom 2-row zero pad
        row = jax.lax.broadcasted_iota(jnp.int32, (Hp, Wc, Pp), 0)
        col = jax.lax.broadcasted_iota(jnp.int32, (Hp, Wc, Pp), 1)
        interior = (row >= 1) & (row <= H) & (col >= 1) & (col <= W)

        # ---- conv1 patches: per-sample zero-padded (Hp, Wc) domain, taps fused along K
        acat = []
        for bi in range(nB):
            ac = jnp.concatenate([zl, a_all[bi], zr], axis=1)        # (H, Wc+2, Cin)
            ap = jnp.concatenate([zt, ac, zt], axis=0)               # (H+4, Wc+2, Cin)
            if full_fuse:        # all 9 taps in a single matmul (K = 9*Cin)
                taps = [ap[dy:dy + Hp, dx:dx + Wc, :]
                        for dy in range(3) for dx in range(3)]
                acat.append(jnp.concatenate(taps, axis=-1).reshape(Hp * Wc, 9 * Cin))
            else:                # dx taps fused (K = 3*Cin), one matmul per dy
                acat.append(jnp.concatenate(
                    [ap[:, 0:Wc, :], ap[:, 1:1 + Wc, :], ap[:, 2:2 + Wc, :]],
                    axis=-1))                                        # (H+4, Wc, 3*Cin)

        def merge(parts):        # merge per-sample patches along the MXU M dim
            return parts[0] if len(parts) == 1 else jnp.concatenate(parts, axis=0)

        # ---- conv1 (MXU), accumulated as a value (no scratch RMW) ----
        if full_fuse:
            h1 = jnp.dot(merge(acat), w1_ref[...], preferred_element_type=jnp.float32)
        else:
            h1 = None
            for dy in range(3):
                patch = merge([acat[bi][dy:dy + Hp].reshape(Hp * Wc, 3 * Cin)
                               for bi in range(nB)])
                d = jnp.dot(patch, w1_ref[dy], preferred_element_type=jnp.float32)
                h1 = d if h1 is None else h1 + d
        h1 = h1 + b1_ref[...]                      # conv1 bias (dropout = bn2 = Identity)
        h1 = jnp.where(h1 >= 0.0, h1, LEAK * h1)   # LeakyReLU, f32

        # ---- zero the 1-pixel ring (h1p == conv2's zero-padded input) and build the
        #      dx-fused conv2 patches per sample ----
        h1cat = []
        for bi in range(nB):
            h1b = h1[bi * Hp * Wc:(bi + 1) * Hp * Wc].reshape(Hp, Wc, Pp)
            h1b = jnp.where(interior, h1b, 0.0).astype(cd)
            h1cat.append(jnp.concatenate(
                [h1b[:, 0:W, :], h1b[:, 1:1 + W, :], h1b[:, 2:2 + W, :]],
                axis=-1))                                            # (Hp, W, 3*Pp)

        # ---- conv2: 3 dy matmuls, accumulated as a value.  stride>1: rows subsampled
        #      here via a layout-free leading-dim reshape; columns stay dense. ----
        acc = None
        for dy in range(3):
            parts = []
            for bi in range(nB):
                slab = h1cat[bi][dy:dy + stride * Ho]                # (stride*Ho, W, 3Pp)
                if stride > 1:
                    slab = slab.reshape(Ho, stride, W, 3 * Pp)[:, 0]
                parts.append(slab.reshape(Ho * W, 3 * Pp))
            d = jnp.dot(merge(parts), w2_ref[dy], preferred_element_type=jnp.float32)
            acc = d if acc is None else acc + d

        # ---- shortcut on the un-activated input ----
        parts = []
        for bi in range(nB):
            xs = x_all[bi]                                           # (H, W, Cin) f32
            if stride > 1:
                xs = xs[0:stride * Ho].reshape(Ho, stride, W, Cin)[:, 0]
            parts.append(xs.reshape(Ho * W, Cin))
        xsc = merge(parts)
        if identity_shortcut:
            if Pp > Cin:
                xsc = jnp.concatenate(
                    [xsc, jnp.zeros((nB * Ho * W, Pp - Cin), jnp.float32)], axis=-1)
            sc = xsc + b2_ref[...]
        else:
            sc = (jnp.dot(xsc.astype(cd), ws_ref[...],
                          preferred_element_type=jnp.float32)
                  + b2_ref[...] + bs_ref[...])

        out_ref[...] = (acc + sc).astype(out_ref.dtype)              # single lane-dense store

    return kernel


def wide_basic_forward(x_nchw, params, stride=1, compute_dtype=jnp.bfloat16,
                       max_batch_block=8):
    """wide_basic forward.  x_nchw: (B, Cin, H, W) f32, NCHW in / NCHW out.
    params = (w1[3,3,Cin,P], b1[P], w2[3,3,P,P], b2[P], ws[Cin,P]|None, bs[P]|None)."""
    # TODO(synk): keep activations NHWC across a block stack to drop these transposes.
    w1, b1, w2, b2, ws, bs = params
    assert stride in (1, 2), "wide_basic uses stride 1 or 2"  # TODO(synk): general stride
    x = jnp.transpose(x_nchw, (0, 2, 3, 1)).astype(jnp.float32)      # NCHW -> NHWC
    B, H, W, Cin = x.shape
    P = w1.shape[-1]
    identity_shortcut = ws is None
    if identity_shortcut:
        assert stride == 1 and Cin == P, "identity shortcut needs stride==1, Cin==planes"
    if stride > 1:
        assert H % stride == 0, "stride-2 path assumes H % stride == 0"

    Pp = _round_up(P, 128)              # lane-dense output / inter-conv channels
    # TODO(synk): for WRN widths 160/320 evaluate keeping conv2's K at P (pad only N).
    Wc = _round_up(W + 2, 8)            # conv1 output-domain width, 8-aligned
    Hp = H + 2
    Ho = (H - 1) // stride + 1
    rps = Ho * W                        # kernel output rows / sample (columns dense)
    full_fuse = Cin <= 32               # single K=9*Cin matmul for the first blocks
    cd = compute_dtype

    # pre-fused / padded weights; matmul operands in compute_dtype, biases in f32
    w1p = jnp.pad(w1, ((0, 0), (0, 0), (0, 0), (0, Pp - P)))
    w1f = (w1p.reshape(9 * Cin, Pp) if full_fuse
           else w1p.reshape(3, 3 * Cin, Pp)).astype(cd)
    w2f = jnp.pad(w2, ((0, 0), (0, 0), (0, Pp - P), (0, Pp - P))
                  ).reshape(3, 3 * Pp, Pp).astype(cd)
    b1p = jnp.pad(b1, (0, Pp - P)).reshape(1, Pp).astype(jnp.float32)
    b2p = jnp.pad(b2, (0, Pp - P)).reshape(1, Pp).astype(jnp.float32)
    args = [w1f, b1p, w2f, b2p]
    if not identity_shortcut:
        args += [jnp.pad(ws, ((0, 0), (0, Pp - P))).astype(cd),
                 jnp.pad(bs, (0, Pp - P)).reshape(1, Pp).astype(jnp.float32)]

    # ---- generation-aware VMEM cap and batch-block size ----
    try:
        vmem_cap = int(pltpu.get_tpu_info().vmem_capacity_bytes)
    except Exception:
        vmem_cap = 64 * 2 ** 20
    vmem_limit = min(128 * 2 ** 20, max(32 * 2 ** 20, int(0.9 * vmem_cap)))

    cs = jnp.dtype(cd).itemsize
    ntaps = 9 if full_fuse else 3
    per_sample = (2 * H * W * Cin * 4                  # double-buffered input tile
                  + 2 * rps * Pp * 4                   # double-buffered output tile
                  + (H + 4) * (Wc + 2) * Cin * cs      # padded activation
                  + ntaps * (H + 4) * Wc * Cin * cs    # conv1 tap concat
                  + Hp * Wc * Pp * (4 + cs)            # h1 (f32) + masked h1p (cd)
                  + 3 * Hp * W * Pp * cs               # conv2 tap concat
                  + 3 * rps * Pp * cs)                 # per-dy conv2 patch
    fixed = (9 * Cin * Pp + 9 * Pp * Pp
             + (0 if identity_shortcut else Cin * Pp)) * cs + 3 * Pp * 4
    budget = int(0.55 * vmem_limit)                    # headroom for Mosaic scratch
    nB = 1
    for cand in range(min(max_batch_block, B), 0, -1):
        if B % cand == 0 and fixed + cand * per_sample <= budget:
            nB = cand
            break
    if (nB * rps) % 8 != 0:            # keep the output block's second-minor 8-aligned
        nB = B

    kernel = _make_kernel(nB=nB, H=H, W=W, Cin=Cin, Pp=Pp, Wc=Wc, stride=stride,
                          identity_shortcut=identity_shortcut,
                          full_fuse=full_fuse, compute_dtype=cd)

    in_specs = [pl.BlockSpec((nB, H, W, Cin), lambda b: (b, 0, 0, 0))]
    in_specs += [pl.BlockSpec(memory_space=pltpu.MemorySpace.VMEM)] * len(args)
    out_specs = pl.BlockSpec((nB * rps, Pp), lambda b: (b, 0))

    out = pl.pallas_call(
        kernel,
        grid=(B // nB,),
        out_shape=jax.ShapeDtypeStruct((B * rps, Pp), jnp.float32),
        in_specs=in_specs,
        out_specs=out_specs,
        compiler_params=pltpu.CompilerParams(
            dimension_semantics=("parallel",),   # batch steps shard across v7x's 2 TCs
            vmem_limit_bytes=vmem_limit),
    )(x, *args)

    out = out.reshape(B, Ho, W, Pp)
    if stride > 1:
        # TODO(synk): move this column subsample into the kernel once a sublane-strided
        # in-kernel read has been device-validated; rows are already subsampled in-kernel.
        out = out[:, :, ::stride, :]
    out = out[..., :P]                                 # strip the lane padding
    return jnp.transpose(out, (0, 3, 1, 2))            # NHWC -> NCHW


def make_params(key, in_planes, planes, stride):
    k1, k2, k3, k4, k5, k6 = jax.random.split(key, 6)
    w1 = jax.random.normal(k1, (3, 3, in_planes, planes), jnp.float32) * 0.1
    b1 = jax.random.normal(k2, (planes,), jnp.float32) * 0.1
    w2 = jax.random.normal(k3, (3, 3, planes, planes), jnp.float32) * 0.1
    b2 = jax.random.normal(k4, (planes,), jnp.float32) * 0.1
    if stride != 1 or in_planes != planes:
        ws = jax.random.normal(k5, (in_planes, planes), jnp.float32) * 0.1
        bs = jax.random.normal(k6, (planes,), jnp.float32) * 0.1
    else:
        ws, bs = None, None                            # nn.Sequential() identity shortcut
    return (w1, b1, w2, b2, ws, bs)


def ref_forward(x_nchw, params, stride=1):
    """Pure-JAX reference (lax.conv), NCHW in/out - mirrors the PyTorch module."""
    w1, b1, w2, b2, ws, bs = params
    lrelu = lambda v: jnp.where(v >= 0, v, LEAK * v)
    dn = ("NHWC", "HWIO", "NHWC")
    hp = jax.lax.Precision.HIGHEST
    x = jnp.transpose(x_nchw, (0, 2, 3, 1))
    h = jax.lax.conv_general_dilated(lrelu(x), w1, (1, 1), [(1, 1), (1, 1)],
                                     dimension_numbers=dn, precision=hp) + b1
    h = jax.lax.conv_general_dilated(lrelu(h), w2, (stride, stride), [(1, 1), (1, 1)],
                                     dimension_numbers=dn, precision=hp) + b2
    if ws is None:
        sc = x[:, ::stride, ::stride, :]
    else:
        sc = jax.lax.conv_general_dilated(x, ws.reshape(1, 1, *ws.shape),
                                          (stride, stride), [(0, 0), (0, 0)],
                                          dimension_numbers=dn, precision=hp) + bs
    return jnp.transpose(h + sc, (0, 3, 1, 2))


if __name__ == "__main__":
    key = jax.random.PRNGKey(0)
    ks = jax.random.split(key, 8)

    def check(x, p, stride, cd, rtol, **kw):
        out = jax.block_until_ready(
            wide_basic_forward(x, p, stride=stride, compute_dtype=cd, **kw))
        ref = ref_forward(x, p, stride=stride)
        assert out.shape == ref.shape, (out.shape, ref.shape)
        err = float(jnp.max(jnp.abs(out - ref)))
        scale = float(jnp.max(jnp.abs(ref))) + 1e-6
        assert err <= rtol * scale, (err, scale, stride, str(cd))

    # 1) projection shortcut (Cin != planes), stride 1, f32 math, multi-step grid (nB=2)
    x1 = jax.random.normal(ks[0], (4, 4, 16, 16), jnp.float32)
    p1 = make_params(ks[1], 4, 8, 1)
    check(x1, p1, 1, jnp.float32, 2e-3, max_batch_block=2)

    # 2) same config with the default bf16 matmul operands (f32 accumulation)
    check(x1, p1, 1, jnp.bfloat16, 8e-2)

    # 3) identity shortcut (in_planes == planes), stride 1, bf16
    x2 = jax.random.normal(ks[2], (2, 8, 16, 16), jnp.float32)
    p2 = make_params(ks[3], 8, 8, 1)
    check(x2, p2, 1, jnp.bfloat16, 8e-2)

    # 4) dx-fused conv1 branch (Cin > 32), stride 1, bf16
    x3 = jax.random.normal(ks[4], (2, 40, 8, 8), jnp.float32)
    p3 = make_params(ks[5], 40, 24, 1)
    check(x3, p3, 1, jnp.bfloat16, 8e-2)

    # 5) stride-2 block (projection shortcut), f32 math for tight indexing validation
    x4 = jax.random.normal(ks[6], (2, 16, 16, 16), jnp.float32)
    p4 = make_params(ks[7], 16, 32, 2)
    check(x4, p4, 2, jnp.float32, 2e-3)

    print("KERNEL_OK")
</pallas_src>

<mosaic_0001>
module attributes {stable_mosaic.version = 11 : i64} {
  func.func @kernel(%arg0: i32, %arg1: memref<2x16x16x4xf32, #tpu.memory_space<vmem>>, %arg2: memref<36x128xf32, #tpu.memory_space<vmem>>, %arg3: memref<1x128xf32, #tpu.memory_space<vmem>>, %arg4: memref<3x384x128xf32, #tpu.memory_space<vmem>>, %arg5: memref<1x128xf32, #tpu.memory_space<vmem>>, %arg6: memref<4x128xf32, #tpu.memory_space<vmem>>, %arg7: memref<1x128xf32, #tpu.memory_space<vmem>>, %arg8: memref<512x128xf32, #tpu.memory_space<vmem>>) attributes {dimension_semantics = [#tpu.dimension_semantics<parallel>], iteration_bounds = array<i64: 2>, scalar_prefetch = 0 : i64, scratch_operands = 0 : i64, tpu.core_type = #tpu.core_type<tc>, window_params = [{transform_indices = @transform_0, window_bounds = array<i64: 2, 16, 16, 4>}, {pipeline_mode = #tpu.pipeline_mode<synchronous>, transform_indices = @transform_1, window_bounds = array<i64: 36, 128>}, {pipeline_mode = #tpu.pipeline_mode<synchronous>, transform_indices = @transform_2, window_bounds = array<i64: 1, 128>}, {pipeline_mode = #tpu.pipeline_mode<synchronous>, transform_indices = @transform_3, window_bounds = array<i64: 3, 384, 128>}, {pipeline_mode = #tpu.pipeline_mode<synchronous>, transform_indices = @transform_4, window_bounds = array<i64: 1, 128>}, {pipeline_mode = #tpu.pipeline_mode<synchronous>, transform_indices = @transform_5, window_bounds = array<i64: 4, 128>}, {pipeline_mode = #tpu.pipeline_mode<synchronous>, transform_indices = @transform_6, window_bounds = array<i64: 1, 128>}, {transform_indices = @transform_7, window_bounds = array<i64: 512, 128>}]} {
    %c0 = arith.constant 0 : index
    %c0_0 = arith.constant 0 : index
    %c0_1 = arith.constant 0 : index
    %c0_2 = arith.constant 0 : index
    %0 = vector.load %arg1[%c0, %c0_0, %c0_1, %c0_2] : memref<2x16x16x4xf32, #tpu.memory_space<vmem>>, vector<2x16x16x4xf32>
    %cst = arith.constant 0.000000e+00 : f32
    %1 = vector.broadcast %cst : f32 to vector<2x16x16x4xf32>
    %2 = arith.cmpf oge, %0, %1 : vector<2x16x16x4xf32>
    %cst_3 = arith.constant 2.000000e-01 : f32
    %3 = vector.broadcast %cst_3 : f32 to vector<2x16x16x4xf32>
    %4 = arith.mulf %3, %0 : vector<2x16x16x4xf32>
    %5 = arith.select %2, %0, %4 : vector<2x16x16x4xi1>, vector<2x16x16x4xf32>
    %cst_4 = arith.constant 0.000000e+00 : f32
    %6 = vector.broadcast %cst_4 : f32 to vector<16x2x4xf32>
    %cst_5 = arith.constant 0.000000e+00 : f32
    %7 = vector.broadcast %cst_5 : f32 to vector<16x8x4xf32>
    %cst_6 = arith.constant 0.000000e+00 : f32
    %8 = vector.broadcast %cst_6 : f32 to vector<2x26x4xf32>
    %9 = tpu.iota {dimensions = array<i32: 0>} : vector<18x24x128xi32>
    %10 = tpu.iota {dimensions = array<i32: 1>} : vector<18x24x128xi32>
    %c1_i32 = arith.constant 1 : i32
    %11 = vector.broadcast %c1_i32 : i32 to vector<18x24x128xi32>
    %12 = arith.cmpi sge, %9, %11 : vector<18x24x128xi32>
    %c16_i32 = arith.constant 16 : i32
    %13 = vector.broadcast %c16_i32 : i32 to vector<18x24x128xi32>
    %14 = arith.cmpi sle, %9, %13 : vector<18x24x128xi32>
    %15 = arith.andi %12, %14 : vector<18x24x128xi1>
    %c1_i32_7 = arith.constant 1 : i32
    %16 = vector.broadcast %c1_i32_7 : i32 to vector<18x24x128xi32>
    %17 = arith.cmpi sge, %10, %16 : vector<18x24x128xi32>
    %18 = arith.andi %15, %17 : vector<18x24x128xi1>
    %c16_i32_8 = arith.constant 16 : i32
    %19 = vector.broadcast %c16_i32_8 : i32 to vector<18x24x128xi32>
    %20 = arith.cmpi sle, %10, %19 : vector<18x24x128xi32>
    %21 = arith.andi %18, %20 : vector<18x24x128xi1>
    %22 = vector.extract_strided_slice %5 {offsets = [0, 0, 0, 0], sizes = [1, 16, 16, 4], strides = [1, 1, 1, 1]} : vector<2x16x16x4xf32> to vector<1x16x16x4xf32>
    %23 = vector.shape_cast %22 : vector<1x16x16x4xf32> to vector<16x16x4xf32>
    %24 = tpu.concatenate %6, %23, %7 in 1 : vector<16x2x4xf32>, vector<16x16x4xf32>, vector<16x8x4xf32> -> vector<16x26x4xf32>
    %25 = tpu.concatenate %8, %24, %8 in 0 : vector<2x26x4xf32>, vector<16x26x4xf32>, vector<2x26x4xf32> -> vector<20x26x4xf32>
    %26 = vector.extract_strided_slice %25 {offsets = [0, 0, 0], sizes = [18, 24, 4], strides = [1, 1, 1]} : vector<20x26x4xf32> to vector<18x24x4xf32>
    %27 = vector.extract_strided_slice %25 {offsets = [0, 1, 0], sizes = [18, 24, 4], strides = [1, 1, 1]} : vector<20x26x4xf32> to vector<18x24x4xf32>
    %28 = vector.extract_strided_slice %25 {offsets = [0, 2, 0], sizes = [18, 24, 4], strides = [1, 1, 1]} : vector<20x26x4xf32> to vector<18x24x4xf32>
    %29 = vector.extract_strided_slice %25 {offsets = [1, 0, 0], sizes = [18, 24, 4], strides = [1, 1, 1]} : vector<20x26x4xf32> to vector<18x24x4xf32>
    %30 = vector.extract_strided_slice %25 {offsets = [1, 1, 0], sizes = [18, 24, 4], strides = [1, 1, 1]} : vector<20x26x4xf32> to vector<18x24x4xf32>
    %31 = vector.extract_strided_slice %25 {offsets = [1, 2, 0], sizes = [18, 24, 4], strides = [1, 1, 1]} : vector<20x26x4xf32> to vector<18x24x4xf32>
    %32 = vector.extract_strided_slice %25 {offsets = [2, 0, 0], sizes = [18, 24, 4], strides = [1, 1, 1]} : vector<20x26x4xf32> to vector<18x24x4xf32>
    %33 = vector.extract_strided_slice %25 {offsets = [2, 1, 0], sizes = [18, 24, 4], strides = [1, 1, 1]} : vector<20x26x4xf32> to vector<18x24x4xf32>
    %34 = vector.extract_strided_slice %25 {offsets = [2, 2, 0], sizes = [18, 24, 4], strides = [1, 1, 1]} : vector<20x26x4xf32> to vector<18x24x4xf32>
    %35 = tpu.concatenate %26, %27, %28, %29, %30, %31, %32, %33, %34 in 2 : vector<18x24x4xf32>, vector<18x24x4xf32>, vector<18x24x4xf32>, vector<18x24x4xf32>, vector<18x24x4xf32>, vector<18x24x4xf32>, vector<18x24x4xf32>, vector<18x24x4xf32>, vector<18x24x4xf32> -> vector<18x24x36xf32>
    %36 = vector.shape_cast %35 : vector<18x24x36xf32> to vector<432x36xf32>
    %37 = vector.extract_strided_slice %5 {offsets = [1, 0, 0, 0], sizes = [1, 16, 16, 4], strides = [1, 1, 1, 1]} : vector<2x16x16x4xf32> to vector<1x16x16x4xf32>
    %38 = vector.shape_cast %37 : vector<1x16x16x4xf32> to vector<16x16x4xf32>
    %39 = tpu.concatenate %6, %38, %7 in 1 : vector<16x2x4xf32>, vector<16x16x4xf32>, vector<16x8x4xf32> -> vector<16x26x4xf32>
    %40 = tpu.concatenate %8, %39, %8 in 0 : vector<2x26x4xf32>, vector<16x26x4xf32>, vector<2x26x4xf32> -> vector<20x26x4xf32>
    %41 = vector.extract_strided_slice %40 {offsets = [0, 0, 0], sizes = [18, 24, 4], strides = [1, 1, 1]} : vector<20x26x4xf32> to vector<18x24x4xf32>
    %42 = vector.extract_strided_slice %40 {offsets = [0, 1, 0], sizes = [18, 24, 4], strides = [1, 1, 1]} : vector<20x26x4xf32> to vector<18x24x4xf32>
    %43 = vector.extract_strided_slice %40 {offsets = [0, 2, 0], sizes = [18, 24, 4], strides = [1, 1, 1]} : vector<20x26x4xf32> to vector<18x24x4xf32>
    %44 = vector.extract_strided_slice %40 {offsets = [1, 0, 0], sizes = [18, 24, 4], strides = [1, 1, 1]} : vector<20x26x4xf32> to vector<18x24x4xf32>
    %45 = vector.extract_strided_slice %40 {offsets = [1, 1, 0], sizes = [18, 24, 4], strides = [1, 1, 1]} : vector<20x26x4xf32> to vector<18x24x4xf32>
    %46 = vector.extract_strided_slice %40 {offsets = [1, 2, 0], sizes = [18, 24, 4], strides = [1, 1, 1]} : vector<20x26x4xf32> to vector<18x24x4xf32>
    %47 = vector.extract_strided_slice %40 {offsets = [2, 0, 0], sizes = [18, 24, 4], strides = [1, 1, 1]} : vector<20x26x4xf32> to vector<18x24x4xf32>
    %48 = vector.extract_strided_slice %40 {offsets = [2, 1, 0], sizes = [18, 24, 4], strides = [1, 1, 1]} : vector<20x26x4xf32> to vector<18x24x4xf32>
    %49 = vector.extract_strided_slice %40 {offsets = [2, 2, 0], sizes = [18, 24, 4], strides = [1, 1, 1]} : vector<20x26x4xf32> to vector<18x24x4xf32>
    %50 = tpu.concatenate %41, %42, %43, %44, %45, %46, %47, %48, %49 in 2 : vector<18x24x4xf32>, vector<18x24x4xf32>, vector<18x24x4xf32>, vector<18x24x4xf32>, vector<18x24x4xf32>, vector<18x24x4xf32>, vector<18x24x4xf32>, vector<18x24x4xf32>, vector<18x24x4xf32> -> vector<18x24x36xf32>
    %51 = vector.shape_cast %50 : vector<18x24x36xf32> to vector<432x36xf32>
    %52 = tpu.concatenate %36, %51 in 0 : vector<432x36xf32>, vector<432x36xf32> -> vector<864x36xf32>
    %c0_9 = arith.constant 0 : index
    %c0_10 = arith.constant 0 : index
    %53 = vector.load %arg2[%c0_9, %c0_10] : memref<36x128xf32, #tpu.memory_space<vmem>>, vector<36x128xf32>
    %cst_11 = arith.constant dense<0.000000e+00> : vector<864x128xf32>
    %54 = tpu.matmul %52, %53, %cst_11 {dimension_numbers = #tpu.dot_dimension_numbers<[1], [0], [0], [1], [0, 0, 1, 1], [], []>} : vector<864x36xf32>, vector<36x128xf32>, vector<864x128xf32> -> vector<864x128xf32>
    %c0_12 = arith.constant 0 : index
    %c0_13 = arith.constant 0 : index
    %55 = vector.load %arg3[%c0_12, %c0_13] : memref<1x128xf32, #tpu.memory_space<vmem>>, vector<1x128xf32>
    %56 = vector.broadcast %55 : vector<1x128xf32> to vector<864x128xf32>
    %57 = arith.addf %54, %56 : vector<864x128xf32>
    %cst_14 = arith.constant 0.000000e+00 : f32
    %58 = vector.broadcast %cst_14 : f32 to vector<864x128xf32>
    %59 = arith.cmpf oge, %57, %58 : vector<864x128xf32>
    %cst_15 = arith.constant 2.000000e-01 : f32
    %60 = vector.broadcast %cst_15 : f32 to vector<864x128xf32>
    %61 = arith.mulf %60, %57 : vector<864x128xf32>
    %62 = arith.select %59, %57, %61 : vector<864x128xi1>, vector<864x128xf32>
    %63 = vector.extract_strided_slice %62 {offsets = [0, 0], sizes = [432, 128], strides = [1, 1]} : vector<864x128xf32> to vector<432x128xf32>
    %64 = vector.shape_cast %63 : vector<432x128xf32> to vector<18x24x128xf32>
    %cst_16 = arith.constant 0.000000e+00 : f32
    %65 = vector.broadcast %cst_16 : f32 to vector<18x24x128xf32>
    %66 = arith.select %21, %64, %65 : vector<18x24x128xi1>, vector<18x24x128xf32>
    %67 = vector.extract_strided_slice %66 {offsets = [0, 0, 0], sizes = [18, 16, 128], strides = [1, 1, 1]} : vector<18x24x128xf32> to vector<18x16x128xf32>
    %68 = vector.extract_strided_slice %66 {offsets = [0, 1, 0], sizes = [18, 16, 128], strides = [1, 1, 1]} : vector<18x24x128xf32> to vector<18x16x128xf32>
    %69 = vector.extract_strided_slice %66 {offsets = [0, 2, 0], sizes = [18, 16, 128], strides = [1, 1, 1]} : vector<18x24x128xf32> to vector<18x16x128xf32>
    %70 = tpu.concatenate %67, %68, %69 in 2 : vector<18x16x128xf32>, vector<18x16x128xf32>, vector<18x16x128xf32> -> vector<18x16x384xf32>
    %71 = vector.extract_strided_slice %62 {offsets = [432, 0], sizes = [432, 128], strides = [1, 1]} : vector<864x128xf32> to vector<432x128xf32>
    %72 = vector.shape_cast %71 : vector<432x128xf32> to vector<18x24x128xf32>
    %cst_17 = arith.constant 0.000000e+00 : f32
    %73 = vector.broadcast %cst_17 : f32 to vector<18x24x128xf32>
    %74 = arith.select %21, %72, %73 : vector<18x24x128xi1>, vector<18x24x128xf32>
    %75 = vector.extract_strided_slice %74 {offsets = [0, 0, 0], sizes = [18, 16, 128], strides = [1, 1, 1]} : vector<18x24x128xf32> to vector<18x16x128xf32>
    %76 = vector.extract_strided_slice %74 {offsets = [0, 1, 0], sizes = [18, 16, 128], strides = [1, 1, 1]} : vector<18x24x128xf32> to vector<18x16x128xf32>
    %77 = vector.extract_strided_slice %74 {offsets = [0, 2, 0], sizes = [18, 16, 128], strides = [1, 1, 1]} : vector<18x24x128xf32> to vector<18x16x128xf32>
    %78 = tpu.concatenate %75, %76, %77 in 2 : vector<18x16x128xf32>, vector<18x16x128xf32>, vector<18x16x128xf32> -> vector<18x16x384xf32>
    %79 = vector.extract_strided_slice %70 {offsets = [0, 0, 0], sizes = [16, 16, 384], strides = [1, 1, 1]} : vector<18x16x384xf32> to vector<16x16x384xf32>
    %80 = vector.shape_cast %79 : vector<16x16x384xf32> to vector<256x384xf32>
    %81 = vector.extract_strided_slice %78 {offsets = [0, 0, 0], sizes = [16, 16, 384], strides = [1, 1, 1]} : vector<18x16x384xf32> to vector<16x16x384xf32>
    %82 = vector.shape_cast %81 : vector<16x16x384xf32> to vector<256x384xf32>
    %83 = tpu.concatenate %80, %82 in 0 : vector<256x384xf32>, vector<256x384xf32> -> vector<512x384xf32>
    %c0_18 = arith.constant 0 : index
    %c0_19 = arith.constant 0 : index
    %c0_20 = arith.constant 0 : index
    %84 = vector.load %arg4[%c0_18, %c0_19, %c0_20] : memref<3x384x128xf32, #tpu.memory_space<vmem>>, vector<1x384x128xf32>
    %85 = vector.shape_cast %84 : vector<1x384x128xf32> to vector<384x128xf32>
    %cst_21 = arith.constant dense<0.000000e+00> : vector<512x128xf32>
    %86 = tpu.matmul %83, %85, %cst_21 {dimension_numbers = #tpu.dot_dimension_numbers<[1], [0], [0], [1], [0, 0, 1, 1], [], []>} : vector<512x384xf32>, vector<384x128xf32>, vector<512x128xf32> -> vector<512x128xf32>
    %87 = vector.extract_strided_slice %70 {offsets = [1, 0, 0], sizes = [16, 16, 384], strides = [1, 1, 1]} : vector<18x16x384xf32> to vector<16x16x384xf32>
    %88 = vector.shape_cast %87 : vector<16x16x384xf32> to vector<256x384xf32>
    %89 = vector.extract_strided_slice %78 {offsets = [1, 0, 0], sizes = [16, 16, 384], strides = [1, 1, 1]} : vector<18x16x384xf32> to vector<16x16x384xf32>
    %90 = vector.shape_cast %89 : vector<16x16x384xf32> to vector<256x384xf32>
    %91 = tpu.concatenate %88, %90 in 0 : vector<256x384xf32>, vector<256x384xf32> -> vector<512x384xf32>
    %c1 = arith.constant 1 : index
    %c0_22 = arith.constant 0 : index
    %c0_23 = arith.constant 0 : index
    %92 = vector.load %arg4[%c1, %c0_22, %c0_23] : memref<3x384x128xf32, #tpu.memory_space<vmem>>, vector<1x384x128xf32>
    %93 = vector.shape_cast %92 : vector<1x384x128xf32> to vector<384x128xf32>
    %cst_24 = arith.constant dense<0.000000e+00> : vector<512x128xf32>
    %94 = tpu.matmul %91, %93, %cst_24 {dimension_numbers = #tpu.dot_dimension_numbers<[1], [0], [0], [1], [0, 0, 1, 1], [], []>} : vector<512x384xf32>, vector<384x128xf32>, vector<512x128xf32> -> vector<512x128xf32>
    %95 = arith.addf %86, %94 : vector<512x128xf32>
    %96 = vector.extract_strided_slice %70 {offsets = [2, 0, 0], sizes = [16, 16, 384], strides = [1, 1, 1]} : vector<18x16x384xf32> to vector<16x16x384xf32>
    %97 = vector.shape_cast %96 : vector<16x16x384xf32> to vector<256x384xf32>
    %98 = vector.extract_strided_slice %78 {offsets = [2, 0, 0], sizes = [16, 16, 384], strides = [1, 1, 1]} : vector<18x16x384xf32> to vector<16x16x384xf32>
    %99 = vector.shape_cast %98 : vector<16x16x384xf32> to vector<256x384xf32>
    %100 = tpu.concatenate %97, %99 in 0 : vector<256x384xf32>, vector<256x384xf32> -> vector<512x384xf32>
    %c2 = arith.constant 2 : index
    %c0_25 = arith.constant 0 : index
    %c0_26 = arith.constant 0 : index
    %101 = vector.load %arg4[%c2, %c0_25, %c0_26] : memref<3x384x128xf32, #tpu.memory_space<vmem>>, vector<1x384x128xf32>
    %102 = vector.shape_cast %101 : vector<1x384x128xf32> to vector<384x128xf32>
    %cst_27 = arith.constant dense<0.000000e+00> : vector<512x128xf32>
    %103 = tpu.matmul %100, %102, %cst_27 {dimension_numbers = #tpu.dot_dimension_numbers<[1], [0], [0], [1], [0, 0, 1, 1], [], []>} : vector<512x384xf32>, vector<384x128xf32>, vector<512x128xf32> -> vector<512x128xf32>
    %104 = arith.addf %95, %103 : vector<512x128xf32>
    %105 = vector.extract_strided_slice %0 {offsets = [0, 0, 0, 0], sizes = [1, 16, 16, 4], strides = [1, 1, 1, 1]} : vector<2x16x16x4xf32> to vector<1x16x16x4xf32>
    %106 = vector.shape_cast %105 : vector<1x16x16x4xf32> to vector<16x16x4xf32>
    %107 = vector.shape_cast %106 : vector<16x16x4xf32> to vector<256x4xf32>
    %108 = vector.extract_strided_slice %0 {offsets = [1, 0, 0, 0], sizes = [1, 16, 16, 4], strides = [1, 1, 1, 1]} : vector<2x16x16x4xf32> to vector<1x16x16x4xf32>
    %109 = vector.shape_cast %108 : vector<1x16x16x4xf32> to vector<16x16x4xf32>
    %110 = vector.shape_cast %109 : vector<16x16x4xf32> to vector<256x4xf32>
    %111 = tpu.concatenate %107, %110 in 0 : vector<256x4xf32>, vector<256x4xf32> -> vector<512x4xf32>
    %c0_28 = arith.constant 0 : index
    %c0_29 = arith.constant 0 : index
    %112 = vector.load %arg6[%c0_28, %c0_29] : memref<4x128xf32, #tpu.memory_space<vmem>>, vector<4x128xf32>
    %cst_30 = arith.constant dense<0.000000e+00> : vector<512x128xf32>
    %113 = tpu.matmul %111, %112, %cst_30 {dimension_numbers = #tpu.dot_dimension_numbers<[1], [0], [0], [1], [0, 0, 1, 1], [], []>} : vector<512x4xf32>, vector<4x128xf32>, vector<512x128xf32> -> vector<512x128xf32>
    %c0_31 = arith.constant 0 : index
    %c0_32 = arith.constant 0 : index
    %114 = vector.load %arg5[%c0_31, %c0_32] : memref<1x128xf32, #tpu.memory_space<vmem>>, vector<1x128xf32>
    %115 = vector.broadcast %114 : vector<1x128xf32> to vector<512x128xf32>
    %116 = arith.addf %113, %115 : vector<512x128xf32>
    %c0_33 = arith.constant 0 : index
    %c0_34 = arith.constant 0 : index
    %117 = vector.load %arg7[%c0_33, %c0_34] : memref<1x128xf32, #tpu.memory_space<vmem>>, vector<1x128xf32>
    %118 = vector.broadcast %117 : vector<1x128xf32> to vector<512x128xf32>
    %119 = arith.addf %116, %118 : vector<512x128xf32>
    %120 = arith.addf %104, %119 : vector<512x128xf32>
    %c0_35 = arith.constant 0 : index
    %c0_36 = arith.constant 0 : index
    %121 = vector.load %arg8[%c0_35, %c0_36] : memref<512x128xf32, #tpu.memory_space<vmem>>, vector<512x128xf32>
    tpu.vector_store %arg8[%c0_35, %c0_36], %120 {strides = array<i32>} : memref<512x128xf32, #tpu.memory_space<vmem>>, vector<512x128xf32>,
    return
  }
  func.func @transform_0(%arg0: i32) -> (i32, i32, i32, i32) {
    %c0_i32 = arith.constant 0 : i32
    %c0_i32_0 = arith.constant 0 : i32
    %c0_i32_1 = arith.constant 0 : i32
    %c0_i32_2 = arith.constant 0 : i32
    return %arg0, %c0_i32, %c0_i32_0, %c0_i32_1 : i32, i32, i32, i32
  }
  func.func @transform_1(%arg0: i32) -> (i32, i32) {
    %c0_i32 = arith.constant 0 : i32
    %c0_i32_0 = arith.constant 0 : i32
    %c0_i32_1 = arith.constant 0 : i32
    return %c0_i32, %c0_i32_0 : i32, i32
  }
  func.func @transform_2(%arg0: i32) -> (i32, i32) {
    %c0_i32 = arith.constant 0 : i32
    %c0_i32_0 = arith.constant 0 : i32
    %c0_i32_1 = arith.constant 0 : i32
    return %c0_i32, %c0_i32_0 : i32, i32
  }
  func.func @transform_3(%arg0: i32) -> (i32, i32, i32) {
    %c0_i32 = arith.constant 0 : i32
    %c0_i32_0 = arith.constant 0 : i32
    %c0_i32_1 = arith.constant 0 : i32
    %c0_i32_2 = arith.constant 0 : i32
    return %c0_i32, %c0_i32_0, %c0_i32_1 : i32, i32, i32
  }
  func.func @transform_4(%arg0: i32) -> (i32, i32) {
    %c0_i32 = arith.constant 0 : i32
    %c0_i32_0 = arith.constant 0 : i32
    %c0_i32_1 = arith.constant 0 : i32
    return %c0_i32, %c0_i32_0 : i32, i32
  }
  func.func @transform_5(%arg0: i32) -> (i32, i32) {
    %c0_i32 = arith.constant 0 : i32
    %c0_i32_0 = arith.constant 0 : i32
    %c0_i32_1 = arith.constant 0 : i32
    return %c0_i32, %c0_i32_0 : i32, i32
  }
  func.func @transform_6(%arg0: i32) -> (i32, i32) {
    %c0_i32 = arith.constant 0 : i32
    %c0_i32_0 = arith.constant 0 : i32
    %c0_i32_1 = arith.constant 0 : i32
    return %c0_i32, %c0_i32_0 : i32, i32
  }
  func.func @transform_7(%arg0: i32) -> (i32, i32) {
    %c0_i32 = arith.constant 0 : i32
    %c0_i32_0 = arith.constant 0 : i32
    return %arg0, %c0_i32 : i32, i32
  }
}

</mosaic_0001>

<llo_original>
// kernel: tpu_custom_call.1
$region0: #{tpu_custom_call.1}
  #allocation0 [shape = 'u32[]', space=smem, size = 0x4, offset = 0x4, fixed_abs, tag = 'smem constant byte address 0x4 - core index']
  #allocation1 [shape = 'u32[144,128]{1,0:T(1,128)}', space=vmem, size = 0x12000, scoped, tag = 'internal scratch']
  %s0 = inlined_call_operand.vmem [shape: f32[4,16,16,4], index: 0, kind: input, shape index: {}]
  %s1 = inlined_call_operand.vmem [shape: f32[36,128], index: 1, kind: input, shape index: {}]
  %s2 = inlined_call_operand.vmem [shape: f32[1,128], index: 2, kind: input, shape index: {}]
  %s3 = inlined_call_operand.vmem [shape: f32[3,384,128], index: 3, kind: input, shape index: {}]
  %s4 = inlined_call_operand.vmem [shape: f32[1,128], index: 4, kind: input, shape index: {}]
  %s5 = inlined_call_operand.vmem [shape: f32[4,128], index: 5, kind: input, shape index: {}]
  %s6 = inlined_call_operand.vmem [shape: f32[1,128], index: 6, kind: input, shape index: {}]
  %s7 = inlined_call_operand.hbm [shape: f32[1024,128], index: 7, kind: output, shape index: {}]
  %s8 = sld [smem:[#allocation0]]
  $region61: #{tpu_custom_call.1} parent=0
    _
  %s10 = ssub.s32 1, %s8
  %s11 = scalar_select 0, %s10, %s8
  $region1: #{tpu_custom_call.1} parent=0
    #allocation2 [shape = 'u8[524288]{0}', space=vmem, size = 0x80000, scoped, tag = 'output window, operand 0']
    #allocation3 [shape = 's32[2]{0}', space=sflag, size = 0x8, scoped, tag = 'scoped memory for tpu_custom_call.1']
    %12 = vsyncpa [#allocation3], 0
    %s13 = scalar_lea.sflag [#allocation3], 1
    %14 = vsyncpa %s13, 0
    loop: start=0, step=1, limit=4
    $region2: #{tpu_custom_call.1} parent=1 // loop_pre_header
      _
    $region3: #{tpu_custom_call.1} parent=1 // loop_header
      %s16 = sphi 0, %s20
      %p17 = scmp.ge.s32.totalorder %s16, 4
      %s26 = sphi 0, %s28
      %s29 = sphi 0, %s26
      %s30 = sphi 0, %s29
      %s46 = sphi 0, %s30
      %s50 = sphi 0, %s50
      %s52 = sphi 0, %s50
      %s53 = sphi 0, %s52
      %s67 = sphi 0, %s53
      %s71 = sphi 0, %s71
      %s73 = sphi 0, %s71
      %s74 = sphi 0, %s73
      %s88 = sphi 0, %s74
      %s92 = sphi 0, %s92
      %s94 = sphi 0, %s92
      %s95 = sphi 0, %s94
      %s109 = sphi 0, %s95
      %s113 = sphi 0, %s113
      %s115 = sphi 0, %s113
      %s116 = sphi 0, %s115
      %s130 = sphi 0, %s116
      %s134 = sphi 0, %s134
      %s136 = sphi 0, %s134
      %s137 = sphi 0, %s136
      %s151 = sphi 0, %s137
      %s155 = sphi 0, %s155
      %s157 = sphi 0, %s155
      %s158 = sphi 0, %s157
      %s172 = sphi 0, %s158
      %s178 = sphi 0, %s180
      %s181 = sphi 0, %s178
      %s182 = sphi 0, %s181
      %s198 = sphi 0, %s182
    $region4: #{tpu_custom_call.1} parent=1 // loop_header_branch
      %19 = sbr.rel (%p17) target = $region8
    $region5: #{tpu_custom_call.1} parent=1 // loop_body
      %s21 = ssub.s32 %s16, 1
      %s22 = ssub.s32 %s16, 2
      %s23 = sadd.s32 %s16, 1
      %s24 = ssub.s32 %s16, %s23
      %p25 = scmp.eq.s32.totalorder %s24, 0
      %s27 = sadd.s32 %s26, 1
      %s28 = scalar_select %p25, %s26, %s27
      %p31 = pneg %p25
      %p32 = scmp.eq.s32.totalorder %s16, 1
      %p33 = por %p31, %p32
      %p34 = scmp.ne.s32.totalorder %s26, %s29
      %p35 = scmp.eq.s32.totalorder %s16, 0
      %p36 = por %p34, %p35
      %p37 = scmp.ne.s32.totalorder %s26, %s29
      %p38 = scmp.eq.s32.totalorder %s21, 1
      %p39 = por %p37, %p38
      %p40 = scmp.ne.s32.totalorder %s29, %s30
      %p41 = scmp.eq.s32.totalorder %s21, 0
      %p42 = por %p40, %p41
      %p43 = scmp.ne.s32.totalorder %s29, %s30
      %p44 = scmp.eq.s32.totalorder %s22, 1
      %p45 = por %p43, %p44
      %p47 = scmp.ne.s32.totalorder %s30, %s46
      %p48 = scmp.eq.s32.totalorder %s22, 0
      %p49 = por %p47, %p48
      %s51 = sadd.s32 %s50, 1
      %p54 = scmp.eq.s32.totalorder %s16, 1
      %p55 = scmp.ne.s32.totalorder %s50, %s52
      %p56 = scmp.eq.s32.totalorder %s16, 0
      %p57 = por %p55, %p56
      %p58 = scmp.ne.s32.totalorder %s50, %s52
      %p59 = scmp.eq.s32.totalorder %s21, 1
      %p60 = por %p58, %p59
      %p61 = scmp.ne.s32.totalorder %s52, %s53
      %p62 = scmp.eq.s32.totalorder %s21, 0
      %p63 = por %p61, %p62
      %p64 = scmp.ne.s32.totalorder %s52, %s53
      %p65 = scmp.eq.s32.totalorder %s22, 1
      %p66 = por %p64, %p65
      %p68 = scmp.ne.s32.totalorder %s53, %s67
      %p69 = scmp.eq.s32.totalorder %s22, 0
      %p70 = por %p68, %p69
      %s72 = sadd.s32 %s71, 1
      %p75 = scmp.eq.s32.totalorder %s16, 1
      %p76 = scmp.ne.s32.totalorder %s71, %s73
      %p77 = scmp.eq.s32.totalorder %s16, 0
      %p78 = por %p76, %p77
      %p79 = scmp.ne.s32.totalorder %s71, %s73
      %p80 = scmp.eq.s32.totalorder %s21, 1
      %p81 = por %p79, %p80
      %p82 = scmp.ne.s32.totalorder %s73, %s74
      %p83 = scmp.eq.s32.totalorder %s21, 0
      %p84 = por %p82, %p83
      %p85 = scmp.ne.s32.totalorder %s73, %s74
      %p86 = scmp.eq.s32.totalorder %s22, 1
      %p87 = por %p85, %p86
      %p89 = scmp.ne.s32.totalorder %s74, %s88
      %p90 = scmp.eq.s32.totalorder %s22, 0
      %p91 = por %p89, %p90
      %s93 = sadd.s32 %s92, 1
      %p96 = scmp.eq.s32.totalorder %s16, 1
      %p97 = scmp.ne.s32.totalorder %s92, %s94
      %p98 = scmp.eq.s32.totalorder %s16, 0
      %p99 = por %p97, %p98
      %p100 = scmp.ne.s32.totalorder %s92, %s94
      %p101 = scmp.eq.s32.totalorder %s21, 1
      %p102 = por %p100, %p101
      %p103 = scmp.ne.s32.totalorder %s94, %s95
      %p104 = scmp.eq.s32.totalorder %s21, 0
      %p105 = por %p103, %p104
      %p106 = scmp.ne.s32.totalorder %s94, %s95
      %p107 = scmp.eq.s32.totalorder %s22, 1
      %p108 = por %p106, %p107
      %p110 = scmp.ne.s32.totalorder %s95, %s109
      %p111 = scmp.eq.s32.totalorder %s22, 0
      %p112 = por %p110, %p111
      %s114 = sadd.s32 %s113, 1
      %p117 = scmp.eq.s32.totalorder %s16, 1
      %p118 = scmp.ne.s32.totalorder %s113, %s115
      %p119 = scmp.eq.s32.totalorder %s16, 0
      %p120 = por %p118, %p119
      %p121 = scmp.ne.s32.totalorder %s113, %s115
      %p122 = scmp.eq.s32.totalorder %s21, 1
      %p123 = por %p121, %p122
      %p124 = scmp.ne.s32.totalorder %s115, %s116
      %p125 = scmp.eq.s32.totalorder %s21, 0
      %p126 = por %p124, %p125
      %p127 = scmp.ne.s32.totalorder %s115, %s116
      %p128 = scmp.eq.s32.totalorder %s22, 1
      %p129 = por %p127, %p128
      %p131 = scmp.ne.s32.totalorder %s116, %s130
      %p132 = scmp.eq.s32.totalorder %s22, 0
      %p133 = por %p131, %p132
      %s135 = sadd.s32 %s134, 1
      %p138 = scmp.eq.s32.totalorder %s16, 1
      %p139 = scmp.ne.s32.totalorder %s134, %s136
      %p140 = scmp.eq.s32.totalorder %s16, 0
      %p141 = por %p139, %p140
      %p142 = scmp.ne.s32.totalorder %s134, %s136
      %p143 = scmp.eq.s32.totalorder %s21, 1
      %p144 = por %p142, %p143
      %p145 = scmp.ne.s32.totalorder %s136, %s137
      %p146 = scmp.eq.s32.totalorder %s21, 0
      %p147 = por %p145, %p146
      %p148 = scmp.ne.s32.totalorder %s136, %s137
      %p149 = scmp.eq.s32.totalorder %s22, 1
      %p150 = por %p148, %p149
      %p152 = scmp.ne.s32.totalorder %s137, %s151
      %p153 = scmp.eq.s32.totalorder %s22, 0
      %p154 = por %p152, %p153
      %s156 = sadd.s32 %s155, 1
      %p159 = scmp.eq.s32.totalorder %s16, 1
      %p160 = scmp.ne.s32.totalorder %s155, %s157
      %p161 = scmp.eq.s32.totalorder %s16, 0
      %p162 = por %p160, %p161
      %p163 = scmp.ne.s32.totalorder %s155, %s157
      %p164 = scmp.eq.s32.totalorder %s21, 1
      %p165 = por %p163, %p164
      %p166 = scmp.ne.s32.totalorder %s157, %s158
      %p167 = scmp.eq.s32.totalorder %s21, 0
      %p168 = por %p166, %p167
      %p169 = scmp.ne.s32.totalorder %s157, %s158
      %p170 = scmp.eq.s32.totalorder %s22, 1
      %p171 = por %p169, %p170
      %p173 = scmp.ne.s32.totalorder %s158, %s172
      %p174 = scmp.eq.s32.totalorder %s22, 0
      %p175 = por %p173, %p174
      %s176 = ssub.s32 %s16, %s23
      %p177 = scmp.eq.s32.totalorder %s176, 0
      %s179 = sadd.s32 %s178, 1
      %s180 = scalar_select %p177, %s178, %s179
      %p183 = pneg %p177
      %p184 = scmp.eq.s32.totalorder %s16, 1
      %p185 = por %p183, %p184
      %p186 = scmp.ne.s32.totalorder %s178, %s181
      %p187 = scmp.eq.s32.totalorder %s16, 0
      %p188 = por %p186, %p187
      %p189 = scmp.ne.s32.totalorder %s178, %s181
      %p190 = scmp.eq.s32.totalorder %s21, 1
      %p191 = por %p189, %p190
      %p192 = scmp.ne.s32.totalorder %s181, %s182
      %p193 = scmp.eq.s32.totalorder %s21, 0
      %p194 = por %p192, %p193
      %p195 = scmp.ne.s32.totalorder %s181, %s182
      %p196 = scmp.eq.s32.totalorder %s22, 1
      %p197 = por %p195, %p196
      %p199 = scmp.ne.s32.totalorder %s182, %s198
      %p200 = scmp.eq.s32.totalorder %s22, 0
      %p201 = por %p199, %p200
      %p202 = scmp.le.s32.totalorder 1, %s16
      %p203 = scmp.lt.s32.totalorder %s16, 3
      %p204 = pnand %p202, %p203
      %p205 = pneg %p204
      // Predicated region
      $region9: #{tpu_custom_call.1} parent=5 // pred_check
        _
      $region10: #{tpu_custom_call.1} parent=5 // pred_check_branch
        %207 = sbr.rel (%p204) target = $region12
      $region11: #{tpu_custom_call.1} parent=5 // pred_region
        %s208 = ssub.s32 %s16, 1
        // Predicated region
        $region13: #{tpu_custom_call.1} parent=11 // pred_check
          %p209 = pneg %p63
        $region14: #{tpu_custom_call.1} parent=11 // pred_check_branch
          %211 = sbr.rel (%p209) target = $region16
        $region15: #{tpu_custom_call.1} parent=11 // pred_region
          _
        $region16: #{tpu_custom_call.1} parent=11 // pred_fallthru
          _
        // Predicated region
        $region17: #{tpu_custom_call.1} parent=11 // pred_check
          %p212 = pneg %p84
        $region18: #{tpu_custom_call.1} parent=11 // pred_check_branch
          %214 = sbr.rel (%p212) target = $region20
        $region19: #{tpu_custom_call.1} parent=11 // pred_region
          _
        $region20: #{tpu_custom_call.1} parent=11 // pred_fallthru
          _
        // Predicated region
        $region21: #{tpu_custom_call.1} parent=11 // pred_check
          %p215 = pneg %p105
        $region22: #{tpu_custom_call.1} parent=11 // pred_check_branch
          %217 = sbr.rel (%p215) target = $region24
        $region23: #{tpu_custom_call.1} parent=11 // pred_region
          _
        $region24: #{tpu_custom_call.1} parent=11 // pred_fallthru
          _
        // Predicated region
        $region25: #{tpu_custom_call.1} parent=11 // pred_check
          %p218 = pneg %p126
        $region26: #{tpu_custom_call.1} parent=11 // pred_check_branch
          %220 = sbr.rel (%p218) target = $region28
        $region27: #{tpu_custom_call.1} parent=11 // pred_region
          _
        $region28: #{tpu_custom_call.1} parent=11 // pred_fallthru
          _
        // Predicated region
        $region29: #{tpu_custom_call.1} parent=11 // pred_check
          %p221 = pneg %p147
        $region30: #{tpu_custom_call.1} parent=11 // pred_check_branch
          %223 = sbr.rel (%p221) target = $region32
        $region31: #{tpu_custom_call.1} parent=11 // pred_region
          _
        $region32: #{tpu_custom_call.1} parent=11 // pred_fallthru
          _
        // Predicated region
        $region33: #{tpu_custom_call.1} parent=11 // pred_check
          %p224 = pneg %p168
        $region34: #{tpu_custom_call.1} parent=11 // pred_check_branch
          %226 = sbr.rel (%p224) target = $region36
        $region35: #{tpu_custom_call.1} parent=11 // pred_region
          _
        $region36: #{tpu_custom_call.1} parent=11 // pred_fallthru
          _
      $region12: #{tpu_custom_call.1} parent=5 // pred_fallthru
        _
      %p227 = scmp.lt.s32.totalorder %s16, 2
      // Predicated region
      $region37: #{tpu_custom_call.1} parent=5 // pred_check
        %p228 = pneg %p227
      $region38: #{tpu_custom_call.1} parent=5 // pred_check_branch
        %230 = sbr.rel (%p228) target = $region40
      $region39: #{tpu_custom_call.1} parent=5 // pred_region
        // Predicated region
        $region41: #{tpu_custom_call.1} parent=39 // pred_check
          %p231 = pneg %p36
        $region42: #{tpu_custom_call.1} parent=39 // pred_check_branch
          %233 = sbr.rel (%p231) target = $region44
        $region43: #{tpu_custom_call.1} parent=39 // pred_region
          %s234 = smul.u32 2, %s16
          %p235 = scmp.lt.s32.totalorder %s234, 3
          %s236 = scalar_select %p235, %s234, 3
          %s237 = smul.addr %s236, 32
          %s238 = smul.addr %s237, 8
          %s239 = scalar_lea.vmem %s0, %s238
          %s240 = smul.u32 2, %s16
        $region44: #{tpu_custom_call.1} parent=39 // pred_fallthru
          _
      $region40: #{tpu_custom_call.1} parent=5 // pred_fallthru
        _
      %p241 = scmp.le.s32.totalorder 1, %s16
      %p242 = scmp.lt.s32.totalorder %s16, 3
      %p243 = pnand %p241, %p242
      %p244 = pneg %p243
      // Predicated region
      $region45: #{tpu_custom_call.1} parent=5 // pred_check
        _
      $region46: #{tpu_custom_call.1} parent=5 // pred_check_branch
        %246 = sbr.rel (%p243) target = $region48
      $region47: #{tpu_custom_call.1} parent=5 // pred_region
        %s247 = ssub.s32 %s16, 1
        %s248 = smul.u32 2, %s21
        %p249 = scmp.lt.s32.totalorder %s248, 3
        %s250 = scalar_select %p249, %s248, 3
        %s251 = smul.addr %s250, 32
        %s252 = smul.addr %s251, 8
        %s253 = scalar_lea.vmem %s0, %s252
        %p254 = pneg %p42
        %p255 = pneg %p39
        %p256 = pneg %p63
        %p257 = pneg %p60
        %p258 = pneg %p84
        %p259 = pneg %p81
        %p260 = pneg %p105
        %p261 = pneg %p102
        %p262 = pneg %p126
        %p263 = pneg %p123
        %p264 = pneg %p147
        %p265 = pneg %p144
        %p266 = pneg %p168
        %p267 = pneg %p165
        %p268 = pneg %p194
        %p269 = pneg %p191
        %s270 = sand.u32 %s181, 1
        %s271 = scalar_lea.sflag [#allocation3], %s270
        %s272 = sand.u32 %s181, 1
        %s273 = smul.addr %s272, 512
        %s274 = scalar_lea.vmem [#allocation2], %s273
        %s275 = smul.u32 2, %s21
        %p276 = scmp.lt.s32.totalorder %s275, 3
        %s277 = scalar_select %p276, %s275, 3
        %s278 = smul.addr %s277, 32
        %s279 = smul.addr %s278, 8
        %s280 = scalar_lea.vmem %s0, %s279
        %s281 = smul.u32 2, %s21
        %s282 = smul.u32 64, %s21
        %v283 = vld [vmem:[%s280] sm:$0xff]
        %v284 = vld [vmem:[%s280 + $0x8] sm:$0xff]
        %v285 = vld [vmem:[%s280 + $0x10] sm:$0xff]
        %v286 = vld [vmem:[%s280 + $0x18] sm:$0xff]
        %v287 = vld [vmem:[%s280 + $0x20] sm:$0xff]
        %v288 = vld [vmem:[%s280 + $0x28] sm:$0xff]
        %v289 = vld [vmem:[%s280 + $0x30] sm:$0xff]
        %v290 = vld [vmem:[%s280 + $0x38] sm:$0xff]
        %v291 = vld [vmem:[%s280 + $0x40] sm:$0xff]
        %v292 = vld [vmem:[%s280 + $0x48] sm:$0xff]
        %v293 = vld [vmem:[%s280 + $0x50] sm:$0xff]
        %v294 = vld [vmem:[%s280 + $0x58] sm:$0xff]
        %v295 = vld [vmem:[%s280 + $0x60] sm:$0xff]
        %v296 = vld [vmem:[%s280 + $0x68] sm:$0xff]
        %v297 = vld [vmem:[%s280 + $0x70] sm:$0xff]
        %v298 = vld [vmem:[%s280 + $0x78] sm:$0xff]
        %v299 = vld [vmem:[%s280 + $0x80] sm:$0xff]
        %v300 = vld [vmem:[%s280 + $0x88] sm:$0xff]
        %v301 = vld [vmem:[%s280 + $0x90] sm:$0xff]
        %v302 = vld [vmem:[%s280 + $0x98] sm:$0xff]
        %v303 = vld [vmem:[%s280 + $0xa0] sm:$0xff]
        %v304 = vld [vmem:[%s280 + $0xa8] sm:$0xff]
        %v305 = vld [vmem:[%s280 + $0xb0] sm:$0xff]
        %v306 = vld [vmem:[%s280 + $0xb8] sm:$0xff]
        %v307 = vld [vmem:[%s280 + $0xc0] sm:$0xff]
        %v308 = vld [vmem:[%s280 + $0xc8] sm:$0xff]
        %v309 = vld [vmem:[%s280 + $0xd0] sm:$0xff]
        %v310 = vld [vmem:[%s280 + $0xd8] sm:$0xff]
        %v311 = vld [vmem:[%s280 + $0xe0] sm:$0xff]
        %v312 = vld [vmem:[%s280 + $0xe8] sm:$0xff]
        %v313 = vld [vmem:[%s280 + $0xf0] sm:$0xff]
        %v314 = vld [vmem:[%s280 + $0xf8] sm:$0xff]
        %v315 = vld [vmem:[%s280 + $0x100] sm:$0xff]
        %v316 = vld [vmem:[%s280 + $0x108] sm:$0xff]
        %v317 = vld [vmem:[%s280 + $0x110] sm:$0xff]
        %v318 = vld [vmem:[%s280 + $0x118] sm:$0xff]
        %v319 = vld [vmem:[%s280 + $0x120] sm:$0xff]
        %v320 = vld [vmem:[%s280 + $0x128] sm:$0xff]
        %v321 = vld [vmem:[%s280 + $0x130] sm:$0xff]
        %v322 = vld [vmem:[%s280 + $0x138] sm:$0xff]
        %v323 = vld [vmem:[%s280 + $0x140] sm:$0xff]
        %v324 = vld [vmem:[%s280 + $0x148] sm:$0xff]
        %v325 = vld [vmem:[%s280 + $0x150] sm:$0xff]
        %v326 = vld [vmem:[%s280 + $0x158] sm:$0xff]
        %v327 = vld [vmem:[%s280 + $0x160] sm:$0xff]
        %v328 = vld [vmem:[%s280 + $0x168] sm:$0xff]
        %v329 = vld [vmem:[%s280 + $0x170] sm:$0xff]
        %v330 = vld [vmem:[%s280 + $0x178] sm:$0xff]
        %v331 = vld [vmem:[%s280 + $0x180] sm:$0xff]
        %v332 = vld [vmem:[%s280 + $0x188] sm:$0xff]
        %v333 = vld [vmem:[%s280 + $0x190] sm:$0xff]
        %v334 = vld [vmem:[%s280 + $0x198] sm:$0xff]
        %v335 = vld [vmem:[%s280 + $0x1a0] sm:$0xff]
        %v336 = vld [vmem:[%s280 + $0x1a8] sm:$0xff]
        %v337 = vld [vmem:[%s280 + $0x1b0] sm:$0xff]
        %v338 = vld [vmem:[%s280 + $0x1b8] sm:$0xff]
        %v339 = vld [vmem:[%s280 + $0x1c0] sm:$0xff]
        %v340 = vld [vmem:[%s280 + $0x1c8] sm:$0xff]
        %v341 = vld [vmem:[%s280 + $0x1d0] sm:$0xff]
        %v342 = vld [vmem:[%s280 + $0x1d8] sm:$0xff]
        %v343 = vld [vmem:[%s280 + $0x1e0] sm:$0xff]
        %v344 = vld [vmem:[%s280 + $0x1e8] sm:$0xff]
        %v345 = vld [vmem:[%s280 + $0x1f0] sm:$0xff]
        %v346 = vld [vmem:[%s280 + $0x1f8] sm:$0xff]
        %vm347 = vcmp.ge.f32.partialorder %v283, 0.0
        %vm348 = vcmp.ge.f32.partialorder %v284, 0.0
        %vm349 = vcmp.ge.f32.partialorder %v285, 0.0
        %vm350 = vcmp.ge.f32.partialorder %v286, 0.0
        %vm351 = vcmp.ge.f32.partialorder %v287, 0.0
        %vm352 = vcmp.ge.f32.partialorder %v288, 0.0
        %vm353 = vcmp.ge.f32.partialorder %v289, 0.0
        %vm354 = vcmp.ge.f32.partialorder %v290, 0.0
        %vm355 = vcmp.ge.f32.partialorder %v291, 0.0
        %vm356 = vcmp.ge.f32.partialorder %v292, 0.0
        %vm357 = vcmp.ge.f32.partialorder %v293, 0.0
        %vm358 = vcmp.ge.f32.partialorder %v294, 0.0
        %vm359 = vcmp.ge.f32.partialorder %v295, 0.0
        %vm360 = vcmp.ge.f32.partialorder %v296, 0.0
        %vm361 = vcmp.ge.f32.partialorder %v297, 0.0
        %vm362 = vcmp.ge.f32.partialorder %v298, 0.0
        %vm363 = vcmp.ge.f32.partialorder %v299, 0.0
        %vm364 = vcmp.ge.f32.partialorder %v300, 0.0
        %vm365 = vcmp.ge.f32.partialorder %v301, 0.0
        %vm366 = vcmp.ge.f32.partialorder %v302, 0.0
        %vm367 = vcmp.ge.f32.partialorder %v303, 0.0
        %vm368 = vcmp.ge.f32.partialorder %v304, 0.0
        %vm369 = vcmp.ge.f32.partialorder %v305, 0.0
        %vm370 = vcmp.ge.f32.partialorder %v306, 0.0
        %vm371 = vcmp.ge.f32.partialorder %v307, 0.0
        %vm372 = vcmp.ge.f32.partialorder %v308, 0.0
        %vm373 = vcmp.ge.f32.partialorder %v309, 0.0
        %vm374 = vcmp.ge.f32.partialorder %v310, 0.0
        %vm375 = vcmp.ge.f32.partialorder %v311, 0.0
        %vm376 = vcmp.ge.f32.partialorder %v312, 0.0
        %vm377 = vcmp.ge.f32.partialorder %v313, 0.0
        %vm378 = vcmp.ge.f32.partialorder %v314, 0.0
        %vm379 = vcmp.ge.f32.partialorder %v315, 0.0
        %vm380 = vcmp.ge.f32.partialorder %v316, 0.0
        %vm381 = vcmp.ge.f32.partialorder %v317, 0.0
        %vm382 = vcmp.ge.f32.partialorder %v318, 0.0
        %vm383 = vcmp.ge.f32.partialorder %v319, 0.0
        %vm384 = vcmp.ge.f32.partialorder %v320, 0.0
        %vm385 = vcmp.ge.f32.partialorder %v321, 0.0
        %vm386 = vcmp.ge.f32.partialorder %v322, 0.0
        %vm387 = vcmp.ge.f32.partialorder %v323, 0.0
        %vm388 = vcmp.ge.f32.partialorder %v324, 0.0
        %vm389 = vcmp.ge.f32.partialorder %v325, 0.0
        %vm390 = vcmp.ge.f32.partialorder %v326, 0.0
        %vm391 = vcmp.ge.f32.partialorder %v327, 0.0
        %vm392 = vcmp.ge.f32.partialorder %v328, 0.0
        %vm393 = vcmp.ge.f32.partialorder %v329, 0.0
        %vm394 = vcmp.ge.f32.partialorder %v330, 0.0
        %vm395 = vcmp.ge.f32.partialorder %v331, 0.0
        %vm396 = vcmp.ge.f32.partialorder %v332, 0.0
        %vm397 = vcmp.ge.f32.partialorder %v333, 0.0
        %vm398 = vcmp.ge.f32.partialorder %v334, 0.0
        %vm399 = vcmp.ge.f32.partialorder %v335, 0.0
        %vm400 = vcmp.ge.f32.partialorder %v336, 0.0
        %vm401 = vcmp.ge.f32.partialorder %v337, 0.0
        %vm402 = vcmp.ge.f32.partialorder %v338, 0.0
        %vm403 = vcmp.ge.f32.partialorder %v339, 0.0
        %vm404 = vcmp.ge.f32.partialorder %v340, 0.0
        %vm405 = vcmp.ge.f32.partialorder %v341, 0.0
        %vm406 = vcmp.ge.f32.partialorder %v342, 0.0
        %vm407 = vcmp.ge.f32.partialorder %v343, 0.0
        %vm408 = vcmp.ge.f32.partialorder %v344, 0.0
        %vm409 = vcmp.ge.f32.partialorder %v345, 0.0
        %vm410 = vcmp.ge.f32.partialorder %v346, 0.0
        %v411 = vmul.f32 %v283, 0.2
        %v412 = vmul.f32 %v284, 0.2
        %v413 = vmul.f32 %v285, 0.2
        %v414 = vmul.f32 %v286, 0.2
        %v415 = vmul.f32 %v287, 0.2
        %v416 = vmul.f32 %v288, 0.2
        %v417 = vmul.f32 %v289, 0.2
        %v418 = vmul.f32 %v290, 0.2
        %v419 = vmul.f32 %v291, 0.2
        %v420 = vmul.f32 %v292, 0.2
        %v421 = vmul.f32 %v293, 0.2
        %v422 = vmul.f32 %v294, 0.2
        %v423 = vmul.f32 %v295, 0.2
        %v424 = vmul.f32 %v296, 0.2
        %v425 = vmul.f32 %v297, 0.2
        %v426 = vmul.f32 %v298, 0.2
        %v427 = vmul.f32 %v299, 0.2
        %v428 = vmul.f32 %v300, 0.2
        %v429 = vmul.f32 %v301, 0.2
        %v430 = vmul.f32 %v302, 0.2
        %v431 = vmul.f32 %v303, 0.2
        %v432 = vmul.f32 %v304, 0.2
        %v433 = vmul.f32 %v305, 0.2
        %v434 = vmul.f32 %v306, 0.2
        %v435 = vmul.f32 %v307, 0.2
        %v436 = vmul.f32 %v308, 0.2
        %v437 = vmul.f32 %v309, 0.2
        %v438 = vmul.f32 %v310, 0.2
        %v439 = vmul.f32 %v311, 0.2
        %v440 = vmul.f32 %v312, 0.2
        %v441 = vmul.f32 %v313, 0.2
        %v442 = vmul.f32 %v314, 0.2
        %v443 = vmul.f32 %v315, 0.2
        %v444 = vmul.f32 %v316, 0.2
        %v445 = vmul.f32 %v317, 0.2
        %v446 = vmul.f32 %v318, 0.2
        %v447 = vmul.f32 %v319, 0.2
        %v448 = vmul.f32 %v320, 0.2
        %v449 = vmul.f32 %v321, 0.2
        %v450 = vmul.f32 %v322, 0.2
        %v451 = vmul.f32 %v323, 0.2
        %v452 = vmul.f32 %v324, 0.2
        %v453 = vmul.f32 %v325, 0.2
        %v454 = vmul.f32 %v326, 0.2
        %v455 = vmul.f32 %v327, 0.2
        %v456 = vmul.f32 %v328, 0.2
        %v457 = vmul.f32 %v329, 0.2
        %v458 = vmul.f32 %v330, 0.2
        %v459 = vmul.f32 %v331, 0.2
        %v460 = vmul.f32 %v332, 0.2
        %v461 = vmul.f32 %v333, 0.2
        %v462 = vmul.f32 %v334, 0.2
        %v463 = vmul.f32 %v335, 0.2
        %v464 = vmul.f32 %v336, 0.2
        %v465 = vmul.f32 %v337, 0.2
        %v466 = vmul.f32 %v338, 0.2
        %v467 = vmul.f32 %v339, 0.2
        %v468 = vmul.f32 %v340, 0.2
        %v469 = vmul.f32 %v341, 0.2
        %v470 = vmul.f32 %v342, 0.2
        %v471 = vmul.f32 %v343, 0.2
        %v472 = vmul.f32 %v344, 0.2
        %v473 = vmul.f32 %v345, 0.2
        %v474 = vmul.f32 %v346, 0.2
        %v475 = vsel %vm347, %v283, %v411
        %v476 = vsel %vm348, %v284, %v412
        %v477 = vsel %vm349, %v285, %v413
        %v478 = vsel %vm350, %v286, %v414
        %v479 = vsel %vm351, %v287, %v415
        %v480 = vsel %vm352, %v288, %v416
        %v481 = vsel %vm353, %v289, %v417
        %v482 = vsel %vm354, %v290, %v418
        %v483 = vsel %vm355, %v291, %v419
        %v484 = vsel %vm356, %v292, %v420
        %v485 = vsel %vm357, %v293, %v421
        %v486 = vsel %vm358, %v294, %v422
        %v487 = vsel %vm359, %v295, %v423
        %v488 = vsel %vm360, %v296, %v424
        %v489 = vsel %vm361, %v297, %v425
        %v490 = vsel %vm362, %v298, %v426
        %v491 = vsel %vm363, %v299, %v427
        %v492 = vsel %vm364, %v300, %v428
        %v493 = vsel %vm365, %v301, %v429
        %v494 = vsel %vm366, %v302, %v430
        %v495 = vsel %vm367, %v303, %v431
        %v496 = vsel %vm368, %v304, %v432
        %v497 = vsel %vm369, %v305, %v433
        %v498 = vsel %vm370, %v306, %v434
        %v499 = vsel %vm371, %v307, %v435
        %v500 = vsel %vm372, %v308, %v436
        %v501 = vsel %vm373, %v309, %v437
        %v502 = vsel %vm374, %v310, %v438
        %v503 = vsel %vm375, %v311, %v439
        %v504 = vsel %vm376, %v312, %v440
        %v505 = vsel %vm377, %v313, %v441
        %v506 = vsel %vm378, %v314, %v442
        %v507 = vsel %vm379, %v315, %v443
        %v508 = vsel %vm380, %v316, %v444
        %v509 = vsel %vm381, %v317, %v445
        %v510 = vsel %vm382, %v318, %v446
        %v511 = vsel %vm383, %v319, %v447
        %v512 = vsel %vm384, %v320, %v448
        %v513 = vsel %vm385, %v321, %v449
        %v514 = vsel %vm386, %v322, %v450
        %v515 = vsel %vm387, %v323, %v451
        %v516 = vsel %vm388, %v324, %v452
        %v517 = vsel %vm389, %v325, %v453
        %v518 = vsel %vm390, %v326, %v454
        %v519 = vsel %vm391, %v327, %v455
        %v520 = vsel %vm392, %v328, %v456
        %v521 = vsel %vm393, %v329, %v457
        %v522 = vsel %vm394, %v330, %v458
        %v523 = vsel %vm395, %v331, %v459
        %v524 = vsel %vm396, %v332, %v460
        %v525 = vsel %vm397, %v333, %v461
        %v526 = vsel %vm398, %v334, %v462
        %v527 = vsel %vm399, %v335, %v463
        %v528 = vsel %vm400, %v336, %v464
        %v529 = vsel %vm401, %v337, %v465
        %v530 = vsel %vm402, %v338, %v466
        %v531 = vsel %vm403, %v339, %v467
        %v532 = vsel %vm404, %v340, %v468
        %v533 = vsel %vm405, %v341, %v469
        %v534 = vsel %vm406, %v342, %v470
        %v535 = vsel %vm407, %v343, %v471
        %v536 = vsel %vm408, %v344, %v472
        %v537 = vsel %vm409, %v345, %v473
        %v538 = vsel %vm410, %v346, %v474
        %v539 = vlaneseq
        %v540 = vshrl.u32 %v539, 7
        %v541 = vadd.s32 %v540, 8
        %v542 = vadd.s32 %v540, 16
        %vm543 = vcmp.ge.s32.totalorder %v540, 1
        %vm544 = vcmp.ge.s32.totalorder %v541, 1
        %vm545 = vcmp.ge.s32.totalorder %v542, 1
        %vm546 = vmand 0, %vm543
        %vm547 = vmand 0, %vm544
        %vm548 = vmand 0, %vm545
        %vm549 = vmand 1, %vm543
        %vm550 = vmand 1, %vm544
        %vm551 = vmand 1, %vm545
        %vm552 = vcmp.le.s32.totalorder %v540, 16
        %vm553 = vcmp.le.s32.totalorder %v541, 16
        %vm554 = vcmp.le.s32.totalorder %v542, 16
        %vm555 = vmand %vm546, %vm552
        %vm556 = vmand %vm547, %vm553
        %vm557 = vmand %vm548, %vm554
        %vm558 = vmand %vm549, %vm552
        %vm559 = vmand %vm550, %vm553
        %vm560 = vmand %vm551, %vm554
        %vm593 = vcmask 1041408
        %v594 = vrot.slane %v475, 6
        %v595 = vrot.slane %v476, 6
        %v596 = vsel %vm593, %v594, %v595
        %v597 = vrot.slane %v477, 6
        %v598 = vrot.slane %v478, 6
        %v599 = vsel %vm593, %v597, %v598
        %v600 = vrot.slane %v479, 6
        %v601 = vrot.slane %v480, 6
        %v602 = vsel %vm593, %v600, %v601
        %v603 = vrot.slane %v481, 6
        %v604 = vrot.slane %v482, 6
        %v605 = vsel %vm593, %v603, %v604
        %v606 = vrot.slane %v483, 6
        %v607 = vrot.slane %v484, 6
        %v608 = vsel %vm593, %v606, %v607
        %v609 = vrot.slane %v485, 6
        %v610 = vrot.slane %v486, 6
        %v611 = vsel %vm593, %v609, %v610
        %v612 = vrot.slane %v487, 6
        %v613 = vrot.slane %v488, 6
        %v614 = vsel %vm593, %v612, %v613
        %v615 = vrot.slane %v489, 6
        %v616 = vrot.slane %v490, 6
        %v617 = vsel %vm593, %v615, %v616
        %v618 = vrot.slane %v491, 6
        %v619 = vrot.slane %v492, 6
        %v620 = vsel %vm593, %v618, %v619
        %v621 = vrot.slane %v493, 6
        %v622 = vrot.slane %v494, 6
        %v623 = vsel %vm593, %v621, %v622
        %v624 = vrot.slane %v495, 6
        %v625 = vrot.slane %v496, 6
        %v626 = vsel %vm593, %v624, %v625
        %v627 = vrot.slane %v497, 6
        %v628 = vrot.slane %v498, 6
        %v629 = vsel %vm593, %v627, %v628
        %v630 = vrot.slane %v499, 6
        %v631 = vrot.slane %v500, 6
        %v632 = vsel %vm593, %v630, %v631
        %v633 = vrot.slane %v501, 6
        %v634 = vrot.slane %v502, 6
        %v635 = vsel %vm593, %v633, %v634
        %v636 = vrot.slane %v503, 6
        %v637 = vrot.slane %v504, 6
        %v638 = vsel %vm593, %v636, %v637
        %v639 = vrot.slane %v505, 6
        %v640 = vrot.slane %v506, 6
        %v641 = vsel %vm593, %v639, %v640
        %v690 = vsel %vm593, 0.0, %v594
        %v691 = vsel %vm593, 0.0, %v597
        %v692 = vsel %vm593, 0.0, %v600
        %v693 = vsel %vm593, 0.0, %v603
        %v694 = vsel %vm593, 0.0, %v606
        %v695 = vsel %vm593, 0.0, %v609
        %v696 = vsel %vm593, 0.0, %v612
        %v697 = vsel %vm593, 0.0, %v615
        %v698 = vsel %vm593, 0.0, %v618
        %v699 = vsel %vm593, 0.0, %v621
        %v700 = vsel %vm593, 0.0, %v624
        %v701 = vsel %vm593, 0.0, %v627
        %v702 = vsel %vm593, 0.0, %v630
        %v703 = vsel %vm593, 0.0, %v633
        %v704 = vsel %vm593, 0.0, %v636
        %v705 = vsel %vm593, 0.0, %v639
        %v706 = vsel %vm593, %v595, 0.0
        %v707 = vsel %vm593, %v598, 0.0
        %v708 = vsel %vm593, %v601, 0.0
        %v709 = vsel %vm593, %v604, 0.0
        %v710 = vsel %vm593, %v607, 0.0
        %v711 = vsel %vm593, %v610, 0.0
        %v712 = vsel %vm593, %v613, 0.0
        %v713 = vsel %vm593, %v616, 0.0
        %v714 = vsel %vm593, %v619, 0.0
        %v715 = vsel %vm593, %v622, 0.0
        %v716 = vsel %vm593, %v625, 0.0
        %v717 = vsel %vm593, %v628, 0.0
        %v718 = vsel %vm593, %v631, 0.0
        %v719 = vsel %vm593, %v634, 0.0
        %v720 = vsel %vm593, %v637, 0.0
        %v721 = vsel %vm593, %v640, 0.0
        %vm755 = vcmask 1046528
        %v756 = vrot.slane 0.0, 1
        %v757 = vsel %vm755, %v756, %v756
        %v758 = vrot.slane %v690, 1
        %v759 = vrot.slane %v596, 1
        %v760 = vsel %vm755, %v758, %v759
        %v761 = vrot.slane %v706, 1
        %v762 = vsel %vm755, %v759, %v761
        %v763 = vsel %vm755, %v761, %v756
        %v764 = vrot.slane %v691, 1
        %v765 = vrot.slane %v599, 1
        %v766 = vsel %vm755, %v764, %v765
        %v767 = vrot.slane %v707, 1
        %v768 = vsel %vm755, %v765, %v767
        %v769 = vsel %vm755, %v767, %v756
        %v770 = vrot.slane %v692, 1
        %v771 = vrot.slane %v602, 1
        %v772 = vsel %vm755, %v770, %v771
        %v773 = vrot.slane %v708, 1
        %v774 = vsel %vm755, %v771, %v773
        %v775 = vsel %vm755, %v773, %v756
        %v776 = vrot.slane %v693, 1
        %v777 = vrot.slane %v605, 1
        %v778 = vsel %vm755, %v776, %v777
        %v779 = vrot.slane %v709, 1
        %v780 = vsel %vm755, %v777, %v779
        %v781 = vsel %vm755, %v779, %v756
        %v782 = vrot.slane %v694, 1
        %v783 = vrot.slane %v608, 1
        %v784 = vsel %vm755, %v782, %v783
        %v785 = vrot.slane %v710, 1
        %v786 = vsel %vm755, %v783, %v785
        %v787 = vsel %vm755, %v785, %v756
        %v788 = vrot.slane %v695, 1
        %v789 = vrot.slane %v611, 1
        %v790 = vsel %vm755, %v788, %v789
        %v791 = vrot.slane %v711, 1
        %v792 = vsel %vm755, %v789, %v791
        %v793 = vsel %vm755, %v791, %v756
        %v794 = vrot.slane %v696, 1
        %v795 = vrot.slane %v614, 1
        %v796 = vsel %vm755, %v794, %v795
        %v797 = vrot.slane %v712, 1
        %v798 = vsel %vm755, %v795, %v797
        %v799 = vsel %vm755, %v797, %v756
        %v800 = vrot.slane %v697, 1
        %v801 = vrot.slane %v617, 1
        %v802 = vsel %vm755, %v800, %v801
        %v803 = vrot.slane %v713, 1
        %v804 = vsel %vm755, %v801, %v803
        %v805 = vsel %vm755, %v803, %v756
        %v806 = vrot.slane %v698, 1
        %v807 = vrot.slane %v620, 1
        %v808 = vsel %vm755, %v806, %v807
        %v809 = vrot.slane %v714, 1
        %v810 = vsel %vm755, %v807, %v809
        %v811 = vsel %vm755, %v809, %v756
        %v812 = vrot.slane %v699, 1
        %v813 = vrot.slane %v623, 1
        %v814 = vsel %vm755, %v812, %v813
        %v815 = vrot.slane %v715, 1
        %v816 = vsel %vm755, %v813, %v815
        %v817 = vsel %vm755, %v815, %v756
        %v818 = vrot.slane %v700, 1
        %v819 = vrot.slane %v626, 1
        %v820 = vsel %vm755, %v818, %v819
        %v821 = vrot.slane %v716, 1
        %v822 = vsel %vm755, %v819, %v821
        %v823 = vsel %vm755, %v821, %v756
        %v824 = vrot.slane %v701, 1
        %v825 = vrot.slane %v629, 1
        %v826 = vsel %vm755, %v824, %v825
        %v827 = vrot.slane %v717, 1
        %v828 = vsel %vm755, %v825, %v827
        %v829 = vsel %vm755, %v827, %v756
        %v830 = vrot.slane %v702, 1
        %v831 = vrot.slane %v632, 1
        %v832 = vsel %vm755, %v830, %v831
        %v833 = vrot.slane %v718, 1
        %v834 = vsel %vm755, %v831, %v833
        %v835 = vsel %vm755, %v833, %v756
        %v836 = vrot.slane %v703, 1
        %v837 = vrot.slane %v635, 1
        %v838 = vsel %vm755, %v836, %v837
        %v839 = vrot.slane %v719, 1
        %v840 = vsel %vm755, %v837, %v839
        %v841 = vsel %vm755, %v839, %v756
        %v842 = vrot.slane %v704, 1
        %v843 = vrot.slane %v638, 1
        %v844 = vsel %vm755, %v842, %v843
        %v845 = vrot.slane %v720, 1
        %v846 = vsel %vm755, %v843, %v845
        %v847 = vsel %vm755, %v845, %v756
        %v848 = vrot.slane %v705, 1
        %v849 = vrot.slane %v641, 1
        %v850 = vsel %vm755, %v848, %v849
        %v851 = vrot.slane %v721, 1
        %v852 = vsel %vm755, %v849, %v851
        %v853 = vsel %vm755, %v851, %v756
        %854 = vrot.lane.b32.xlu0 %v757, 4
        %v855 = vpop.permute.xlu0 %854
        %856 = vrot.lane.b32.xlu0 %v760, 4
        %v857 = vpop.permute.xlu0 %856
        %858 = vrot.lane.b32.xlu0 %v762, 4
        %v859 = vpop.permute.xlu0 %858
        %860 = vrot.lane.b32.xlu0 %v763, 4
        %v861 = vpop.permute.xlu0 %860
        %862 = vrot.lane.b32.xlu0 %v766, 4
        %v863 = vpop.permute.xlu0 %862
        %864 = vrot.lane.b32.xlu0 %v768, 4
        %v865 = vpop.permute.xlu0 %864
        %866 = vrot.lane.b32.xlu0 %v769, 4
        %v867 = vpop.permute.xlu0 %866
        %868 = vrot.lane.b32.xlu0 %v772, 4
        %v869 = vpop.permute.xlu0 %868
        %870 = vrot.lane.b32.xlu0 %v774, 4
        %v871 = vpop.permute.xlu0 %870
        %872 = vrot.lane.b32.xlu0 %v775, 4
        %v873 = vpop.permute.xlu0 %872
        %874 = vrot.lane.b32.xlu0 %v778, 4
        %v875 = vpop.permute.xlu0 %874
        %876 = vrot.lane.b32.xlu0 %v780, 4
        %v877 = vpop.permute.xlu0 %876
        %878 = vrot.lane.b32.xlu0 %v781, 4
        %v879 = vpop.permute.xlu0 %878
        %880 = vrot.lane.b32.xlu0 %v784, 4
        %v881 = vpop.permute.xlu0 %880
        %882 = vrot.lane.b32.xlu0 %v786, 4
        %v883 = vpop.permute.xlu0 %882
        %884 = vrot.lane.b32.xlu0 %v787, 4
        %v885 = vpop.permute.xlu0 %884
        %886 = vrot.lane.b32.xlu0 %v790, 4
        %v887 = vpop.permute.xlu0 %886
        %888 = vrot.lane.b32.xlu0 %v792, 4
        %v889 = vpop.permute.xlu0 %888
        %890 = vrot.lane.b32.xlu0 %v793, 4
        %v891 = vpop.permute.xlu0 %890
        %892 = vrot.lane.b32.xlu0 %v796, 4
        %v893 = vpop.permute.xlu0 %892
        %894 = vrot.lane.b32.xlu0 %v798, 4
        %v895 = vpop.permute.xlu0 %894
        %896 = vrot.lane.b32.xlu0 %v799, 4
        %v897 = vpop.permute.xlu0 %896
        %898 = vrot.lane.b32.xlu0 %v802, 4
        %v899 = vpop.permute.xlu0 %898
        %900 = vrot.lane.b32.xlu0 %v804, 4
        %v901 = vpop.permute.xlu0 %900
        %902 = vrot.lane.b32.xlu0 %v805, 4
        %v903 = vpop.permute.xlu0 %902
        %904 = vrot.lane.b32.xlu0 %v808, 4
        %v905 = vpop.permute.xlu0 %904
        %906 = vrot.lane.b32.xlu0 %v810, 4
        %v907 = vpop.permute.xlu0 %906
        %908 = vrot.lane.b32.xlu0 %v811, 4
        %v909 = vpop.permute.xlu0 %908
        %910 = vrot.lane.b32.xlu0 %v814, 4
        %v911 = vpop.permute.xlu0 %910
        %912 = vrot.lane.b32.xlu0 %v816, 4
        %v913 = vpop.permute.xlu0 %912
        %914 = vrot.lane.b32.xlu0 %v817, 4
        %v915 = vpop.permute.xlu0 %914
        %916 = vrot.lane.b32.xlu0 %v820, 4
        %v917 = vpop.permute.xlu0 %916
        %918 = vrot.lane.b32.xlu0 %v822, 4
        %v919 = vpop.permute.xlu0 %918
        %920 = vrot.lane.b32.xlu0 %v823, 4
        %v921 = vpop.permute.xlu0 %920
        %922 = vrot.lane.b32.xlu0 %v826, 4
        %v923 = vpop.permute.xlu0 %922
        %924 = vrot.lane.b32.xlu0 %v828, 4
        %v925 = vpop.permute.xlu0 %924
        %926 = vrot.lane.b32.xlu0 %v829, 4
        %v927 = vpop.permute.xlu0 %926
        %928 = vrot.lane.b32.xlu0 %v832, 4
        %v929 = vpop.permute.xlu0 %928
        %930 = vrot.lane.b32.xlu0 %v834, 4
        %v931 = vpop.permute.xlu0 %930
        %932 = vrot.lane.b32.xlu0 %v835, 4
        %v933 = vpop.permute.xlu0 %932
        %934 = vrot.lane.b32.xlu0 %v838, 4
        %v935 = vpop.permute.xlu0 %934
        %936 = vrot.lane.b32.xlu0 %v840, 4
        %v937 = vpop.permute.xlu0 %936
        %938 = vrot.lane.b32.xlu0 %v841, 4
        %v939 = vpop.permute.xlu0 %938
        %940 = vrot.lane.b32.xlu0 %v844, 4
        %v941 = vpop.permute.xlu0 %940
        %942 = vrot.lane.b32.xlu0 %v846, 4
        %v943 = vpop.permute.xlu0 %942
        %944 = vrot.lane.b32.xlu0 %v847, 4
        %v945 = vpop.permute.xlu0 %944
        %946 = vrot.lane.b32.xlu0 %v850, 4
        %v947 = vpop.permute.xlu0 %946
        %948 = vrot.lane.b32.xlu0 %v852, 4
        %v949 = vpop.permute.xlu0 %948
        %950 = vrot.lane.b32.xlu0 %v853, 4
        %v951 = vpop.permute.xlu0 %950
        %vm1001 = vcmask 1045504
        %v1002 = vrot.slane 0.0, 2
        %v1003 = vsel %vm1001, %v1002, %v1002
        %v1004 = vrot.slane %v690, 2
        %v1005 = vrot.slane %v596, 2
        %v1006 = vsel %vm1001, %v1004, %v1005
        %v1007 = vrot.slane %v706, 2
        %v1008 = vsel %vm1001, %v1005, %v1007
        %v1009 = vsel %vm1001, %v1007, %v1002
        %v1010 = vrot.slane %v691, 2
        %v1011 = vrot.slane %v599, 2
        %v1012 = vsel %vm1001, %v1010, %v1011
        %v1013 = vrot.slane %v707, 2
        %v1014 = vsel %vm1001, %v1011, %v1013
        %v1015 = vsel %vm1001, %v1013, %v1002
        %v1016 = vrot.slane %v692, 2
        %v1017 = vrot.slane %v602, 2
        %v1018 = vsel %vm1001, %v1016, %v1017
        %v1019 = vrot.slane %v708, 2
        %v1020 = vsel %vm1001, %v1017, %v1019
        %v1021 = vsel %vm1001, %v1019, %v1002
        %v1022 = vrot.slane %v693, 2
        %v1023 = vrot.slane %v605, 2
        %v1024 = vsel %vm1001, %v1022, %v1023
        %v1025 = vrot.slane %v709, 2
        %v1026 = vsel %vm1001, %v1023, %v1025
        %v1027 = vsel %vm1001, %v1025, %v1002
        %v1028 = vrot.slane %v694, 2
        %v1029 = vrot.slane %v608, 2
        %v1030 = vsel %vm1001, %v1028, %v1029
        %v1031 = vrot.slane %v710, 2
        %v1032 = vsel %vm1001, %v1029, %v1031
        %v1033 = vsel %vm1001, %v1031, %v1002
        %v1034 = vrot.slane %v695, 2
        %v1035 = vrot.slane %v611, 2
        %v1036 = vsel %vm1001, %v1034, %v1035
        %v1037 = vrot.slane %v711, 2
        %v1038 = vsel %vm1001, %v1035, %v1037
        %v1039 = vsel %vm1001, %v1037, %v1002
        %v1040 = vrot.slane %v696, 2
        %v1041 = vrot.slane %v614, 2
        %v1042 = vsel %vm1001, %v1040, %v1041
        %v1043 = vrot.slane %v712, 2
        %v1044 = vsel %vm1001, %v1041, %v1043
        %v1045 = vsel %vm1001, %v1043, %v1002
        %v1046 = vrot.slane %v697, 2
        %v1047 = vrot.slane %v617, 2
        %v1048 = vsel %vm1001, %v1046, %v1047
        %v1049 = vrot.slane %v713, 2
        %v1050 = vsel %vm1001, %v1047, %v1049
        %v1051 = vsel %vm1001, %v1049, %v1002
        %v1052 = vrot.slane %v698, 2
        %v1053 = vrot.slane %v620, 2
        %v1054 = vsel %vm1001, %v1052, %v1053
        %v1055 = vrot.slane %v714, 2
        %v1056 = vsel %vm1001, %v1053, %v1055
        %v1057 = vsel %vm1001, %v1055, %v1002
        %v1058 = vrot.slane %v699, 2
        %v1059 = vrot.slane %v623, 2
        %v1060 = vsel %vm1001, %v1058, %v1059
        %v1061 = vrot.slane %v715, 2
        %v1062 = vsel %vm1001, %v1059, %v1061
        %v1063 = vsel %vm1001, %v1061, %v1002
        %v1064 = vrot.slane %v700, 2
        %v1065 = vrot.slane %v626, 2
        %v1066 = vsel %vm1001, %v1064, %v1065
        %v1067 = vrot.slane %v716, 2
        %v1068 = vsel %vm1001, %v1065, %v1067
        %v1069 = vsel %vm1001, %v1067, %v1002
        %v1070 = vrot.slane %v701, 2
        %v1071 = vrot.slane %v629, 2
        %v1072 = vsel %vm1001, %v1070, %v1071
        %v1073 = vrot.slane %v717, 2
        %v1074 = vsel %vm1001, %v1071, %v1073
        %v1075 = vsel %vm1001, %v1073, %v1002
        %v1076 = vrot.slane %v702, 2
        %v1077 = vrot.slane %v632, 2
        %v1078 = vsel %vm1001, %v1076, %v1077
        %v1079 = vrot.slane %v718, 2
        %v1080 = vsel %vm1001, %v1077, %v1079
        %v1081 = vsel %vm1001, %v1079, %v1002
        %v1082 = vrot.slane %v703, 2
        %v1083 = vrot.slane %v635, 2
        %v1084 = vsel %vm1001, %v1082, %v1083
        %v1085 = vrot.slane %v719, 2
        %v1086 = vsel %vm1001, %v1083, %v1085
        %v1087 = vsel %vm1001, %v1085, %v1002
        %v1088 = vrot.slane %v704, 2
        %v1089 = vrot.slane %v638, 2
        %v1090 = vsel %vm1001, %v1088, %v1089
        %v1091 = vrot.slane %v720, 2
        %v1092 = vsel %vm1001, %v1089, %v1091
        %v1093 = vsel %vm1001, %v1091, %v1002
        %v1094 = vrot.slane %v705, 2
        %v1095 = vrot.slane %v641, 2
        %v1096 = vsel %vm1001, %v1094, %v1095
        %v1097 = vrot.slane %v721, 2
        %v1098 = vsel %vm1001, %v1095, %v1097
        %v1099 = vsel %vm1001, %v1097, %v1002
        %1100 = vrot.lane.b32.xlu0 %v1003, 8
        %v1101 = vpop.permute.xlu0 %1100
        %1102 = vrot.lane.b32.xlu0 %v1006, 8
        %v1103 = vpop.permute.xlu0 %1102
        %1104 = vrot.lane.b32.xlu0 %v1008, 8
        %v1105 = vpop.permute.xlu0 %1104
        %1106 = vrot.lane.b32.xlu0 %v1009, 8
        %v1107 = vpop.permute.xlu0 %1106
        %1108 = vrot.lane.b32.xlu0 %v1012, 8
        %v1109 = vpop.permute.xlu0 %1108
        %1110 = vrot.lane.b32.xlu0 %v1014, 8
        %v1111 = vpop.permute.xlu0 %1110
        %1112 = vrot.lane.b32.xlu0 %v1015, 8
        %v1113 = vpop.permute.xlu0 %1112
        %1114 = vrot.lane.b32.xlu0 %v1018, 8
        %v1115 = vpop.permute.xlu0 %1114
        %1116 = vrot.lane.b32.xlu0 %v1020, 8
        %v1117 = vpop.permute.xlu0 %1116
        %1118 = vrot.lane.b32.xlu0 %v1021, 8
        %v1119 = vpop.permute.xlu0 %1118
        %1120 = vrot.lane.b32.xlu0 %v1024, 8
        %v1121 = vpop.permute.xlu0 %1120
        %1122 = vrot.lane.b32.xlu0 %v1026, 8
        %v1123 = vpop.permute.xlu0 %1122
        %1124 = vrot.lane.b32.xlu0 %v1027, 8
        %v1125 = vpop.permute.xlu0 %1124
        %1126 = vrot.lane.b32.xlu0 %v1030, 8
        %v1127 = vpop.permute.xlu0 %1126
        %1128 = vrot.lane.b32.xlu0 %v1032, 8
        %v1129 = vpop.permute.xlu0 %1128
        %1130 = vrot.lane.b32.xlu0 %v1033, 8
        %v1131 = vpop.permute.xlu0 %1130
        %1132 = vrot.lane.b32.xlu0 %v1036, 8
        %v1133 = vpop.permute.xlu0 %1132
        %1134 = vrot.lane.b32.xlu0 %v1038, 8
        %v1135 = vpop.permute.xlu0 %1134
        %1136 = vrot.lane.b32.xlu0 %v1039, 8
        %v1137 = vpop.permute.xlu0 %1136
        %1138 = vrot.lane.b32.xlu0 %v1042, 8
        %v1139 = vpop.permute.xlu0 %1138
        %1140 = vrot.lane.b32.xlu0 %v1044, 8
        %v1141 = vpop.permute.xlu0 %1140
        %1142 = vrot.lane.b32.xlu0 %v1045, 8
        %v1143 = vpop.permute.xlu0 %1142
        %1144 = vrot.lane.b32.xlu0 %v1048, 8
        %v1145 = vpop.permute.xlu0 %1144
        %1146 = vrot.lane.b32.xlu0 %v1050, 8
        %v1147 = vpop.permute.xlu0 %1146
        %1148 = vrot.lane.b32.xlu0 %v1051, 8
        %v1149 = vpop.permute.xlu0 %1148
        %1150 = vrot.lane.b32.xlu0 %v1054, 8
        %v1151 = vpop.permute.xlu0 %1150
        %1152 = vrot.lane.b32.xlu0 %v1056, 8
        %v1153 = vpop.permute.xlu0 %1152
        %1154 = vrot.lane.b32.xlu0 %v1057, 8
        %v1155 = vpop.permute.xlu0 %1154
        %1156 = vrot.lane.b32.xlu0 %v1060, 8
        %v1157 = vpop.permute.xlu0 %1156
        %1158 = vrot.lane.b32.xlu0 %v1062, 8
        %v1159 = vpop.permute.xlu0 %1158
        %1160 = vrot.lane.b32.xlu0 %v1063, 8
        %v1161 = vpop.permute.xlu0 %1160
        %1162 = vrot.lane.b32.xlu0 %v1066, 8
        %v1163 = vpop.permute.xlu0 %1162
        %1164 = vrot.lane.b32.xlu0 %v1068, 8
        %v1165 = vpop.permute.xlu0 %1164
        %1166 = vrot.lane.b32.xlu0 %v1069, 8
        %v1167 = vpop.permute.xlu0 %1166
        %1168 = vrot.lane.b32.xlu0 %v1072, 8
        %v1169 = vpop.permute.xlu0 %1168
        %1170 = vrot.lane.b32.xlu0 %v1074, 8
        %v1171 = vpop.permute.xlu0 %1170
        %1172 = vrot.lane.b32.xlu0 %v1075, 8
        %v1173 = vpop.permute.xlu0 %1172
        %1174 = vrot.lane.b32.xlu0 %v1078, 8
        %v1175 = vpop.permute.xlu0 %1174
        %1176 = vrot.lane.b32.xlu0 %v1080, 8
        %v1177 = vpop.permute.xlu0 %1176
        %1178 = vrot.lane.b32.xlu0 %v1081, 8
        %v1179 = vpop.permute.xlu0 %1178
        %1180 = vrot.lane.b32.xlu0 %v1084, 8
        %v1181 = vpop.permute.xlu0 %1180
        %1182 = vrot.lane.b32.xlu0 %v1086, 8
        %v1183 = vpop.permute.xlu0 %1182
        %1184 = vrot.lane.b32.xlu0 %v1087, 8
        %v1185 = vpop.permute.xlu0 %1184
        %1186 = vrot.lane.b32.xlu0 %v1090, 8
        %v1187 = vpop.permute.xlu0 %1186
        %1188 = vrot.lane.b32.xlu0 %v1092, 8
        %v1189 = vpop.permute.xlu0 %1188
        %1190 = vrot.lane.b32.xlu0 %v1093, 8
        %v1191 = vpop.permute.xlu0 %1190
        %1192 = vrot.lane.b32.xlu0 %v1096, 8
        %v1193 = vpop.permute.xlu0 %1192
        %1194 = vrot.lane.b32.xlu0 %v1098, 8
        %v1195 = vpop.permute.xlu0 %1194
        %1196 = vrot.lane.b32.xlu0 %v1099, 8
        %v1197 = vpop.permute.xlu0 %1196
        %1247 = vrot.lane.b32.xlu0 0.0, 12
        %v1248 = vpop.permute.xlu0 %1247
        %1249 = vrot.lane.b32.xlu0 %v690, 12
        %v1250 = vpop.permute.xlu0 %1249
        %1251 = vrot.lane.b32.xlu0 %v596, 12
        %v1252 = vpop.permute.xlu0 %1251
        %1253 = vrot.lane.b32.xlu0 %v706, 12
        %v1254 = vpop.permute.xlu0 %1253
        %1255 = vrot.lane.b32.xlu0 %v691, 12
        %v1256 = vpop.permute.xlu0 %1255
        %1257 = vrot.lane.b32.xlu0 %v599, 12
        %v1258 = vpop.permute.xlu0 %1257
        %1259 = vrot.lane.b32.xlu0 %v707, 12
        %v1260 = vpop.permute.xlu0 %1259
        %1261 = vrot.lane.b32.xlu0 %v692, 12
        %v1262 = vpop.permute.xlu0 %1261
        %1263 = vrot.lane.b32.xlu0 %v602, 12
        %v1264 = vpop.permute.xlu0 %1263
        %1265 = vrot.lane.b32.xlu0 %v708, 12
        %v1266 = vpop.permute.xlu0 %1265
        %1267 = vrot.lane.b32.xlu0 %v693, 12
        %v1268 = vpop.permute.xlu0 %1267
        %1269 = vrot.lane.b32.xlu0 %v605, 12
        %v1270 = vpop.permute.xlu0 %1269
        %1271 = vrot.lane.b32.xlu0 %v709, 12
        %v1272 = vpop.permute.xlu0 %1271
        %1273 = vrot.lane.b32.xlu0 %v694, 12
        %v1274 = vpop.permute.xlu0 %1273
        %1275 = vrot.lane.b32.xlu0 %v608, 12
        %v1276 = vpop.permute.xlu0 %1275
        %1277 = vrot.lane.b32.xlu0 %v710, 12
        %v1278 = vpop.permute.xlu0 %1277
        %1279 = vrot.lane.b32.xlu0 %v695, 12
        %v1280 = vpop.permute.xlu0 %1279
        %1281 = vrot.lane.b32.xlu0 %v611, 12
        %v1282 = vpop.permute.xlu0 %1281
        %1283 = vrot.lane.b32.xlu0 %v711, 12
        %v1284 = vpop.permute.xlu0 %1283
        %1285 = vrot.lane.b32.xlu0 %v696, 12
        %v1286 = vpop.permute.xlu0 %1285
        %1287 = vrot.lane.b32.xlu0 %v614, 12
        %v1288 = vpop.permute.xlu0 %1287
        %1289 = vrot.lane.b32.xlu0 %v712, 12
        %v1290 = vpop.permute.xlu0 %1289
        %1291 = vrot.lane.b32.xlu0 %v697, 12
        %v1292 = vpop.permute.xlu0 %1291
        %1293 = vrot.lane.b32.xlu0 %v617, 12
        %v1294 = vpop.permute.xlu0 %1293
        %1295 = vrot.lane.b32.xlu0 %v713, 12
        %v1296 = vpop.permute.xlu0 %1295
        %1297 = vrot.lane.b32.xlu0 %v698, 12
        %v1298 = vpop.permute.xlu0 %1297
        %1299 = vrot.lane.b32.xlu0 %v620, 12
        %v1300 = vpop.permute.xlu0 %1299
        %1301 = vrot.lane.b32.xlu0 %v714, 12
        %v1302 = vpop.permute.xlu0 %1301
        %1303 = vrot.lane.b32.xlu0 %v699, 12
        %v1304 = vpop.permute.xlu0 %1303
        %1305 = vrot.lane.b32.xlu0 %v623, 12
        %v1306 = vpop.permute.xlu0 %1305
        %1307 = vrot.lane.b32.xlu0 %v715, 12
        %v1308 = vpop.permute.xlu0 %1307
        %1309 = vrot.lane.b32.xlu0 %v700, 12
        %v1310 = vpop.permute.xlu0 %1309
        %1311 = vrot.lane.b32.xlu0 %v626, 12
        %v1312 = vpop.permute.xlu0 %1311
        %1313 = vrot.lane.b32.xlu0 %v716, 12
        %v1314 = vpop.permute.xlu0 %1313
        %1315 = vrot.lane.b32.xlu0 %v701, 12
        %v1316 = vpop.permute.xlu0 %1315
        %1317 = vrot.lane.b32.xlu0 %v629, 12
        %v1318 = vpop.permute.xlu0 %1317
        %1319 = vrot.lane.b32.xlu0 %v717, 12
        %v1320 = vpop.permute.xlu0 %1319
        %1321 = vrot.lane.b32.xlu0 %v702, 12
        %v1322 = vpop.permute.xlu0 %1321
        %1323 = vrot.lane.b32.xlu0 %v632, 12
        %v1324 = vpop.permute.xlu0 %1323
        %1325 = vrot.lane.b32.xlu0 %v718, 12
        %v1326 = vpop.permute.xlu0 %1325
        %1327 = vrot.lane.b32.xlu0 %v703, 12
        %v1328 = vpop.permute.xlu0 %1327
        %1329 = vrot.lane.b32.xlu0 %v635, 12
        %v1330 = vpop.permute.xlu0 %1329
        %1331 = vrot.lane.b32.xlu0 %v719, 12
        %v1332 = vpop.permute.xlu0 %1331
        %1333 = vrot.lane.b32.xlu0 %v704, 12
        %v1334 = vpop.permute.xlu0 %1333
        %1335 = vrot.lane.b32.xlu0 %v638, 12
        %v1336 = vpop.permute.xlu0 %1335
        %1337 = vrot.lane.b32.xlu0 %v720, 12
        %v1338 = vpop.permute.xlu0 %1337
        %1339 = vrot.lane.b32.xlu0 %v705, 12
        %v1340 = vpop.permute.xlu0 %1339
        %1341 = vrot.lane.b32.xlu0 %v641, 12
        %v1342 = vpop.permute.xlu0 %1341
        %1343 = vrot.lane.b32.xlu0 %v721, 12
        %v1344 = vpop.permute.xlu0 %1343
        %1394 = vrot.lane.b32.xlu0 %v757, 16
        %v1395 = vpop.permute.xlu0 %1394
        %1396 = vrot.lane.b32.xlu0 %v760, 16
        %v1397 = vpop.permute.xlu0 %1396
        %1398 = vrot.lane.b32.xlu0 %v762, 16
        %v1399 = vpop.permute.xlu0 %1398
        %1400 = vrot.lane.b32.xlu0 %v763, 16
        %v1401 = vpop.permute.xlu0 %1400
        %1402 = vrot.lane.b32.xlu0 %v766, 16
        %v1403 = vpop.permute.xlu0 %1402
        %1404 = vrot.lane.b32.xlu0 %v768, 16
        %v1405 = vpop.permute.xlu0 %1404
        %1406 = vrot.lane.b32.xlu0 %v769, 16
        %v1407 = vpop.permute.xlu0 %1406
        %1408 = vrot.lane.b32.xlu0 %v772, 16
        %v1409 = vpop.permute.xlu0 %1408
        %1410 = vrot.lane.b32.xlu0 %v774, 16
        %v1411 = vpop.permute.xlu0 %1410
        %1412 = vrot.lane.b32.xlu0 %v775, 16
        %v1413 = vpop.permute.xlu0 %1412
        %1414 = vrot.lane.b32.xlu0 %v778, 16
        %v1415 = vpop.permute.xlu0 %1414
        %1416 = vrot.lane.b32.xlu0 %v780, 16
        %v1417 = vpop.permute.xlu0 %1416
        %1418 = vrot.lane.b32.xlu0 %v781, 16
        %v1419 = vpop.permute.xlu0 %1418
        %1420 = vrot.lane.b32.xlu0 %v784, 16
        %v1421 = vpop.permute.xlu0 %1420
        %1422 = vrot.lane.b32.xlu0 %v786, 16
        %v1423 = vpop.permute.xlu0 %1422
        %1424 = vrot.lane.b32.xlu0 %v787, 16
        %v1425 = vpop.permute.xlu0 %1424
        %1426 = vrot.lane.b32.xlu0 %v790, 16
        %v1427 = vpop.permute.xlu0 %1426
        %1428 = vrot.lane.b32.xlu0 %v792, 16
        %v1429 = vpop.permute.xlu0 %1428
        %1430 = vrot.lane.b32.xlu0 %v793, 16
        %v1431 = vpop.permute.xlu0 %1430
        %1432 = vrot.lane.b32.xlu0 %v796, 16
        %v1433 = vpop.permute.xlu0 %1432
        %1434 = vrot.lane.b32.xlu0 %v798, 16
        %v1435 = vpop.permute.xlu0 %1434
        %1436 = vrot.lane.b32.xlu0 %v799, 16
        %v1437 = vpop.permute.xlu0 %1436
        %1438 = vrot.lane.b32.xlu0 %v802, 16
        %v1439 = vpop.permute.xlu0 %1438
        %1440 = vrot.lane.b32.xlu0 %v804, 16
        %v1441 = vpop.permute.xlu0 %1440
        %1442 = vrot.lane.b32.xlu0 %v805, 16
        %v1443 = vpop.permute.xlu0 %1442
        %1444 = vrot.lane.b32.xlu0 %v808, 16
        %v1445 = vpop.permute.xlu0 %1444
        %1446 = vrot.lane.b32.xlu0 %v810, 16
        %v1447 = vpop.permute.xlu0 %1446
        %1448 = vrot.lane.b32.xlu0 %v811, 16
        %v1449 = vpop.permute.xlu0 %1448
        %1450 = vrot.lane.b32.xlu0 %v814, 16
        %v1451 = vpop.permute.xlu0 %1450
        %1452 = vrot.lane.b32.xlu0 %v816, 16
        %v1453 = vpop.permute.xlu0 %1452
        %1454 = vrot.lane.b32.xlu0 %v817, 16
        %v1455 = vpop.permute.xlu0 %1454
        %1456 = vrot.lane.b32.xlu0 %v820, 16
        %v1457 = vpop.permute.xlu0 %1456
        %1458 = vrot.lane.b32.xlu0 %v822, 16
        %v1459 = vpop.permute.xlu0 %1458
        %1460 = vrot.lane.b32.xlu0 %v823, 16
        %v1461 = vpop.permute.xlu0 %1460
        %1462 = vrot.lane.b32.xlu0 %v826, 16
        %v1463 = vpop.permute.xlu0 %1462
        %1464 = vrot.lane.b32.xlu0 %v828, 16
        %v1465 = vpop.permute.xlu0 %1464
        %1466 = vrot.lane.b32.xlu0 %v829, 16
        %v1467 = vpop.permute.xlu0 %1466
        %1468 = vrot.lane.b32.xlu0 %v832, 16
        %v1469 = vpop.permute.xlu0 %1468
        %1470 = vrot.lane.b32.xlu0 %v834, 16
        %v1471 = vpop.permute.xlu0 %1470
        %1472 = vrot.lane.b32.xlu0 %v835, 16
        %v1473 = vpop.permute.xlu0 %1472
        %1474 = vrot.lane.b32.xlu0 %v838, 16
        %v1475 = vpop.permute.xlu0 %1474
        %1476 = vrot.lane.b32.xlu0 %v840, 16
        %v1477 = vpop.permute.xlu0 %1476
        %1478 = vrot.lane.b32.xlu0 %v841, 16
        %v1479 = vpop.permute.xlu0 %1478
        %1480 = vrot.lane.b32.xlu0 %v844, 16
        %v1481 = vpop.permute.xlu0 %1480
        %1482 = vrot.lane.b32.xlu0 %v846, 16
        %v1483 = vpop.permute.xlu0 %1482
        %1484 = vrot.lane.b32.xlu0 %v847, 16
        %v1485 = vpop.permute.xlu0 %1484
        %1486 = vrot.lane.b32.xlu0 %v850, 16
        %v1487 = vpop.permute.xlu0 %1486
        %1488 = vrot.lane.b32.xlu0 %v852, 16
        %v1489 = vpop.permute.xlu0 %1488
        %1490 = vrot.lane.b32.xlu0 %v853, 16
        %v1491 = vpop.permute.xlu0 %1490
        %1541 = vrot.lane.b32.xlu0 %v1003, 20
        %v1542 = vpop.permute.xlu0 %1541
        %1543 = vrot.lane.b32.xlu0 %v1006, 20
        %v1544 = vpop.permute.xlu0 %1543
        %1545 = vrot.lane.b32.xlu0 %v1008, 20
        %v1546 = vpop.permute.xlu0 %1545
        %1547 = vrot.lane.b32.xlu0 %v1009, 20
        %v1548 = vpop.permute.xlu0 %1547
        %1549 = vrot.lane.b32.xlu0 %v1012, 20
        %v1550 = vpop.permute.xlu0 %1549
        %1551 = vrot.lane.b32.xlu0 %v1014, 20
        %v1552 = vpop.permute.xlu0 %1551
        %1553 = vrot.lane.b32.xlu0 %v1015, 20
        %v1554 = vpop.permute.xlu0 %1553
        %1555 = vrot.lane.b32.xlu0 %v1018, 20
        %v1556 = vpop.permute.xlu0 %1555
        %1557 = vrot.lane.b32.xlu0 %v1020, 20
        %v1558 = vpop.permute.xlu0 %1557
        %1559 = vrot.lane.b32.xlu0 %v1021, 20
        %v1560 = vpop.permute.xlu0 %1559
        %1561 = vrot.lane.b32.xlu0 %v1024, 20
        %v1562 = vpop.permute.xlu0 %1561
        %1563 = vrot.lane.b32.xlu0 %v1026, 20
        %v1564 = vpop.permute.xlu0 %1563
        %1565 = vrot.lane.b32.xlu0 %v1027, 20
        %v1566 = vpop.permute.xlu0 %1565
        %1567 = vrot.lane.b32.xlu0 %v1030, 20
        %v1568 = vpop.permute.xlu0 %1567
        %1569 = vrot.lane.b32.xlu0 %v1032, 20
        %v1570 = vpop.permute.xlu0 %1569
        %1571 = vrot.lane.b32.xlu0 %v1033, 20
        %v1572 = vpop.permute.xlu0 %1571
        %1573 = vrot.lane.b32.xlu0 %v1036, 20
        %v1574 = vpop.permute.xlu0 %1573
        %1575 = vrot.lane.b32.xlu0 %v1038, 20
        %v1576 = vpop.permute.xlu0 %1575
        %1577 = vrot.lane.b32.xlu0 %v1039, 20
        %v1578 = vpop.permute.xlu0 %1577
        %1579 = vrot.lane.b32.xlu0 %v1042, 20
        %v1580 = vpop.permute.xlu0 %1579
        %1581 = vrot.lane.b32.xlu0 %v1044, 20
        %v1582 = vpop.permute.xlu0 %1581
        %1583 = vrot.lane.b32.xlu0 %v1045, 20
        %v1584 = vpop.permute.xlu0 %1583
        %1585 = vrot.lane.b32.xlu0 %v1048, 20
        %v1586 = vpop.permute.xlu0 %1585
        %1587 = vrot.lane.b32.xlu0 %v1050, 20
        %v1588 = vpop.permute.xlu0 %1587
        %1589 = vrot.lane.b32.xlu0 %v1051, 20
        %v1590 = vpop.permute.xlu0 %1589
        %1591 = vrot.lane.b32.xlu0 %v1054, 20
        %v1592 = vpop.permute.xlu0 %1591
        %1593 = vrot.lane.b32.xlu0 %v1056, 20
        %v1594 = vpop.permute.xlu0 %1593
        %1595 = vrot.lane.b32.xlu0 %v1057, 20
        %v1596 = vpop.permute.xlu0 %1595
        %1597 = vrot.lane.b32.xlu0 %v1060, 20
        %v1598 = vpop.permute.xlu0 %1597
        %1599 = vrot.lane.b32.xlu0 %v1062, 20
        %v1600 = vpop.permute.xlu0 %1599
        %1601 = vrot.lane.b32.xlu0 %v1063, 20
        %v1602 = vpop.permute.xlu0 %1601
        %1603 = vrot.lane.b32.xlu0 %v1066, 20
        %v1604 = vpop.permute.xlu0 %1603
        %1605 = vrot.lane.b32.xlu0 %v1068, 20
        %v1606 = vpop.permute.xlu0 %1605
        %1607 = vrot.lane.b32.xlu0 %v1069, 20
        %v1608 = vpop.permute.xlu0 %1607
        %1609 = vrot.lane.b32.xlu0 %v1072, 20
        %v1610 = vpop.permute.xlu0 %1609
        %1611 = vrot.lane.b32.xlu0 %v1074, 20
        %v1612 = vpop.permute.xlu0 %1611
        %1613 = vrot.lane.b32.xlu0 %v1075, 20
        %v1614 = vpop.permute.xlu0 %1613
        %1615 = vrot.lane.b32.xlu0 %v1078, 20
        %v1616 = vpop.permute.xlu0 %1615
        %1617 = vrot.lane.b32.xlu0 %v1080, 20
        %v1618 = vpop.permute.xlu0 %1617
        %1619 = vrot.lane.b32.xlu0 %v1081, 20
        %v1620 = vpop.permute.xlu0 %1619
        %1621 = vrot.lane.b32.xlu0 %v1084, 20
        %v1622 = vpop.permute.xlu0 %1621
        %1623 = vrot.lane.b32.xlu0 %v1086, 20
        %v1624 = vpop.permute.xlu0 %1623
        %1625 = vrot.lane.b32.xlu0 %v1087, 20
        %v1626 = vpop.permute.xlu0 %1625
        %1627 = vrot.lane.b32.xlu0 %v1090, 20
        %v1628 = vpop.permute.xlu0 %1627
        %1629 = vrot.lane.b32.xlu0 %v1092, 20
        %v1630 = vpop.permute.xlu0 %1629
        %1631 = vrot.lane.b32.xlu0 %v1093, 20
        %v1632 = vpop.permute.xlu0 %1631
        %1633 = vrot.lane.b32.xlu0 %v1096, 20
        %v1634 = vpop.permute.xlu0 %1633
        %1635 = vrot.lane.b32.xlu0 %v1098, 20
        %v1636 = vpop.permute.xlu0 %1635
        %1637 = vrot.lane.b32.xlu0 %v1099, 20
        %v1638 = vpop.permute.xlu0 %1637
        %1688 = vrot.lane.b32.xlu0 %v690, 24
        %v1689 = vpop.permute.xlu0 %1688
        %1690 = vrot.lane.b32.xlu0 %v596, 24
        %v1691 = vpop.permute.xlu0 %1690
        %1692 = vrot.lane.b32.xlu0 %v706, 24
        %v1693 = vpop.permute.xlu0 %1692
        %1694 = vrot.lane.b32.xlu0 %v691, 24
        %v1695 = vpop.permute.xlu0 %1694
        %1696 = vrot.lane.b32.xlu0 %v599, 24
        %v1697 = vpop.permute.xlu0 %1696
        %1698 = vrot.lane.b32.xlu0 %v707, 24
        %v1699 = vpop.permute.xlu0 %1698
        %1700 = vrot.lane.b32.xlu0 %v692, 24
        %v1701 = vpop.permute.xlu0 %1700
        %1702 = vrot.lane.b32.xlu0 %v602, 24
        %v1703 = vpop.permute.xlu0 %1702
        %1704 = vrot.lane.b32.xlu0 %v708, 24
        %v1705 = vpop.permute.xlu0 %1704
        %1706 = vrot.lane.b32.xlu0 %v693, 24
        %v1707 = vpop.permute.xlu0 %1706
        %1708 = vrot.lane.b32.xlu0 %v605, 24
        %v1709 = vpop.permute.xlu0 %1708
        %1710 = vrot.lane.b32.xlu0 %v709, 24
        %v1711 = vpop.permute.xlu0 %1710
        %1712 = vrot.lane.b32.xlu0 %v694, 24
        %v1713 = vpop.permute.xlu0 %1712
        %1714 = vrot.lane.b32.xlu0 %v608, 24
        %v1715 = vpop.permute.xlu0 %1714
        %1716 = vrot.lane.b32.xlu0 %v710, 24
        %v1717 = vpop.permute.xlu0 %1716
        %1718 = vrot.lane.b32.xlu0 %v695, 24
        %v1719 = vpop.permute.xlu0 %1718
        %1720 = vrot.lane.b32.xlu0 %v611, 24
        %v1721 = vpop.permute.xlu0 %1720
        %1722 = vrot.lane.b32.xlu0 %v711, 24
        %v1723 = vpop.permute.xlu0 %1722
        %1724 = vrot.lane.b32.xlu0 %v696, 24
        %v1725 = vpop.permute.xlu0 %1724
        %1726 = vrot.lane.b32.xlu0 %v614, 24
        %v1727 = vpop.permute.xlu0 %1726
        %1728 = vrot.lane.b32.xlu0 %v712, 24
        %v1729 = vpop.permute.xlu0 %1728
        %1730 = vrot.lane.b32.xlu0 %v697, 24
        %v1731 = vpop.permute.xlu0 %1730
        %1732 = vrot.lane.b32.xlu0 %v617, 24
        %v1733 = vpop.permute.xlu0 %1732
        %1734 = vrot.lane.b32.xlu0 %v713, 24
        %v1735 = vpop.permute.xlu0 %1734
        %1736 = vrot.lane.b32.xlu0 %v698, 24
        %v1737 = vpop.permute.xlu0 %1736
        %1738 = vrot.lane.b32.xlu0 %v620, 24
        %v1739 = vpop.permute.xlu0 %1738
        %1740 = vrot.lane.b32.xlu0 %v714, 24
        %v1741 = vpop.permute.xlu0 %1740
        %1742 = vrot.lane.b32.xlu0 %v699, 24
        %v1743 = vpop.permute.xlu0 %1742
        %1744 = vrot.lane.b32.xlu0 %v623, 24
        %v1745 = vpop.permute.xlu0 %1744
        %1746 = vrot.lane.b32.xlu0 %v715, 24
        %v1747 = vpop.permute.xlu0 %1746
        %1748 = vrot.lane.b32.xlu0 %v700, 24
        %v1749 = vpop.permute.xlu0 %1748
        %1750 = vrot.lane.b32.xlu0 %v626, 24
        %v1751 = vpop.permute.xlu0 %1750
        %1752 = vrot.lane.b32.xlu0 %v716, 24
        %v1753 = vpop.permute.xlu0 %1752
        %1754 = vrot.lane.b32.xlu0 %v701, 24
        %v1755 = vpop.permute.xlu0 %1754
        %1756 = vrot.lane.b32.xlu0 %v629, 24
        %v1757 = vpop.permute.xlu0 %1756
        %1758 = vrot.lane.b32.xlu0 %v717, 24
        %v1759 = vpop.permute.xlu0 %1758
        %1760 = vrot.lane.b32.xlu0 %v702, 24
        %v1761 = vpop.permute.xlu0 %1760
        %1762 = vrot.lane.b32.xlu0 %v632, 24
        %v1763 = vpop.permute.xlu0 %1762
        %1764 = vrot.lane.b32.xlu0 %v718, 24
        %v1765 = vpop.permute.xlu0 %1764
        %1766 = vrot.lane.b32.xlu0 %v703, 24
        %v1767 = vpop.permute.xlu0 %1766
        %1768 = vrot.lane.b32.xlu0 %v635, 24
        %v1769 = vpop.permute.xlu0 %1768
        %1770 = vrot.lane.b32.xlu0 %v719, 24
        %v1771 = vpop.permute.xlu0 %1770
        %1772 = vrot.lane.b32.xlu0 %v704, 24
        %v1773 = vpop.permute.xlu0 %1772
        %1774 = vrot.lane.b32.xlu0 %v638, 24
        %v1775 = vpop.permute.xlu0 %1774
        %1776 = vrot.lane.b32.xlu0 %v720, 24
        %v1777 = vpop.permute.xlu0 %1776
        %1778 = vrot.lane.b32.xlu0 %v705, 24
        %v1779 = vpop.permute.xlu0 %1778
        %1780 = vrot.lane.b32.xlu0 %v641, 24
        %v1781 = vpop.permute.xlu0 %1780
        %1782 = vrot.lane.b32.xlu0 %v721, 24
        %v1783 = vpop.permute.xlu0 %1782
        %1784 = vrot.lane.b32.xlu0 0.0, 24
        %v1785 = vpop.permute.xlu0 %1784
        %1835 = vrot.lane.b32.xlu0 %v760, 28
        %v1836 = vpop.permute.xlu0 %1835
        %1837 = vrot.lane.b32.xlu0 %v762, 28
        %v1838 = vpop.permute.xlu0 %1837
        %1839 = vrot.lane.b32.xlu0 %v763, 28
        %v1840 = vpop.permute.xlu0 %1839
        %1841 = vrot.lane.b32.xlu0 %v766, 28
        %v1842 = vpop.permute.xlu0 %1841
        %1843 = vrot.lane.b32.xlu0 %v768, 28
        %v1844 = vpop.permute.xlu0 %1843
        %1845 = vrot.lane.b32.xlu0 %v769, 28
        %v1846 = vpop.permute.xlu0 %1845
        %1847 = vrot.lane.b32.xlu0 %v772, 28
        %v1848 = vpop.permute.xlu0 %1847
        %1849 = vrot.lane.b32.xlu0 %v774, 28
        %v1850 = vpop.permute.xlu0 %1849
        %1851 = vrot.lane.b32.xlu0 %v775, 28
        %v1852 = vpop.permute.xlu0 %1851
        %1853 = vrot.lane.b32.xlu0 %v778, 28
        %v1854 = vpop.permute.xlu0 %1853
        %1855 = vrot.lane.b32.xlu0 %v780, 28
        %v1856 = vpop.permute.xlu0 %1855
        %1857 = vrot.lane.b32.xlu0 %v781, 28
        %v1858 = vpop.permute.xlu0 %1857
        %1859 = vrot.lane.b32.xlu0 %v784, 28
        %v1860 = vpop.permute.xlu0 %1859
        %1861 = vrot.lane.b32.xlu0 %v786, 28
        %v1862 = vpop.permute.xlu0 %1861
        %1863 = vrot.lane.b32.xlu0 %v787, 28
        %v1864 = vpop.permute.xlu0 %1863
        %1865 = vrot.lane.b32.xlu0 %v790, 28
        %v1866 = vpop.permute.xlu0 %1865
        %1867 = vrot.lane.b32.xlu0 %v792, 28
        %v1868 = vpop.permute.xlu0 %1867
        %1869 = vrot.lane.b32.xlu0 %v793, 28
        %v1870 = vpop.permute.xlu0 %1869
        %1871 = vrot.lane.b32.xlu0 %v796, 28
        %v1872 = vpop.permute.xlu0 %1871
        %1873 = vrot.lane.b32.xlu0 %v798, 28
        %v1874 = vpop.permute.xlu0 %1873
        %1875 = vrot.lane.b32.xlu0 %v799, 28
        %v1876 = vpop.permute.xlu0 %1875
        %1877 = vrot.lane.b32.xlu0 %v802, 28
        %v1878 = vpop.permute.xlu0 %1877
        %1879 = vrot.lane.b32.xlu0 %v804, 28
        %v1880 = vpop.permute.xlu0 %1879
        %1881 = vrot.lane.b32.xlu0 %v805, 28
        %v1882 = vpop.permute.xlu0 %1881
        %1883 = vrot.lane.b32.xlu0 %v808, 28
        %v1884 = vpop.permute.xlu0 %1883
        %1885 = vrot.lane.b32.xlu0 %v810, 28
        %v1886 = vpop.permute.xlu0 %1885
        %1887 = vrot.lane.b32.xlu0 %v811, 28
        %v1888 = vpop.permute.xlu0 %1887
        %1889 = vrot.lane.b32.xlu0 %v814, 28
        %v1890 = vpop.permute.xlu0 %1889
        %1891 = vrot.lane.b32.xlu0 %v816, 28
        %v1892 = vpop.permute.xlu0 %1891
        %1893 = vrot.lane.b32.xlu0 %v817, 28
        %v1894 = vpop.permute.xlu0 %1893
        %1895 = vrot.lane.b32.xlu0 %v820, 28
        %v1896 = vpop.permute.xlu0 %1895
        %1897 = vrot.lane.b32.xlu0 %v822, 28
        %v1898 = vpop.permute.xlu0 %1897
        %1899 = vrot.lane.b32.xlu0 %v823, 28
        %v1900 = vpop.permute.xlu0 %1899
        %1901 = vrot.lane.b32.xlu0 %v826, 28
        %v1902 = vpop.permute.xlu0 %1901
        %1903 = vrot.lane.b32.xlu0 %v828, 28
        %v1904 = vpop.permute.xlu0 %1903
        %1905 = vrot.lane.b32.xlu0 %v829, 28
        %v1906 = vpop.permute.xlu0 %1905
        %1907 = vrot.lane.b32.xlu0 %v832, 28
        %v1908 = vpop.permute.xlu0 %1907
        %1909 = vrot.lane.b32.xlu0 %v834, 28
        %v1910 = vpop.permute.xlu0 %1909
        %1911 = vrot.lane.b32.xlu0 %v835, 28
        %v1912 = vpop.permute.xlu0 %1911
        %1913 = vrot.lane.b32.xlu0 %v838, 28
        %v1914 = vpop.permute.xlu0 %1913
        %1915 = vrot.lane.b32.xlu0 %v840, 28
        %v1916 = vpop.permute.xlu0 %1915
        %1917 = vrot.lane.b32.xlu0 %v841, 28
        %v1918 = vpop.permute.xlu0 %1917
        %1919 = vrot.lane.b32.xlu0 %v844, 28
        %v1920 = vpop.permute.xlu0 %1919
        %1921 = vrot.lane.b32.xlu0 %v846, 28
        %v1922 = vpop.permute.xlu0 %1921
        %1923 = vrot.lane.b32.xlu0 %v847, 28
        %v1924 = vpop.permute.xlu0 %1923
        %1925 = vrot.lane.b32.xlu0 %v850, 28
        %v1926 = vpop.permute.xlu0 %1925
        %1927 = vrot.lane.b32.xlu0 %v852, 28
        %v1928 = vpop.permute.xlu0 %1927
        %1929 = vrot.lane.b32.xlu0 %v853, 28
        %v1930 = vpop.permute.xlu0 %1929
        %1931 = vrot.lane.b32.xlu0 %v757, 28
        %v1932 = vpop.permute.xlu0 %1931
        %1982 = vrot.lane.b32.xlu0 %v1006, 32
        %v1983 = vpop.permute.xlu0 %1982
        %1984 = vrot.lane.b32.xlu0 %v1008, 32
        %v1985 = vpop.permute.xlu0 %1984
        %1986 = vrot.lane.b32.xlu0 %v1009, 32
        %v1987 = vpop.permute.xlu0 %1986
        %1988 = vrot.lane.b32.xlu0 %v1012, 32
        %v1989 = vpop.permute.xlu0 %1988
        %1990 = vrot.lane.b32.xlu0 %v1014, 32
        %v1991 = vpop.permute.xlu0 %1990
        %1992 = vrot.lane.b32.xlu0 %v1015, 32
        %v1993 = vpop.permute.xlu0 %1992
        %1994 = vrot.lane.b32.xlu0 %v1018, 32
        %v1995 = vpop.permute.xlu0 %1994
        %1996 = vrot.lane.b32.xlu0 %v1020, 32
        %v1997 = vpop.permute.xlu0 %1996
        %1998 = vrot.lane.b32.xlu0 %v1021, 32
        %v1999 = vpop.permute.xlu0 %1998
        %2000 = vrot.lane.b32.xlu0 %v1024, 32
        %v2001 = vpop.permute.xlu0 %2000
        %2002 = vrot.lane.b32.xlu0 %v1026, 32
        %v2003 = vpop.permute.xlu0 %2002
        %2004 = vrot.lane.b32.xlu0 %v1027, 32
        %v2005 = vpop.permute.xlu0 %2004
        %2006 = vrot.lane.b32.xlu0 %v1030, 32
        %v2007 = vpop.permute.xlu0 %2006
        %2008 = vrot.lane.b32.xlu0 %v1032, 32
        %v2009 = vpop.permute.xlu0 %2008
        %2010 = vrot.lane.b32.xlu0 %v1033, 32
        %v2011 = vpop.permute.xlu0 %2010
        %2012 = vrot.lane.b32.xlu0 %v1036, 32
        %v2013 = vpop.permute.xlu0 %2012
        %2014 = vrot.lane.b32.xlu0 %v1038, 32
        %v2015 = vpop.permute.xlu0 %2014
        %2016 = vrot.lane.b32.xlu0 %v1039, 32
        %v2017 = vpop.permute.xlu0 %2016
        %2018 = vrot.lane.b32.xlu0 %v1042, 32
        %v2019 = vpop.permute.xlu0 %2018
        %2020 = vrot.lane.b32.xlu0 %v1044, 32
        %v2021 = vpop.permute.xlu0 %2020
        %2022 = vrot.lane.b32.xlu0 %v1045, 32
        %v2023 = vpop.permute.xlu0 %2022
        %2024 = vrot.lane.b32.xlu0 %v1048, 32
        %v2025 = vpop.permute.xlu0 %2024
        %2026 = vrot.lane.b32.xlu0 %v1050, 32
        %v2027 = vpop.permute.xlu0 %2026
        %2028 = vrot.lane.b32.xlu0 %v1051, 32
        %v2029 = vpop.permute.xlu0 %2028
        %2030 = vrot.lane.b32.xlu0 %v1054, 32
        %v2031 = vpop.permute.xlu0 %2030
        %2032 = vrot.lane.b32.xlu0 %v1056, 32
        %v2033 = vpop.permute.xlu0 %2032
        %2034 = vrot.lane.b32.xlu0 %v1057, 32
        %v2035 = vpop.permute.xlu0 %2034
        %2036 = vrot.lane.b32.xlu0 %v1060, 32
        %v2037 = vpop.permute.xlu0 %2036
        %2038 = vrot.lane.b32.xlu0 %v1062, 32
        %v2039 = vpop.permute.xlu0 %2038
        %2040 = vrot.lane.b32.xlu0 %v1063, 32
        %v2041 = vpop.permute.xlu0 %2040
        %2042 = vrot.lane.b32.xlu0 %v1066, 32
        %v2043 = vpop.permute.xlu0 %2042
        %2044 = vrot.lane.b32.xlu0 %v1068, 32
        %v2045 = vpop.permute.xlu0 %2044
        %2046 = vrot.lane.b32.xlu0 %v1069, 32
        %v2047 = vpop.permute.xlu0 %2046
        %2048 = vrot.lane.b32.xlu0 %v1072, 32
        %v2049 = vpop.permute.xlu0 %2048
        %2050 = vrot.lane.b32.xlu0 %v1074, 32
        %v2051 = vpop.permute.xlu0 %2050
        %2052 = vrot.lane.b32.xlu0 %v1075, 32
        %v2053 = vpop.permute.xlu0 %2052
        %2054 = vrot.lane.b32.xlu0 %v1078, 32
        %v2055 = vpop.permute.xlu0 %2054
        %2056 = vrot.lane.b32.xlu0 %v1080, 32
        %v2057 = vpop.permute.xlu0 %2056
        %2058 = vrot.lane.b32.xlu0 %v1081, 32
        %v2059 = vpop.permute.xlu0 %2058
        %2060 = vrot.lane.b32.xlu0 %v1084, 32
        %v2061 = vpop.permute.xlu0 %2060
        %2062 = vrot.lane.b32.xlu0 %v1086, 32
        %v2063 = vpop.permute.xlu0 %2062
        %2064 = vrot.lane.b32.xlu0 %v1087, 32
        %v2065 = vpop.permute.xlu0 %2064
        %2066 = vrot.lane.b32.xlu0 %v1090, 32
        %v2067 = vpop.permute.xlu0 %2066
        %2068 = vrot.lane.b32.xlu0 %v1092, 32
        %v2069 = vpop.permute.xlu0 %2068
        %2070 = vrot.lane.b32.xlu0 %v1093, 32
        %v2071 = vpop.permute.xlu0 %2070
        %2072 = vrot.lane.b32.xlu0 %v1096, 32
        %v2073 = vpop.permute.xlu0 %2072
        %2074 = vrot.lane.b32.xlu0 %v1098, 32
        %v2075 = vpop.permute.xlu0 %2074
        %2076 = vrot.lane.b32.xlu0 %v1099, 32
        %v2077 = vpop.permute.xlu0 %2076
        %2078 = vrot.lane.b32.xlu0 %v1003, 32
        %v2079 = vpop.permute.xlu0 %2078
        %vm2129 = vcmask 31744
        %v2130 = vsel %vm2129, 0.0, %v855
        %v2131 = vsel %vm2129, %v690, %v857
        %v2132 = vsel %vm2129, %v596, %v859
        %v2133 = vsel %vm2129, %v706, %v861
        %v2134 = vsel %vm2129, %v691, %v863
        %v2135 = vsel %vm2129, %v599, %v865
        %v2136 = vsel %vm2129, %v707, %v867
        %v2137 = vsel %vm2129, %v692, %v869
        %v2138 = vsel %vm2129, %v602, %v871
        %v2139 = vsel %vm2129, %v708, %v873
        %v2140 = vsel %vm2129, %v693, %v875
        %v2141 = vsel %vm2129, %v605, %v877
        %v2142 = vsel %vm2129, %v709, %v879
        %v2143 = vsel %vm2129, %v694, %v881
        %v2144 = vsel %vm2129, %v608, %v883
        %v2145 = vsel %vm2129, %v710, %v885
        %v2146 = vsel %vm2129, %v695, %v887
        %v2147 = vsel %vm2129, %v611, %v889
        %v2148 = vsel %vm2129, %v711, %v891
        %v2149 = vsel %vm2129, %v696, %v893
        %v2150 = vsel %vm2129, %v614, %v895
        %v2151 = vsel %vm2129, %v712, %v897
        %v2152 = vsel %vm2129, %v697, %v899
        %v2153 = vsel %vm2129, %v617, %v901
        %v2154 = vsel %vm2129, %v713, %v903
        %v2155 = vsel %vm2129, %v698, %v905
        %v2156 = vsel %vm2129, %v620, %v907
        %v2157 = vsel %vm2129, %v714, %v909
        %v2158 = vsel %vm2129, %v699, %v911
        %v2159 = vsel %vm2129, %v623, %v913
        %v2160 = vsel %vm2129, %v715, %v915
        %v2161 = vsel %vm2129, %v700, %v917
        %v2162 = vsel %vm2129, %v626, %v919
        %v2163 = vsel %vm2129, %v716, %v921
        %v2164 = vsel %vm2129, %v701, %v923
        %v2165 = vsel %vm2129, %v629, %v925
        %v2166 = vsel %vm2129, %v717, %v927
        %v2167 = vsel %vm2129, %v702, %v929
        %v2168 = vsel %vm2129, %v632, %v931
        %v2169 = vsel %vm2129, %v718, %v933
        %v2170 = vsel %vm2129, %v703, %v935
        %v2171 = vsel %vm2129, %v635, %v937
        %v2172 = vsel %vm2129, %v719, %v939
        %v2173 = vsel %vm2129, %v704, %v941
        %v2174 = vsel %vm2129, %v638, %v943
        %v2175 = vsel %vm2129, %v720, %v945
        %v2176 = vsel %vm2129, %v705, %v947
        %v2177 = vsel %vm2129, %v641, %v949
        %v2178 = vsel %vm2129, %v721, %v951
        %vm2179 = vcmask 64512
        %v2180 = vsel %vm2179, %v2130, %v1101
        %v2181 = vsel %vm2179, %v2131, %v1103
        %v2182 = vsel %vm2179, %v2132, %v1105
        %v2183 = vsel %vm2179, %v2133, %v1107
        %v2184 = vsel %vm2179, %v2134, %v1109
        %v2185 = vsel %vm2179, %v2135, %v1111
        %v2186 = vsel %vm2179, %v2136, %v1113
        %v2187 = vsel %vm2179, %v2137, %v1115
        %v2188 = vsel %vm2179, %v2138, %v1117
        %v2189 = vsel %vm2179, %v2139, %v1119
        %v2190 = vsel %vm2179, %v2140, %v1121
        %v2191 = vsel %vm2179, %v2141, %v1123
        %v2192 = vsel %vm2179, %v2142, %v1125
        %v2193 = vsel %vm2179, %v2143, %v1127
        %v2194 = vsel %vm2179, %v2144, %v1129
        %v2195 = vsel %vm2179, %v2145, %v1131
        %v2196 = vsel %vm2179, %v2146, %v1133
        %v2197 = vsel %vm2179, %v2147, %v1135
        %v2198 = vsel %vm2179, %v2148, %v1137
        %v2199 = vsel %vm2179, %v2149, %v1139
        %v2200 = vsel %vm2179, %v2150, %v1141
        %v2201 = vsel %vm2179, %v2151, %v1143
        %v2202 = vsel %vm2179, %v2152, %v1145
        %v2203 = vsel %vm2179, %v2153, %v1147
        %v2204 = vsel %vm2179, %v2154, %v1149
        %v2205 = vsel %vm2179, %v2155, %v1151
        %v2206 = vsel %vm2179, %v2156, %v1153
        %v2207 = vsel %vm2179, %v2157, %v1155
        %v2208 = vsel %vm2179, %v2158, %v1157
        %v2209 = vsel %vm2179, %v2159, %v1159
        %v2210 = vsel %vm2179, %v2160, %v1161
        %v2211 = vsel %vm2179, %v2161, %v1163
        %v2212 = vsel %vm2179, %v2162, %v1165
        %v2213 = vsel %vm2179, %v2163, %v1167
        %v2214 = vsel %vm2179, %v2164, %v1169
        %v2215 = vsel %vm2179, %v2165, %v1171
        %v2216 = vsel %vm2179, %v2166, %v1173
        %v2217 = vsel %vm2179, %v2167, %v1175
        %v2218 = vsel %vm2179, %v2168, %v1177
        %v2219 = vsel %vm2179, %v2169, %v1179
        %v2220 = vsel %vm2179, %v2170, %v1181
        %v2221 = vsel %vm2179, %v2171, %v1183
        %v2222 = vsel %vm2179, %v2172, %v1185
        %v2223 = vsel %vm2179, %v2173, %v1187
        %v2224 = vsel %vm2179, %v2174, %v1189
        %v2225 = vsel %vm2179, %v2175, %v1191
        %v2226 = vsel %vm2179, %v2176, %v1193
        %v2227 = vsel %vm2179, %v2177, %v1195
        %v2228 = vsel %vm2179, %v2178, %v1197
        %vm2229 = vcmask 97280
        %v2230 = vsel %vm2229, %v2180, %v1248
        %v2231 = vsel %vm2229, %v2180, %v1250
        %v2232 = vsel %vm2229, %v2180, %v1252
        %v2233 = vsel %vm2229, %v2180, %v1254
        %v2234 = vsel %vm2229, %v2181, %v1256
        %v2235 = vsel %vm2229, %v2182, %v1258
        %v2236 = vsel %vm2229, %v2183, %v1260
        %v2237 = vsel %vm2229, %v2184, %v1262
        %v2238 = vsel %vm2229, %v2185, %v1264
        %v2239 = vsel %vm2229, %v2186, %v1266
        %v2240 = vsel %vm2229, %v2187, %v1268
        %v2241 = vsel %vm2229, %v2188, %v1270
        %v2242 = vsel %vm2229, %v2189, %v1272
        %v2243 = vsel %vm2229, %v2190, %v1274
        %v2244 = vsel %vm2229, %v2191, %v1276
        %v2245 = vsel %vm2229, %v2192, %v1278
        %v2246 = vsel %vm2229, %v2193, %v1280
        %v2247 = vsel %vm2229, %v2194, %v1282
        %v2248 = vsel %vm2229, %v2195, %v1284
        %v2249 = vsel %vm2229, %v2196, %v1286
        %v2250 = vsel %vm2229, %v2197, %v1288
        %v2251 = vsel %vm2229, %v2198, %v1290
        %v2252 = vsel %vm2229, %v2199, %v1292
        %v2253 = vsel %vm2229, %v2200, %v1294
        %v2254 = vsel %vm2229, %v2201, %v1296
        %v2255 = vsel %vm2229, %v2202, %v1298
        %v2256 = vsel %vm2229, %v2203, %v1300
        %v2257 = vsel %vm2229, %v2204, %v1302
        %v2258 = vsel %vm2229, %v2205, %v1304
        %v2259 = vsel %vm2229, %v2206, %v1306
        %v2260 = vsel %vm2229, %v2207, %v1308
        %v2261 = vsel %vm2229, %v2208, %v1310
        %v2262 = vsel %vm2229, %v2209, %v1312
        %v2263 = vsel %vm2229, %v2210, %v1314
        %v2264 = vsel %vm2229, %v2211, %v1316
        %v2265 = vsel %vm2229, %v2212, %v1318
        %v2266 = vsel %vm2229, %v2213, %v1320
        %v2267 = vsel %vm2229, %v2214, %v1322
        %v2268 = vsel %vm2229, %v2215, %v1324
        %v2269 = vsel %vm2229, %v2216, %v1326
        %v2270 = vsel %vm2229, %v2217, %v1328
        %v2271 = vsel %vm2229, %v2218, %v1330
        %v2272 = vsel %vm2229, %v2219, %v1332
        %v2273 = vsel %vm2229, %v2220, %v1334
        %v2274 = vsel %vm2229, %v2221, %v1336
        %v2275 = vsel %vm2229, %v2222, %v1338
        %v2276 = vsel %vm2229, %v2223, %v1340
        %v2277 = vsel %vm2229, %v2224, %v1342
        %v2278 = vsel %vm2229, %v2225, %v1344
        %v2279 = vsel %vm2229, %v2226, %v1248
        %v2280 = vsel %vm2229, %v2227, %v1248
        %v2281 = vsel %vm2229, %v2228, %v1248
        %vm2282 = vcmask 130048
        %v2283 = vsel %vm2282, %v2230, %v1395
        %v2284 = vsel %vm2282, %v2231, %v1397
        %v2285 = vsel %vm2282, %v2232, %v1399
        %v2286 = vsel %vm2282, %v2233, %v1401
        %v2287 = vsel %vm2282, %v2234, %v1403
        %v2288 = vsel %vm2282, %v2235, %v1405
        %v2289 = vsel %vm2282, %v2236, %v1407
        %v2290 = vsel %vm2282, %v2237, %v1409
        %v2291 = vsel %vm2282, %v2238, %v1411
        %v2292 = vsel %vm2282, %v2239, %v1413
        %v2293 = vsel %vm2282, %v2240, %v1415
        %v2294 = vsel %vm2282, %v2241, %v1417
        %v2295 = vsel %vm2282, %v2242, %v1419
        %v2296 = vsel %vm2282, %v2243, %v1421
        %v2297 = vsel %vm2282, %v2244, %v1423
        %v2298 = vsel %vm2282, %v2245, %v1425
        %v2299 = vsel %vm2282, %v2246, %v1427
        %v2300 = vsel %vm2282, %v2247, %v1429
        %v2301 = vsel %vm2282, %v2248, %v1431
        %v2302 = vsel %vm2282, %v2249, %v1433
        %v2303 = vsel %vm2282, %v2250, %v1435
        %v2304 = vsel %vm2282, %v2251, %v1437
        %v2305 = vsel %vm2282, %v2252, %v1439
        %v2306 = vsel %vm2282, %v2253, %v1441
        %v2307 = vsel %vm2282, %v2254, %v1443
        %v2308 = vsel %vm2282, %v2255, %v1445
        %v2309 = vsel %vm2282, %v2256, %v1447
        %v2310 = vsel %vm2282, %v2257, %v1449
        %v2311 = vsel %vm2282, %v2258, %v1451
        %v2312 = vsel %vm2282, %v2259, %v1453
        %v2313 = vsel %vm2282, %v2260, %v1455
        %v2314 = vsel %vm2282, %v2261, %v1457
        %v2315 = vsel %vm2282, %v2262, %v1459
        %v2316 = vsel %vm2282, %v2263, %v1461
        %v2317 = vsel %vm2282, %v2264, %v1463
        %v2318 = vsel %vm2282, %v2265, %v1465
        %v2319 = vsel %vm2282, %v2266, %v1467
        %v2320 = vsel %vm2282, %v2267, %v1469
        %v2321 = vsel %vm2282, %v2268, %v1471
        %v2322 = vsel %vm2282, %v2269, %v1473
        %v2323 = vsel %vm2282, %v2270, %v1475
        %v2324 = vsel %vm2282, %v2271, %v1477
        %v2325 = vsel %vm2282, %v2272, %v1479
        %v2326 = vsel %vm2282, %v2273, %v1481
        %v2327 = vsel %vm2282, %v2274, %v1483
        %v2328 = vsel %vm2282, %v2275, %v1485
        %v2329 = vsel %vm2282, %v2276, %v1487
        %v2330 = vsel %vm2282, %v2277, %v1489
        %v2331 = vsel %vm2282, %v2278, %v1491
        %v2332 = vsel %vm2282, %v2279, %v1395
        %v2333 = vsel %vm2282, %v2280, %v1395
        %v2334 = vsel %vm2282, %v2281, %v1395
        %vm2335 = vcmask 162816
        %v2336 = vsel %vm2335, %v2283, %v1542
        %v2337 = vsel %vm2335, %v2284, %v1544
        %v2338 = vsel %vm2335, %v2285, %v1546
        %v2339 = vsel %vm2335, %v2286, %v1548
        %v2340 = vsel %vm2335, %v2287, %v1550
        %v2341 = vsel %vm2335, %v2288, %v1552
        %v2342 = vsel %vm2335, %v2289, %v1554
        %v2343 = vsel %vm2335, %v2290, %v1556
        %v2344 = vsel %vm2335, %v2291, %v1558
        %v2345 = vsel %vm2335, %v2292, %v1560
        %v2346 = vsel %vm2335, %v2293, %v1562
        %v2347 = vsel %vm2335, %v2294, %v1564
        %v2348 = vsel %vm2335, %v2295, %v1566
        %v2349 = vsel %vm2335, %v2296, %v1568
        %v2350 = vsel %vm2335, %v2297, %v1570
        %v2351 = vsel %vm2335, %v2298, %v1572
        %v2352 = vsel %vm2335, %v2299, %v1574
        %v2353 = vsel %vm2335, %v2300, %v1576
        %v2354 = vsel %vm2335, %v2301, %v1578
        %v2355 = vsel %vm2335, %v2302, %v1580
        %v2356 = vsel %vm2335, %v2303, %v1582
        %v2357 = vsel %vm2335, %v2304, %v1584
        %v2358 = vsel %vm2335, %v2305, %v1586
        %v2359 = vsel %vm2335, %v2306, %v1588
        %v2360 = vsel %vm2335, %v2307, %v1590
        %v2361 = vsel %vm2335, %v2308, %v1592
        %v2362 = vsel %vm2335, %v2309, %v1594
        %v2363 = vsel %vm2335, %v2310, %v1596
        %v2364 = vsel %vm2335, %v2311, %v1598
        %v2365 = vsel %vm2335, %v2312, %v1600
        %v2366 = vsel %vm2335, %v2313, %v1602
        %v2367 = vsel %vm2335, %v2314, %v1604
        %v2368 = vsel %vm2335, %v2315, %v1606
        %v2369 = vsel %vm2335, %v2316, %v1608
        %v2370 = vsel %vm2335, %v2317, %v1610
        %v2371 = vsel %vm2335, %v2318, %v1612
        %v2372 = vsel %vm2335, %v2319, %v1614
        %v2373 = vsel %vm2335, %v2320, %v1616
        %v2374 = vsel %vm2335, %v2321, %v1618
        %v2375 = vsel %vm2335, %v2322, %v1620
        %v2376 = vsel %vm2335, %v2323, %v1622
        %v2377 = vsel %vm2335, %v2324, %v1624
        %v2378 = vsel %vm2335, %v2325, %v1626
        %v2379 = vsel %vm2335, %v2326, %v1628
        %v2380 = vsel %vm2335, %v2327, %v1630
        %v2381 = vsel %vm2335, %v2328, %v1632
        %v2382 = vsel %vm2335, %v2329, %v1634
        %v2383 = vsel %vm2335, %v2330, %v1636
        %v2384 = vsel %vm2335, %v2331, %v1638
        %v2385 = vsel %vm2335, %v2332, %v1542
        %v2386 = vsel %vm2335, %v2333, %v1542
        %v2387 = vsel %vm2335, %v2334, %v1542
        %vm2388 = vcmask 195584
        %v2389 = vsel %vm2388, %v2336, %v1689
        %v2390 = vsel %vm2388, %v2336, %v1691
        %v2391 = vsel %vm2388, %v2336, %v1693
        %v2392 = vsel %vm2388, %v2337, %v1695
        %v2393 = vsel %vm2388, %v2338, %v1697
        %v2394 = vsel %vm2388, %v2339, %v1699
        %v2395 = vsel %vm2388, %v2340, %v1701
        %v2396 = vsel %vm2388, %v2341, %v1703
        %v2397 = vsel %vm2388, %v2342, %v1705
        %v2398 = vsel %vm2388, %v2343, %v1707
        %v2399 = vsel %vm2388, %v2344, %v1709
        %v2400 = vsel %vm2388, %v2345, %v1711
        %v2401 = vsel %vm2388, %v2346, %v1713
        %v2402 = vsel %vm2388, %v2347, %v1715
        %v2403 = vsel %vm2388, %v2348, %v1717
        %v2404 = vsel %vm2388, %v2349, %v1719
        %v2405 = vsel %vm2388, %v2350, %v1721
        %v2406 = vsel %vm2388, %v2351, %v1723
        %v2407 = vsel %vm2388, %v2352, %v1725
        %v2408 = vsel %vm2388, %v2353, %v1727
        %v2409 = vsel %vm2388, %v2354, %v1729
        %v2410 = vsel %vm2388, %v2355, %v1731
        %v2411 = vsel %vm2388, %v2356, %v1733
        %v2412 = vsel %vm2388, %v2357, %v1735
        %v2413 = vsel %vm2388, %v2358, %v1737
        %v2414 = vsel %vm2388, %v2359, %v1739
        %v2415 = vsel %vm2388, %v2360, %v1741
        %v2416 = vsel %vm2388, %v2361, %v1743
        %v2417 = vsel %vm2388, %v2362, %v1745
        %v2418 = vsel %vm2388, %v2363, %v1747
        %v2419 = vsel %vm2388, %v2364, %v1749
        %v2420 = vsel %vm2388, %v2365, %v1751
        %v2421 = vsel %vm2388, %v2366, %v1753
        %v2422 = vsel %vm2388, %v2367, %v1755
        %v2423 = vsel %vm2388, %v2368, %v1757
        %v2424 = vsel %vm2388, %v2369, %v1759
        %v2425 = vsel %vm2388, %v2370, %v1761
        %v2426 = vsel %vm2388, %v2371, %v1763
        %v2427 = vsel %vm2388, %v2372, %v1765
        %v2428 = vsel %vm2388, %v2373, %v1767
        %v2429 = vsel %vm2388, %v2374, %v1769
        %v2430 = vsel %vm2388, %v2375, %v1771
        %v2431 = vsel %vm2388, %v2376, %v1773
        %v2432 = vsel %vm2388, %v2377, %v1775
        %v2433 = vsel %vm2388, %v2378, %v1777
        %v2434 = vsel %vm2388, %v2379, %v1779
        %v2435 = vsel %vm2388, %v2380, %v1781
        %v2436 = vsel %vm2388, %v2381, %v1783
        %v2437 = vsel %vm2388, %v2382, %v1785
        %v2438 = vsel %vm2388, %v2383, %v1785
        %v2439 = vsel %vm2388, %v2384, %v1785
        %v2440 = vsel %vm2388, %v2385, %v1785
        %v2441 = vsel %vm2388, %v2386, %v1785
        %v2442 = vsel %vm2388, %v2387, %v1785
        %vm2443 = vcmask 228352
        %v2444 = vsel %vm2443, %v2389, %v1836
        %v2445 = vsel %vm2443, %v2390, %v1838
        %v2446 = vsel %vm2443, %v2391, %v1840
        %v2447 = vsel %vm2443, %v2392, %v1842
        %v2448 = vsel %vm2443, %v2393, %v1844
        %v2449 = vsel %vm2443, %v2394, %v1846
        %v2450 = vsel %vm2443, %v2395, %v1848
        %v2451 = vsel %vm2443, %v2396, %v1850
        %v2452 = vsel %vm2443, %v2397, %v1852
        %v2453 = vsel %vm2443, %v2398, %v1854
        %v2454 = vsel %vm2443, %v2399, %v1856
        %v2455 = vsel %vm2443, %v2400, %v1858
        %v2456 = vsel %vm2443, %v2401, %v1860
        %v2457 = vsel %vm2443, %v2402, %v1862
        %v2458 = vsel %vm2443, %v2403, %v1864
        %v2459 = vsel %vm2443, %v2404, %v1866
        %v2460 = vsel %vm2443, %v2405, %v1868
        %v2461 = vsel %vm2443, %v2406, %v1870
        %v2462 = vsel %vm2443, %v2407, %v1872
        %v2463 = vsel %vm2443, %v2408, %v1874
        %v2464 = vsel %vm2443, %v2409, %v1876
        %v2465 = vsel %vm2443, %v2410, %v1878
        %v2466 = vsel %vm2443, %v2411, %v1880
        %v2467 = vsel %vm2443, %v2412, %v1882
        %v2468 = vsel %vm2443, %v2413, %v1884
        %v2469 = vsel %vm2443, %v2414, %v1886
        %v2470 = vsel %vm2443, %v2415, %v1888
        %v2471 = vsel %vm2443, %v2416, %v1890
        %v2472 = vsel %vm2443, %v2417, %v1892
        %v2473 = vsel %vm2443, %v2418, %v1894
        %v2474 = vsel %vm2443, %v2419, %v1896
        %v2475 = vsel %vm2443, %v2420, %v1898
        %v2476 = vsel %vm2443, %v2421, %v1900
        %v2477 = vsel %vm2443, %v2422, %v1902
        %v2478 = vsel %vm2443, %v2423, %v1904
        %v2479 = vsel %vm2443, %v2424, %v1906
        %v2480 = vsel %vm2443, %v2425, %v1908
        %v2481 = vsel %vm2443, %v2426, %v1910
        %v2482 = vsel %vm2443, %v2427, %v1912
        %v2483 = vsel %vm2443, %v2428, %v1914
        %v2484 = vsel %vm2443, %v2429, %v1916
        %v2485 = vsel %vm2443, %v2430, %v1918
        %v2486 = vsel %vm2443, %v2431, %v1920
        %v2487 = vsel %vm2443, %v2432, %v1922
        %v2488 = vsel %vm2443, %v2433, %v1924
        %v2489 = vsel %vm2443, %v2434, %v1926
        %v2490 = vsel %vm2443, %v2435, %v1928
        %v2491 = vsel %vm2443, %v2436, %v1930
        %v2492 = vsel %vm2443, %v2437, %v1932
        %v2493 = vsel %vm2443, %v2438, %v1932
        %v2494 = vsel %vm2443, %v2439, %v1932
        %v2495 = vsel %vm2443, %v2440, %v1932
        %v2496 = vsel %vm2443, %v2441, %v1932
        %v2497 = vsel %vm2443, %v2442, %v1932
        %vm2498 = vcmask 261120
        %v2499 = vsel %vm2498, %v2444, %v1983
        %v2500 = vsel %vm2498, %v2445, %v1985
        %v2501 = vsel %vm2498, %v2446, %v1987
        %v2502 = vsel %vm2498, %v2447, %v1989
        %v2503 = vsel %vm2498, %v2448, %v1991
        %v2504 = vsel %vm2498, %v2449, %v1993
        %v2505 = vsel %vm2498, %v2450, %v1995
        %v2506 = vsel %vm2498, %v2451, %v1997
        %v2507 = vsel %vm2498, %v2452, %v1999
        %v2508 = vsel %vm2498, %v2453, %v2001
        %v2509 = vsel %vm2498, %v2454, %v2003
        %v2510 = vsel %vm2498, %v2455, %v2005
        %v2511 = vsel %vm2498, %v2456, %v2007
        %v2512 = vsel %vm2498, %v2457, %v2009
        %v2513 = vsel %vm2498, %v2458, %v2011
        %v2514 = vsel %vm2498, %v2459, %v2013
        %v2515 = vsel %vm2498, %v2460, %v2015
        %v2516 = vsel %vm2498, %v2461, %v2017
        %v2517 = vsel %vm2498, %v2462, %v2019
        %v2518 = vsel %vm2498, %v2463, %v2021
        %v2519 = vsel %vm2498, %v2464, %v2023
        %v2520 = vsel %vm2498, %v2465, %v2025
        %v2521 = vsel %vm2498, %v2466, %v2027
        %v2522 = vsel %vm2498, %v2467, %v2029
        %v2523 = vsel %vm2498, %v2468, %v2031
        %v2524 = vsel %vm2498, %v2469, %v2033
        %v2525 = vsel %vm2498, %v2470, %v2035
        %v2526 = vsel %vm2498, %v2471, %v2037
        %v2527 = vsel %vm2498, %v2472, %v2039
        %v2528 = vsel %vm2498, %v2473, %v2041
        %v2529 = vsel %vm2498, %v2474, %v2043
        %v2530 = vsel %vm2498, %v2475, %v2045
        %v2531 = vsel %vm2498, %v2476, %v2047
        %v2532 = vsel %vm2498, %v2477, %v2049
        %v2533 = vsel %vm2498, %v2478, %v2051
        %v2534 = vsel %vm2498, %v2479, %v2053
        %v2535 = vsel %vm2498, %v2480, %v2055
        %v2536 = vsel %vm2498, %v2481, %v2057
        %v2537 = vsel %vm2498, %v2482, %v2059
        %v2538 = vsel %vm2498, %v2483, %v2061
        %v2539 = vsel %vm2498, %v2484, %v2063
        %v2540 = vsel %vm2498, %v2485, %v2065
        %v2541 = vsel %vm2498, %v2486, %v2067
        %v2542 = vsel %vm2498, %v2487, %v2069
        %v2543 = vsel %vm2498, %v2488, %v2071
        %v2544 = vsel %vm2498, %v2489, %v2073
        %v2545 = vsel %vm2498, %v2490, %v2075
        %v2546 = vsel %vm2498, %v2491, %v2077
        %v2547 = vsel %vm2498, %v2492, %v2079
        %v2548 = vsel %vm2498, %v2493, %v2079
        %v2549 = vsel %vm2498, %v2494, %v2079
        %v2550 = vsel %vm2498, %v2495, %v2079
        %v2551 = vsel %vm2498, %v2496, %v2079
        %v2552 = vsel %vm2498, %v2497, %v2079
        %v2585 = vrot.slane %v507, 6
        %v2586 = vrot.slane %v508, 6
        %v2587 = vsel %vm593, %v2585, %v2586
        %v2588 = vrot.slane %v509, 6
        %v2589 = vrot.slane %v510, 6
        %v2590 = vsel %vm593, %v2588, %v2589
        %v2591 = vrot.slane %v511, 6
        %v2592 = vrot.slane %v512, 6
        %v2593 = vsel %vm593, %v2591, %v2592
        %v2594 = vrot.slane %v513, 6
        %v2595 = vrot.slane %v514, 6
        %v2596 = vsel %vm593, %v2594, %v2595
        %v2597 = vrot.slane %v515, 6
        %v2598 = vrot.slane %v516, 6
        %v2599 = vsel %vm593, %v2597, %v2598
        %v2600 = vrot.slane %v517, 6
        %v2601 = vrot.slane %v518, 6
        %v2602 = vsel %vm593, %v2600, %v2601
        %v2603 = vrot.slane %v519, 6
        %v2604 = vrot.slane %v520, 6
        %v2605 = vsel %vm593, %v2603, %v2604
        %v2606 = vrot.slane %v521, 6
        %v2607 = vrot.slane %v522, 6
        %v2608 = vsel %vm593, %v2606, %v2607
        %v2609 = vrot.slane %v523, 6
        %v2610 = vrot.slane %v524, 6
        %v2611 = vsel %vm593, %v2609, %v2610
        %v2612 = vrot.slane %v525, 6
        %v2613 = vrot.slane %v526, 6
        %v2614 = vsel %vm593, %v2612, %v2613
        %v2615 = vrot.slane %v527, 6
        %v2616 = vrot.slane %v528, 6
        %v2617 = vsel %vm593, %v2615, %v2616
        %v2618 = vrot.slane %v529, 6
        %v2619 = vrot.slane %v530, 6
        %v2620 = vsel %vm593, %v2618, %v2619
        %v2621 = vrot.slane %v531, 6
        %v2622 = vrot.slane %v532, 6
        %v2623 = vsel %vm593, %v2621, %v2622
        %v2624 = vrot.slane %v533, 6
        %v2625 = vrot.slane %v534, 6
        %v2626 = vsel %vm593, %v2624, %v2625
        %v2627 = vrot.slane %v535, 6
        %v2628 = vrot.slane %v536, 6
        %v2629 = vsel %vm593, %v2627, %v2628
        %v2630 = vrot.slane %v537, 6
        %v2631 = vrot.slane %v538, 6
        %v2632 = vsel %vm593, %v2630, %v2631
        %v2681 = vsel %vm593, 0.0, %v2585
        %v2682 = vsel %vm593, 0.0, %v2588
        %v2683 = vsel %vm593, 0.0, %v2591
        %v2684 = vsel %vm593, 0.0, %v2594
        %v2685 = vsel %vm593, 0.0, %v2597
        %v2686 = vsel %vm593, 0.0, %v2600
        %v2687 = vsel %vm593, 0.0, %v2603
        %v2688 = vsel %vm593, 0.0, %v2606
        %v2689 = vsel %vm593, 0.0, %v2609
        %v2690 = vsel %vm593, 0.0, %v2612
        %v2691 = vsel %vm593, 0.0, %v2615
        %v2692 = vsel %vm593, 0.0, %v2618
        %v2693 = vsel %vm593, 0.0, %v2621
        %v2694 = vsel %vm593, 0.0, %v2624
        %v2695 = vsel %vm593, 0.0, %v2627
        %v2696 = vsel %vm593, 0.0, %v2630
        %v2697 = vsel %vm593, %v2586, 0.0
        %v2698 = vsel %vm593, %v2589, 0.0
        %v2699 = vsel %vm593, %v2592, 0.0
        %v2700 = vsel %vm593, %v2595, 0.0
        %v2701 = vsel %vm593, %v2598, 0.0
        %v2702 = vsel %vm593, %v2601, 0.0
        %v2703 = vsel %vm593, %v2604, 0.0
        %v2704 = vsel %vm593, %v2607, 0.0
        %v2705 = vsel %vm593, %v2610, 0.0
        %v2706 = vsel %vm593, %v2613, 0.0
        %v2707 = vsel %vm593, %v2616, 0.0
        %v2708 = vsel %vm593, %v2619, 0.0
        %v2709 = vsel %vm593, %v2622, 0.0
        %v2710 = vsel %vm593, %v2625, 0.0
        %v2711 = vsel %vm593, %v2628, 0.0
        %v2712 = vsel %vm593, %v2631, 0.0
        %v2745 = vrot.slane %v2681, 1
        %v2746 = vrot.slane %v2587, 1
        %v2747 = vsel %vm755, %v2745, %v2746
        %v2748 = vrot.slane %v2697, 1
        %v2749 = vsel %vm755, %v2746, %v2748
        %v2750 = vsel %vm755, %v2748, %v756
        %v2751 = vrot.slane %v2682, 1
        %v2752 = vrot.slane %v2590, 1
        %v2753 = vsel %vm755, %v2751, %v2752
        %v2754 = vrot.slane %v2698, 1
        %v2755 = vsel %vm755, %v2752, %v2754
        %v2756 = vsel %vm755, %v2754, %v756
        %v2757 = vrot.slane %v2683, 1
        %v2758 = vrot.slane %v2593, 1
        %v2759 = vsel %vm755, %v2757, %v2758
        %v2760 = vrot.slane %v2699, 1
        %v2761 = vsel %vm755, %v2758, %v2760
        %v2762 = vsel %vm755, %v2760, %v756
        %v2763 = vrot.slane %v2684, 1
        %v2764 = vrot.slane %v2596, 1
        %v2765 = vsel %vm755, %v2763, %v2764
        %v2766 = vrot.slane %v2700, 1
        %v2767 = vsel %vm755, %v2764, %v2766
        %v2768 = vsel %vm755, %v2766, %v756
        %v2769 = vrot.slane %v2685, 1
        %v2770 = vrot.slane %v2599, 1
        %v2771 = vsel %vm755, %v2769, %v2770
        %v2772 = vrot.slane %v2701, 1
        %v2773 = vsel %vm755, %v2770, %v2772
        %v2774 = vsel %vm755, %v2772, %v756
        %v2775 = vrot.slane %v2686, 1
        %v2776 = vrot.slane %v2602, 1
        %v2777 = vsel %vm755, %v2775, %v2776
        %v2778 = vrot.slane %v2702, 1
        %v2779 = vsel %vm755, %v2776, %v2778
        %v2780 = vsel %vm755, %v2778, %v756
        %v2781 = vrot.slane %v2687, 1
        %v2782 = vrot.slane %v2605, 1
        %v2783 = vsel %vm755, %v2781, %v2782
        %v2784 = vrot.slane %v2703, 1
        %v2785 = vsel %vm755, %v2782, %v2784
        %v2786 = vsel %vm755, %v2784, %v756
        %v2787 = vrot.slane %v2688, 1
        %v2788 = vrot.slane %v2608, 1
        %v2789 = vsel %vm755, %v2787, %v2788
        %v2790 = vrot.slane %v2704, 1
        %v2791 = vsel %vm755, %v2788, %v2790
        %v2792 = vsel %vm755, %v2790, %v756
        %v2793 = vrot.slane %v2689, 1
        %v2794 = vrot.slane %v2611, 1
        %v2795 = vsel %vm755, %v2793, %v2794
        %v2796 = vrot.slane %v2705, 1
        %v2797 = vsel %vm755, %v2794, %v2796
        %v2798 = vsel %vm755, %v2796, %v756
        %v2799 = vrot.slane %v2690, 1
        %v2800 = vrot.slane %v2614, 1
        %v2801 = vsel %vm755, %v2799, %v2800
        %v2802 = vrot.slane %v2706, 1
        %v2803 = vsel %vm755, %v2800, %v2802
        %v2804 = vsel %vm755, %v2802, %v756
        %v2805 = vrot.slane %v2691, 1
        %v2806 = vrot.slane %v2617, 1
        %v2807 = vsel %vm755, %v2805, %v2806
        %v2808 = vrot.slane %v2707, 1
        %v2809 = vsel %vm755, %v2806, %v2808
        %v2810 = vsel %vm755, %v2808, %v756
        %v2811 = vrot.slane %v2692, 1
        %v2812 = vrot.slane %v2620, 1
        %v2813 = vsel %vm755, %v2811, %v2812
        %v2814 = vrot.slane %v2708, 1
        %v2815 = vsel %vm755, %v2812, %v2814
        %v2816 = vsel %vm755, %v2814, %v756
        %v2817 = vrot.slane %v2693, 1
        %v2818 = vrot.slane %v2623, 1
        %v2819 = vsel %vm755, %v2817, %v2818
        %v2820 = vrot.slane %v2709, 1
        %v2821 = vsel %vm755, %v2818, %v2820
        %v2822 = vsel %vm755, %v2820, %v756
        %v2823 = vrot.slane %v2694, 1
        %v2824 = vrot.slane %v2626, 1
        %v2825 = vsel %vm755, %v2823, %v2824
        %v2826 = vrot.slane %v2710, 1
        %v2827 = vsel %vm755, %v2824, %v2826
        %v2828 = vsel %vm755, %v2826, %v756
        %v2829 = vrot.slane %v2695, 1
        %v2830 = vrot.slane %v2629, 1
        %v2831 = vsel %vm755, %v2829, %v2830
        %v2832 = vrot.slane %v2711, 1
        %v2833 = vsel %vm755, %v2830, %v2832
        %v2834 = vsel %vm755, %v2832, %v756
        %v2835 = vrot.slane %v2696, 1
        %v2836 = vrot.slane %v2632, 1
        %v2837 = vsel %vm755, %v2835, %v2836
        %v2838 = vrot.slane %v2712, 1
        %v2839 = vsel %vm755, %v2836, %v2838
        %v2840 = vsel %vm755, %v2838, %v756
        %2841 = vrot.lane.b32.xlu0 %v2747, 4
        %v2842 = vpop.permute.xlu0 %2841
        %2843 = vrot.lane.b32.xlu0 %v2749, 4
        %v2844 = vpop.permute.xlu0 %2843
        %2845 = vrot.lane.b32.xlu0 %v2750, 4
        %v2846 = vpop.permute.xlu0 %2845
        %2847 = vrot.lane.b32.xlu0 %v2753, 4
        %v2848 = vpop.permute.xlu0 %2847
        %2849 = vrot.lane.b32.xlu0 %v2755, 4
        %v2850 = vpop.permute.xlu0 %2849
        %2851 = vrot.lane.b32.xlu0 %v2756, 4
        %v2852 = vpop.permute.xlu0 %2851
        %2853 = vrot.lane.b32.xlu0 %v2759, 4
        %v2854 = vpop.permute.xlu0 %2853
        %2855 = vrot.lane.b32.xlu0 %v2761, 4
        %v2856 = vpop.permute.xlu0 %2855
        %2857 = vrot.lane.b32.xlu0 %v2762, 4
        %v2858 = vpop.permute.xlu0 %2857
        %2859 = vrot.lane.b32.xlu0 %v2765, 4
        %v2860 = vpop.permute.xlu0 %2859
        %2861 = vrot.lane.b32.xlu0 %v2767, 4
        %v2862 = vpop.permute.xlu0 %2861
        %2863 = vrot.lane.b32.xlu0 %v2768, 4
        %v2864 = vpop.permute.xlu0 %2863
        %2865 = vrot.lane.b32.xlu0 %v2771, 4
        %v2866 = vpop.permute.xlu0 %2865
        %2867 = vrot.lane.b32.xlu0 %v2773, 4
        %v2868 = vpop.permute.xlu0 %2867
        %2869 = vrot.lane.b32.xlu0 %v2774, 4
        %v2870 = vpop.permute.xlu0 %2869
        %2871 = vrot.lane.b32.xlu0 %v2777, 4
        %v2872 = vpop.permute.xlu0 %2871
        %2873 = vrot.lane.b32.xlu0 %v2779, 4
        %v2874 = vpop.permute.xlu0 %2873
        %2875 = vrot.lane.b32.xlu0 %v2780, 4
        %v2876 = vpop.permute.xlu0 %2875
        %2877 = vrot.lane.b32.xlu0 %v2783, 4
        %v2878 = vpop.permute.xlu0 %2877
        %2879 = vrot.lane.b32.xlu0 %v2785, 4
        %v2880 = vpop.permute.xlu0 %2879
        %2881 = vrot.lane.b32.xlu0 %v2786, 4
        %v2882 = vpop.permute.xlu0 %2881
        %2883 = vrot.lane.b32.xlu0 %v2789, 4
        %v2884 = vpop.permute.xlu0 %2883
        %2885 = vrot.lane.b32.xlu0 %v2791, 4
        %v2886 = vpop.permute.xlu0 %2885
        %2887 = vrot.lane.b32.xlu0 %v2792, 4
        %v2888 = vpop.permute.xlu0 %2887
        %2889 = vrot.lane.b32.xlu0 %v2795, 4
        %v2890 = vpop.permute.xlu0 %2889
        %2891 = vrot.lane.b32.xlu0 %v2797, 4
        %v2892 = vpop.permute.xlu0 %2891
        %2893 = vrot.lane.b32.xlu0 %v2798, 4
        %v2894 = vpop.permute.xlu0 %2893
        %2895 = vrot.lane.b32.xlu0 %v2801, 4
        %v2896 = vpop.permute.xlu0 %2895
        %2897 = vrot.lane.b32.xlu0 %v2803, 4
        %v2898 = vpop.permute.xlu0 %2897
        %2899 = vrot.lane.b32.xlu0 %v2804, 4
        %v2900 = vpop.permute.xlu0 %2899
        %2901 = vrot.lane.b32.xlu0 %v2807, 4
        %v2902 = vpop.permute.xlu0 %2901
        %2903 = vrot.lane.b32.xlu0 %v2809, 4
        %v2904 = vpop.permute.xlu0 %2903
        %2905 = vrot.lane.b32.xlu0 %v2810, 4
        %v2906 = vpop.permute.xlu0 %2905
        %2907 = vrot.lane.b32.xlu0 %v2813, 4
        %v2908 = vpop.permute.xlu0 %2907
        %2909 = vrot.lane.b32.xlu0 %v2815, 4
        %v2910 = vpop.permute.xlu0 %2909
        %2911 = vrot.lane.b32.xlu0 %v2816, 4
        %v2912 = vpop.permute.xlu0 %2911
        %2913 = vrot.lane.b32.xlu0 %v2819, 4
        %v2914 = vpop.permute.xlu0 %2913
        %2915 = vrot.lane.b32.xlu0 %v2821, 4
        %v2916 = vpop.permute.xlu0 %2915
        %2917 = vrot.lane.b32.xlu0 %v2822, 4
        %v2918 = vpop.permute.xlu0 %2917
        %2919 = vrot.lane.b32.xlu0 %v2825, 4
        %v2920 = vpop.permute.xlu0 %2919
        %2921 = vrot.lane.b32.xlu0 %v2827, 4
        %v2922 = vpop.permute.xlu0 %2921
        %2923 = vrot.lane.b32.xlu0 %v2828, 4
        %v2924 = vpop.permute.xlu0 %2923
        %2925 = vrot.lane.b32.xlu0 %v2831, 4
        %v2926 = vpop.permute.xlu0 %2925
        %2927 = vrot.lane.b32.xlu0 %v2833, 4
        %v2928 = vpop.permute.xlu0 %2927
        %2929 = vrot.lane.b32.xlu0 %v2834, 4
        %v2930 = vpop.permute.xlu0 %2929
        %2931 = vrot.lane.b32.xlu0 %v2837, 4
        %v2932 = vpop.permute.xlu0 %2931
        %2933 = vrot.lane.b32.xlu0 %v2839, 4
        %v2934 = vpop.permute.xlu0 %2933
        %2935 = vrot.lane.b32.xlu0 %v2840, 4
        %v2936 = vpop.permute.xlu0 %2935
        %v2985 = vrot.slane %v2681, 2
        %v2986 = vrot.slane %v2587, 2
        %v2987 = vsel %vm1001, %v2985, %v2986
        %v2988 = vrot.slane %v2697, 2
        %v2989 = vsel %vm1001, %v2986, %v2988
        %v2990 = vsel %vm1001, %v2988, %v1002
        %v2991 = vrot.slane %v2682, 2
        %v2992 = vrot.slane %v2590, 2
        %v2993 = vsel %vm1001, %v2991, %v2992
        %v2994 = vrot.slane %v2698, 2
        %v2995 = vsel %vm1001, %v2992, %v2994
        %v2996 = vsel %vm1001, %v2994, %v1002
        %v2997 = vrot.slane %v2683, 2
        %v2998 = vrot.slane %v2593, 2
        %v2999 = vsel %vm1001, %v2997, %v2998
        %v3000 = vrot.slane %v2699, 2
        %v3001 = vsel %vm1001, %v2998, %v3000
        %v3002 = vsel %vm1001, %v3000, %v1002
        %v3003 = vrot.slane %v2684, 2
        %v3004 = vrot.slane %v2596, 2
        %v3005 = vsel %vm1001, %v3003, %v3004
        %v3006 = vrot.slane %v2700, 2
        %v3007 = vsel %vm1001, %v3004, %v3006
        %v3008 = vsel %vm1001, %v3006, %v1002
        %v3009 = vrot.slane %v2685, 2
        %v3010 = vrot.slane %v2599, 2
        %v3011 = vsel %vm1001, %v3009, %v3010
        %v3012 = vrot.slane %v2701, 2
        %v3013 = vsel %vm1001, %v3010, %v3012
        %v3014 = vsel %vm1001, %v3012, %v1002
        %v3015 = vrot.slane %v2686, 2
        %v3016 = vrot.slane %v2602, 2
        %v3017 = vsel %vm1001, %v3015, %v3016
        %v3018 = vrot.slane %v2702, 2
        %v3019 = vsel %vm1001, %v3016, %v3018
        %v3020 = vsel %vm1001, %v3018, %v1002
        %v3021 = vrot.slane %v2687, 2
        %v3022 = vrot.slane %v2605, 2
        %v3023 = vsel %vm1001, %v3021, %v3022
        %v3024 = vrot.slane %v2703, 2
        %v3025 = vsel %vm1001, %v3022, %v3024
        %v3026 = vsel %vm1001, %v3024, %v1002
        %v3027 = vrot.slane %v2688, 2
        %v3028 = vrot.slane %v2608, 2
        %v3029 = vsel %vm1001, %v3027, %v3028
        %v3030 = vrot.slane %v2704, 2
        %v3031 = vsel %vm1001, %v3028, %v3030
        %v3032 = vsel %vm1001, %v3030, %v1002
        %v3033 = vrot.slane %v2689, 2
        %v3034 = vrot.slane %v2611, 2
        %v3035 = vsel %vm1001, %v3033, %v3034
        %v3036 = vrot.slane %v2705, 2
        %v3037 = vsel %vm1001, %v3034, %v3036
        %v3038 = vsel %vm1001, %v3036, %v1002
        %v3039 = vrot.slane %v2690, 2
        %v3040 = vrot.slane %v2614, 2
        %v3041 = vsel %vm1001, %v3039, %v3040
        %v3042 = vrot.slane %v2706, 2
        %v3043 = vsel %vm1001, %v3040, %v3042
        %v3044 = vsel %vm1001, %v3042, %v1002
        %v3045 = vrot.slane %v2691, 2
        %v3046 = vrot.slane %v2617, 2
        %v3047 = vsel %vm1001, %v3045, %v3046
        %v3048 = vrot.slane %v2707, 2
        %v3049 = vsel %vm1001, %v3046, %v3048
        %v3050 = vsel %vm1001, %v3048, %v1002
        %v3051 = vrot.slane %v2692, 2
        %v3052 = vrot.slane %v2620, 2
        %v3053 = vsel %vm1001, %v3051, %v3052
        %v3054 = vrot.slane %v2708, 2
        %v3055 = vsel %vm1001, %v3052, %v3054
        %v3056 = vsel %vm1001, %v3054, %v1002
        %v3057 = vrot.slane %v2693, 2
        %v3058 = vrot.slane %v2623, 2
        %v3059 = vsel %vm1001, %v3057, %v3058
        %v3060 = vrot.slane %v2709, 2
        %v3061 = vsel %vm1001, %v3058, %v3060
        %v3062 = vsel %vm1001, %v3060, %v1002
        %v3063 = vrot.slane %v2694, 2
        %v3064 = vrot.slane %v2626, 2
        %v3065 = vsel %vm1001, %v3063, %v3064
        %v3066 = vrot.slane %v2710, 2
        %v3067 = vsel %vm1001, %v3064, %v3066
        %v3068 = vsel %vm1001, %v3066, %v1002
        %v3069 = vrot.slane %v2695, 2
        %v3070 = vrot.slane %v2629, 2
        %v3071 = vsel %vm1001, %v3069, %v3070
        %v3072 = vrot.slane %v2711, 2
        %v3073 = vsel %vm1001, %v3070, %v3072
        %v3074 = vsel %vm1001, %v3072, %v1002
        %v3075 = vrot.slane %v2696, 2
        %v3076 = vrot.slane %v2632, 2
        %v3077 = vsel %vm1001, %v3075, %v3076
        %v3078 = vrot.slane %v2712, 2
        %v3079 = vsel %vm1001, %v3076, %v3078
        %v3080 = vsel %vm1001, %v3078, %v1002
        %3081 = vrot.lane.b32.xlu0 %v2987, 8
        %v3082 = vpop.permute.xlu0 %3081
        %3083 = vrot.lane.b32.xlu0 %v2989, 8
        %v3084 = vpop.permute.xlu0 %3083
        %3085 = vrot.lane.b32.xlu0 %v2990, 8
        %v3086 = vpop.permute.xlu0 %3085
        %3087 = vrot.lane.b32.xlu0 %v2993, 8
        %v3088 = vpop.permute.xlu0 %3087
        %3089 = vrot.lane.b32.xlu0 %v2995, 8
        %v3090 = vpop.permute.xlu0 %3089
        %3091 = vrot.lane.b32.xlu0 %v2996, 8
        %v3092 = vpop.permute.xlu0 %3091
        %3093 = vrot.lane.b32.xlu0 %v2999, 8
        %v3094 = vpop.permute.xlu0 %3093
        %3095 = vrot.lane.b32.xlu0 %v3001, 8
        %v3096 = vpop.permute.xlu0 %3095
        %3097 = vrot.lane.b32.xlu0 %v3002, 8
        %v3098 = vpop.permute.xlu0 %3097
        %3099 = vrot.lane.b32.xlu0 %v3005, 8
        %v3100 = vpop.permute.xlu0 %3099
        %3101 = vrot.lane.b32.xlu0 %v3007, 8
        %v3102 = vpop.permute.xlu0 %3101
        %3103 = vrot.lane.b32.xlu0 %v3008, 8
        %v3104 = vpop.permute.xlu0 %3103
        %3105 = vrot.lane.b32.xlu0 %v3011, 8
        %v3106 = vpop.permute.xlu0 %3105
        %3107 = vrot.lane.b32.xlu0 %v3013, 8
        %v3108 = vpop.permute.xlu0 %3107
        %3109 = vrot.lane.b32.xlu0 %v3014, 8
        %v3110 = vpop.permute.xlu0 %3109
        %3111 = vrot.lane.b32.xlu0 %v3017, 8
        %v3112 = vpop.permute.xlu0 %3111
        %3113 = vrot.lane.b32.xlu0 %v3019, 8
        %v3114 = vpop.permute.xlu0 %3113
        %3115 = vrot.lane.b32.xlu0 %v3020, 8
        %v3116 = vpop.permute.xlu0 %3115
        %3117 = vrot.lane.b32.xlu0 %v3023, 8
        %v3118 = vpop.permute.xlu0 %3117
        %3119 = vrot.lane.b32.xlu0 %v3025, 8
        %v3120 = vpop.permute.xlu0 %3119
        %3121 = vrot.lane.b32.xlu0 %v3026, 8
        %v3122 = vpop.permute.xlu0 %3121
        %3123 = vrot.lane.b32.xlu0 %v3029, 8
        %v3124 = vpop.permute.xlu0 %3123
        %3125 = vrot.lane.b32.xlu0 %v3031, 8
        %v3126 = vpop.permute.xlu0 %3125
        %3127 = vrot.lane.b32.xlu0 %v3032, 8
        %v3128 = vpop.permute.xlu0 %3127
        %3129 = vrot.lane.b32.xlu0 %v3035, 8
        %v3130 = vpop.permute.xlu0 %3129
        %3131 = vrot.lane.b32.xlu0 %v3037, 8
        %v3132 = vpop.permute.xlu0 %3131
        %3133 = vrot.lane.b32.xlu0 %v3038, 8
        %v3134 = vpop.permute.xlu0 %3133
        %3135 = vrot.lane.b32.xlu0 %v3041, 8
        %v3136 = vpop.permute.xlu0 %3135
        %3137 = vrot.lane.b32.xlu0 %v3043, 8
        %v3138 = vpop.permute.xlu0 %3137
        %3139 = vrot.lane.b32.xlu0 %v3044, 8
        %v3140 = vpop.permute.xlu0 %3139
        %3141 = vrot.lane.b32.xlu0 %v3047, 8
        %v3142 = vpop.permute.xlu0 %3141
        %3143 = vrot.lane.b32.xlu0 %v3049, 8
        %v3144 = vpop.permute.xlu0 %3143
        %3145 = vrot.lane.b32.xlu0 %v3050, 8
        %v3146 = vpop.permute.xlu0 %3145
        %3147 = vrot.lane.b32.xlu0 %v3053, 8
        %v3148 = vpop.permute.xlu0 %3147
        %3149 = vrot.lane.b32.xlu0 %v3055, 8
        %v3150 = vpop.permute.xlu0 %3149
        %3151 = vrot.lane.b32.xlu0 %v3056, 8
        %v3152 = vpop.permute.xlu0 %3151
        %3153 = vrot.lane.b32.xlu0 %v3059, 8
        %v3154 = vpop.permute.xlu0 %3153
        %3155 = vrot.lane.b32.xlu0 %v3061, 8
        %v3156 = vpop.permute.xlu0 %3155
        %3157 = vrot.lane.b32.xlu0 %v3062, 8
        %v3158 = vpop.permute.xlu0 %3157
        %3159 = vrot.lane.b32.xlu0 %v3065, 8
        %v3160 = vpop.permute.xlu0 %3159
        %3161 = vrot.lane.b32.xlu0 %v3067, 8
        %v3162 = vpop.permute.xlu0 %3161
        %3163 = vrot.lane.b32.xlu0 %v3068, 8
        %v3164 = vpop.permute.xlu0 %3163
        %3165 = vrot.lane.b32.xlu0 %v3071, 8
        %v3166 = vpop.permute.xlu0 %3165
        %3167 = vrot.lane.b32.xlu0 %v3073, 8
        %v3168 = vpop.permute.xlu0 %3167
        %3169 = vrot.lane.b32.xlu0 %v3074, 8
        %v3170 = vpop.permute.xlu0 %3169
        %3171 = vrot.lane.b32.xlu0 %v3077, 8
        %v3172 = vpop.permute.xlu0 %3171
        %3173 = vrot.lane.b32.xlu0 %v3079, 8
        %v3174 = vpop.permute.xlu0 %3173
        %3175 = vrot.lane.b32.xlu0 %v3080, 8
        %v3176 = vpop.permute.xlu0 %3175
        %3225 = vrot.lane.b32.xlu0 %v2681, 12
        %v3226 = vpop.permute.xlu0 %3225
        %3227 = vrot.lane.b32.xlu0 %v2587, 12
        %v3228 = vpop.permute.xlu0 %3227
        %3229 = vrot.lane.b32.xlu0 %v2697, 12
        %v3230 = vpop.permute.xlu0 %3229
        %3231 = vrot.lane.b32.xlu0 %v2682, 12
        %v3232 = vpop.permute.xlu0 %3231
        %3233 = vrot.lane.b32.xlu0 %v2590, 12
        %v3234 = vpop.permute.xlu0 %3233
        %3235 = vrot.lane.b32.xlu0 %v2698, 12
        %v3236 = vpop.permute.xlu0 %3235
        %3237 = vrot.lane.b32.xlu0 %v2683, 12
        %v3238 = vpop.permute.xlu0 %3237
        %3239 = vrot.lane.b32.xlu0 %v2593, 12
        %v3240 = vpop.permute.xlu0 %3239
        %3241 = vrot.lane.b32.xlu0 %v2699, 12
        %v3242 = vpop.permute.xlu0 %3241
        %3243 = vrot.lane.b32.xlu0 %v2684, 12
        %v3244 = vpop.permute.xlu0 %3243
        %3245 = vrot.lane.b32.xlu0 %v2596, 12
        %v3246 = vpop.permute.xlu0 %3245
        %3247 = vrot.lane.b32.xlu0 %v2700, 12
        %v3248 = vpop.permute.xlu0 %3247
        %3249 = vrot.lane.b32.xlu0 %v2685, 12
        %v3250 = vpop.permute.xlu0 %3249
        %3251 = vrot.lane.b32.xlu0 %v2599, 12
        %v3252 = vpop.permute.xlu0 %3251
        %3253 = vrot.lane.b32.xlu0 %v2701, 12
        %v3254 = vpop.permute.xlu0 %3253
        %3255 = vrot.lane.b32.xlu0 %v2686, 12
        %v3256 = vpop.permute.xlu0 %3255
        %3257 = vrot.lane.b32.xlu0 %v2602, 12
        %v3258 = vpop.permute.xlu0 %3257
        %3259 = vrot.lane.b32.xlu0 %v2702, 12
        %v3260 = vpop.permute.xlu0 %3259
        %3261 = vrot.lane.b32.xlu0 %v2687, 12
        %v3262 = vpop.permute.xlu0 %3261
        %3263 = vrot.lane.b32.xlu0 %v2605, 12
        %v3264 = vpop.permute.xlu0 %3263
        %3265 = vrot.lane.b32.xlu0 %v2703, 12
        %v3266 = vpop.permute.xlu0 %3265
        %3267 = vrot.lane.b32.xlu0 %v2688, 12
        %v3268 = vpop.permute.xlu0 %3267
        %3269 = vrot.lane.b32.xlu0 %v2608, 12
        %v3270 = vpop.permute.xlu0 %3269
        %3271 = vrot.lane.b32.xlu0 %v2704, 12
        %v3272 = vpop.permute.xlu0 %3271
        %3273 = vrot.lane.b32.xlu0 %v2689, 12
        %v3274 = vpop.permute.xlu0 %3273
        %3275 = vrot.lane.b32.xlu0 %v2611, 12
        %v3276 = vpop.permute.xlu0 %3275
        %3277 = vrot.lane.b32.xlu0 %v2705, 12
        %v3278 = vpop.permute.xlu0 %3277
        %3279 = vrot.lane.b32.xlu0 %v2690, 12
        %v3280 = vpop.permute.xlu0 %3279
        %3281 = vrot.lane.b32.xlu0 %v2614, 12
        %v3282 = vpop.permute.xlu0 %3281
        %3283 = vrot.lane.b32.xlu0 %v2706, 12
        %v3284 = vpop.permute.xlu0 %3283
        %3285 = vrot.lane.b32.xlu0 %v2691, 12
        %v3286 = vpop.permute.xlu0 %3285
        %3287 = vrot.lane.b32.xlu0 %v2617, 12
        %v3288 = vpop.permute.xlu0 %3287
        %3289 = vrot.lane.b32.xlu0 %v2707, 12
        %v3290 = vpop.permute.xlu0 %3289
        %3291 = vrot.lane.b32.xlu0 %v2692, 12
        %v3292 = vpop.permute.xlu0 %3291
        %3293 = vrot.lane.b32.xlu0 %v2620, 12
        %v3294 = vpop.permute.xlu0 %3293
        %3295 = vrot.lane.b32.xlu0 %v2708, 12
        %v3296 = vpop.permute.xlu0 %3295
        %3297 = vrot.lane.b32.xlu0 %v2693, 12
        %v3298 = vpop.permute.xlu0 %3297
        %3299 = vrot.lane.b32.xlu0 %v2623, 12
        %v3300 = vpop.permute.xlu0 %3299
        %3301 = vrot.lane.b32.xlu0 %v2709, 12
        %v3302 = vpop.permute.xlu0 %3301
        %3303 = vrot.lane.b32.xlu0 %v2694, 12
        %v3304 = vpop.permute.xlu0 %3303
        %3305 = vrot.lane.b32.xlu0 %v2626, 12
        %v3306 = vpop.permute.xlu0 %3305
        %3307 = vrot.lane.b32.xlu0 %v2710, 12
        %v3308 = vpop.permute.xlu0 %3307
        %3309 = vrot.lane.b32.xlu0 %v2695, 12
        %v3310 = vpop.permute.xlu0 %3309
        %3311 = vrot.lane.b32.xlu0 %v2629, 12
        %v3312 = vpop.permute.xlu0 %3311
        %3313 = vrot.lane.b32.xlu0 %v2711, 12
        %v3314 = vpop.permute.xlu0 %3313
        %3315 = vrot.lane.b32.xlu0 %v2696, 12
        %v3316 = vpop.permute.xlu0 %3315
        %3317 = vrot.lane.b32.xlu0 %v2632, 12
        %v3318 = vpop.permute.xlu0 %3317
        %3319 = vrot.lane.b32.xlu0 %v2712, 12
        %v3320 = vpop.permute.xlu0 %3319
        %3369 = vrot.lane.b32.xlu0 %v2747, 16
        %v3370 = vpop.permute.xlu0 %3369
        %3371 = vrot.lane.b32.xlu0 %v2749, 16
        %v3372 = vpop.permute.xlu0 %3371
        %3373 = vrot.lane.b32.xlu0 %v2750, 16
        %v3374 = vpop.permute.xlu0 %3373
        %3375 = vrot.lane.b32.xlu0 %v2753, 16
        %v3376 = vpop.permute.xlu0 %3375
        %3377 = vrot.lane.b32.xlu0 %v2755, 16
        %v3378 = vpop.permute.xlu0 %3377
        %3379 = vrot.lane.b32.xlu0 %v2756, 16
        %v3380 = vpop.permute.xlu0 %3379
        %3381 = vrot.lane.b32.xlu0 %v2759, 16
        %v3382 = vpop.permute.xlu0 %3381
        %3383 = vrot.lane.b32.xlu0 %v2761, 16
        %v3384 = vpop.permute.xlu0 %3383
        %3385 = vrot.lane.b32.xlu0 %v2762, 16
        %v3386 = vpop.permute.xlu0 %3385
        %3387 = vrot.lane.b32.xlu0 %v2765, 16
        %v3388 = vpop.permute.xlu0 %3387
        %3389 = vrot.lane.b32.xlu0 %v2767, 16
        %v3390 = vpop.permute.xlu0 %3389
        %3391 = vrot.lane.b32.xlu0 %v2768, 16
        %v3392 = vpop.permute.xlu0 %3391
        %3393 = vrot.lane.b32.xlu0 %v2771, 16
        %v3394 = vpop.permute.xlu0 %3393
        %3395 = vrot.lane.b32.xlu0 %v2773, 16
        %v3396 = vpop.permute.xlu0 %3395
        %3397 = vrot.lane.b32.xlu0 %v2774, 16
        %v3398 = vpop.permute.xlu0 %3397
        %3399 = vrot.lane.b32.xlu0 %v2777, 16
        %v3400 = vpop.permute.xlu0 %3399
        %3401 = vrot.lane.b32.xlu0 %v2779, 16
        %v3402 = vpop.permute.xlu0 %3401
        %3403 = vrot.lane.b32.xlu0 %v2780, 16
        %v3404 = vpop.permute.xlu0 %3403
        %3405 = vrot.lane.b32.xlu0 %v2783, 16
        %v3406 = vpop.permute.xlu0 %3405
        %3407 = vrot.lane.b32.xlu0 %v2785, 16
        %v3408 = vpop.permute.xlu0 %3407
        %3409 = vrot.lane.b32.xlu0 %v2786, 16
        %v3410 = vpop.permute.xlu0 %3409
        %3411 = vrot.lane.b32.xlu0 %v2789, 16
        %v3412 = vpop.permute.xlu0 %3411
        %3413 = vrot.lane.b32.xlu0 %v2791, 16
        %v3414 = vpop.permute.xlu0 %3413
        %3415 = vrot.lane.b32.xlu0 %v2792, 16
        %v3416 = vpop.permute.xlu0 %3415
        %3417 = vrot.lane.b32.xlu0 %v2795, 16
        %v3418 = vpop.permute.xlu0 %3417
        %3419 = vrot.lane.b32.xlu0 %v2797, 16
        %v3420 = vpop.permute.xlu0 %3419
        %3421 = vrot.lane.b32.xlu0 %v2798, 16
        %v3422 = vpop.permute.xlu0 %3421
        %3423 = vrot.lane.b32.xlu0 %v2801, 16
        %v3424 = vpop.permute.xlu0 %3423
        %3425 = vrot.lane.b32.xlu0 %v2803, 16
        %v3426 = vpop.permute.xlu0 %3425
        %3427 = vrot.lane.b32.xlu0 %v2804, 16
        %v3428 = vpop.permute.xlu0 %3427
        %3429 = vrot.lane.b32.xlu0 %v2807, 16
        %v3430 = vpop.permute.xlu0 %3429
        %3431 = vrot.lane.b32.xlu0 %v2809, 16
        %v3432 = vpop.permute.xlu0 %3431
        %3433 = vrot.lane.b32.xlu0 %v2810, 16
        %v3434 = vpop.permute.xlu0 %3433
        %3435 = vrot.lane.b32.xlu0 %v2813, 16
        %v3436 = vpop.permute.xlu0 %3435
        %3437 = vrot.lane.b32.xlu0 %v2815, 16
        %v3438 = vpop.permute.xlu0 %3437
        %3439 = vrot.lane.b32.xlu0 %v2816, 16
        %v3440 = vpop.permute.xlu0 %3439
        %3441 = vrot.lane.b32.xlu0 %v2819, 16
        %v3442 = vpop.permute.xlu0 %3441
        %3443 = vrot.lane.b32.xlu0 %v2821, 16
        %v3444 = vpop.permute.xlu0 %3443
        %3445 = vrot.lane.b32.xlu0 %v2822, 16
        %v3446 = vpop.permute.xlu0 %3445
        %3447 = vrot.lane.b32.xlu0 %v2825, 16
        %v3448 = vpop.permute.xlu0 %3447
        %3449 = vrot.lane.b32.xlu0 %v2827, 16
        %v3450 = vpop.permute.xlu0 %3449
        %3451 = vrot.lane.b32.xlu0 %v2828, 16
        %v3452 = vpop.permute.xlu0 %3451
        %3453 = vrot.lane.b32.xlu0 %v2831, 16
        %v3454 = vpop.permute.xlu0 %3453
        %3455 = vrot.lane.b32.xlu0 %v2833, 16
        %v3456 = vpop.permute.xlu0 %3455
        %3457 = vrot.lane.b32.xlu0 %v2834, 16
        %v3458 = vpop.permute.xlu0 %3457
        %3459 = vrot.lane.b32.xlu0 %v2837, 16
        %v3460 = vpop.permute.xlu0 %3459
        %3461 = vrot.lane.b32.xlu0 %v2839, 16
        %v3462 = vpop.permute.xlu0 %3461
        %3463 = vrot.lane.b32.xlu0 %v2840, 16
        %v3464 = vpop.permute.xlu0 %3463
        %3513 = vrot.lane.b32.xlu0 %v2987, 20
        %v3514 = vpop.permute.xlu0 %3513
        %3515 = vrot.lane.b32.xlu0 %v2989, 20
        %v3516 = vpop.permute.xlu0 %3515
        %3517 = vrot.lane.b32.xlu0 %v2990, 20
        %v3518 = vpop.permute.xlu0 %3517
        %3519 = vrot.lane.b32.xlu0 %v2993, 20
        %v3520 = vpop.permute.xlu0 %3519
        %3521 = vrot.lane.b32.xlu0 %v2995, 20
        %v3522 = vpop.permute.xlu0 %3521
        %3523 = vrot.lane.b32.xlu0 %v2996, 20
        %v3524 = vpop.permute.xlu0 %3523
        %3525 = vrot.lane.b32.xlu0 %v2999, 20
        %v3526 = vpop.permute.xlu0 %3525
        %3527 = vrot.lane.b32.xlu0 %v3001, 20
        %v3528 = vpop.permute.xlu0 %3527
        %3529 = vrot.lane.b32.xlu0 %v3002, 20
        %v3530 = vpop.permute.xlu0 %3529
        %3531 = vrot.lane.b32.xlu0 %v3005, 20
        %v3532 = vpop.permute.xlu0 %3531
        %3533 = vrot.lane.b32.xlu0 %v3007, 20
        %v3534 = vpop.permute.xlu0 %3533
        %3535 = vrot.lane.b32.xlu0 %v3008, 20
        %v3536 = vpop.permute.xlu0 %3535
        %3537 = vrot.lane.b32.xlu0 %v3011, 20
        %v3538 = vpop.permute.xlu0 %3537
        %3539 = vrot.lane.b32.xlu0 %v3013, 20
        %v3540 = vpop.permute.xlu0 %3539
        %3541 = vrot.lane.b32.xlu0 %v3014, 20
        %v3542 = vpop.permute.xlu0 %3541
        %3543 = vrot.lane.b32.xlu0 %v3017, 20
        %v3544 = vpop.permute.xlu0 %3543
        %3545 = vrot.lane.b32.xlu0 %v3019, 20
        %v3546 = vpop.permute.xlu0 %3545
        %3547 = vrot.lane.b32.xlu0 %v3020, 20
        %v3548 = vpop.permute.xlu0 %3547
        %3549 = vrot.lane.b32.xlu0 %v3023, 20
        %v3550 = vpop.permute.xlu0 %3549
        %3551 = vrot.lane.b32.xlu0 %v3025, 20
        %v3552 = vpop.permute.xlu0 %3551
        %3553 = vrot.lane.b32.xlu0 %v3026, 20
        %v3554 = vpop.permute.xlu0 %3553
        %3555 = vrot.lane.b32.xlu0 %v3029, 20
        %v3556 = vpop.permute.xlu0 %3555
        %3557 = vrot.lane.b32.xlu0 %v3031, 20
        %v3558 = vpop.permute.xlu0 %3557
        %3559 = vrot.lane.b32.xlu0 %v3032, 20
        %v3560 = vpop.permute.xlu0 %3559
        %3561 = vrot.lane.b32.xlu0 %v3035, 20
        %v3562 = vpop.permute.xlu0 %3561
        %3563 = vrot.lane.b32.xlu0 %v3037, 20
        %v3564 = vpop.permute.xlu0 %3563
        %3565 = vrot.lane.b32.xlu0 %v3038, 20
        %v3566 = vpop.permute.xlu0 %3565
        %3567 = vrot.lane.b32.xlu0 %v3041, 20
        %v3568 = vpop.permute.xlu0 %3567
        %3569 = vrot.lane.b32.xlu0 %v3043, 20
        %v3570 = vpop.permute.xlu0 %3569
        %3571 = vrot.lane.b32.xlu0 %v3044, 20
        %v3572 = vpop.permute.xlu0 %3571
        %3573 = vrot.lane.b32.xlu0 %v3047, 20
        %v3574 = vpop.permute.xlu0 %3573
        %3575 = vrot.lane.b32.xlu0 %v3049, 20
        %v3576 = vpop.permute.xlu0 %3575
        %3577 = vrot.lane.b32.xlu0 %v3050, 20
        %v3578 = vpop.permute.xlu0 %3577
        %3579 = vrot.lane.b32.xlu0 %v3053, 20
        %v3580 = vpop.permute.xlu0 %3579
        %3581 = vrot.lane.b32.xlu0 %v3055, 20
        %v3582 = vpop.permute.xlu0 %3581
        %3583 = vrot.lane.b32.xlu0 %v3056, 20
        %v3584 = vpop.permute.xlu0 %3583
        %3585 = vrot.lane.b32.xlu0 %v3059, 20
        %v3586 = vpop.permute.xlu0 %3585
        %3587 = vrot.lane.b32.xlu0 %v3061, 20
        %v3588 = vpop.permute.xlu0 %3587
        %3589 = vrot.lane.b32.xlu0 %v3062, 20
        %v3590 = vpop.permute.xlu0 %3589
        %3591 = vrot.lane.b32.xlu0 %v3065, 20
        %v3592 = vpop.permute.xlu0 %3591
        %3593 = vrot.lane.b32.xlu0 %v3067, 20
        %v3594 = vpop.permute.xlu0 %3593
        %3595 = vrot.lane.b32.xlu0 %v3068, 20
        %v3596 = vpop.permute.xlu0 %3595
        %3597 = vrot.lane.b32.xlu0 %v3071, 20
        %v3598 = vpop.permute.xlu0 %3597
        %3599 = vrot.lane.b32.xlu0 %v3073, 20
        %v3600 = vpop.permute.xlu0 %3599
        %3601 = vrot.lane.b32.xlu0 %v3074, 20
        %v3602 = vpop.permute.xlu0 %3601
        %3603 = vrot.lane.b32.xlu0 %v3077, 20
        %v3604 = vpop.permute.xlu0 %3603
        %3605 = vrot.lane.b32.xlu0 %v3079, 20
        %v3606 = vpop.permute.xlu0 %3605
        %3607 = vrot.lane.b32.xlu0 %v3080, 20
        %v3608 = vpop.permute.xlu0 %3607
        %3657 = vrot.lane.b32.xlu0 %v2681, 24
        %v3658 = vpop.permute.xlu0 %3657
        %3659 = vrot.lane.b32.xlu0 %v2587, 24
        %v3660 = vpop.permute.xlu0 %3659
        %3661 = vrot.lane.b32.xlu0 %v2697, 24
        %v3662 = vpop.permute.xlu0 %3661
        %3663 = vrot.lane.b32.xlu0 %v2682, 24
        %v3664 = vpop.permute.xlu0 %3663
        %3665 = vrot.lane.b32.xlu0 %v2590, 24
        %v3666 = vpop.permute.xlu0 %3665
        %3667 = vrot.lane.b32.xlu0 %v2698, 24
        %v3668 = vpop.permute.xlu0 %3667
        %3669 = vrot.lane.b32.xlu0 %v2683, 24
        %v3670 = vpop.permute.xlu0 %3669
        %3671 = vrot.lane.b32.xlu0 %v2593, 24
        %v3672 = vpop.permute.xlu0 %3671
        %3673 = vrot.lane.b32.xlu0 %v2699, 24
        %v3674 = vpop.permute.xlu0 %3673
        %3675 = vrot.lane.b32.xlu0 %v2684, 24
        %v3676 = vpop.permute.xlu0 %3675
        %3677 = vrot.lane.b32.xlu0 %v2596, 24
        %v3678 = vpop.permute.xlu0 %3677
        %3679 = vrot.lane.b32.xlu0 %v2700, 24
        %v3680 = vpop.permute.xlu0 %3679
        %3681 = vrot.lane.b32.xlu0 %v2685, 24
        %v3682 = vpop.permute.xlu0 %3681
        %3683 = vrot.lane.b32.xlu0 %v2599, 24
        %v3684 = vpop.permute.xlu0 %3683
        %3685 = vrot.lane.b32.xlu0 %v2701, 24
        %v3686 = vpop.permute.xlu0 %3685
        %3687 = vrot.lane.b32.xlu0 %v2686, 24
        %v3688 = vpop.permute.xlu0 %3687
        %3689 = vrot.lane.b32.xlu0 %v2602, 24
        %v3690 = vpop.permute.xlu0 %3689
        %3691 = vrot.lane.b32.xlu0 %v2702, 24
        %v3692 = vpop.permute.xlu0 %3691
        %3693 = vrot.lane.b32.xlu0 %v2687, 24
        %v3694 = vpop.permute.xlu0 %3693
        %3695 = vrot.lane.b32.xlu0 %v2605, 24
        %v3696 = vpop.permute.xlu0 %3695
        %3697 = vrot.lane.b32.xlu0 %v2703, 24
        %v3698 = vpop.permute.xlu0 %3697
        %3699 = vrot.lane.b32.xlu0 %v2688, 24
        %v3700 = vpop.permute.xlu0 %3699
        %3701 = vrot.lane.b32.xlu0 %v2608, 24
        %v3702 = vpop.permute.xlu0 %3701
        %3703 = vrot.lane.b32.xlu0 %v2704, 24
        %v3704 = vpop.permute.xlu0 %3703
        %3705 = vrot.lane.b32.xlu0 %v2689, 24
        %v3706 = vpop.permute.xlu0 %3705
        %3707 = vrot.lane.b32.xlu0 %v2611, 24
        %v3708 = vpop.permute.xlu0 %3707
        %3709 = vrot.lane.b32.xlu0 %v2705, 24
        %v3710 = vpop.permute.xlu0 %3709
        %3711 = vrot.lane.b32.xlu0 %v2690, 24
        %v3712 = vpop.permute.xlu0 %3711
        %3713 = vrot.lane.b32.xlu0 %v2614, 24
        %v3714 = vpop.permute.xlu0 %3713
        %3715 = vrot.lane.b32.xlu0 %v2706, 24
        %v3716 = vpop.permute.xlu0 %3715
        %3717 = vrot.lane.b32.xlu0 %v2691, 24
        %v3718 = vpop.permute.xlu0 %3717
        %3719 = vrot.lane.b32.xlu0 %v2617, 24
        %v3720 = vpop.permute.xlu0 %3719
        %3721 = vrot.lane.b32.xlu0 %v2707, 24
        %v3722 = vpop.permute.xlu0 %3721
        %3723 = vrot.lane.b32.xlu0 %v2692, 24
        %v3724 = vpop.permute.xlu0 %3723
        %3725 = vrot.lane.b32.xlu0 %v2620, 24
        %v3726 = vpop.permute.xlu0 %3725
        %3727 = vrot.lane.b32.xlu0 %v2708, 24
        %v3728 = vpop.permute.xlu0 %3727
        %3729 = vrot.lane.b32.xlu0 %v2693, 24
        %v3730 = vpop.permute.xlu0 %3729
        %3731 = vrot.lane.b32.xlu0 %v2623, 24
        %v3732 = vpop.permute.xlu0 %3731
        %3733 = vrot.lane.b32.xlu0 %v2709, 24
        %v3734 = vpop.permute.xlu0 %3733
        %3735 = vrot.lane.b32.xlu0 %v2694, 24
        %v3736 = vpop.permute.xlu0 %3735
        %3737 = vrot.lane.b32.xlu0 %v2626, 24
        %v3738 = vpop.permute.xlu0 %3737
        %3739 = vrot.lane.b32.xlu0 %v2710, 24
        %v3740 = vpop.permute.xlu0 %3739
        %3741 = vrot.lane.b32.xlu0 %v2695, 24
        %v3742 = vpop.permute.xlu0 %3741
        %3743 = vrot.lane.b32.xlu0 %v2629, 24
        %v3744 = vpop.permute.xlu0 %3743
        %3745 = vrot.lane.b32.xlu0 %v2711, 24
        %v3746 = vpop.permute.xlu0 %3745
        %3747 = vrot.lane.b32.xlu0 %v2696, 24
        %v3748 = vpop.permute.xlu0 %3747
        %3749 = vrot.lane.b32.xlu0 %v2632, 24
        %v3750 = vpop.permute.xlu0 %3749
        %3751 = vrot.lane.b32.xlu0 %v2712, 24
        %v3752 = vpop.permute.xlu0 %3751
        %3801 = vrot.lane.b32.xlu0 %v2747, 28
        %v3802 = vpop.permute.xlu0 %3801
        %3803 = vrot.lane.b32.xlu0 %v2749, 28
        %v3804 = vpop.permute.xlu0 %3803
        %3805 = vrot.lane.b32.xlu0 %v2750, 28
        %v3806 = vpop.permute.xlu0 %3805
        %3807 = vrot.lane.b32.xlu0 %v2753, 28
        %v3808 = vpop.permute.xlu0 %3807
        %3809 = vrot.lane.b32.xlu0 %v2755, 28
        %v3810 = vpop.permute.xlu0 %3809
        %3811 = vrot.lane.b32.xlu0 %v2756, 28
        %v3812 = vpop.permute.xlu0 %3811
        %3813 = vrot.lane.b32.xlu0 %v2759, 28
        %v3814 = vpop.permute.xlu0 %3813
        %3815 = vrot.lane.b32.xlu0 %v2761, 28
        %v3816 = vpop.permute.xlu0 %3815
        %3817 = vrot.lane.b32.xlu0 %v2762, 28
        %v3818 = vpop.permute.xlu0 %3817
        %3819 = vrot.lane.b32.xlu0 %v2765, 28
        %v3820 = vpop.permute.xlu0 %3819
        %3821 = vrot.lane.b32.xlu0 %v2767, 28
        %v3822 = vpop.permute.xlu0 %3821
        %3823 = vrot.lane.b32.xlu0 %v2768, 28
        %v3824 = vpop.permute.xlu0 %3823
        %3825 = vrot.lane.b32.xlu0 %v2771, 28
        %v3826 = vpop.permute.xlu0 %3825
        %3827 = vrot.lane.b32.xlu0 %v2773, 28
        %v3828 = vpop.permute.xlu0 %3827
        %3829 = vrot.lane.b32.xlu0 %v2774, 28
        %v3830 = vpop.permute.xlu0 %3829
        %3831 = vrot.lane.b32.xlu0 %v2777, 28
        %v3832 = vpop.permute.xlu0 %3831
        %3833 = vrot.lane.b32.xlu0 %v2779, 28
        %v3834 = vpop.permute.xlu0 %3833
        %3835 = vrot.lane.b32.xlu0 %v2780, 28
        %v3836 = vpop.permute.xlu0 %3835
        %3837 = vrot.lane.b32.xlu0 %v2783, 28
        %v3838 = vpop.permute.xlu0 %3837
        %3839 = vrot.lane.b32.xlu0 %v2785, 28
        %v3840 = vpop.permute.xlu0 %3839
        %3841 = vrot.lane.b32.xlu0 %v2786, 28
        %v3842 = vpop.permute.xlu0 %3841
        %3843 = vrot.lane.b32.xlu0 %v2789, 28
        %v3844 = vpop.permute.xlu0 %3843
        %3845 = vrot.lane.b32.xlu0 %v2791, 28
        %v3846 = vpop.permute.xlu0 %3845
        %3847 = vrot.lane.b32.xlu0 %v2792, 28
        %v3848 = vpop.permute.xlu0 %3847
        %3849 = vrot.lane.b32.xlu0 %v2795, 28
        %v3850 = vpop.permute.xlu0 %3849
        %3851 = vrot.lane.b32.xlu0 %v2797, 28
        %v3852 = vpop.permute.xlu0 %3851
        %3853 = vrot.lane.b32.xlu0 %v2798, 28
        %v3854 = vpop.permute.xlu0 %3853
        %3855 = vrot.lane.b32.xlu0 %v2801, 28
        %v3856 = vpop.permute.xlu0 %3855
        %3857 = vrot.lane.b32.xlu0 %v2803, 28
        %v3858 = vpop.permute.xlu0 %3857
        %3859 = vrot.lane.b32.xlu0 %v2804, 28
        %v3860 = vpop.permute.xlu0 %3859
        %3861 = vrot.lane.b32.xlu0 %v2807, 28
        %v3862 = vpop.permute.xlu0 %3861
        %3863 = vrot.lane.b32.xlu0 %v2809, 28
        %v3864 = vpop.permute.xlu0 %3863
        %3865 = vrot.lane.b32.xlu0 %v2810, 28
        %v3866 = vpop.permute.xlu0 %3865
        %3867 = vrot.lane.b32.xlu0 %v2813, 28
        %v3868 = vpop.permute.xlu0 %3867
        %3869 = vrot.lane.b32.xlu0 %v2815, 28
        %v3870 = vpop.permute.xlu0 %3869
        %3871 = vrot.lane.b32.xlu0 %v2816, 28
        %v3872 = vpop.permute.xlu0 %3871
        %3873 = vrot.lane.b32.xlu0 %v2819, 28
        %v3874 = vpop.permute.xlu0 %3873
        %3875 = vrot.lane.b32.xlu0 %v2821, 28
        %v3876 = vpop.permute.xlu0 %3875
        %3877 = vrot.lane.b32.xlu0 %v2822, 28
        %v3878 = vpop.permute.xlu0 %3877
        %3879 = vrot.lane.b32.xlu0 %v2825, 28
        %v3880 = vpop.permute.xlu0 %3879
        %3881 = vrot.lane.b32.xlu0 %v2827, 28
        %v3882 = vpop.permute.xlu0 %3881
        %3883 = vrot.lane.b32.xlu0 %v2828, 28
        %v3884 = vpop.permute.xlu0 %3883
        %3885 = vrot.lane.b32.xlu0 %v2831, 28
        %v3886 = vpop.permute.xlu0 %3885
        %3887 = vrot.lane.b32.xlu0 %v2833, 28
        %v3888 = vpop.permute.xlu0 %3887
        %3889 = vrot.lane.b32.xlu0 %v2834, 28
        %v3890 = vpop.permute.xlu0 %3889
        %3891 = vrot.lane.b32.xlu0 %v2837, 28
        %v3892 = vpop.permute.xlu0 %3891
        %3893 = vrot.lane.b32.xlu0 %v2839, 28
        %v3894 = vpop.permute.xlu0 %3893
        %3895 = vrot.lane.b32.xlu0 %v2840, 28
        %v3896 = vpop.permute.xlu0 %3895
        %3945 = vrot.lane.b32.xlu0 %v2987, 32
        %v3946 = vpop.permute.xlu0 %3945
        %3947 = vrot.lane.b32.xlu0 %v2989, 32
        %v3948 = vpop.permute.xlu0 %3947
        %3949 = vrot.lane.b32.xlu0 %v2990, 32
        %v3950 = vpop.permute.xlu0 %3949
        %3951 = vrot.lane.b32.xlu0 %v2993, 32
        %v3952 = vpop.permute.xlu0 %3951
        %3953 = vrot.lane.b32.xlu0 %v2995, 32
        %v3954 = vpop.permute.xlu0 %3953
        %3955 = vrot.lane.b32.xlu0 %v2996, 32
        %v3956 = vpop.permute.xlu0 %3955
        %3957 = vrot.lane.b32.xlu0 %v2999, 32
        %v3958 = vpop.permute.xlu0 %3957
        %3959 = vrot.lane.b32.xlu0 %v3001, 32
        %v3960 = vpop.permute.xlu0 %3959
        %3961 = vrot.lane.b32.xlu0 %v3002, 32
        %v3962 = vpop.permute.xlu0 %3961
        %3963 = vrot.lane.b32.xlu0 %v3005, 32
        %v3964 = vpop.permute.xlu0 %3963
        %3965 = vrot.lane.b32.xlu0 %v3007, 32
        %v3966 = vpop.permute.xlu0 %3965
        %3967 = vrot.lane.b32.xlu0 %v3008, 32
        %v3968 = vpop.permute.xlu0 %3967
        %3969 = vrot.lane.b32.xlu0 %v3011, 32
        %v3970 = vpop.permute.xlu0 %3969
        %3971 = vrot.lane.b32.xlu0 %v3013, 32
        %v3972 = vpop.permute.xlu0 %3971
        %3973 = vrot.lane.b32.xlu0 %v3014, 32
        %v3974 = vpop.permute.xlu0 %3973
        %3975 = vrot.lane.b32.xlu0 %v3017, 32
        %v3976 = vpop.permute.xlu0 %3975
        %3977 = vrot.lane.b32.xlu0 %v3019, 32
        %v3978 = vpop.permute.xlu0 %3977
        %3979 = vrot.lane.b32.xlu0 %v3020, 32
        %v3980 = vpop.permute.xlu0 %3979
        %3981 = vrot.lane.b32.xlu0 %v3023, 32
        %v3982 = vpop.permute.xlu0 %3981
        %3983 = vrot.lane.b32.xlu0 %v3025, 32
        %v3984 = vpop.permute.xlu0 %3983
        %3985 = vrot.lane.b32.xlu0 %v3026, 32
        %v3986 = vpop.permute.xlu0 %3985
        %3987 = vrot.lane.b32.xlu0 %v3029, 32
        %v3988 = vpop.permute.xlu0 %3987
        %3989 = vrot.lane.b32.xlu0 %v3031, 32
        %v3990 = vpop.permute.xlu0 %3989
        %3991 = vrot.lane.b32.xlu0 %v3032, 32
        %v3992 = vpop.permute.xlu0 %3991
        %3993 = vrot.lane.b32.xlu0 %v3035, 32
        %v3994 = vpop.permute.xlu0 %3993
        %3995 = vrot.lane.b32.xlu0 %v3037, 32
        %v3996 = vpop.permute.xlu0 %3995
        %3997 = vrot.lane.b32.xlu0 %v3038, 32
        %v3998 = vpop.permute.xlu0 %3997
        %3999 = vrot.lane.b32.xlu0 %v3041, 32
        %v4000 = vpop.permute.xlu0 %3999
        %4001 = vrot.lane.b32.xlu0 %v3043, 32
        %v4002 = vpop.permute.xlu0 %4001
        %4003 = vrot.lane.b32.xlu0 %v3044, 32
        %v4004 = vpop.permute.xlu0 %4003
        %4005 = vrot.lane.b32.xlu0 %v3047, 32
        %v4006 = vpop.permute.xlu0 %4005
        %4007 = vrot.lane.b32.xlu0 %v3049, 32
        %v4008 = vpop.permute.xlu0 %4007
        %4009 = vrot.lane.b32.xlu0 %v3050, 32
        %v4010 = vpop.permute.xlu0 %4009
        %4011 = vrot.lane.b32.xlu0 %v3053, 32
        %v4012 = vpop.permute.xlu0 %4011
        %4013 = vrot.lane.b32.xlu0 %v3055, 32
        %v4014 = vpop.permute.xlu0 %4013
        %4015 = vrot.lane.b32.xlu0 %v3056, 32
        %v4016 = vpop.permute.xlu0 %4015
        %4017 = vrot.lane.b32.xlu0 %v3059, 32
        %v4018 = vpop.permute.xlu0 %4017
        %4019 = vrot.lane.b32.xlu0 %v3061, 32
        %v4020 = vpop.permute.xlu0 %4019
        %4021 = vrot.lane.b32.xlu0 %v3062, 32
        %v4022 = vpop.permute.xlu0 %4021
        %4023 = vrot.lane.b32.xlu0 %v3065, 32
        %v4024 = vpop.permute.xlu0 %4023
        %4025 = vrot.lane.b32.xlu0 %v3067, 32
        %v4026 = vpop.permute.xlu0 %4025
        %4027 = vrot.lane.b32.xlu0 %v3068, 32
        %v4028 = vpop.permute.xlu0 %4027
        %4029 = vrot.lane.b32.xlu0 %v3071, 32
        %v4030 = vpop.permute.xlu0 %4029
        %4031 = vrot.lane.b32.xlu0 %v3073, 32
        %v4032 = vpop.permute.xlu0 %4031
        %4033 = vrot.lane.b32.xlu0 %v3074, 32
        %v4034 = vpop.permute.xlu0 %4033
        %4035 = vrot.lane.b32.xlu0 %v3077, 32
        %v4036 = vpop.permute.xlu0 %4035
        %4037 = vrot.lane.b32.xlu0 %v3079, 32
        %v4038 = vpop.permute.xlu0 %4037
        %4039 = vrot.lane.b32.xlu0 %v3080, 32
        %v4040 = vpop.permute.xlu0 %4039
        %v4089 = vsel %vm2129, %v2681, %v2842
        %v4090 = vsel %vm2129, %v2587, %v2844
        %v4091 = vsel %vm2129, %v2697, %v2846
        %v4092 = vsel %vm2129, %v2682, %v2848
        %v4093 = vsel %vm2129, %v2590, %v2850
        %v4094 = vsel %vm2129, %v2698, %v2852
        %v4095 = vsel %vm2129, %v2683, %v2854
        %v4096 = vsel %vm2129, %v2593, %v2856
        %v4097 = vsel %vm2129, %v2699, %v2858
        %v4098 = vsel %vm2129, %v2684, %v2860
        %v4099 = vsel %vm2129, %v2596, %v2862
        %v4100 = vsel %vm2129, %v2700, %v2864
        %v4101 = vsel %vm2129, %v2685, %v2866
        %v4102 = vsel %vm2129, %v2599, %v2868
        %v4103 = vsel %vm2129, %v2701, %v2870
        %v4104 = vsel %vm2129, %v2686, %v2872
        %v4105 = vsel %vm2129, %v2602, %v2874
        %v4106 = vsel %vm2129, %v2702, %v2876
        %v4107 = vsel %vm2129, %v2687, %v2878
        %v4108 = vsel %vm2129, %v2605, %v2880
        %v4109 = vsel %vm2129, %v2703, %v2882
        %v4110 = vsel %vm2129, %v2688, %v2884
        %v4111 = vsel %vm2129, %v2608, %v2886
        %v4112 = vsel %vm2129, %v2704, %v2888
        %v4113 = vsel %vm2129, %v2689, %v2890
        %v4114 = vsel %vm2129, %v2611, %v2892
        %v4115 = vsel %vm2129, %v2705, %v2894
        %v4116 = vsel %vm2129, %v2690, %v2896
        %v4117 = vsel %vm2129, %v2614, %v2898
        %v4118 = vsel %vm2129, %v2706, %v2900
        %v4119 = vsel %vm2129, %v2691, %v2902
        %v4120 = vsel %vm2129, %v2617, %v2904
        %v4121 = vsel %vm2129, %v2707, %v2906
        %v4122 = vsel %vm2129, %v2692, %v2908
        %v4123 = vsel %vm2129, %v2620, %v2910
        %v4124 = vsel %vm2129, %v2708, %v2912
        %v4125 = vsel %vm2129, %v2693, %v2914
        %v4126 = vsel %vm2129, %v2623, %v2916
        %v4127 = vsel %vm2129, %v2709, %v2918
        %v4128 = vsel %vm2129, %v2694, %v2920
        %v4129 = vsel %vm2129, %v2626, %v2922
        %v4130 = vsel %vm2129, %v2710, %v2924
        %v4131 = vsel %vm2129, %v2695, %v2926
        %v4132 = vsel %vm2129, %v2629, %v2928
        %v4133 = vsel %vm2129, %v2711, %v2930
        %v4134 = vsel %vm2129, %v2696, %v2932
        %v4135 = vsel %vm2129, %v2632, %v2934
        %v4136 = vsel %vm2129, %v2712, %v2936
        %v4137 = vsel %vm2179, %v4089, %v3082
        %v4138 = vsel %vm2179, %v4090, %v3084
        %v4139 = vsel %vm2179, %v4091, %v3086
        %v4140 = vsel %vm2179, %v4092, %v3088
        %v4141 = vsel %vm2179, %v4093, %v3090
        %v4142 = vsel %vm2179, %v4094, %v3092
        %v4143 = vsel %vm2179, %v4095, %v3094
        %v4144 = vsel %vm2179, %v4096, %v3096
        %v4145 = vsel %vm2179, %v4097, %v3098
        %v4146 = vsel %vm2179, %v4098, %v3100
        %v4147 = vsel %vm2179, %v4099, %v3102
        %v4148 = vsel %vm2179, %v4100, %v3104
        %v4149 = vsel %vm2179, %v4101, %v3106
        %v4150 = vsel %vm2179, %v4102, %v3108
        %v4151 = vsel %vm2179, %v4103, %v3110
        %v4152 = vsel %vm2179, %v4104, %v3112
        %v4153 = vsel %vm2179, %v4105, %v3114
        %v4154 = vsel %vm2179, %v4106, %v3116
        %v4155 = vsel %vm2179, %v4107, %v3118
        %v4156 = vsel %vm2179, %v4108, %v3120
        %v4157 = vsel %vm2179, %v4109, %v3122
        %v4158 = vsel %vm2179, %v4110, %v3124
        %v4159 = vsel %vm2179, %v4111, %v3126
        %v4160 = vsel %vm2179, %v4112, %v3128
        %v4161 = vsel %vm2179, %v4113, %v3130
        %v4162 = vsel %vm2179, %v4114, %v3132
        %v4163 = vsel %vm2179, %v4115, %v3134
        %v4164 = vsel %vm2179, %v4116, %v3136
        %v4165 = vsel %vm2179, %v4117, %v3138
        %v4166 = vsel %vm2179, %v4118, %v3140
        %v4167 = vsel %vm2179, %v4119, %v3142
        %v4168 = vsel %vm2179, %v4120, %v3144
        %v4169 = vsel %vm2179, %v4121, %v3146
        %v4170 = vsel %vm2179, %v4122, %v3148
        %v4171 = vsel %vm2179, %v4123, %v3150
        %v4172 = vsel %vm2179, %v4124, %v3152
        %v4173 = vsel %vm2179, %v4125, %v3154
        %v4174 = vsel %vm2179, %v4126, %v3156
        %v4175 = vsel %vm2179, %v4127, %v3158
        %v4176 = vsel %vm2179, %v4128, %v3160
        %v4177 = vsel %vm2179, %v4129, %v3162
        %v4178 = vsel %vm2179, %v4130, %v3164
        %v4179 = vsel %vm2179, %v4131, %v3166
        %v4180 = vsel %vm2179, %v4132, %v3168
        %v4181 = vsel %vm2179, %v4133, %v3170
        %v4182 = vsel %vm2179, %v4134, %v3172
        %v4183 = vsel %vm2179, %v4135, %v3174
        %v4184 = vsel %vm2179, %v4136, %v3176
        %v4185 = vsel %vm2229, %v2180, %v3226
        %v4186 = vsel %vm2229, %v2180, %v3228
        %v4187 = vsel %vm2229, %v2180, %v3230
        %v4188 = vsel %vm2229, %v4137, %v3232
        %v4189 = vsel %vm2229, %v4138, %v3234
        %v4190 = vsel %vm2229, %v4139, %v3236
        %v4191 = vsel %vm2229, %v4140, %v3238
        %v4192 = vsel %vm2229, %v4141, %v3240
        %v4193 = vsel %vm2229, %v4142, %v3242
        %v4194 = vsel %vm2229, %v4143, %v3244
        %v4195 = vsel %vm2229, %v4144, %v3246
        %v4196 = vsel %vm2229, %v4145, %v3248
        %v4197 = vsel %vm2229, %v4146, %v3250
        %v4198 = vsel %vm2229, %v4147, %v3252
        %v4199 = vsel %vm2229, %v4148, %v3254
        %v4200 = vsel %vm2229, %v4149, %v3256
        %v4201 = vsel %vm2229, %v4150, %v3258
        %v4202 = vsel %vm2229, %v4151, %v3260
        %v4203 = vsel %vm2229, %v4152, %v3262
        %v4204 = vsel %vm2229, %v4153, %v3264
        %v4205 = vsel %vm2229, %v4154, %v3266
        %v4206 = vsel %vm2229, %v4155, %v3268
        %v4207 = vsel %vm2229, %v4156, %v3270
        %v4208 = vsel %vm2229, %v4157, %v3272
        %v4209 = vsel %vm2229, %v4158, %v3274
        %v4210 = vsel %vm2229, %v4159, %v3276
        %v4211 = vsel %vm2229, %v4160, %v3278
        %v4212 = vsel %vm2229, %v4161, %v3280
        %v4213 = vsel %vm2229, %v4162, %v3282
        %v4214 = vsel %vm2229, %v4163, %v3284
        %v4215 = vsel %vm2229, %v4164, %v3286
        %v4216 = vsel %vm2229, %v4165, %v3288
        %v4217 = vsel %vm2229, %v4166, %v3290
        %v4218 = vsel %vm2229, %v4167, %v3292
        %v4219 = vsel %vm2229, %v4168, %v3294
        %v4220 = vsel %vm2229, %v4169, %v3296
        %v4221 = vsel %vm2229, %v4170, %v3298
        %v4222 = vsel %vm2229, %v4171, %v3300
        %v4223 = vsel %vm2229, %v4172, %v3302
        %v4224 = vsel %vm2229, %v4173, %v3304
        %v4225 = vsel %vm2229, %v4174, %v3306
        %v4226 = vsel %vm2229, %v4175, %v3308
        %v4227 = vsel %vm2229, %v4176, %v3310
        %v4228 = vsel %vm2229, %v4177, %v3312
        %v4229 = vsel %vm2229, %v4178, %v3314
        %v4230 = vsel %vm2229, %v4179, %v3316
        %v4231 = vsel %vm2229, %v4180, %v3318
        %v4232 = vsel %vm2229, %v4181, %v3320
        %v4233 = vsel %vm2229, %v4182, %v1248
        %v4234 = vsel %vm2229, %v4183, %v1248
        %v4235 = vsel %vm2229, %v4184, %v1248
        %v4236 = vsel %vm2282, %v4185, %v3370
        %v4237 = vsel %vm2282, %v4186, %v3372
        %v4238 = vsel %vm2282, %v4187, %v3374
        %v4239 = vsel %vm2282, %v4188, %v3376
        %v4240 = vsel %vm2282, %v4189, %v3378
        %v4241 = vsel %vm2282, %v4190, %v3380
        %v4242 = vsel %vm2282, %v4191, %v3382
        %v4243 = vsel %vm2282, %v4192, %v3384
        %v4244 = vsel %vm2282, %v4193, %v3386
        %v4245 = vsel %vm2282, %v4194, %v3388
        %v4246 = vsel %vm2282, %v4195, %v3390
        %v4247 = vsel %vm2282, %v4196, %v3392
        %v4248 = vsel %vm2282, %v4197, %v3394
        %v4249 = vsel %vm2282, %v4198, %v3396
        %v4250 = vsel %vm2282, %v4199, %v3398
        %v4251 = vsel %vm2282, %v4200, %v3400
        %v4252 = vsel %vm2282, %v4201, %v3402
        %v4253 = vsel %vm2282, %v4202, %v3404
        %v4254 = vsel %vm2282, %v4203, %v3406
        %v4255 = vsel %vm2282, %v4204, %v3408
        %v4256 = vsel %vm2282, %v4205, %v3410
        %v4257 = vsel %vm2282, %v4206, %v3412
        %v4258 = vsel %vm2282, %v4207, %v3414
        %v4259 = vsel %vm2282, %v4208, %v3416
        %v4260 = vsel %vm2282, %v4209, %v3418
        %v4261 = vsel %vm2282, %v4210, %v3420
        %v4262 = vsel %vm2282, %v4211, %v3422
        %v4263 = vsel %vm2282, %v4212, %v3424
        %v4264 = vsel %vm2282, %v4213, %v3426
        %v4265 = vsel %vm2282, %v4214, %v3428
        %v4266 = vsel %vm2282, %v4215, %v3430
        %v4267 = vsel %vm2282, %v4216, %v3432
        %v4268 = vsel %vm2282, %v4217, %v3434
        %v4269 = vsel %vm2282, %v4218, %v3436
        %v4270 = vsel %vm2282, %v4219, %v3438
        %v4271 = vsel %vm2282, %v4220, %v3440
        %v4272 = vsel %vm2282, %v4221, %v3442
        %v4273 = vsel %vm2282, %v4222, %v3444
        %v4274 = vsel %vm2282, %v4223, %v3446
        %v4275 = vsel %vm2282, %v4224, %v3448
        %v4276 = vsel %vm2282, %v4225, %v3450
        %v4277 = vsel %vm2282, %v4226, %v3452
        %v4278 = vsel %vm2282, %v4227, %v3454
        %v4279 = vsel %vm2282, %v4228, %v3456
        %v4280 = vsel %vm2282, %v4229, %v3458
        %v4281 = vsel %vm2282, %v4230, %v3460
        %v4282 = vsel %vm2282, %v4231, %v3462
        %v4283 = vsel %vm2282, %v4232, %v3464
        %v4284 = vsel %vm2282, %v4233, %v1395
        %v4285 = vsel %vm2282, %v4234, %v1395
        %v4286 = vsel %vm2282, %v4235, %v1395
        %v4287 = vsel %vm2335, %v4236, %v3514
        %v4288 = vsel %vm2335, %v4237, %v3516
        %v4289 = vsel %vm2335, %v4238, %v3518
        %v4290 = vsel %vm2335, %v4239, %v3520
        %v4291 = vsel %vm2335, %v4240, %v3522
        %v4292 = vsel %vm2335, %v4241, %v3524
        %v4293 = vsel %vm2335, %v4242, %v3526
        %v4294 = vsel %vm2335, %v4243, %v3528
        %v4295 = vsel %vm2335, %v4244, %v3530
        %v4296 = vsel %vm2335, %v4245, %v3532
        %v4297 = vsel %vm2335, %v4246, %v3534
        %v4298 = vsel %vm2335, %v4247, %v3536
        %v4299 = vsel %vm2335, %v4248, %v3538
        %v4300 = vsel %vm2335, %v4249, %v3540
        %v4301 = vsel %vm2335, %v4250, %v3542
        %v4302 = vsel %vm2335, %v4251, %v3544
        %v4303 = vsel %vm2335, %v4252, %v3546
        %v4304 = vsel %vm2335, %v4253, %v3548
        %v4305 = vsel %vm2335, %v4254, %v3550
        %v4306 = vsel %vm2335, %v4255, %v3552
        %v4307 = vsel %vm2335, %v4256, %v3554
        %v4308 = vsel %vm2335, %v4257, %v3556
        %v4309 = vsel %vm2335, %v4258, %v3558
        %v4310 = vsel %vm2335, %v4259, %v3560
        %v4311 = vsel %vm2335, %v4260, %v3562
        %v4312 = vsel %vm2335, %v4261, %v3564
        %v4313 = vsel %vm2335, %v4262, %v3566
        %v4314 = vsel %vm2335, %v4263, %v3568
        %v4315 = vsel %vm2335, %v4264, %v3570
        %v4316 = vsel %vm2335, %v4265, %v3572
        %v4317 = vsel %vm2335, %v4266, %v3574
        %v4318 = vsel %vm2335, %v4267, %v3576
        %v4319 = vsel %vm2335, %v4268, %v3578
        %v4320 = vsel %vm2335, %v4269, %v3580
        %v4321 = vsel %vm2335, %v4270, %v3582
        %v4322 = vsel %vm2335, %v4271, %v3584
        %v4323 = vsel %vm2335, %v4272, %v3586
        %v4324 = vsel %vm2335, %v4273, %v3588
        %v4325 = vsel %vm2335, %v4274, %v3590
        %v4326 = vsel %vm2335, %v4275, %v3592
        %v4327 = vsel %vm2335, %v4276, %v3594
        %v4328 = vsel %vm2335, %v4277, %v3596
        %v4329 = vsel %vm2335, %v4278, %v3598
        %v4330 = vsel %vm2335, %v4279, %v3600
        %v4331 = vsel %vm2335, %v4280, %v3602
        %v4332 = vsel %vm2335, %v4281, %v3604
        %v4333 = vsel %vm2335, %v4282, %v3606
        %v4334 = vsel %vm2335, %v4283, %v3608
        %v4335 = vsel %vm2335, %v4284, %v1542
        %v4336 = vsel %vm2335, %v4285, %v1542
        %v4337 = vsel %vm2335, %v4286, %v1542
        %v4338 = vsel %vm2388, %v2336, %v3658
        %v4339 = vsel %vm2388, %v2336, %v3660
        %v4340 = vsel %vm2388, %v2336, %v3662
        %v4341 = vsel %vm2388, %v4287, %v3664
        %v4342 = vsel %vm2388, %v4288, %v3666
        %v4343 = vsel %vm2388, %v4289, %v3668
        %v4344 = vsel %vm2388, %v4290, %v3670
        %v4345 = vsel %vm2388, %v4291, %v3672
        %v4346 = vsel %vm2388, %v4292, %v3674
        %v4347 = vsel %vm2388, %v4293, %v3676
        %v4348 = vsel %vm2388, %v4294, %v3678
        %v4349 = vsel %vm2388, %v4295, %v3680
        %v4350 = vsel %vm2388, %v4296, %v3682
        %v4351 = vsel %vm2388, %v4297, %v3684
        %v4352 = vsel %vm2388, %v4298, %v3686
        %v4353 = vsel %vm2388, %v4299, %v3688
        %v4354 = vsel %vm2388, %v4300, %v3690
        %v4355 = vsel %vm2388, %v4301, %v3692
        %v4356 = vsel %vm2388, %v4302, %v3694
        %v4357 = vsel %vm2388, %v4303, %v3696
        %v4358 = vsel %vm2388, %v4304, %v3698
        %v4359 = vsel %vm2388, %v4305, %v3700
        %v4360 = vsel %vm2388, %v4306, %v3702
        %v4361 = vsel %vm2388, %v4307, %v3704
        %v4362 = vsel %vm2388, %v4308, %v3706
        %v4363 = vsel %vm2388, %v4309, %v3708
        %v4364 = vsel %vm2388, %v4310, %v3710
        %v4365 = vsel %vm2388, %v4311, %v3712
        %v4366 = vsel %vm2388, %v4312, %v3714
        %v4367 = vsel %vm2388, %v4313, %v3716
        %v4368 = vsel %vm2388, %v4314, %v3718
        %v4369 = vsel %vm2388, %v4315, %v3720
        %v4370 = vsel %vm2388, %v4316, %v3722
        %v4371 = vsel %vm2388, %v4317, %v3724
        %v4372 = vsel %vm2388, %v4318, %v3726
        %v4373 = vsel %vm2388, %v4319, %v3728
        %v4374 = vsel %vm2388, %v4320, %v3730
        %v4375 = vsel %vm2388, %v4321, %v3732
        %v4376 = vsel %vm2388, %v4322, %v3734
        %v4377 = vsel %vm2388, %v4323, %v3736
        %v4378 = vsel %vm2388, %v4324, %v3738
        %v4379 = vsel %vm2388, %v4325, %v3740
        %v4380 = vsel %vm2388, %v4326, %v3742
        %v4381 = vsel %vm2388, %v4327, %v3744
        %v4382 = vsel %vm2388, %v4328, %v3746
        %v4383 = vsel %vm2388, %v4329, %v3748
        %v4384 = vsel %vm2388, %v4330, %v3750
        %v4385 = vsel %vm2388, %v4331, %v3752
        %v4386 = vsel %vm2388, %v4332, %v1785
        %v4387 = vsel %vm2388, %v4333, %v1785
        %v4388 = vsel %vm2388, %v4334, %v1785
        %v4389 = vsel %vm2388, %v4335, %v1785
        %v4390 = vsel %vm2388, %v4336, %v1785
        %v4391 = vsel %vm2388, %v4337, %v1785
        %v4392 = vsel %vm2443, %v4338, %v3802
        %v4393 = vsel %vm2443, %v4339, %v3804
        %v4394 = vsel %vm2443, %v4340, %v3806
        %v4395 = vsel %vm2443, %v4341, %v3808
        %v4396 = vsel %vm2443, %v4342, %v3810
        %v4397 = vsel %vm2443, %v4343, %v3812
        %v4398 = vsel %vm2443, %v4344, %v3814
        %v4399 = vsel %vm2443, %v4345, %v3816
        %v4400 = vsel %vm2443, %v4346, %v3818
        %v4401 = vsel %vm2443, %v4347, %v3820
        %v4402 = vsel %vm2443, %v4348, %v3822
        %v4403 = vsel %vm2443, %v4349, %v3824
        %v4404 = vsel %vm2443, %v4350, %v3826
        %v4405 = vsel %vm2443, %v4351, %v3828
        %v4406 = vsel %vm2443, %v4352, %v3830
        %v4407 = vsel %vm2443, %v4353, %v3832
        %v4408 = vsel %vm2443, %v4354, %v3834
        %v4409 = vsel %vm2443, %v4355, %v3836
        %v4410 = vsel %vm2443, %v4356, %v3838
        %v4411 = vsel %vm2443, %v4357, %v3840
        %v4412 = vsel %vm2443, %v4358, %v3842
        %v4413 = vsel %vm2443, %v4359, %v3844
        %v4414 = vsel %vm2443, %v4360, %v3846
        %v4415 = vsel %vm2443, %v4361, %v3848
        %v4416 = vsel %vm2443, %v4362, %v3850
        %v4417 = vsel %vm2443, %v4363, %v3852
        %v4418 = vsel %vm2443, %v4364, %v3854
        %v4419 = vsel %vm2443, %v4365, %v3856
        %v4420 = vsel %vm2443, %v4366, %v3858
        %v4421 = vsel %vm2443, %v4367, %v3860
        %v4422 = vsel %vm2443, %v4368, %v3862
        %v4423 = vsel %vm2443, %v4369, %v3864
        %v4424 = vsel %vm2443, %v4370, %v3866
        %v4425 = vsel %vm2443, %v4371, %v3868
        %v4426 = vsel %vm2443, %v4372, %v3870
        %v4427 = vsel %vm2443, %v4373, %v3872
        %v4428 = vsel %vm2443, %v4374, %v3874
        %v4429 = vsel %vm2443, %v4375, %v3876
        %v4430 = vsel %vm2443, %v4376, %v3878
        %v4431 = vsel %vm2443, %v4377, %v3880
        %v4432 = vsel %vm2443, %v4378, %v3882
        %v4433 = vsel %vm2443, %v4379, %v3884
        %v4434 = vsel %vm2443, %v4380, %v3886
        %v4435 = vsel %vm2443, %v4381, %v3888
        %v4436 = vsel %vm2443, %v4382, %v3890
        %v4437 = vsel %vm2443, %v4383, %v3892
        %v4438 = vsel %vm2443, %v4384, %v3894
        %v4439 = vsel %vm2443, %v4385, %v3896
        %v4440 = vsel %vm2443, %v4386, %v1932
        %v4441 = vsel %vm2443, %v4387, %v1932
        %v4442 = vsel %vm2443, %v4388, %v1932
        %v4443 = vsel %vm2443, %v4389, %v1932
        %v4444 = vsel %vm2443, %v4390, %v1932
        %v4445 = vsel %vm2443, %v4391, %v1932
        %v4446 = vsel %vm2498, %v4392, %v3946
        %v4447 = vsel %vm2498, %v4393, %v3948
        %v4448 = vsel %vm2498, %v4394, %v3950
        %v4449 = vsel %vm2498, %v4395, %v3952
        %v4450 = vsel %vm2498, %v4396, %v3954
        %v4451 = vsel %vm2498, %v4397, %v3956
        %v4452 = vsel %vm2498, %v4398, %v3958
        %v4453 = vsel %vm2498, %v4399, %v3960
        %v4454 = vsel %vm2498, %v4400, %v3962
        %v4455 = vsel %vm2498, %v4401, %v3964
        %v4456 = vsel %vm2498, %v4402, %v3966
        %v4457 = vsel %vm2498, %v4403, %v3968
        %v4458 = vsel %vm2498, %v4404, %v3970
        %v4459 = vsel %vm2498, %v4405, %v3972
        %v4460 = vsel %vm2498, %v4406, %v3974
        %v4461 = vsel %vm2498, %v4407, %v3976
        %v4462 = vsel %vm2498, %v4408, %v3978
        %v4463 = vsel %vm2498, %v4409, %v3980
        %v4464 = vsel %vm2498, %v4410, %v3982
        %v4465 = vsel %vm2498, %v4411, %v3984
        %v4466 = vsel %vm2498, %v4412, %v3986
        %v4467 = vsel %vm2498, %v4413, %v3988
        %v4468 = vsel %vm2498, %v4414, %v3990
        %v4469 = vsel %vm2498, %v4415, %v3992
        %v4470 = vsel %vm2498, %v4416, %v3994
        %v4471 = vsel %vm2498, %v4417, %v3996
        %v4472 = vsel %vm2498, %v4418, %v3998
        %v4473 = vsel %vm2498, %v4419, %v4000
        %v4474 = vsel %vm2498, %v4420, %v4002
        %v4475 = vsel %vm2498, %v4421, %v4004
        %v4476 = vsel %vm2498, %v4422, %v4006
        %v4477 = vsel %vm2498, %v4423, %v4008
        %v4478 = vsel %vm2498, %v4424, %v4010
        %v4479 = vsel %vm2498, %v4425, %v4012
        %v4480 = vsel %vm2498, %v4426, %v4014
        %v4481 = vsel %vm2498, %v4427, %v4016
        %v4482 = vsel %vm2498, %v4428, %v4018
        %v4483 = vsel %vm2498, %v4429, %v4020
        %v4484 = vsel %vm2498, %v4430, %v4022
        %v4485 = vsel %vm2498, %v4431, %v4024
        %v4486 = vsel %vm2498, %v4432, %v4026
        %v4487 = vsel %vm2498, %v4433, %v4028
        %v4488 = vsel %vm2498, %v4434, %v4030
        %v4489 = vsel %vm2498, %v4435, %v4032
        %v4490 = vsel %vm2498, %v4436, %v4034
        %v4491 = vsel %vm2498, %v4437, %v4036
        %v4492 = vsel %vm2498, %v4438, %v4038
        %v4493 = vsel %vm2498, %v4439, %v4040
        %v4494 = vsel %vm2498, %v4440, %v2079
        %v4495 = vsel %vm2498, %v4441, %v2079
        %v4496 = vsel %vm2498, %v4442, %v2079
        %v4497 = vsel %vm2498, %v4443, %v2079
        %v4498 = vsel %vm2498, %v4444, %v2079
        %v4499 = vsel %vm2498, %v4445, %v2079
        %v4500 = vld [vmem:[%s1] sm:$0xff]
        %v4501 = vld [vmem:[%s1 + $0x8] sm:$0xff]
        %v4502 = vld [vmem:[%s1 + $0x10] sm:$0xff]
        %v4503 = vld [vmem:[%s1 + $0x18] sm:$0xff]
        %v4504 = vld [vmem:[%s1 + $0x20] sm:$0xf]
        %v4505 = vld [vmem:[%s2] sm:$0x1]
        %v4507 = vlaneseq
        %v4508 = vshrl.u32 %v4507, 7
        %v4509 = vsub.s32 0, %v4508
        %v4510 = vrot.slane %v4505, %v4509
        %vm4512 = vcmask 293888
        %v4514 = vsel %vm4512, %v2499, 0
        %v4517 = vsel %vm4512, %v2500, 0
        %v4520 = vsel %vm4512, %v2501, 0
        %v4523 = vsel %vm4512, %v2502, 0
        %v4526 = vsel %vm4512, %v2503, 0
        %v4529 = vsel %vm4512, %v2504, 0
        %v4532 = vsel %vm4512, %v2505, 0
        %v4535 = vsel %vm4512, %v2506, 0
        %v4538 = vsel %vm4512, %v2507, 0
        %v4541 = vsel %vm4512, %v2508, 0
        %v4544 = vsel %vm4512, %v2509, 0
        %v4547 = vsel %vm4512, %v2510, 0
        %v4550 = vsel %vm4512, %v2511, 0
        %v4553 = vsel %vm4512, %v2512, 0
        %v4556 = vsel %vm4512, %v2513, 0
        %v4559 = vsel %vm4512, %v2514, 0
        %v4562 = vsel %vm4512, %v2515, 0
        %v4565 = vsel %vm4512, %v2516, 0
        %v4568 = vsel %vm4512, %v2517, 0
        %v4571 = vsel %vm4512, %v2518, 0
        %v4574 = vsel %vm4512, %v2519, 0
        %v4577 = vsel %vm4512, %v2520, 0
        %v4580 = vsel %vm4512, %v2521, 0
        %v4583 = vsel %vm4512, %v2522, 0
        %v4586 = vsel %vm4512, %v2523, 0
        %v4589 = vsel %vm4512, %v2524, 0
        %v4592 = vsel %vm4512, %v2525, 0
        %v4595 = vsel %vm4512, %v2526, 0
        %v4598 = vsel %vm4512, %v2527, 0
        %v4601 = vsel %vm4512, %v2528, 0
        %v4604 = vsel %vm4512, %v2529, 0
        %v4607 = vsel %vm4512, %v2530, 0
        %v4610 = vsel %vm4512, %v2531, 0
        %v4613 = vsel %vm4512, %v2532, 0
        %v4616 = vsel %vm4512, %v2533, 0
        %v4619 = vsel %vm4512, %v2534, 0
        %v4622 = vsel %vm4512, %v2535, 0
        %v4625 = vsel %vm4512, %v2536, 0
        %v4628 = vsel %vm4512, %v2537, 0
        %v4631 = vsel %vm4512, %v2538, 0
        %v4634 = vsel %vm4512, %v2539, 0
        %v4637 = vsel %vm4512, %v2540, 0
        %v4640 = vsel %vm4512, %v2541, 0
        %v4643 = vsel %vm4512, %v2542, 0
        %v4646 = vsel %vm4512, %v2543, 0
        %v4649 = vsel %vm4512, %v2544, 0
        %v4652 = vsel %vm4512, %v2545, 0
        %v4655 = vsel %vm4512, %v2546, 0
        %v4658 = vsel %vm4512, %v2547, 0
        %v4661 = vsel %vm4512, %v2548, 0
        %v4664 = vsel %vm4512, %v2549, 0
        %v4667 = vsel %vm4512, %v2550, 0
        %v4670 = vsel %vm4512, %v2551, 0
        %v4673 = vsel %vm4512, %v2552, 0
        %v4676 = vsel %vm4512, %v4446, 0
        %v4679 = vsel %vm4512, %v4447, 0
        %v4682 = vsel %vm4512, %v4448, 0
        %v4685 = vsel %vm4512, %v4449, 0
        %v4688 = vsel %vm4512, %v4450, 0
        %v4691 = vsel %vm4512, %v4451, 0
        %v4694 = vsel %vm4512, %v4452, 0
        %v4697 = vsel %vm4512, %v4453, 0
        %v4700 = vsel %vm4512, %v4454, 0
        %v4703 = vsel %vm4512, %v4455, 0
        %v4706 = vsel %vm4512, %v4456, 0
        %v4709 = vsel %vm4512, %v4457, 0
        %v4712 = vsel %vm4512, %v4458, 0
        %v4715 = vsel %vm4512, %v4459, 0
        %v4718 = vsel %vm4512, %v4460, 0
        %v4721 = vsel %vm4512, %v4461, 0
        %v4724 = vsel %vm4512, %v4462, 0
        %v4727 = vsel %vm4512, %v4463, 0
        %v4730 = vsel %vm4512, %v4464, 0
        %v4733 = vsel %vm4512, %v4465, 0
        %v4736 = vsel %vm4512, %v4466, 0
        %v4739 = vsel %vm4512, %v4467, 0
        %v4742 = vsel %vm4512, %v4468, 0
        %v4745 = vsel %vm4512, %v4469, 0
        %v4748 = vsel %vm4512, %v4470, 0
        %v4751 = vsel %vm4512, %v4471, 0
        %v4754 = vsel %vm4512, %v4472, 0
        %v4757 = vsel %vm4512, %v4473, 0
        %v4760 = vsel %vm4512, %v4474, 0
        %v4763 = vsel %vm4512, %v4475, 0
        %v4766 = vsel %vm4512, %v4476, 0
        %v4769 = vsel %vm4512, %v4477, 0
        %v4772 = vsel %vm4512, %v4478, 0
        %v4775 = vsel %vm4512, %v4479, 0
        %v4778 = vsel %vm4512, %v4480, 0
        %v4781 = vsel %vm4512, %v4481, 0
        %v4784 = vsel %vm4512, %v4482, 0
        %v4787 = vsel %vm4512, %v4483, 0
        %v4790 = vsel %vm4512, %v4484, 0
        %v4793 = vsel %vm4512, %v4485, 0
        %v4796 = vsel %vm4512, %v4486, 0
        %v4799 = vsel %vm4512, %v4487, 0
        %v4802 = vsel %vm4512, %v4488, 0
        %v4805 = vsel %vm4512, %v4489, 0
        %v4808 = vsel %vm4512, %v4490, 0
        %v4811 = vsel %vm4512, %v4491, 0
        %v4814 = vsel %vm4512, %v4492, 0
        %v4817 = vsel %vm4512, %v4493, 0
        %v4820 = vsel %vm4512, %v4494, 0
        %v4823 = vsel %vm4512, %v4495, 0
        %v4826 = vsel %vm4512, %v4496, 0
        %v4829 = vsel %vm4512, %v4497, 0
        %v4832 = vsel %vm4512, %v4498, 0
        %v4835 = vsel %vm4512, %v4499, 0
        %vm4837 = vcmask 1043456
        %v4839 = vsel %vm4837, %v4504, 0
        %4841 = vmatprep.subr.mxu0 0.0
        %4842 = vmatpush1.msra.mxu0 0.0
        %4843 = vmatprep.subr.mxu0 0.0
        %4844 = vmatpush1.msra.mxu0 0.0
        %4845 = vmatprep.subr.mxu0 0.0
        %4846 = vmatpush1.msra.mxu0 0.0
        %4847 = vmatprep.subr.mxu0 0.0
        %4848 = vmatpush1.msra.mxu0 0.0
        %4849 = vmatprep.subr.mxu0 0.0
        %4850 = vmatpush1.msra.mxu0 0.0
        %4851 = vmatprep.subr.mxu0 0.0
        %4852 = vmatpush1.msra.mxu0 0.0
        %4853 = vmatprep.subr.mxu0 0.0
        %4854 = vmatpush1.msra.mxu0 0.0
        %4855 = vmatprep.subr.mxu0 0.0
        %4856 = vmatpush1.msra.mxu0 0.0
        %4857 = vmatprep.subr.mxu0 0.0
        %4858 = vmatpush1.msra.mxu0 0.0
        %4859 = vmatprep.subr.mxu0 0.0
        %4860 = vmatpush1.msra.mxu0 0.0
        %4861 = vmatprep.subr.mxu0 0.0
        %4862 = vmatpush1.msra.mxu0 0.0
        %4863 = vmatprep.subr.mxu0 0.0
        %4864 = vmatpush1.msra.mxu0 %v4839
        %4865 = vmatprep.subr.mxu0 0.0
        %4866 = vmatpush1.msra.mxu0 %v4503
        %4867 = vmatprep.subr.mxu0 0.0
        %4868 = vmatpush1.msra.mxu0 %v4502
        %4869 = vmatprep.subr.mxu0 0.0
        %4870 = vmatpush1.msra.mxu0 %v4501
        %4871 = vmatprep.subr.mxu0 0.0
        %4872 = vmatpush1.msra.mxu0 %v4500
        %4873 = vmatprep.subr.mxu0 0.0
        %4874 = vmatpush2.msra.mxu0 0.0
        %4875 = vmatprep.subr.mxu0 0.0
        %4876 = vmatpush2.msra.mxu0 0.0
        %4877 = vmatprep.subr.mxu0 0.0
        %4878 = vmatpush2.msra.mxu0 0.0
        %4879 = vmatprep.subr.mxu0 0.0
        %4880 = vmatpush2.msra.mxu0 0.0
        %4881 = vmatprep.subr.mxu0 0.0
        %4882 = vmatpush2.msra.mxu0 0.0
        %4883 = vmatprep.subr.mxu0 0.0
        %4884 = vmatpush2.msra.mxu0 0.0
        %4885 = vmatprep.subr.mxu0 0.0
        %4886 = vmatpush2.msra.mxu0 0.0
        %4887 = vmatprep.subr.mxu0 0.0
        %4888 = vmatpush2.msra.mxu0 0.0
        %4889 = vmatprep.subr.mxu0 0.0
        %4890 = vmatpush2.msra.mxu0 0.0
        %4891 = vmatprep.subr.mxu0 0.0
        %4892 = vmatpush2.msra.mxu0 0.0
        %4893 = vmatprep.subr.mxu0 0.0
        %4894 = vmatpush2.msra.mxu0 0.0
        %4895 = vmatprep.subr.mxu0 0.0
        %4896 = vmatpush2.msra.mxu0 0.0
        %4897 = vmatprep.subr.mxu0 0.0
        %4898 = vmatpush2.msra.mxu0 0.0
        %4899 = vmatprep.subr.mxu0 0.0
        %4900 = vmatpush2.msra.mxu0 0.0
        %4901 = vmatprep.subr.mxu0 0.0
        %4902 = vmatpush2.msra.mxu0 0.0
        %4903 = vmatprep.subr.mxu0 0.0
        %4904 = vmatpush2.msra.mxu0 0.0
        %4905 = vmatprep.mubr.f32.mxu0 0.0
        %4906 = vmatmul.mubr.f32.gmra.mxu0 %v4514
        %v4907 = vpop.f32.mrf.mxu0
        %v4908 = vadd.f32 %v4510, %v4907
        %v4909 = vpop.f32.mrf.mxu0
        %4910 = vmatprep.mubr.f32.mxu0 0.0
        %4911 = vmatmul.mubr.f32.gmra.mxu0 %v4517
        %v4912 = vpop.f32.mrf.mxu0
        %v4913 = vadd.f32 %v4510, %v4912
        %v4914 = vpop.f32.mrf.mxu0
        %4915 = vmatprep.mubr.f32.mxu0 0.0
        %4916 = vmatmul.mubr.f32.gmra.mxu0 %v4520
        %v4917 = vpop.f32.mrf.mxu0
        %v4918 = vadd.f32 %v4510, %v4917
        %v4919 = vpop.f32.mrf.mxu0
        %4920 = vmatprep.mubr.f32.mxu0 0.0
        %4921 = vmatmul.mubr.f32.gmra.mxu0 %v4523
        %v4922 = vpop.f32.mrf.mxu0
        %v4923 = vadd.f32 %v4510, %v4922
        %v4924 = vpop.f32.mrf.mxu0
        %4925 = vmatprep.mubr.f32.mxu0 0.0
        %4926 = vmatmul.mubr.f32.gmra.mxu0 %v4526
        %v4927 = vpop.f32.mrf.mxu0
        %v4928 = vadd.f32 %v4510, %v4927
        %v4929 = vpop.f32.mrf.mxu0
        %4930 = vmatprep.mubr.f32.mxu0 0.0
        %4931 = vmatmul.mubr.f32.gmra.mxu0 %v4529
        %v4932 = vpop.f32.mrf.mxu0
        %v4933 = vadd.f32 %v4510, %v4932
        %v4934 = vpop.f32.mrf.mxu0
        %4935 = vmatprep.mubr.f32.mxu0 0.0
        %4936 = vmatmul.mubr.f32.gmra.mxu0 %v4532
        %v4937 = vpop.f32.mrf.mxu0
        %v4938 = vadd.f32 %v4510, %v4937
        %v4939 = vpop.f32.mrf.mxu0
        %4940 = vmatprep.mubr.f32.mxu0 0.0
        %4941 = vmatmul.mubr.f32.gmra.mxu0 %v4535
        %v4942 = vpop.f32.mrf.mxu0
        %v4943 = vadd.f32 %v4510, %v4942
        %v4944 = vpop.f32.mrf.mxu0
        %4945 = vmatprep.mubr.f32.mxu0 0.0
        %4946 = vmatmul.mubr.f32.gmra.mxu0 %v4538
        %v4947 = vpop.f32.mrf.mxu0
        %v4948 = vadd.f32 %v4510, %v4947
        %v4949 = vpop.f32.mrf.mxu0
        %4950 = vmatprep.mubr.f32.mxu0 0.0
        %4951 = vmatmul.mubr.f32.gmra.mxu0 %v4541
        %v4952 = vpop.f32.mrf.mxu0
        %v4953 = vadd.f32 %v4510, %v4952
        %v4954 = vpop.f32.mrf.mxu0
        %4955 = vmatprep.mubr.f32.mxu0 0.0
        %4956 = vmatmul.mubr.f32.gmra.mxu0 %v4544
        %v4957 = vpop.f32.mrf.mxu0
        %v4958 = vadd.f32 %v4510, %v4957
        %v4959 = vpop.f32.mrf.mxu0
        %4960 = vmatprep.mubr.f32.mxu0 0.0
        %4961 = vmatmul.mubr.f32.gmra.mxu0 %v4547
        %v4962 = vpop.f32.mrf.mxu0
        %v4963 = vadd.f32 %v4510, %v4962
        %v4964 = vpop.f32.mrf.mxu0
        %4965 = vmatprep.mubr.f32.mxu0 0.0
        %4966 = vmatmul.mubr.f32.gmra.mxu0 %v4550
        %v4967 = vpop.f32.mrf.mxu0
        %v4968 = vadd.f32 %v4510, %v4967
        %v4969 = vpop.f32.mrf.mxu0
        %4970 = vmatprep.mubr.f32.mxu0 0.0
        %4971 = vmatmul.mubr.f32.gmra.mxu0 %v4553
        %v4972 = vpop.f32.mrf.mxu0
        %v4973 = vadd.f32 %v4510, %v4972
        %v4974 = vpop.f32.mrf.mxu0
        %4975 = vmatprep.mubr.f32.mxu0 0.0
        %4976 = vmatmul.mubr.f32.gmra.mxu0 %v4556
        %v4977 = vpop.f32.mrf.mxu0
        %v4978 = vadd.f32 %v4510, %v4977
        %v4979 = vpop.f32.mrf.mxu0
        %4980 = vmatprep.mubr.f32.mxu0 0.0
        %4981 = vmatmul.mubr.f32.gmra.mxu0 %v4559
        %v4982 = vpop.f32.mrf.mxu0
        %v4983 = vadd.f32 %v4510, %v4982
        %v4984 = vpop.f32.mrf.mxu0
        %4985 = vmatprep.mubr.f32.mxu0 0.0
        %4986 = vmatmul.mubr.f32.gmra.mxu0 %v4562
        %v4987 = vpop.f32.mrf.mxu0
        %v4988 = vadd.f32 %v4510, %v4987
        %v4989 = vpop.f32.mrf.mxu0
        %4990 = vmatprep.mubr.f32.mxu0 0.0
        %4991 = vmatmul.mubr.f32.gmra.mxu0 %v4565
        %v4992 = vpop.f32.mrf.mxu0
        %v4993 = vadd.f32 %v4510, %v4992
        %v4994 = vpop.f32.mrf.mxu0
        %4995 = vmatprep.mubr.f32.mxu0 0.0
        %4996 = vmatmul.mubr.f32.gmra.mxu0 %v4568
        %v4997 = vpop.f32.mrf.mxu0
        %v4998 = vadd.f32 %v4510, %v4997
        %v4999 = vpop.f32.mrf.mxu0
        %5000 = vmatprep.mubr.f32.mxu0 0.0
        %5001 = vmatmul.mubr.f32.gmra.mxu0 %v4571
        %v5002 = vpop.f32.mrf.mxu0
        %v5003 = vadd.f32 %v4510, %v5002
        %v5004 = vpop.f32.mrf.mxu0
        %5005 = vmatprep.mubr.f32.mxu0 0.0
        %5006 = vmatmul.mubr.f32.gmra.mxu0 %v4574
        %v5007 = vpop.f32.mrf.mxu0
        %v5008 = vadd.f32 %v4510, %v5007
        %v5009 = vpop.f32.mrf.mxu0
        %5010 = vmatprep.mubr.f32.mxu0 0.0
        %5011 = vmatmul.mubr.f32.gmra.mxu0 %v4577
        %v5012 = vpop.f32.mrf.mxu0
        %v5013 = vadd.f32 %v4510, %v5012
        %v5014 = vpop.f32.mrf.mxu0
        %5015 = vmatprep.mubr.f32.mxu0 0.0
        %5016 = vmatmul.mubr.f32.gmra.mxu0 %v4580
        %v5017 = vpop.f32.mrf.mxu0
        %v5018 = vadd.f32 %v4510, %v5017
        %v5019 = vpop.f32.mrf.mxu0
        %5020 = vmatprep.mubr.f32.mxu0 0.0
        %5021 = vmatmul.mubr.f32.gmra.mxu0 %v4583
        %v5022 = vpop.f32.mrf.mxu0
        %v5023 = vadd.f32 %v4510, %v5022
        %v5024 = vpop.f32.mrf.mxu0
        %5025 = vmatprep.mubr.f32.mxu0 0.0
        %5026 = vmatmul.mubr.f32.gmra.mxu0 %v4586
        %v5027 = vpop.f32.mrf.mxu0
        %v5028 = vadd.f32 %v4510, %v5027
        %v5029 = vpop.f32.mrf.mxu0
        %5030 = vmatprep.mubr.f32.mxu0 0.0
        %5031 = vmatmul.mubr.f32.gmra.mxu0 %v4589
        %v5032 = vpop.f32.mrf.mxu0
        %v5033 = vadd.f32 %v4510, %v5032
        %v5034 = vpop.f32.mrf.mxu0
        %5035 = vmatprep.mubr.f32.mxu0 0.0
        %5036 = vmatmul.mubr.f32.gmra.mxu0 %v4592
        %v5037 = vpop.f32.mrf.mxu0
        %v5038 = vadd.f32 %v4510, %v5037
        %v5039 = vpop.f32.mrf.mxu0
        %5040 = vmatprep.mubr.f32.mxu0 0.0
        %5041 = vmatmul.mubr.f32.gmra.mxu0 %v4595
        %v5042 = vpop.f32.mrf.mxu0
        %v5043 = vadd.f32 %v4510, %v5042
        %v5044 = vpop.f32.mrf.mxu0
        %5045 = vmatprep.mubr.f32.mxu0 0.0
        %5046 = vmatmul.mubr.f32.gmra.mxu0 %v4598
        %v5047 = vpop.f32.mrf.mxu0
        %v5048 = vadd.f32 %v4510, %v5047
        %v5049 = vpop.f32.mrf.mxu0
        %5050 = vmatprep.mubr.f32.mxu0 0.0
        %5051 = vmatmul.mubr.f32.gmra.mxu0 %v4601
        %v5052 = vpop.f32.mrf.mxu0
        %v5053 = vadd.f32 %v4510, %v5052
        %v5054 = vpop.f32.mrf.mxu0
        %5055 = vmatprep.mubr.f32.mxu0 0.0
        %5056 = vmatmul.mubr.f32.gmra.mxu0 %v4604
        %v5057 = vpop.f32.mrf.mxu0
        %v5058 = vadd.f32 %v4510, %v5057
        %v5059 = vpop.f32.mrf.mxu0
        %5060 = vmatprep.mubr.f32.mxu0 0.0
        %5061 = vmatmul.mubr.f32.gmra.mxu0 %v4607
        %v5062 = vpop.f32.mrf.mxu0
        %v5063 = vadd.f32 %v4510, %v5062
        %v5064 = vpop.f32.mrf.mxu0
        %5065 = vmatprep.mubr.f32.mxu0 0.0
        %5066 = vmatmul.mubr.f32.gmra.mxu0 %v4610
        %v5067 = vpop.f32.mrf.mxu0
        %v5068 = vadd.f32 %v4510, %v5067
        %v5069 = vpop.f32.mrf.mxu0
        %5070 = vmatprep.mubr.f32.mxu0 0.0
        %5071 = vmatmul.mubr.f32.gmra.mxu0 %v4613
        %v5072 = vpop.f32.mrf.mxu0
        %v5073 = vadd.f32 %v4510, %v5072
        %v5074 = vpop.f32.mrf.mxu0
        %5075 = vmatprep.mubr.f32.mxu0 0.0
        %5076 = vmatmul.mubr.f32.gmra.mxu0 %v4616
        %v5077 = vpop.f32.mrf.mxu0
        %v5078 = vadd.f32 %v4510, %v5077
        %v5079 = vpop.f32.mrf.mxu0
        %5080 = vmatprep.mubr.f32.mxu0 0.0
        %5081 = vmatmul.mubr.f32.gmra.mxu0 %v4619
        %v5082 = vpop.f32.mrf.mxu0
        %v5083 = vadd.f32 %v4510, %v5082
        %v5084 = vpop.f32.mrf.mxu0
        %5085 = vmatprep.mubr.f32.mxu0 0.0
        %5086 = vmatmul.mubr.f32.gmra.mxu0 %v4622
        %v5087 = vpop.f32.mrf.mxu0
        %v5088 = vadd.f32 %v4510, %v5087
        %v5089 = vpop.f32.mrf.mxu0
        %5090 = vmatprep.mubr.f32.mxu0 0.0
        %5091 = vmatmul.mubr.f32.gmra.mxu0 %v4625
        %v5092 = vpop.f32.mrf.mxu0
        %v5093 = vadd.f32 %v4510, %v5092
        %v5094 = vpop.f32.mrf.mxu0
        %5095 = vmatprep.mubr.f32.mxu0 0.0
        %5096 = vmatmul.mubr.f32.gmra.mxu0 %v4628
        %v5097 = vpop.f32.mrf.mxu0
        %v5098 = vadd.f32 %v4510, %v5097
        %v5099 = vpop.f32.mrf.mxu0
        %5100 = vmatprep.mubr.f32.mxu0 0.0
        %5101 = vmatmul.mubr.f32.gmra.mxu0 %v4631
        %v5102 = vpop.f32.mrf.mxu0
        %v5103 = vadd.f32 %v4510, %v5102
        %v5104 = vpop.f32.mrf.mxu0
        %5105 = vmatprep.mubr.f32.mxu0 0.0
        %5106 = vmatmul.mubr.f32.gmra.mxu0 %v4634
        %v5107 = vpop.f32.mrf.mxu0
        %v5108 = vadd.f32 %v4510, %v5107
        %v5109 = vpop.f32.mrf.mxu0
        %5110 = vmatprep.mubr.f32.mxu0 0.0
        %5111 = vmatmul.mubr.f32.gmra.mxu0 %v4637
        %v5112 = vpop.f32.mrf.mxu0
        %v5113 = vadd.f32 %v4510, %v5112
        %v5114 = vpop.f32.mrf.mxu0
        %5115 = vmatprep.mubr.f32.mxu0 0.0
        %5116 = vmatmul.mubr.f32.gmra.mxu0 %v4640
        %v5117 = vpop.f32.mrf.mxu0
        %v5118 = vadd.f32 %v4510, %v5117
        %v5119 = vpop.f32.mrf.mxu0
        %5120 = vmatprep.mubr.f32.mxu0 0.0
        %5121 = vmatmul.mubr.f32.gmra.mxu0 %v4643
        %v5122 = vpop.f32.mrf.mxu0
        %v5123 = vadd.f32 %v4510, %v5122
        %v5124 = vpop.f32.mrf.mxu0
        %5125 = vmatprep.mubr.f32.mxu0 0.0
        %5126 = vmatmul.mubr.f32.gmra.mxu0 %v4646
        %v5127 = vpop.f32.mrf.mxu0
        %v5128 = vadd.f32 %v4510, %v5127
        %v5129 = vpop.f32.mrf.mxu0
        %5130 = vmatprep.mubr.f32.mxu0 0.0
        %5131 = vmatmul.mubr.f32.gmra.mxu0 %v4649
        %v5132 = vpop.f32.mrf.mxu0
        %v5133 = vadd.f32 %v4510, %v5132
        %v5134 = vpop.f32.mrf.mxu0
        %5135 = vmatprep.mubr.f32.mxu0 0.0
        %5136 = vmatmul.mubr.f32.gmra.mxu0 %v4652
        %v5137 = vpop.f32.mrf.mxu0
        %v5138 = vadd.f32 %v4510, %v5137
        %v5139 = vpop.f32.mrf.mxu0
        %5140 = vmatprep.mubr.f32.mxu0 0.0
        %5141 = vmatmul.mubr.f32.gmra.mxu0 %v4655
        %v5142 = vpop.f32.mrf.mxu0
        %v5143 = vadd.f32 %v4510, %v5142
        %v5144 = vpop.f32.mrf.mxu0
        %5145 = vmatprep.mubr.f32.mxu0 0.0
        %5146 = vmatmul.mubr.f32.gmra.mxu0 %v4658
        %v5147 = vpop.f32.mrf.mxu0
        %v5148 = vadd.f32 %v4510, %v5147
        %v5149 = vpop.f32.mrf.mxu0
        %5150 = vmatprep.mubr.f32.mxu0 0.0
        %5151 = vmatmul.mubr.f32.gmra.mxu0 %v4661
        %v5152 = vpop.f32.mrf.mxu0
        %v5153 = vadd.f32 %v4510, %v5152
        %v5154 = vpop.f32.mrf.mxu0
        %5155 = vmatprep.mubr.f32.mxu0 0.0
        %5156 = vmatmul.mubr.f32.gmra.mxu0 %v4664
        %v5157 = vpop.f32.mrf.mxu0
        %v5158 = vadd.f32 %v4510, %v5157
        %v5159 = vpop.f32.mrf.mxu0
        %5160 = vmatprep.mubr.f32.mxu0 0.0
        %5161 = vmatmul.mubr.f32.gmra.mxu0 %v4667
        %v5162 = vpop.f32.mrf.mxu0
        %v5163 = vadd.f32 %v4510, %v5162
        %v5164 = vpop.f32.mrf.mxu0
        %5165 = vmatprep.mubr.f32.mxu0 0.0
        %5166 = vmatmul.mubr.f32.gmra.mxu0 %v4670
        %v5167 = vpop.f32.mrf.mxu0
        %v5168 = vadd.f32 %v4510, %v5167
        %v5169 = vpop.f32.mrf.mxu0
        %5170 = vmatprep.mubr.f32.mxu0 0.0
        %5171 = vmatmul.mubr.f32.gmra.mxu0 %v4673
        %v5172 = vpop.f32.mrf.mxu0
        %v5173 = vadd.f32 %v4510, %v5172
        %v5174 = vpop.f32.mrf.mxu0
        %5175 = vmatprep.mubr.f32.mxu0 0.0
        %5176 = vmatmul.mubr.f32.gmra.mxu0 %v4676
        %v5177 = vpop.f32.mrf.mxu0
        %v5178 = vadd.f32 %v4510, %v5177
        %v5179 = vpop.f32.mrf.mxu0
        %5180 = vmatprep.mubr.f32.mxu0 0.0
        %5181 = vmatmul.mubr.f32.gmra.mxu0 %v4679
        %v5182 = vpop.f32.mrf.mxu0
        %v5183 = vadd.f32 %v4510, %v5182
        %v5184 = vpop.f32.mrf.mxu0
        %5185 = vmatprep.mubr.f32.mxu0 0.0
        %5186 = vmatmul.mubr.f32.gmra.mxu0 %v4682
        %v5187 = vpop.f32.mrf.mxu0
        %v5188 = vadd.f32 %v4510, %v5187
        %v5189 = vpop.f32.mrf.mxu0
        %5190 = vmatprep.mubr.f32.mxu0 0.0
        %5191 = vmatmul.mubr.f32.gmra.mxu0 %v4685
        %v5192 = vpop.f32.mrf.mxu0
        %v5193 = vadd.f32 %v4510, %v5192
        %v5194 = vpop.f32.mrf.mxu0
        %5195 = vmatprep.mubr.f32.mxu0 0.0
        %5196 = vmatmul.mubr.f32.gmra.mxu0 %v4688
        %v5197 = vpop.f32.mrf.mxu0
        %v5198 = vadd.f32 %v4510, %v5197
        %v5199 = vpop.f32.mrf.mxu0
        %5200 = vmatprep.mubr.f32.mxu0 0.0
        %5201 = vmatmul.mubr.f32.gmra.mxu0 %v4691
        %v5202 = vpop.f32.mrf.mxu0
        %v5203 = vadd.f32 %v4510, %v5202
        %v5204 = vpop.f32.mrf.mxu0
        %5205 = vmatprep.mubr.f32.mxu0 0.0
        %5206 = vmatmul.mubr.f32.gmra.mxu0 %v4694
        %v5207 = vpop.f32.mrf.mxu0
        %v5208 = vadd.f32 %v4510, %v5207
        %v5209 = vpop.f32.mrf.mxu0
        %5210 = vmatprep.mubr.f32.mxu0 0.0
        %5211 = vmatmul.mubr.f32.gmra.mxu0 %v4697
        %v5212 = vpop.f32.mrf.mxu0
        %v5213 = vadd.f32 %v4510, %v5212
        %v5214 = vpop.f32.mrf.mxu0
        %5215 = vmatprep.mubr.f32.mxu0 0.0
        %5216 = vmatmul.mubr.f32.gmra.mxu0 %v4700
        %v5217 = vpop.f32.mrf.mxu0
        %v5218 = vadd.f32 %v4510, %v5217
        %v5219 = vpop.f32.mrf.mxu0
        %5220 = vmatprep.mubr.f32.mxu0 0.0
        %5221 = vmatmul.mubr.f32.gmra.mxu0 %v4703
        %v5222 = vpop.f32.mrf.mxu0
        %v5223 = vadd.f32 %v4510, %v5222
        %v5224 = vpop.f32.mrf.mxu0
        %5225 = vmatprep.mubr.f32.mxu0 0.0
        %5226 = vmatmul.mubr.f32.gmra.mxu0 %v4706
        %v5227 = vpop.f32.mrf.mxu0
        %v5228 = vadd.f32 %v4510, %v5227
        %v5229 = vpop.f32.mrf.mxu0
        %5230 = vmatprep.mubr.f32.mxu0 0.0
        %5231 = vmatmul.mubr.f32.gmra.mxu0 %v4709
        %v5232 = vpop.f32.mrf.mxu0
        %v5233 = vadd.f32 %v4510, %v5232
        %v5234 = vpop.f32.mrf.mxu0
        %5235 = vmatprep.mubr.f32.mxu0 0.0
        %5236 = vmatmul.mubr.f32.gmra.mxu0 %v4712
        %v5237 = vpop.f32.mrf.mxu0
        %v5238 = vadd.f32 %v4510, %v5237
        %v5239 = vpop.f32.mrf.mxu0
        %5240 = vmatprep.mubr.f32.mxu0 0.0
        %5241 = vmatmul.mubr.f32.gmra.mxu0 %v4715
        %v5242 = vpop.f32.mrf.mxu0
        %v5243 = vadd.f32 %v4510, %v5242
        %v5244 = vpop.f32.mrf.mxu0
        %5245 = vmatprep.mubr.f32.mxu0 0.0
        %5246 = vmatmul.mubr.f32.gmra.mxu0 %v4718
        %v5247 = vpop.f32.mrf.mxu0
        %v5248 = vadd.f32 %v4510, %v5247
        %v5249 = vpop.f32.mrf.mxu0
        %5250 = vmatprep.mubr.f32.mxu0 0.0
        %5251 = vmatmul.mubr.f32.gmra.mxu0 %v4721
        %v5252 = vpop.f32.mrf.mxu0
        %v5253 = vadd.f32 %v4510, %v5252
        %v5254 = vpop.f32.mrf.mxu0
        %5255 = vmatprep.mubr.f32.mxu0 0.0
        %5256 = vmatmul.mubr.f32.gmra.mxu0 %v4724
        %v5257 = vpop.f32.mrf.mxu0
        %v5258 = vadd.f32 %v4510, %v5257
        %v5259 = vpop.f32.mrf.mxu0
        %5260 = vmatprep.mubr.f32.mxu0 0.0
        %5261 = vmatmul.mubr.f32.gmra.mxu0 %v4727
        %v5262 = vpop.f32.mrf.mxu0
        %v5263 = vadd.f32 %v4510, %v5262
        %v5264 = vpop.f32.mrf.mxu0
        %5265 = vmatprep.mubr.f32.mxu0 0.0
        %5266 = vmatmul.mubr.f32.gmra.mxu0 %v4730
        %v5267 = vpop.f32.mrf.mxu0
        %v5268 = vadd.f32 %v4510, %v5267
        %v5269 = vpop.f32.mrf.mxu0
        %5270 = vmatprep.mubr.f32.mxu0 0.0
        %5271 = vmatmul.mubr.f32.gmra.mxu0 %v4733
        %v5272 = vpop.f32.mrf.mxu0
        %v5273 = vadd.f32 %v4510, %v5272
        %v5274 = vpop.f32.mrf.mxu0
        %5275 = vmatprep.mubr.f32.mxu0 0.0
        %5276 = vmatmul.mubr.f32.gmra.mxu0 %v4736
        %v5277 = vpop.f32.mrf.mxu0
        %v5278 = vadd.f32 %v4510, %v5277
        %v5279 = vpop.f32.mrf.mxu0
        %5280 = vmatprep.mubr.f32.mxu0 0.0
        %5281 = vmatmul.mubr.f32.gmra.mxu0 %v4739
        %v5282 = vpop.f32.mrf.mxu0
        %v5283 = vadd.f32 %v4510, %v5282
        %v5284 = vpop.f32.mrf.mxu0
        %5285 = vmatprep.mubr.f32.mxu0 0.0
        %5286 = vmatmul.mubr.f32.gmra.mxu0 %v4742
        %v5287 = vpop.f32.mrf.mxu0
        %v5288 = vadd.f32 %v4510, %v5287
        %v5289 = vpop.f32.mrf.mxu0
        %5290 = vmatprep.mubr.f32.mxu0 0.0
        %5291 = vmatmul.mubr.f32.gmra.mxu0 %v4745
        %v5292 = vpop.f32.mrf.mxu0
        %v5293 = vadd.f32 %v4510, %v5292
        %v5294 = vpop.f32.mrf.mxu0
        %5295 = vmatprep.mubr.f32.mxu0 0.0
        %5296 = vmatmul.mubr.f32.gmra.mxu0 %v4748
        %v5297 = vpop.f32.mrf.mxu0
        %v5298 = vadd.f32 %v4510, %v5297
        %v5299 = vpop.f32.mrf.mxu0
        %5300 = vmatprep.mubr.f32.mxu0 0.0
        %5301 = vmatmul.mubr.f32.gmra.mxu0 %v4751
        %v5302 = vpop.f32.mrf.mxu0
        %v5303 = vadd.f32 %v4510, %v5302
        %v5304 = vpop.f32.mrf.mxu0
        %5305 = vmatprep.mubr.f32.mxu0 0.0
        %5306 = vmatmul.mubr.f32.gmra.mxu0 %v4754
        %v5307 = vpop.f32.mrf.mxu0
        %v5308 = vadd.f32 %v4510, %v5307
        %v5309 = vpop.f32.mrf.mxu0
        %5310 = vmatprep.mubr.f32.mxu0 0.0
        %5311 = vmatmul.mubr.f32.gmra.mxu0 %v4757
        %v5312 = vpop.f32.mrf.mxu0
        %v5313 = vadd.f32 %v4510, %v5312
        %v5314 = vpop.f32.mrf.mxu0
        %5315 = vmatprep.mubr.f32.mxu0 0.0
        %5316 = vmatmul.mubr.f32.gmra.mxu0 %v4760
        %v5317 = vpop.f32.mrf.mxu0
        %v5318 = vadd.f32 %v4510, %v5317
        %v5319 = vpop.f32.mrf.mxu0
        %5320 = vmatprep.mubr.f32.mxu0 0.0
        %5321 = vmatmul.mubr.f32.gmra.mxu0 %v4763
        %v5322 = vpop.f32.mrf.mxu0
        %v5323 = vadd.f32 %v4510, %v5322
        %v5324 = vpop.f32.mrf.mxu0
        %5325 = vmatprep.mubr.f32.mxu0 0.0
        %5326 = vmatmul.mubr.f32.gmra.mxu0 %v4766
        %v5327 = vpop.f32.mrf.mxu0
        %v5328 = vadd.f32 %v4510, %v5327
        %v5329 = vpop.f32.mrf.mxu0
        %5330 = vmatprep.mubr.f32.mxu0 0.0
        %5331 = vmatmul.mubr.f32.gmra.mxu0 %v4769
        %v5332 = vpop.f32.mrf.mxu0
        %v5333 = vadd.f32 %v4510, %v5332
        %v5334 = vpop.f32.mrf.mxu0
        %5335 = vmatprep.mubr.f32.mxu0 0.0
        %5336 = vmatmul.mubr.f32.gmra.mxu0 %v4772
        %v5337 = vpop.f32.mrf.mxu0
        %v5338 = vadd.f32 %v4510, %v5337
        %v5339 = vpop.f32.mrf.mxu0
        %5340 = vmatprep.mubr.f32.mxu0 0.0
        %5341 = vmatmul.mubr.f32.gmra.mxu0 %v4775
        %v5342 = vpop.f32.mrf.mxu0
        %v5343 = vadd.f32 %v4510, %v5342
        %v5344 = vpop.f32.mrf.mxu0
        %5345 = vmatprep.mubr.f32.mxu0 0.0
        %5346 = vmatmul.mubr.f32.gmra.mxu0 %v4778
        %v5347 = vpop.f32.mrf.mxu0
        %v5348 = vadd.f32 %v4510, %v5347
        %v5349 = vpop.f32.mrf.mxu0
        %5350 = vmatprep.mubr.f32.mxu0 0.0
        %5351 = vmatmul.mubr.f32.gmra.mxu0 %v4781
        %v5352 = vpop.f32.mrf.mxu0
        %v5353 = vadd.f32 %v4510, %v5352
        %v5354 = vpop.f32.mrf.mxu0
        %5355 = vmatprep.mubr.f32.mxu0 0.0
        %5356 = vmatmul.mubr.f32.gmra.mxu0 %v4784
        %v5357 = vpop.f32.mrf.mxu0
        %v5358 = vadd.f32 %v4510, %v5357
        %v5359 = vpop.f32.mrf.mxu0
        %5360 = vmatprep.mubr.f32.mxu0 0.0
        %5361 = vmatmul.mubr.f32.gmra.mxu0 %v4787
        %v5362 = vpop.f32.mrf.mxu0
        %v5363 = vadd.f32 %v4510, %v5362
        %v5364 = vpop.f32.mrf.mxu0
        %5365 = vmatprep.mubr.f32.mxu0 0.0
        %5366 = vmatmul.mubr.f32.gmra.mxu0 %v4790
        %v5367 = vpop.f32.mrf.mxu0
        %v5368 = vadd.f32 %v4510, %v5367
        %v5369 = vpop.f32.mrf.mxu0
        %5370 = vmatprep.mubr.f32.mxu0 0.0
        %5371 = vmatmul.mubr.f32.gmra.mxu0 %v4793
        %v5372 = vpop.f32.mrf.mxu0
        %v5373 = vadd.f32 %v4510, %v5372
        %v5374 = vpop.f32.mrf.mxu0
        %5375 = vmatprep.mubr.f32.mxu0 0.0
        %5376 = vmatmul.mubr.f32.gmra.mxu0 %v4796
        %v5377 = vpop.f32.mrf.mxu0
        %v5378 = vadd.f32 %v4510, %v5377
        %v5379 = vpop.f32.mrf.mxu0
        %5380 = vmatprep.mubr.f32.mxu0 0.0
        %5381 = vmatmul.mubr.f32.gmra.mxu0 %v4799
        %v5382 = vpop.f32.mrf.mxu0
        %v5383 = vadd.f32 %v4510, %v5382
        %v5384 = vpop.f32.mrf.mxu0
        %5385 = vmatprep.mubr.f32.mxu0 0.0
        %5386 = vmatmul.mubr.f32.gmra.mxu0 %v4802
        %v5387 = vpop.f32.mrf.mxu0
        %v5388 = vadd.f32 %v4510, %v5387
        %v5389 = vpop.f32.mrf.mxu0
        %5390 = vmatprep.mubr.f32.mxu0 0.0
        %5391 = vmatmul.mubr.f32.gmra.mxu0 %v4805
        %v5392 = vpop.f32.mrf.mxu0
        %v5393 = vadd.f32 %v4510, %v5392
        %v5394 = vpop.f32.mrf.mxu0
        %5395 = vmatprep.mubr.f32.mxu0 0.0
        %5396 = vmatmul.mubr.f32.gmra.mxu0 %v4808
        %v5397 = vpop.f32.mrf.mxu0
        %v5398 = vadd.f32 %v4510, %v5397
        %v5399 = vpop.f32.mrf.mxu0
        %5400 = vmatprep.mubr.f32.mxu0 0.0
        %5401 = vmatmul.mubr.f32.gmra.mxu0 %v4811
        %v5402 = vpop.f32.mrf.mxu0
        %v5403 = vadd.f32 %v4510, %v5402
        %v5404 = vpop.f32.mrf.mxu0
        %5405 = vmatprep.mubr.f32.mxu0 0.0
        %5406 = vmatmul.mubr.f32.gmra.mxu0 %v4814
        %v5407 = vpop.f32.mrf.mxu0
        %v5408 = vadd.f32 %v4510, %v5407
        %v5409 = vpop.f32.mrf.mxu0
        %5410 = vmatprep.mubr.f32.mxu0 0.0
        %5411 = vmatmul.mubr.f32.gmra.mxu0 %v4817
        %v5412 = vpop.f32.mrf.mxu0
        %v5413 = vadd.f32 %v4510, %v5412
        %v5414 = vpop.f32.mrf.mxu0
        %5415 = vmatprep.mubr.f32.mxu0 0.0
        %5416 = vmatmul.mubr.f32.gmra.mxu0 %v4820
        %v5417 = vpop.f32.mrf.mxu0
        %v5418 = vadd.f32 %v4510, %v5417
        %v5419 = vpop.f32.mrf.mxu0
        %5420 = vmatprep.mubr.f32.mxu0 0.0
        %5421 = vmatmul.mubr.f32.gmra.mxu0 %v4823
        %v5422 = vpop.f32.mrf.mxu0
        %v5423 = vadd.f32 %v4510, %v5422
        %v5424 = vpop.f32.mrf.mxu0
        %5425 = vmatprep.mubr.f32.mxu0 0.0
        %5426 = vmatmul.mubr.f32.gmra.mxu0 %v4826
        %v5427 = vpop.f32.mrf.mxu0
        %v5428 = vadd.f32 %v4510, %v5427
        %v5429 = vpop.f32.mrf.mxu0
        %5430 = vmatprep.mubr.f32.mxu0 0.0
        %5431 = vmatmul.mubr.f32.gmra.mxu0 %v4829
        %v5432 = vpop.f32.mrf.mxu0
        %v5433 = vadd.f32 %v4510, %v5432
        %v5434 = vpop.f32.mrf.mxu0
        %5435 = vmatprep.mubr.f32.mxu0 0.0
        %5436 = vmatmul.mubr.f32.gmra.mxu0 %v4832
        %v5437 = vpop.f32.mrf.mxu0
        %v5438 = vadd.f32 %v4510, %v5437
        %v5439 = vpop.f32.mrf.mxu0
        %5440 = vmatprep.mubr.f32.mxu0 0.0
        %5441 = vmatmul.mubr.f32.gmra.mxu0 %v4835
        %v5442 = vpop.f32.mrf.mxu0
        %v5443 = vadd.f32 %v4510, %v5442
        %v5444 = vpop.f32.mrf.mxu0
        %5445 = vdwg.mxu0
        %vm5446 = vcmp.ge.f32.partialorder %v4908, 0.0
        %vm5447 = vcmp.ge.f32.partialorder %v4913, 0.0
        %vm5448 = vcmp.ge.f32.partialorder %v4918, 0.0
        %vm5449 = vcmp.ge.f32.partialorder %v4923, 0.0
        %vm5450 = vcmp.ge.f32.partialorder %v4928, 0.0
        %vm5451 = vcmp.ge.f32.partialorder %v4933, 0.0
        %vm5452 = vcmp.ge.f32.partialorder %v4938, 0.0
        %vm5453 = vcmp.ge.f32.partialorder %v4943, 0.0
        %vm5454 = vcmp.ge.f32.partialorder %v4948, 0.0
        %vm5455 = vcmp.ge.f32.partialorder %v4953, 0.0
        %vm5456 = vcmp.ge.f32.partialorder %v4958, 0.0
        %vm5457 = vcmp.ge.f32.partialorder %v4963, 0.0
        %vm5458 = vcmp.ge.f32.partialorder %v4968, 0.0
        %vm5459 = vcmp.ge.f32.partialorder %v4973, 0.0
        %vm5460 = vcmp.ge.f32.partialorder %v4978, 0.0
        %vm5461 = vcmp.ge.f32.partialorder %v4983, 0.0
        %vm5462 = vcmp.ge.f32.partialorder %v4988, 0.0
        %vm5463 = vcmp.ge.f32.partialorder %v4993, 0.0
        %vm5464 = vcmp.ge.f32.partialorder %v4998, 0.0
        %vm5465 = vcmp.ge.f32.partialorder %v5003, 0.0
        %vm5466 = vcmp.ge.f32.partialorder %v5008, 0.0
        %vm5467 = vcmp.ge.f32.partialorder %v5013, 0.0
        %vm5468 = vcmp.ge.f32.partialorder %v5018, 0.0
        %vm5469 = vcmp.ge.f32.partialorder %v5023, 0.0
        %vm5470 = vcmp.ge.f32.partialorder %v5028, 0.0
        %vm5471 = vcmp.ge.f32.partialorder %v5033, 0.0
        %vm5472 = vcmp.ge.f32.partialorder %v5038, 0.0
        %vm5473 = vcmp.ge.f32.partialorder %v5043, 0.0
        %vm5474 = vcmp.ge.f32.partialorder %v5048, 0.0
        %vm5475 = vcmp.ge.f32.partialorder %v5053, 0.0
        %vm5476 = vcmp.ge.f32.partialorder %v5058, 0.0
        %vm5477 = vcmp.ge.f32.partialorder %v5063, 0.0
        %vm5478 = vcmp.ge.f32.partialorder %v5068, 0.0
        %vm5479 = vcmp.ge.f32.partialorder %v5073, 0.0
        %vm5480 = vcmp.ge.f32.partialorder %v5078, 0.0
        %vm5481 = vcmp.ge.f32.partialorder %v5083, 0.0
        %vm5482 = vcmp.ge.f32.partialorder %v5088, 0.0
        %vm5483 = vcmp.ge.f32.partialorder %v5093, 0.0
        %vm5484 = vcmp.ge.f32.partialorder %v5098, 0.0
        %vm5485 = vcmp.ge.f32.partialorder %v5103, 0.0
        %vm5486 = vcmp.ge.f32.partialorder %v5108, 0.0
        %vm5487 = vcmp.ge.f32.partialorder %v5113, 0.0
        %vm5488 = vcmp.ge.f32.partialorder %v5118, 0.0
        %vm5489 = vcmp.ge.f32.partialorder %v5123, 0.0
        %vm5490 = vcmp.ge.f32.partialorder %v5128, 0.0
        %vm5491 = vcmp.ge.f32.partialorder %v5133, 0.0
        %vm5492 = vcmp.ge.f32.partialorder %v5138, 0.0
        %vm5493 = vcmp.ge.f32.partialorder %v5143, 0.0
        %vm5494 = vcmp.ge.f32.partialorder %v5148, 0.0
        %vm5495 = vcmp.ge.f32.partialorder %v5153, 0.0
        %vm5496 = vcmp.ge.f32.partialorder %v5158, 0.0
        %vm5497 = vcmp.ge.f32.partialorder %v5163, 0.0
        %vm5498 = vcmp.ge.f32.partialorder %v5168, 0.0
        %vm5499 = vcmp.ge.f32.partialorder %v5173, 0.0
        %vm5500 = vcmp.ge.f32.partialorder %v5178, 0.0
        %vm5501 = vcmp.ge.f32.partialorder %v5183, 0.0
        %vm5502 = vcmp.ge.f32.partialorder %v5188, 0.0
        %vm5503 = vcmp.ge.f32.partialorder %v5193, 0.0
        %vm5504 = vcmp.ge.f32.partialorder %v5198, 0.0
        %vm5505 = vcmp.ge.f32.partialorder %v5203, 0.0
        %vm5506 = vcmp.ge.f32.partialorder %v5208, 0.0
        %vm5507 = vcmp.ge.f32.partialorder %v5213, 0.0
        %vm5508 = vcmp.ge.f32.partialorder %v5218, 0.0
        %vm5509 = vcmp.ge.f32.partialorder %v5223, 0.0
        %vm5510 = vcmp.ge.f32.partialorder %v5228, 0.0
        %vm5511 = vcmp.ge.f32.partialorder %v5233, 0.0
        %vm5512 = vcmp.ge.f32.partialorder %v5238, 0.0
        %vm5513 = vcmp.ge.f32.partialorder %v5243, 0.0
        %vm5514 = vcmp.ge.f32.partialorder %v5248, 0.0
        %vm5515 = vcmp.ge.f32.partialorder %v5253, 0.0
        %vm5516 = vcmp.ge.f32.partialorder %v5258, 0.0
        %vm5517 = vcmp.ge.f32.partialorder %v5263, 0.0
        %vm5518 = vcmp.ge.f32.partialorder %v5268, 0.0
        %vm5519 = vcmp.ge.f32.partialorder %v5273, 0.0
        %vm5520 = vcmp.ge.f32.partialorder %v5278, 0.0
        %vm5521 = vcmp.ge.f32.partialorder %v5283, 0.0
        %vm5522 = vcmp.ge.f32.partialorder %v5288, 0.0
        %vm5523 = vcmp.ge.f32.partialorder %v5293, 0.0
        %vm5524 = vcmp.ge.f32.partialorder %v5298, 0.0
        %vm5525 = vcmp.ge.f32.partialorder %v5303, 0.0
        %vm5526 = vcmp.ge.f32.partialorder %v5308, 0.0
        %vm5527 = vcmp.ge.f32.partialorder %v5313, 0.0
        %vm5528 = vcmp.ge.f32.partialorder %v5318, 0.0
        %vm5529 = vcmp.ge.f32.partialorder %v5323, 0.0
        %vm5530 = vcmp.ge.f32.partialorder %v5328, 0.0
        %vm5531 = vcmp.ge.f32.partialorder %v5333, 0.0
        %vm5532 = vcmp.ge.f32.partialorder %v5338, 0.0
        %vm5533 = vcmp.ge.f32.partialorder %v5343, 0.0
        %vm5534 = vcmp.ge.f32.partialorder %v5348, 0.0
        %vm5535 = vcmp.ge.f32.partialorder %v5353, 0.0
        %vm5536 = vcmp.ge.f32.partialorder %v5358, 0.0
        %vm5537 = vcmp.ge.f32.partialorder %v5363, 0.0
        %vm5538 = vcmp.ge.f32.partialorder %v5368, 0.0
        %vm5539 = vcmp.ge.f32.partialorder %v5373, 0.0
        %vm5540 = vcmp.ge.f32.partialorder %v5378, 0.0
        %vm5541 = vcmp.ge.f32.partialorder %v5383, 0.0
        %vm5542 = vcmp.ge.f32.partialorder %v5388, 0.0
        %vm5543 = vcmp.ge.f32.partialorder %v5393, 0.0
        %vm5544 = vcmp.ge.f32.partialorder %v5398, 0.0
        %vm5545 = vcmp.ge.f32.partialorder %v5403, 0.0
        %vm5546 = vcmp.ge.f32.partialorder %v5408, 0.0
        %vm5547 = vcmp.ge.f32.partialorder %v5413, 0.0
        %vm5548 = vcmp.ge.f32.partialorder %v5418, 0.0
        %vm5549 = vcmp.ge.f32.partialorder %v5423, 0.0
        %vm5550 = vcmp.ge.f32.partialorder %v5428, 0.0
        %vm5551 = vcmp.ge.f32.partialorder %v5433, 0.0
        %vm5552 = vcmp.ge.f32.partialorder %v5438, 0.0
        %vm5553 = vcmp.ge.f32.partialorder %v5443, 0.0
        %v5554 = vmul.f32 %v4908, 0.2
        %v5555 = vmul.f32 %v4913, 0.2
        %v5556 = vmul.f32 %v4918, 0.2
        %v5557 = vmul.f32 %v4923, 0.2
        %v5558 = vmul.f32 %v4928, 0.2
        %v5559 = vmul.f32 %v4933, 0.2
        %v5560 = vmul.f32 %v4938, 0.2
        %v5561 = vmul.f32 %v4943, 0.2
        %v5562 = vmul.f32 %v4948, 0.2
        %v5563 = vmul.f32 %v4953, 0.2
        %v5564 = vmul.f32 %v4958, 0.2
        %v5565 = vmul.f32 %v4963, 0.2
        %v5566 = vmul.f32 %v4968, 0.2
        %v5567 = vmul.f32 %v4973, 0.2
        %v5568 = vmul.f32 %v4978, 0.2
        %v5569 = vmul.f32 %v4983, 0.2
        %v5570 = vmul.f32 %v4988, 0.2
        %v5571 = vmul.f32 %v4993, 0.2
        %v5572 = vmul.f32 %v4998, 0.2
        %v5573 = vmul.f32 %v5003, 0.2
        %v5574 = vmul.f32 %v5008, 0.2
        %v5575 = vmul.f32 %v5013, 0.2
        %v5576 = vmul.f32 %v5018, 0.2
        %v5577 = vmul.f32 %v5023, 0.2
        %v5578 = vmul.f32 %v5028, 0.2
        %v5579 = vmul.f32 %v5033, 0.2
        %v5580 = vmul.f32 %v5038, 0.2
        %v5581 = vmul.f32 %v5043, 0.2
        %v5582 = vmul.f32 %v5048, 0.2
        %v5583 = vmul.f32 %v5053, 0.2
        %v5584 = vmul.f32 %v5058, 0.2
        %v5585 = vmul.f32 %v5063, 0.2
        %v5586 = vmul.f32 %v5068, 0.2
        %v5587 = vmul.f32 %v5073, 0.2
        %v5588 = vmul.f32 %v5078, 0.2
        %v5589 = vmul.f32 %v5083, 0.2
        %v5590 = vmul.f32 %v5088, 0.2
        %v5591 = vmul.f32 %v5093, 0.2
        %v5592 = vmul.f32 %v5098, 0.2
        %v5593 = vmul.f32 %v5103, 0.2
        %v5594 = vmul.f32 %v5108, 0.2
        %v5595 = vmul.f32 %v5113, 0.2
        %v5596 = vmul.f32 %v5118, 0.2
        %v5597 = vmul.f32 %v5123, 0.2
        %v5598 = vmul.f32 %v5128, 0.2
        %v5599 = vmul.f32 %v5133, 0.2
        %v5600 = vmul.f32 %v5138, 0.2
        %v5601 = vmul.f32 %v5143, 0.2
        %v5602 = vmul.f32 %v5148, 0.2
        %v5603 = vmul.f32 %v5153, 0.2
        %v5604 = vmul.f32 %v5158, 0.2
        %v5605 = vmul.f32 %v5163, 0.2
        %v5606 = vmul.f32 %v5168, 0.2
        %v5607 = vmul.f32 %v5173, 0.2
        %v5608 = vmul.f32 %v5178, 0.2
        %v5609 = vmul.f32 %v5183, 0.2
        %v5610 = vmul.f32 %v5188, 0.2
        %v5611 = vmul.f32 %v5193, 0.2
        %v5612 = vmul.f32 %v5198, 0.2
        %v5613 = vmul.f32 %v5203, 0.2
        %v5614 = vmul.f32 %v5208, 0.2
        %v5615 = vmul.f32 %v5213, 0.2
        %v5616 = vmul.f32 %v5218, 0.2
        %v5617 = vmul.f32 %v5223, 0.2
        %v5618 = vmul.f32 %v5228, 0.2
        %v5619 = vmul.f32 %v5233, 0.2
        %v5620 = vmul.f32 %v5238, 0.2
        %v5621 = vmul.f32 %v5243, 0.2
        %v5622 = vmul.f32 %v5248, 0.2
        %v5623 = vmul.f32 %v5253, 0.2
        %v5624 = vmul.f32 %v5258, 0.2
        %v5625 = vmul.f32 %v5263, 0.2
        %v5626 = vmul.f32 %v5268, 0.2
        %v5627 = vmul.f32 %v5273, 0.2
        %v5628 = vmul.f32 %v5278, 0.2
        %v5629 = vmul.f32 %v5283, 0.2
        %v5630 = vmul.f32 %v5288, 0.2
        %v5631 = vmul.f32 %v5293, 0.2
        %v5632 = vmul.f32 %v5298, 0.2
        %v5633 = vmul.f32 %v5303, 0.2
        %v5634 = vmul.f32 %v5308, 0.2
        %v5635 = vmul.f32 %v5313, 0.2
        %v5636 = vmul.f32 %v5318, 0.2
        %v5637 = vmul.f32 %v5323, 0.2
        %v5638 = vmul.f32 %v5328, 0.2
        %v5639 = vmul.f32 %v5333, 0.2
        %v5640 = vmul.f32 %v5338, 0.2
        %v5641 = vmul.f32 %v5343, 0.2
        %v5642 = vmul.f32 %v5348, 0.2
        %v5643 = vmul.f32 %v5353, 0.2
        %v5644 = vmul.f32 %v5358, 0.2
        %v5645 = vmul.f32 %v5363, 0.2
        %v5646 = vmul.f32 %v5368, 0.2
        %v5647 = vmul.f32 %v5373, 0.2
        %v5648 = vmul.f32 %v5378, 0.2
        %v5649 = vmul.f32 %v5383, 0.2
        %v5650 = vmul.f32 %v5388, 0.2
        %v5651 = vmul.f32 %v5393, 0.2
        %v5652 = vmul.f32 %v5398, 0.2
        %v5653 = vmul.f32 %v5403, 0.2
        %v5654 = vmul.f32 %v5408, 0.2
        %v5655 = vmul.f32 %v5413, 0.2
        %v5656 = vmul.f32 %v5418, 0.2
        %v5657 = vmul.f32 %v5423, 0.2
        %v5658 = vmul.f32 %v5428, 0.2
        %v5659 = vmul.f32 %v5433, 0.2
        %v5660 = vmul.f32 %v5438, 0.2
        %v5661 = vmul.f32 %v5443, 0.2
        %v5662 = vsel %vm5446, %v4908, %v5554
        %v5663 = vsel %vm5447, %v4913, %v5555
        %v5664 = vsel %vm5448, %v4918, %v5556
        %v5665 = vsel %vm5449, %v4923, %v5557
        %v5666 = vsel %vm5450, %v4928, %v5558
        %v5667 = vsel %vm5451, %v4933, %v5559
        %v5668 = vsel %vm5452, %v4938, %v5560
        %v5669 = vsel %vm5453, %v4943, %v5561
        %v5670 = vsel %vm5454, %v4948, %v5562
        %v5671 = vsel %vm5455, %v4953, %v5563
        %v5672 = vsel %vm5456, %v4958, %v5564
        %v5673 = vsel %vm5457, %v4963, %v5565
        %v5674 = vsel %vm5458, %v4968, %v5566
        %v5675 = vsel %vm5459, %v4973, %v5567
        %v5676 = vsel %vm5460, %v4978, %v5568
        %v5677 = vsel %vm5461, %v4983, %v5569
        %v5678 = vsel %vm5462, %v4988, %v5570
        %v5679 = vsel %vm5463, %v4993, %v5571
        %v5680 = vsel %vm5464, %v4998, %v5572
        %v5681 = vsel %vm5465, %v5003, %v5573
        %v5682 = vsel %vm5466, %v5008, %v5574
        %v5683 = vsel %vm5467, %v5013, %v5575
        %v5684 = vsel %vm5468, %v5018, %v5576
        %v5685 = vsel %vm5469, %v5023, %v5577
        %v5686 = vsel %vm5470, %v5028, %v5578
        %v5687 = vsel %vm5471, %v5033, %v5579
        %v5688 = vsel %vm5472, %v5038, %v5580
        %v5689 = vsel %vm5473, %v5043, %v5581
        %v5690 = vsel %vm5474, %v5048, %v5582
        %v5691 = vsel %vm5475, %v5053, %v5583
        %v5692 = vsel %vm5476, %v5058, %v5584
        %v5693 = vsel %vm5477, %v5063, %v5585
        %v5694 = vsel %vm5478, %v5068, %v5586
        %v5695 = vsel %vm5479, %v5073, %v5587
        %v5696 = vsel %vm5480, %v5078, %v5588
        %v5697 = vsel %vm5481, %v5083, %v5589
        %v5698 = vsel %vm5482, %v5088, %v5590
        %v5699 = vsel %vm5483, %v5093, %v5591
        %v5700 = vsel %vm5484, %v5098, %v5592
        %v5701 = vsel %vm5485, %v5103, %v5593
        %v5702 = vsel %vm5486, %v5108, %v5594
        %v5703 = vsel %vm5487, %v5113, %v5595
        %v5704 = vsel %vm5488, %v5118, %v5596
        %v5705 = vsel %vm5489, %v5123, %v5597
        %v5706 = vsel %vm5490, %v5128, %v5598
        %v5707 = vsel %vm5491, %v5133, %v5599
        %v5708 = vsel %vm5492, %v5138, %v5600
        %v5709 = vsel %vm5493, %v5143, %v5601
        %v5710 = vsel %vm5494, %v5148, %v5602
        %v5711 = vsel %vm5495, %v5153, %v5603
        %v5712 = vsel %vm5496, %v5158, %v5604
        %v5713 = vsel %vm5497, %v5163, %v5605
        %v5714 = vsel %vm5498, %v5168, %v5606
        %v5715 = vsel %vm5499, %v5173, %v5607
        %v5716 = vsel %vm5500, %v5178, %v5608
        %v5717 = vsel %vm5501, %v5183, %v5609
        %v5718 = vsel %vm5502, %v5188, %v5610
        %v5719 = vsel %vm5503, %v5193, %v5611
        %v5720 = vsel %vm5504, %v5198, %v5612
        %v5721 = vsel %vm5505, %v5203, %v5613
        %v5722 = vsel %vm5506, %v5208, %v5614
        %v5723 = vsel %vm5507, %v5213, %v5615
        %v5724 = vsel %vm5508, %v5218, %v5616
        %v5725 = vsel %vm5509, %v5223, %v5617
        %v5726 = vsel %vm5510, %v5228, %v5618
        %v5727 = vsel %vm5511, %v5233, %v5619
        %v5728 = vsel %vm5512, %v5238, %v5620
        %v5729 = vsel %vm5513, %v5243, %v5621
        %v5730 = vsel %vm5514, %v5248, %v5622
        %v5731 = vsel %vm5515, %v5253, %v5623
        %v5732 = vsel %vm5516, %v5258, %v5624
        %v5733 = vsel %vm5517, %v5263, %v5625
        %v5734 = vsel %vm5518, %v5268, %v5626
        %v5735 = vsel %vm5519, %v5273, %v5627
        %v5736 = vsel %vm5520, %v5278, %v5628
        %v5737 = vsel %vm5521, %v5283, %v5629
        %v5738 = vsel %vm5522, %v5288, %v5630
        %v5739 = vsel %vm5523, %v5293, %v5631
        %v5740 = vsel %vm5524, %v5298, %v5632
        %v5741 = vsel %vm5525, %v5303, %v5633
        %v5742 = vsel %vm5526, %v5308, %v5634
        %v5743 = vsel %vm5527, %v5313, %v5635
        %v5744 = vsel %vm5528, %v5318, %v5636
        %v5745 = vsel %vm5529, %v5323, %v5637
        %v5746 = vsel %vm5530, %v5328, %v5638
        %v5747 = vsel %vm5531, %v5333, %v5639
        %v5748 = vsel %vm5532, %v5338, %v5640
        %v5749 = vsel %vm5533, %v5343, %v5641
        %v5750 = vsel %vm5534, %v5348, %v5642
        %v5751 = vsel %vm5535, %v5353, %v5643
        %v5752 = vsel %vm5536, %v5358, %v5644
        %v5753 = vsel %vm5537, %v5363, %v5645
        %v5754 = vsel %vm5538, %v5368, %v5646
        %v5755 = vsel %vm5539, %v5373, %v5647
        %v5756 = vsel %vm5540, %v5378, %v5648
        %v5757 = vsel %vm5541, %v5383, %v5649
        %v5758 = vsel %vm5542, %v5388, %v5650
        %v5759 = vsel %vm5543, %v5393, %v5651
        %v5760 = vsel %vm5544, %v5398, %v5652
        %v5761 = vsel %vm5545, %v5403, %v5653
        %v5762 = vsel %vm5546, %v5408, %v5654
        %v5763 = vsel %vm5547, %v5413, %v5655
        %v5764 = vsel %vm5548, %v5418, %v5656
        %v5765 = vsel %vm5549, %v5423, %v5657
        %v5766 = vsel %vm5550, %v5428, %v5658
        %v5767 = vsel %vm5551, %v5433, %v5659
        %v5768 = vsel %vm5552, %v5438, %v5660
        %v5769 = vsel %vm5553, %v5443, %v5661
        %v5770 = vsel %vm555, %v5662, 0.0
        %v5771 = vsel %vm556, %v5663, 0.0
        %v5772 = vsel %vm557, %v5664, 0.0
        %v5773 = vsel %vm558, %v5665, 0.0
        %v5774 = vsel %vm559, %v5666, 0.0
        %v5775 = vsel %vm560, %v5667, 0.0
        %v5776 = vsel %vm558, %v5668, 0.0
        %v5777 = vsel %vm559, %v5669, 0.0
        %v5778 = vsel %vm560, %v5670, 0.0
        %v5779 = vsel %vm558, %v5671, 0.0
        %v5780 = vsel %vm559, %v5672, 0.0
        %v5781 = vsel %vm560, %v5673, 0.0
        %v5782 = vsel %vm558, %v5674, 0.0
        %v5783 = vsel %vm559, %v5675, 0.0
        %v5784 = vsel %vm560, %v5676, 0.0
        %v5785 = vsel %vm558, %v5677, 0.0
        %v5786 = vsel %vm559, %v5678, 0.0
        %v5787 = vsel %vm560, %v5679, 0.0
        %v5788 = vsel %vm558, %v5680, 0.0
        %v5789 = vsel %vm559, %v5681, 0.0
        %v5790 = vsel %vm560, %v5682, 0.0
        %v5791 = vsel %vm558, %v5683, 0.0
        %v5792 = vsel %vm559, %v5684, 0.0
        %v5793 = vsel %vm560, %v5685, 0.0
        %v5794 = vsel %vm558, %v5686, 0.0
        %v5795 = vsel %vm559, %v5687, 0.0
        %v5796 = vsel %vm560, %v5688, 0.0
        %v5797 = vsel %vm558, %v5689, 0.0
        %v5798 = vsel %vm559, %v5690, 0.0
        %v5799 = vsel %vm560, %v5691, 0.0
        %v5800 = vsel %vm558, %v5692, 0.0
        %v5801 = vsel %vm559, %v5693, 0.0
        %v5802 = vsel %vm560, %v5694, 0.0
        %v5803 = vsel %vm558, %v5695, 0.0
        %v5804 = vsel %vm559, %v5696, 0.0
        %v5805 = vsel %vm560, %v5697, 0.0
        %v5806 = vsel %vm558, %v5698, 0.0
        %v5807 = vsel %vm559, %v5699, 0.0
        %v5808 = vsel %vm560, %v5700, 0.0
        %v5809 = vsel %vm558, %v5701, 0.0
        %v5810 = vsel %vm559, %v5702, 0.0
        %v5811 = vsel %vm560, %v5703, 0.0
        %v5812 = vsel %vm558, %v5704, 0.0
        %v5813 = vsel %vm559, %v5705, 0.0
        %v5814 = vsel %vm560, %v5706, 0.0
        %v5815 = vsel %vm558, %v5707, 0.0
        %v5816 = vsel %vm559, %v5708, 0.0
        %v5817 = vsel %vm560, %v5709, 0.0
        %v5818 = vsel %vm558, %v5710, 0.0
        %v5819 = vsel %vm559, %v5711, 0.0
        %v5820 = vsel %vm560, %v5712, 0.0
        %v5821 = vsel %vm555, %v5713, 0.0
        %v5822 = vsel %vm556, %v5714, 0.0
        %v5823 = vsel %vm557, %v5715, 0.0
        %v5878 = vrot.slane %v5770, 1
        %v5879 = vrot.slane %v5771, 1
        %v5880 = vsel %vm755, %v5878, %v5879
        %v5881 = vrot.slane %v5772, 1
        %v5882 = vsel %vm755, %v5879, %v5881
        %v5883 = vrot.slane %v5773, 1
        %v5884 = vrot.slane %v5774, 1
        %v5885 = vsel %vm755, %v5883, %v5884
        %v5886 = vrot.slane %v5775, 1
        %v5887 = vsel %vm755, %v5884, %v5886
        %v5888 = vrot.slane %v5776, 1
        %v5889 = vrot.slane %v5777, 1
        %v5890 = vsel %vm755, %v5888, %v5889
        %v5891 = vrot.slane %v5778, 1
        %v5892 = vsel %vm755, %v5889, %v5891
        %v5893 = vrot.slane %v5779, 1
        %v5894 = vrot.slane %v5780, 1
        %v5895 = vsel %vm755, %v5893, %v5894
        %v5896 = vrot.slane %v5781, 1
        %v5897 = vsel %vm755, %v5894, %v5896
        %v5898 = vrot.slane %v5782, 1
        %v5899 = vrot.slane %v5783, 1
        %v5900 = vsel %vm755, %v5898, %v5899
        %v5901 = vrot.slane %v5784, 1
        %v5902 = vsel %vm755, %v5899, %v5901
        %v5903 = vrot.slane %v5785, 1
        %v5904 = vrot.slane %v5786, 1
        %v5905 = vsel %vm755, %v5903, %v5904
        %v5906 = vrot.slane %v5787, 1
        %v5907 = vsel %vm755, %v5904, %v5906
        %v5908 = vrot.slane %v5788, 1
        %v5909 = vrot.slane %v5789, 1
        %v5910 = vsel %vm755, %v5908, %v5909
        %v5911 = vrot.slane %v5790, 1
        %v5912 = vsel %vm755, %v5909, %v5911
        %v5913 = vrot.slane %v5791, 1
        %v5914 = vrot.slane %v5792, 1
        %v5915 = vsel %vm755, %v5913, %v5914
        %v5916 = vrot.slane %v5793, 1
        %v5917 = vsel %vm755, %v5914, %v5916
        %v5918 = vrot.slane %v5794, 1
        %v5919 = vrot.slane %v5795, 1
        %v5920 = vsel %vm755, %v5918, %v5919
        %v5921 = vrot.slane %v5796, 1
        %v5922 = vsel %vm755, %v5919, %v5921
        %v5923 = vrot.slane %v5797, 1
        %v5924 = vrot.slane %v5798, 1
        %v5925 = vsel %vm755, %v5923, %v5924
        %v5926 = vrot.slane %v5799, 1
        %v5927 = vsel %vm755, %v5924, %v5926
        %v5928 = vrot.slane %v5800, 1
        %v5929 = vrot.slane %v5801, 1
        %v5930 = vsel %vm755, %v5928, %v5929
        %v5931 = vrot.slane %v5802, 1
        %v5932 = vsel %vm755, %v5929, %v5931
        %v5933 = vrot.slane %v5803, 1
        %v5934 = vrot.slane %v5804, 1
        %v5935 = vsel %vm755, %v5933, %v5934
        %v5936 = vrot.slane %v5805, 1
        %v5937 = vsel %vm755, %v5934, %v5936
        %v5938 = vrot.slane %v5806, 1
        %v5939 = vrot.slane %v5807, 1
        %v5940 = vsel %vm755, %v5938, %v5939
        %v5941 = vrot.slane %v5808, 1
        %v5942 = vsel %vm755, %v5939, %v5941
        %v5943 = vrot.slane %v5809, 1
        %v5944 = vrot.slane %v5810, 1
        %v5945 = vsel %vm755, %v5943, %v5944
        %v5946 = vrot.slane %v5811, 1
        %v5947 = vsel %vm755, %v5944, %v5946
        %v5948 = vrot.slane %v5812, 1
        %v5949 = vrot.slane %v5813, 1
        %v5950 = vsel %vm755, %v5948, %v5949
        %v5951 = vrot.slane %v5814, 1
        %v5952 = vsel %vm755, %v5949, %v5951
        %v5953 = vrot.slane %v5815, 1
        %v5954 = vrot.slane %v5816, 1
        %v5955 = vsel %vm755, %v5953, %v5954
        %v5956 = vrot.slane %v5817, 1
        %v5957 = vsel %vm755, %v5954, %v5956
        %v5958 = vrot.slane %v5818, 1
        %v5959 = vrot.slane %v5819, 1
        %v5960 = vsel %vm755, %v5958, %v5959
        %v5961 = vrot.slane %v5820, 1
        %v5962 = vsel %vm755, %v5959, %v5961
        %v5963 = vrot.slane %v5821, 1
        %v5964 = vrot.slane %v5822, 1
        %v5965 = vsel %vm755, %v5963, %v5964
        %v5966 = vrot.slane %v5823, 1
        %v5967 = vsel %vm755, %v5964, %v5966
        %v6004 = vrot.slane %v5770, 2
        %v6005 = vrot.slane %v5771, 2
        %v6006 = vsel %vm1001, %v6004, %v6005
        %v6007 = vrot.slane %v5772, 2
        %v6008 = vsel %vm1001, %v6005, %v6007
        %v6009 = vrot.slane %v5773, 2
        %v6010 = vrot.slane %v5774, 2
        %v6011 = vsel %vm1001, %v6009, %v6010
        %v6012 = vrot.slane %v5775, 2
        %v6013 = vsel %vm1001, %v6010, %v6012
        %v6014 = vrot.slane %v5776, 2
        %v6015 = vrot.slane %v5777, 2
        %v6016 = vsel %vm1001, %v6014, %v6015
        %v6017 = vrot.slane %v5778, 2
        %v6018 = vsel %vm1001, %v6015, %v6017
        %v6019 = vrot.slane %v5779, 2
        %v6020 = vrot.slane %v5780, 2
        %v6021 = vsel %vm1001, %v6019, %v6020
        %v6022 = vrot.slane %v5781, 2
        %v6023 = vsel %vm1001, %v6020, %v6022
        %v6024 = vrot.slane %v5782, 2
        %v6025 = vrot.slane %v5783, 2
        %v6026 = vsel %vm1001, %v6024, %v6025
        %v6027 = vrot.slane %v5784, 2
        %v6028 = vsel %vm1001, %v6025, %v6027
        %v6029 = vrot.slane %v5785, 2
        %v6030 = vrot.slane %v5786, 2
        %v6031 = vsel %vm1001, %v6029, %v6030
        %v6032 = vrot.slane %v5787, 2
        %v6033 = vsel %vm1001, %v6030, %v6032
        %v6034 = vrot.slane %v5788, 2
        %v6035 = vrot.slane %v5789, 2
        %v6036 = vsel %vm1001, %v6034, %v6035
        %v6037 = vrot.slane %v5790, 2
        %v6038 = vsel %vm1001, %v6035, %v6037
        %v6039 = vrot.slane %v5791, 2
        %v6040 = vrot.slane %v5792, 2
        %v6041 = vsel %vm1001, %v6039, %v6040
        %v6042 = vrot.slane %v5793, 2
        %v6043 = vsel %vm1001, %v6040, %v6042
        %v6044 = vrot.slane %v5794, 2
        %v6045 = vrot.slane %v5795, 2
        %v6046 = vsel %vm1001, %v6044, %v6045
        %v6047 = vrot.slane %v5796, 2
        %v6048 = vsel %vm1001, %v6045, %v6047
        %v6049 = vrot.slane %v5797, 2
        %v6050 = vrot.slane %v5798, 2
        %v6051 = vsel %vm1001, %v6049, %v6050
        %v6052 = vrot.slane %v5799, 2
        %v6053 = vsel %vm1001, %v6050, %v6052
        %v6054 = vrot.slane %v5800, 2
        %v6055 = vrot.slane %v5801, 2
        %v6056 = vsel %vm1001, %v6054, %v6055
        %v6057 = vrot.slane %v5802, 2
        %v6058 = vsel %vm1001, %v6055, %v6057
        %v6059 = vrot.slane %v5803, 2
        %v6060 = vrot.slane %v5804, 2
        %v6061 = vsel %vm1001, %v6059, %v6060
        %v6062 = vrot.slane %v5805, 2
        %v6063 = vsel %vm1001, %v6060, %v6062
        %v6064 = vrot.slane %v5806, 2
        %v6065 = vrot.slane %v5807, 2
        %v6066 = vsel %vm1001, %v6064, %v6065
        %v6067 = vrot.slane %v5808, 2
        %v6068 = vsel %vm1001, %v6065, %v6067
        %v6069 = vrot.slane %v5809, 2
        %v6070 = vrot.slane %v5810, 2
        %v6071 = vsel %vm1001, %v6069, %v6070
        %v6072 = vrot.slane %v5811, 2
        %v6073 = vsel %vm1001, %v6070, %v6072
        %v6074 = vrot.slane %v5812, 2
        %v6075 = vrot.slane %v5813, 2
        %v6076 = vsel %vm1001, %v6074, %v6075
        %v6077 = vrot.slane %v5814, 2
        %v6078 = vsel %vm1001, %v6075, %v6077
        %v6079 = vrot.slane %v5815, 2
        %v6080 = vrot.slane %v5816, 2
        %v6081 = vsel %vm1001, %v6079, %v6080
        %v6082 = vrot.slane %v5817, 2
        %v6083 = vsel %vm1001, %v6080, %v6082
        %v6084 = vrot.slane %v5818, 2
        %v6085 = vrot.slane %v5819, 2
        %v6086 = vsel %vm1001, %v6084, %v6085
        %v6087 = vrot.slane %v5820, 2
        %v6088 = vsel %vm1001, %v6085, %v6087
        %v6089 = vrot.slane %v5821, 2
        %v6090 = vrot.slane %v5822, 2
        %v6091 = vsel %vm1001, %v6089, %v6090
        %v6092 = vrot.slane %v5823, 2
        %v6093 = vsel %vm1001, %v6090, %v6092
        %v6130 = vsel %vm555, %v5716, 0.0
        %v6131 = vsel %vm556, %v5717, 0.0
        %v6132 = vsel %vm557, %v5718, 0.0
        %v6133 = vsel %vm558, %v5719, 0.0
        %v6134 = vsel %vm559, %v5720, 0.0
        %v6135 = vsel %vm560, %v5721, 0.0
        %v6136 = vsel %vm558, %v5722, 0.0
        %v6137 = vsel %vm559, %v5723, 0.0
        %v6138 = vsel %vm560, %v5724, 0.0
        %v6139 = vsel %vm558, %v5725, 0.0
        %v6140 = vsel %vm559, %v5726, 0.0
        %v6141 = vsel %vm560, %v5727, 0.0
        %v6142 = vsel %vm558, %v5728, 0.0
        %v6143 = vsel %vm559, %v5729, 0.0
        %v6144 = vsel %vm560, %v5730, 0.0
        %v6145 = vsel %vm558, %v5731, 0.0
        %v6146 = vsel %vm559, %v5732, 0.0
        %v6147 = vsel %vm560, %v5733, 0.0
        %v6148 = vsel %vm558, %v5734, 0.0
        %v6149 = vsel %vm559, %v5735, 0.0
        %v6150 = vsel %vm560, %v5736, 0.0
        %v6151 = vsel %vm558, %v5737, 0.0
        %v6152 = vsel %vm559, %v5738, 0.0
        %v6153 = vsel %vm560, %v5739, 0.0
        %v6154 = vsel %vm558, %v5740, 0.0
        %v6155 = vsel %vm559, %v5741, 0.0
        %v6156 = vsel %vm560, %v5742, 0.0
        %v6157 = vsel %vm558, %v5743, 0.0
        %v6158 = vsel %vm559, %v5744, 0.0
        %v6159 = vsel %vm560, %v5745, 0.0
        %v6160 = vsel %vm558, %v5746, 0.0
        %v6161 = vsel %vm559, %v5747, 0.0
        %v6162 = vsel %vm560, %v5748, 0.0
        %v6163 = vsel %vm558, %v5749, 0.0
        %v6164 = vsel %vm559, %v5750, 0.0
        %v6165 = vsel %vm560, %v5751, 0.0
        %v6166 = vsel %vm558, %v5752, 0.0
        %v6167 = vsel %vm559, %v5753, 0.0
        %v6168 = vsel %vm560, %v5754, 0.0
        %v6169 = vsel %vm558, %v5755, 0.0
        %v6170 = vsel %vm559, %v5756, 0.0
        %v6171 = vsel %vm560, %v5757, 0.0
        %v6172 = vsel %vm558, %v5758, 0.0
        %v6173 = vsel %vm559, %v5759, 0.0
        %v6174 = vsel %vm560, %v5760, 0.0
        %v6175 = vsel %vm558, %v5761, 0.0
        %v6176 = vsel %vm559, %v5762, 0.0
        %v6177 = vsel %vm560, %v5763, 0.0
        %v6178 = vsel %vm558, %v5764, 0.0
        %v6179 = vsel %vm559, %v5765, 0.0
        %v6180 = vsel %vm560, %v5766, 0.0
        %v6181 = vsel %vm555, %v5767, 0.0
        %v6182 = vsel %vm556, %v5768, 0.0
        %v6183 = vsel %vm557, %v5769, 0.0
        %v6238 = vrot.slane %v6130, 1
        %v6239 = vrot.slane %v6131, 1
        %v6240 = vsel %vm755, %v6238, %v6239
        %v6241 = vrot.slane %v6132, 1
        %v6242 = vsel %vm755, %v6239, %v6241
        %v6243 = vrot.slane %v6133, 1
        %v6244 = vrot.slane %v6134, 1
        %v6245 = vsel %vm755, %v6243, %v6244
        %v6246 = vrot.slane %v6135, 1
        %v6247 = vsel %vm755, %v6244, %v6246
        %v6248 = vrot.slane %v6136, 1
        %v6249 = vrot.slane %v6137, 1
        %v6250 = vsel %vm755, %v6248, %v6249
        %v6251 = vrot.slane %v6138, 1
        %v6252 = vsel %vm755, %v6249, %v6251
        %v6253 = vrot.slane %v6139, 1
        %v6254 = vrot.slane %v6140, 1
        %v6255 = vsel %vm755, %v6253, %v6254
        %v6256 = vrot.slane %v6141, 1
        %v6257 = vsel %vm755, %v6254, %v6256
        %v6258 = vrot.slane %v6142, 1
        %v6259 = vrot.slane %v6143, 1
        %v6260 = vsel %vm755, %v6258, %v6259
        %v6261 = vrot.slane %v6144, 1
        %v6262 = vsel %vm755, %v6259, %v6261
        %v6263 = vrot.slane %v6145, 1
        %v6264 = vrot.slane %v6146, 1
        %v6265 = vsel %vm755, %v6263, %v6264
        %v6266 = vrot.slane %v6147, 1
        %v6267 = vsel %vm755, %v6264, %v6266
        %v6268 = vrot.slane %v6148, 1
        %v6269 = vrot.slane %v6149, 1
        %v6270 = vsel %vm755, %v6268, %v6269
        %v6271 = vrot.slane %v6150, 1
        %v6272 = vsel %vm755, %v6269, %v6271
        %v6273 = vrot.slane %v6151, 1
        %v6274 = vrot.slane %v6152, 1
        %v6275 = vsel %vm755, %v6273, %v6274
        %v6276 = vrot.slane %v6153, 1
        %v6277 = vsel %vm755, %v6274, %v6276
        %v6278 = vrot.slane %v6154, 1
        %v6279 = vrot.slane %v6155, 1
        %v6280 = vsel %vm755, %v6278, %v6279
        %v6281 = vrot.slane %v6156, 1
        %v6282 = vsel %vm755, %v6279, %v6281
        %v6283 = vrot.slane %v6157, 1
        %v6284 = vrot.slane %v6158, 1
        %v6285 = vsel %vm755, %v6283, %v6284
        %v6286 = vrot.slane %v6159, 1
        %v6287 = vsel %vm755, %v6284, %v6286
        %v6288 = vrot.slane %v6160, 1
        %v6289 = vrot.slane %v6161, 1
        %v6290 = vsel %vm755, %v6288, %v6289
        %v6291 = vrot.slane %v6162, 1
        %v6292 = vsel %vm755, %v6289, %v6291
        %v6293 = vrot.slane %v6163, 1
        %v6294 = vrot.slane %v6164, 1
        %v6295 = vsel %vm755, %v6293, %v6294
        %v6296 = vrot.slane %v6165, 1
        %v6297 = vsel %vm755, %v6294, %v6296
        %v6298 = vrot.slane %v6166, 1
        %v6299 = vrot.slane %v6167, 1
        %v6300 = vsel %vm755, %v6298, %v6299
        %v6301 = vrot.slane %v6168, 1
        %v6302 = vsel %vm755, %v6299, %v6301
        %v6303 = vrot.slane %v6169, 1
        %v6304 = vrot.slane %v6170, 1
        %v6305 = vsel %vm755, %v6303, %v6304
        %v6306 = vrot.slane %v6171, 1
        %v6307 = vsel %vm755, %v6304, %v6306
        %v6308 = vrot.slane %v6172, 1
        %v6309 = vrot.slane %v6173, 1
        %v6310 = vsel %vm755, %v6308, %v6309
        %v6311 = vrot.slane %v6174, 1
        %v6312 = vsel %vm755, %v6309, %v6311
        %v6313 = vrot.slane %v6175, 1
        %v6314 = vrot.slane %v6176, 1
        %v6315 = vsel %vm755, %v6313, %v6314
        %v6316 = vrot.slane %v6177, 1
        %v6317 = vsel %vm755, %v6314, %v6316
        %v6318 = vrot.slane %v6178, 1
        %v6319 = vrot.slane %v6179, 1
        %v6320 = vsel %vm755, %v6318, %v6319
        %v6321 = vrot.slane %v6180, 1
        %v6322 = vsel %vm755, %v6319, %v6321
        %v6323 = vrot.slane %v6181, 1
        %v6324 = vrot.slane %v6182, 1
        %v6325 = vsel %vm755, %v6323, %v6324
        %v6326 = vrot.slane %v6183, 1
        %v6327 = vsel %vm755, %v6324, %v6326
        %v6364 = vrot.slane %v6130, 2
        %v6365 = vrot.slane %v6131, 2
        %v6366 = vsel %vm1001, %v6364, %v6365
        %v6367 = vrot.slane %v6132, 2
        %v6368 = vsel %vm1001, %v6365, %v6367
        %v6369 = vrot.slane %v6133, 2
        %v6370 = vrot.slane %v6134, 2
        %v6371 = vsel %vm1001, %v6369, %v6370
        %v6372 = vrot.slane %v6135, 2
        %v6373 = vsel %vm1001, %v6370, %v6372
        %v6374 = vrot.slane %v6136, 2
        %v6375 = vrot.slane %v6137, 2
        %v6376 = vsel %vm1001, %v6374, %v6375
        %v6377 = vrot.slane %v6138, 2
        %v6378 = vsel %vm1001, %v6375, %v6377
        %v6379 = vrot.slane %v6139, 2
        %v6380 = vrot.slane %v6140, 2
        %v6381 = vsel %vm1001, %v6379, %v6380
        %v6382 = vrot.slane %v6141, 2
        %v6383 = vsel %vm1001, %v6380, %v6382
        %v6384 = vrot.slane %v6142, 2
        %v6385 = vrot.slane %v6143, 2
        %v6386 = vsel %vm1001, %v6384, %v6385
        %v6387 = vrot.slane %v6144, 2
        %v6388 = vsel %vm1001, %v6385, %v6387
        %v6389 = vrot.slane %v6145, 2
        %v6390 = vrot.slane %v6146, 2
        %v6391 = vsel %vm1001, %v6389, %v6390
        %v6392 = vrot.slane %v6147, 2
        %v6393 = vsel %vm1001, %v6390, %v6392
        %v6394 = vrot.slane %v6148, 2
        %v6395 = vrot.slane %v6149, 2
        %v6396 = vsel %vm1001, %v6394, %v6395
        %v6397 = vrot.slane %v6150, 2
        %v6398 = vsel %vm1001, %v6395, %v6397
        %v6399 = vrot.slane %v6151, 2
        %v6400 = vrot.slane %v6152, 2
        %v6401 = vsel %vm1001, %v6399, %v6400
        %v6402 = vrot.slane %v6153, 2
        %v6403 = vsel %vm1001, %v6400, %v6402
        %v6404 = vrot.slane %v6154, 2
        %v6405 = vrot.slane %v6155, 2
        %v6406 = vsel %vm1001, %v6404, %v6405
        %v6407 = vrot.slane %v6156, 2
        %v6408 = vsel %vm1001, %v6405, %v6407
        %v6409 = vrot.slane %v6157, 2
        %v6410 = vrot.slane %v6158, 2
        %v6411 = vsel %vm1001, %v6409, %v6410
        %v6412 = vrot.slane %v6159, 2
        %v6413 = vsel %vm1001, %v6410, %v6412
        %v6414 = vrot.slane %v6160, 2
        %v6415 = vrot.slane %v6161, 2
        %v6416 = vsel %vm1001, %v6414, %v6415
        %v6417 = vrot.slane %v6162, 2
        %v6418 = vsel %vm1001, %v6415, %v6417
        %v6419 = vrot.slane %v6163, 2
        %v6420 = vrot.slane %v6164, 2
        %v6421 = vsel %vm1001, %v6419, %v6420
        %v6422 = vrot.slane %v6165, 2
        %v6423 = vsel %vm1001, %v6420, %v6422
        %v6424 = vrot.slane %v6166, 2
        %v6425 = vrot.slane %v6167, 2
        %v6426 = vsel %vm1001, %v6424, %v6425
        %v6427 = vrot.slane %v6168, 2
        %v6428 = vsel %vm1001, %v6425, %v6427
        %v6429 = vrot.slane %v6169, 2
        %v6430 = vrot.slane %v6170, 2
        %v6431 = vsel %vm1001, %v6429, %v6430
        %v6432 = vrot.slane %v6171, 2
        %v6433 = vsel %vm1001, %v6430, %v6432
        %v6434 = vrot.slane %v6172, 2
        %v6435 = vrot.slane %v6173, 2
        %v6436 = vsel %vm1001, %v6434, %v6435
        %v6437 = vrot.slane %v6174, 2
        %v6438 = vsel %vm1001, %v6435, %v6437
        %v6439 = vrot.slane %v6175, 2
        %v6440 = vrot.slane %v6176, 2
        %v6441 = vsel %vm1001, %v6439, %v6440
        %v6442 = vrot.slane %v6177, 2
        %v6443 = vsel %vm1001, %v6440, %v6442
        %v6444 = vrot.slane %v6178, 2
        %v6445 = vrot.slane %v6179, 2
        %v6446 = vsel %vm1001, %v6444, %v6445
        %v6447 = vrot.slane %v6180, 2
        %v6448 = vsel %vm1001, %v6445, %v6447
        %v6449 = vrot.slane %v6181, 2
        %v6450 = vrot.slane %v6182, 2
        %v6451 = vsel %vm1001, %v6449, %v6450
        %v6452 = vrot.slane %v6183, 2
        %v6453 = vsel %vm1001, %v6450, %v6452
        %v6490 = vld [vmem:[%s3] sm:$0xff]
        %v6491 = vld [vmem:[%s3 + $0x8] sm:$0xff]
        %v6492 = vld [vmem:[%s3 + $0x10] sm:$0xff]
        %v6493 = vld [vmem:[%s3 + $0x18] sm:$0xff]
        %v6494 = vld [vmem:[%s3 + $0x20] sm:$0xff]
        %v6495 = vld [vmem:[%s3 + $0x28] sm:$0xff]
        %v6496 = vld [vmem:[%s3 + $0x30] sm:$0xff]
        %v6497 = vld [vmem:[%s3 + $0x38] sm:$0xff]
        %v6498 = vld [vmem:[%s3 + $0x40] sm:$0xff]
        %v6499 = vld [vmem:[%s3 + $0x48] sm:$0xff]
        %v6500 = vld [vmem:[%s3 + $0x50] sm:$0xff]
        %v6501 = vld [vmem:[%s3 + $0x58] sm:$0xff]
        %v6502 = vld [vmem:[%s3 + $0x60] sm:$0xff]
        %v6503 = vld [vmem:[%s3 + $0x68] sm:$0xff]
        %v6504 = vld [vmem:[%s3 + $0x70] sm:$0xff]
        %v6505 = vld [vmem:[%s3 + $0x78] sm:$0xff]
        %v6506 = vld [vmem:[%s3 + $0x80] sm:$0xff]
        %v6507 = vld [vmem:[%s3 + $0x88] sm:$0xff]
        %v6508 = vld [vmem:[%s3 + $0x90] sm:$0xff]
        %v6509 = vld [vmem:[%s3 + $0x98] sm:$0xff]
        %v6510 = vld [vmem:[%s3 + $0xa0] sm:$0xff]
        %v6511 = vld [vmem:[%s3 + $0xa8] sm:$0xff]
        %v6512 = vld [vmem:[%s3 + $0xb0] sm:$0xff]
        %v6513 = vld [vmem:[%s3 + $0xb8] sm:$0xff]
        %v6514 = vld [vmem:[%s3 + $0xc0] sm:$0xff]
        %v6515 = vld [vmem:[%s3 + $0xc8] sm:$0xff]
        %v6516 = vld [vmem:[%s3 + $0xd0] sm:$0xff]
        %v6517 = vld [vmem:[%s3 + $0xd8] sm:$0xff]
        %v6518 = vld [vmem:[%s3 + $0xe0] sm:$0xff]
        %v6519 = vld [vmem:[%s3 + $0xe8] sm:$0xff]
        %v6520 = vld [vmem:[%s3 + $0xf0] sm:$0xff]
        %v6521 = vld [vmem:[%s3 + $0xf8] sm:$0xff]
        %v6522 = vld [vmem:[%s3 + $0x100] sm:$0xff]
        %v6523 = vld [vmem:[%s3 + $0x108] sm:$0xff]
        %v6524 = vld [vmem:[%s3 + $0x110] sm:$0xff]
        %v6525 = vld [vmem:[%s3 + $0x118] sm:$0xff]
        %v6526 = vld [vmem:[%s3 + $0x120] sm:$0xff]
        %v6527 = vld [vmem:[%s3 + $0x128] sm:$0xff]
        %v6528 = vld [vmem:[%s3 + $0x130] sm:$0xff]
        %v6529 = vld [vmem:[%s3 + $0x138] sm:$0xff]
        %v6530 = vld [vmem:[%s3 + $0x140] sm:$0xff]
        %v6531 = vld [vmem:[%s3 + $0x148] sm:$0xff]
        %v6532 = vld [vmem:[%s3 + $0x150] sm:$0xff]
        %v6533 = vld [vmem:[%s3 + $0x158] sm:$0xff]
        %v6534 = vld [vmem:[%s3 + $0x160] sm:$0xff]
        %v6535 = vld [vmem:[%s3 + $0x168] sm:$0xff]
        %v6536 = vld [vmem:[%s3 + $0x170] sm:$0xff]
        %v6537 = vld [vmem:[%s3 + $0x178] sm:$0xff]
        %s6538 = scalar_lea.vmem %s3, 384
        %v6539 = vld [vmem:[%s6538] sm:$0xff]
        %v6540 = vld [vmem:[%s6538 + $0x8] sm:$0xff]
        %v6541 = vld [vmem:[%s6538 + $0x10] sm:$0xff]
        %v6542 = vld [vmem:[%s6538 + $0x18] sm:$0xff]
        %v6543 = vld [vmem:[%s6538 + $0x20] sm:$0xff]
        %v6544 = vld [vmem:[%s6538 + $0x28] sm:$0xff]
        %v6545 = vld [vmem:[%s6538 + $0x30] sm:$0xff]
        %v6546 = vld [vmem:[%s6538 + $0x38] sm:$0xff]
        %v6547 = vld [vmem:[%s6538 + $0x40] sm:$0xff]
        %v6548 = vld [vmem:[%s6538 + $0x48] sm:$0xff]
        %v6549 = vld [vmem:[%s6538 + $0x50] sm:$0xff]
        %v6550 = vld [vmem:[%s6538 + $0x58] sm:$0xff]
        %v6551 = vld [vmem:[%s6538 + $0x60] sm:$0xff]
        %v6552 = vld [vmem:[%s6538 + $0x68] sm:$0xff]
        %v6553 = vld [vmem:[%s6538 + $0x70] sm:$0xff]
        %v6554 = vld [vmem:[%s6538 + $0x78] sm:$0xff]
        %v6555 = vld [vmem:[%s6538 + $0x80] sm:$0xff]
        %v6556 = vld [vmem:[%s6538 + $0x88] sm:$0xff]
        %v6557 = vld [vmem:[%s6538 + $0x90] sm:$0xff]
        %v6558 = vld [vmem:[%s6538 + $0x98] sm:$0xff]
        %v6559 = vld [vmem:[%s6538 + $0xa0] sm:$0xff]
        %v6560 = vld [vmem:[%s6538 + $0xa8] sm:$0xff]
        %v6561 = vld [vmem:[%s6538 + $0xb0] sm:$0xff]
        %v6562 = vld [vmem:[%s6538 + $0xb8] sm:$0xff]
        %v6563 = vld [vmem:[%s6538 + $0xc0] sm:$0xff]
        %v6564 = vld [vmem:[%s6538 + $0xc8] sm:$0xff]
        %v6565 = vld [vmem:[%s6538 + $0xd0] sm:$0xff]
        %v6566 = vld [vmem:[%s6538 + $0xd8] sm:$0xff]
        %v6567 = vld [vmem:[%s6538 + $0xe0] sm:$0xff]
        %v6568 = vld [vmem:[%s6538 + $0xe8] sm:$0xff]
        %v6569 = vld [vmem:[%s6538 + $0xf0] sm:$0xff]
        %v6570 = vld [vmem:[%s6538 + $0xf8] sm:$0xff]
        %v6571 = vld [vmem:[%s6538 + $0x100] sm:$0xff]
        %v6572 = vld [vmem:[%s6538 + $0x108] sm:$0xff]
        %v6573 = vld [vmem:[%s6538 + $0x110] sm:$0xff]
        %v6574 = vld [vmem:[%s6538 + $0x118] sm:$0xff]
        %v6575 = vld [vmem:[%s6538 + $0x120] sm:$0xff]
        %v6576 = vld [vmem:[%s6538 + $0x128] sm:$0xff]
        %v6577 = vld [vmem:[%s6538 + $0x130] sm:$0xff]
        %v6578 = vld [vmem:[%s6538 + $0x138] sm:$0xff]
        %v6579 = vld [vmem:[%s6538 + $0x140] sm:$0xff]
        %v6580 = vld [vmem:[%s6538 + $0x148] sm:$0xff]
        %v6581 = vld [vmem:[%s6538 + $0x150] sm:$0xff]
        %v6582 = vld [vmem:[%s6538 + $0x158] sm:$0xff]
        %v6583 = vld [vmem:[%s6538 + $0x160] sm:$0xff]
        %v6584 = vld [vmem:[%s6538 + $0x168] sm:$0xff]
        %v6585 = vld [vmem:[%s6538 + $0x170] sm:$0xff]
        %v6586 = vld [vmem:[%s6538 + $0x178] sm:$0xff]
        %6587 = vmatprep.subr.mxu0 0.0
        %6588 = vmatpush1.msra.mxu0 %v6554
        %6589 = vmatprep.subr.mxu0 0.0
        %6590 = vmatpush1.msra.mxu0 %v6553
        %6591 = vmatprep.subr.mxu0 0.0
        %6592 = vmatpush1.msra.mxu0 %v6552
        %6593 = vmatprep.subr.mxu0 0.0
        %6594 = vmatpush1.msra.mxu0 %v6551
        %6595 = vmatprep.subr.mxu0 0.0
        %6596 = vmatpush1.msra.mxu0 %v6550
        %6597 = vmatprep.subr.mxu0 0.0
        %6598 = vmatpush1.msra.mxu0 %v6549
        %6599 = vmatprep.subr.mxu0 0.0
        %6600 = vmatpush1.msra.mxu0 %v6548
        %6601 = vmatprep.subr.mxu0 0.0
        %6602 = vmatpush1.msra.mxu0 %v6547
        %6603 = vmatprep.subr.mxu0 0.0
        %6604 = vmatpush1.msra.mxu0 %v6546
        %6605 = vmatprep.subr.mxu0 0.0
        %6606 = vmatpush1.msra.mxu0 %v6545
        %6607 = vmatprep.subr.mxu0 0.0
        %6608 = vmatpush1.msra.mxu0 %v6544
        %6609 = vmatprep.subr.mxu0 0.0
        %6610 = vmatpush1.msra.mxu0 %v6543
        %6611 = vmatprep.subr.mxu0 0.0
        %6612 = vmatpush1.msra.mxu0 %v6542
        %6613 = vmatprep.subr.mxu0 0.0
        %6614 = vmatpush1.msra.mxu0 %v6541
        %6615 = vmatprep.subr.mxu0 0.0
        %6616 = vmatpush1.msra.mxu0 %v6540
        %6617 = vmatprep.subr.mxu0 0.0
        %6618 = vmatpush1.msra.mxu0 %v6539
        %6619 = vmatprep.subr.mxu0 0.0
        %6620 = vmatpush2.msra.mxu0 %v6570
        %6621 = vmatprep.subr.mxu0 0.0
        %6622 = vmatpush2.msra.mxu0 %v6569
        %6623 = vmatprep.subr.mxu0 0.0
        %6624 = vmatpush2.msra.mxu0 %v6568
        %6625 = vmatprep.subr.mxu0 0.0
        %6626 = vmatpush2.msra.mxu0 %v6567
        %6627 = vmatprep.subr.mxu0 0.0
        %6628 = vmatpush2.msra.mxu0 %v6566
        %6629 = vmatprep.subr.mxu0 0.0
        %6630 = vmatpush2.msra.mxu0 %v6565
        %6631 = vmatprep.subr.mxu0 0.0
        %6632 = vmatpush2.msra.mxu0 %v6564
        %6633 = vmatprep.subr.mxu0 0.0
        %6634 = vmatpush2.msra.mxu0 %v6563
        %6635 = vmatprep.subr.mxu0 0.0
        %6636 = vmatpush2.msra.mxu0 %v6562
        %6637 = vmatprep.subr.mxu0 0.0
        %6638 = vmatpush2.msra.mxu0 %v6561
        %6639 = vmatprep.subr.mxu0 0.0
        %6640 = vmatpush2.msra.mxu0 %v6560
        %6641 = vmatprep.subr.mxu0 0.0
        %6642 = vmatpush2.msra.mxu0 %v6559
        %6643 = vmatprep.subr.mxu0 0.0
        %6644 = vmatpush2.msra.mxu0 %v6558
        %6645 = vmatprep.subr.mxu0 0.0
        %6646 = vmatpush2.msra.mxu0 %v6557
        %6647 = vmatprep.subr.mxu0 0.0
        %6648 = vmatpush2.msra.mxu0 %v6556
        %6649 = vmatprep.subr.mxu0 0.0
        %6650 = vmatpush2.msra.mxu0 %v6555
        %6651 = vmatprep.mubr.f32.mxu0 %v5885
        %6652 = vmatmul.mubr.f32.gmra.mxu0 %v5773
        %v6653 = vpop.f32.mrf.mxu0
        %v6654 = vadd.f32 0.0, %v6653
        %v6655 = vpop.f32.mrf.mxu0
        %6656 = vmatprep.mubr.f32.mxu0 %v5887
        %6657 = vmatmul.mubr.f32.gmra.mxu0 %v5774
        %v6658 = vpop.f32.mrf.mxu0
        %v6659 = vadd.f32 0.0, %v6658
        %v6660 = vpop.f32.mrf.mxu0
        %6661 = vmatprep.mubr.f32.mxu0 %v5890
        %6662 = vmatmul.mubr.f32.gmra.mxu0 %v5776
        %v6663 = vpop.f32.mrf.mxu0
        %v6664 = vadd.f32 0.0, %v6663
        %v6665 = vpop.f32.mrf.mxu0
        %6666 = vmatprep.mubr.f32.mxu0 %v5892
        %6667 = vmatmul.mubr.f32.gmra.mxu0 %v5777
        %v6668 = vpop.f32.mrf.mxu0
        %v6669 = vadd.f32 0.0, %v6668
        %v6670 = vpop.f32.mrf.mxu0
        %6671 = vmatprep.mubr.f32.mxu0 %v5895
        %6672 = vmatmul.mubr.f32.gmra.mxu0 %v5779
        %v6673 = vpop.f32.mrf.mxu0
        %v6674 = vadd.f32 0.0, %v6673
        %v6675 = vpop.f32.mrf.mxu0
        %6676 = vmatprep.mubr.f32.mxu0 %v5897
        %6677 = vmatmul.mubr.f32.gmra.mxu0 %v5780
        %v6678 = vpop.f32.mrf.mxu0
        %v6679 = vadd.f32 0.0, %v6678
        %v6680 = vpop.f32.mrf.mxu0
        %6681 = vmatprep.mubr.f32.mxu0 %v5900
        %6682 = vmatmul.mubr.f32.gmra.mxu0 %v5782
        %v6683 = vpop.f32.mrf.mxu0
        %v6684 = vadd.f32 0.0, %v6683
        %v6685 = vpop.f32.mrf.mxu0
        %6686 = vmatprep.mubr.f32.mxu0 %v5902
        %6687 = vmatmul.mubr.f32.gmra.mxu0 %v5783
        %v6688 = vpop.f32.mrf.mxu0
        %v6689 = vadd.f32 0.0, %v6688
        %v6690 = vpop.f32.mrf.mxu0
        %6691 = vmatprep.mubr.f32.mxu0 %v5905
        %6692 = vmatmul.mubr.f32.gmra.mxu0 %v5785
        %v6693 = vpop.f32.mrf.mxu0
        %v6694 = vadd.f32 0.0, %v6693
        %v6695 = vpop.f32.mrf.mxu0
        %6696 = vmatprep.mubr.f32.mxu0 %v5907
        %6697 = vmatmul.mubr.f32.gmra.mxu0 %v5786
        %v6698 = vpop.f32.mrf.mxu0
        %v6699 = vadd.f32 0.0, %v6698
        %v6700 = vpop.f32.mrf.mxu0
        %6701 = vmatprep.mubr.f32.mxu0 %v5910
        %6702 = vmatmul.mubr.f32.gmra.mxu0 %v5788
        %v6703 = vpop.f32.mrf.mxu0
        %v6704 = vadd.f32 0.0, %v6703
        %v6705 = vpop.f32.mrf.mxu0
        %6706 = vmatprep.mubr.f32.mxu0 %v5912
        %6707 = vmatmul.mubr.f32.gmra.mxu0 %v5789
        %v6708 = vpop.f32.mrf.mxu0
        %v6709 = vadd.f32 0.0, %v6708
        %v6710 = vpop.f32.mrf.mxu0
        %6711 = vmatprep.mubr.f32.mxu0 %v5915
        %6712 = vmatmul.mubr.f32.gmra.mxu0 %v5791
        %v6713 = vpop.f32.mrf.mxu0
        %v6714 = vadd.f32 0.0, %v6713
        %v6715 = vpop.f32.mrf.mxu0
        %6716 = vmatprep.mubr.f32.mxu0 %v5917
        %6717 = vmatmul.mubr.f32.gmra.mxu0 %v5792
        %v6718 = vpop.f32.mrf.mxu0
        %v6719 = vadd.f32 0.0, %v6718
        %v6720 = vpop.f32.mrf.mxu0
        %6721 = vmatprep.mubr.f32.mxu0 %v5920
        %6722 = vmatmul.mubr.f32.gmra.mxu0 %v5794
        %v6723 = vpop.f32.mrf.mxu0
        %v6724 = vadd.f32 0.0, %v6723
        %v6725 = vpop.f32.mrf.mxu0
        %6726 = vmatprep.mubr.f32.mxu0 %v5922
        %6727 = vmatmul.mubr.f32.gmra.mxu0 %v5795
        %v6728 = vpop.f32.mrf.mxu0
        %v6729 = vadd.f32 0.0, %v6728
        %v6730 = vpop.f32.mrf.mxu0
        %6731 = vmatprep.mubr.f32.mxu0 %v5925
        %6732 = vmatmul.mubr.f32.gmra.mxu0 %v5797
        %v6733 = vpop.f32.mrf.mxu0
        %v6734 = vadd.f32 0.0, %v6733
        %v6735 = vpop.f32.mrf.mxu0
        %6736 = vmatprep.mubr.f32.mxu0 %v5927
        %6737 = vmatmul.mubr.f32.gmra.mxu0 %v5798
        %v6738 = vpop.f32.mrf.mxu0
        %v6739 = vadd.f32 0.0, %v6738
        %v6740 = vpop.f32.mrf.mxu0
        %6741 = vmatprep.mubr.f32.mxu0 %v5930
        %6742 = vmatmul.mubr.f32.gmra.mxu0 %v5800
        %v6743 = vpop.f32.mrf.mxu0
        %v6744 = vadd.f32 0.0, %v6743
        %v6745 = vpop.f32.mrf.mxu0
        %6746 = vmatprep.mubr.f32.mxu0 %v5932
        %6747 = vmatmul.mubr.f32.gmra.mxu0 %v5801
        %v6748 = vpop.f32.mrf.mxu0
        %v6749 = vadd.f32 0.0, %v6748
        %v6750 = vpop.f32.mrf.mxu0
        %6751 = vmatprep.mubr.f32.mxu0 %v5935
        %6752 = vmatmul.mubr.f32.gmra.mxu0 %v5803
        %v6753 = vpop.f32.mrf.mxu0
        %v6754 = vadd.f32 0.0, %v6753
        %v6755 = vpop.f32.mrf.mxu0
        %6756 = vmatprep.mubr.f32.mxu0 %v5937
        %6757 = vmatmul.mubr.f32.gmra.mxu0 %v5804
        %v6758 = vpop.f32.mrf.mxu0
        %v6759 = vadd.f32 0.0, %v6758
        %v6760 = vpop.f32.mrf.mxu0
        %6761 = vmatprep.mubr.f32.mxu0 %v5940
        %6762 = vmatmul.mubr.f32.gmra.mxu0 %v5806
        %v6763 = vpop.f32.mrf.mxu0
        %v6764 = vadd.f32 0.0, %v6763
        %v6765 = vpop.f32.mrf.mxu0
        %6766 = vmatprep.mubr.f32.mxu0 %v5942
        %6767 = vmatmul.mubr.f32.gmra.mxu0 %v5807
        %v6768 = vpop.f32.mrf.mxu0
        %v6769 = vadd.f32 0.0, %v6768
        %v6770 = vpop.f32.mrf.mxu0
        %6771 = vmatprep.mubr.f32.mxu0 %v5945
        %6772 = vmatmul.mubr.f32.gmra.mxu0 %v5809
        %v6773 = vpop.f32.mrf.mxu0
        %v6774 = vadd.f32 0.0, %v6773
        %v6775 = vpop.f32.mrf.mxu0
        %6776 = vmatprep.mubr.f32.mxu0 %v5947
        %6777 = vmatmul.mubr.f32.gmra.mxu0 %v5810
        %v6778 = vpop.f32.mrf.mxu0
        %v6779 = vadd.f32 0.0, %v6778
        %v6780 = vpop.f32.mrf.mxu0
        %6781 = vmatprep.mubr.f32.mxu0 %v5950
        %6782 = vmatmul.mubr.f32.gmra.mxu0 %v5812
        %v6783 = vpop.f32.mrf.mxu0
        %v6784 = vadd.f32 0.0, %v6783
        %v6785 = vpop.f32.mrf.mxu0
        %6786 = vmatprep.mubr.f32.mxu0 %v5952
        %6787 = vmatmul.mubr.f32.gmra.mxu0 %v5813
        %v6788 = vpop.f32.mrf.mxu0
        %v6789 = vadd.f32 0.0, %v6788
        %v6790 = vpop.f32.mrf.mxu0
        %6791 = vmatprep.mubr.f32.mxu0 %v5955
        %6792 = vmatmul.mubr.f32.gmra.mxu0 %v5815
        %v6793 = vpop.f32.mrf.mxu0
        %v6794 = vadd.f32 0.0, %v6793
        %v6795 = vpop.f32.mrf.mxu0
        %6796 = vmatprep.mubr.f32.mxu0 %v5957
        %6797 = vmatmul.mubr.f32.gmra.mxu0 %v5816
        %v6798 = vpop.f32.mrf.mxu0
        %v6799 = vadd.f32 0.0, %v6798
        %v6800 = vpop.f32.mrf.mxu0
        %6801 = vmatprep.mubr.f32.mxu0 %v5960
        %6802 = vmatmul.mubr.f32.gmra.mxu0 %v5818
        %v6803 = vpop.f32.mrf.mxu0
        %v6804 = vadd.f32 0.0, %v6803
        %v6805 = vpop.f32.mrf.mxu0
        %6806 = vmatprep.mubr.f32.mxu0 %v5962
        %6807 = vmatmul.mubr.f32.gmra.mxu0 %v5819
        %v6808 = vpop.f32.mrf.mxu0
        %v6809 = vadd.f32 0.0, %v6808
        %v6810 = vpop.f32.mrf.mxu0
        %6811 = vmatprep.mubr.f32.mxu0 %v6245
        %6812 = vmatmul.mubr.f32.gmra.mxu0 %v6133
        %v6813 = vpop.f32.mrf.mxu0
        %v6814 = vadd.f32 0.0, %v6813
        %v6815 = vpop.f32.mrf.mxu0
        %6816 = vmatprep.mubr.f32.mxu0 %v6247
        %6817 = vmatmul.mubr.f32.gmra.mxu0 %v6134
        %v6818 = vpop.f32.mrf.mxu0
        %v6819 = vadd.f32 0.0, %v6818
        %v6820 = vpop.f32.mrf.mxu0
        %6821 = vmatprep.mubr.f32.mxu0 %v6250
        %6822 = vmatmul.mubr.f32.gmra.mxu0 %v6136
        %v6823 = vpop.f32.mrf.mxu0
        %v6824 = vadd.f32 0.0, %v6823
        %v6825 = vpop.f32.mrf.mxu0
        %6826 = vmatprep.mubr.f32.mxu0 %v6252
        %6827 = vmatmul.mubr.f32.gmra.mxu0 %v6137
        %v6828 = vpop.f32.mrf.mxu0
        %v6829 = vadd.f32 0.0, %v6828
        %v6830 = vpop.f32.mrf.mxu0
        %6831 = vmatprep.mubr.f32.mxu0 %v6255
        %6832 = vmatmul.mubr.f32.gmra.mxu0 %v6139
        %v6833 = vpop.f32.mrf.mxu0
        %v6834 = vadd.f32 0.0, %v6833
        %v6835 = vpop.f32.mrf.mxu0
        %6836 = vmatprep.mubr.f32.mxu0 %v6257
        %6837 = vmatmul.mubr.f32.gmra.mxu0 %v6140
        %v6838 = vpop.f32.mrf.mxu0
        %v6839 = vadd.f32 0.0, %v6838
        %v6840 = vpop.f32.mrf.mxu0
        %6841 = vmatprep.mubr.f32.mxu0 %v6260
        %6842 = vmatmul.mubr.f32.gmra.mxu0 %v6142
        %v6843 = vpop.f32.mrf.mxu0
        %v6844 = vadd.f32 0.0, %v6843
        %v6845 = vpop.f32.mrf.mxu0
        %6846 = vmatprep.mubr.f32.mxu0 %v6262
        %6847 = vmatmul.mubr.f32.gmra.mxu0 %v6143
        %v6848 = vpop.f32.mrf.mxu0
        %v6849 = vadd.f32 0.0, %v6848
        %v6850 = vpop.f32.mrf.mxu0
        %6851 = vmatprep.mubr.f32.mxu0 %v6265
        %6852 = vmatmul.mubr.f32.gmra.mxu0 %v6145
        %v6853 = vpop.f32.mrf.mxu0
        %v6854 = vadd.f32 0.0, %v6853
        %v6855 = vpop.f32.mrf.mxu0
        %6856 = vmatprep.mubr.f32.mxu0 %v6267
        %6857 = vmatmul.mubr.f32.gmra.mxu0 %v6146
        %v6858 = vpop.f32.mrf.mxu0
        %v6859 = vadd.f32 0.0, %v6858
        %v6860 = vpop.f32.mrf.mxu0
        %6861 = vmatprep.mubr.f32.mxu0 %v6270
        %6862 = vmatmul.mubr.f32.gmra.mxu0 %v6148
        %v6863 = vpop.f32.mrf.mxu0
        %v6864 = vadd.f32 0.0, %v6863
        %v6865 = vpop.f32.mrf.mxu0
        %6866 = vmatprep.mubr.f32.mxu0 %v6272
        %6867 = vmatmul.mubr.f32.gmra.mxu0 %v6149
        %v6868 = vpop.f32.mrf.mxu0
        %v6869 = vadd.f32 0.0, %v6868
        %v6870 = vpop.f32.mrf.mxu0
        %6871 = vmatprep.mubr.f32.mxu0 %v6275
        %6872 = vmatmul.mubr.f32.gmra.mxu0 %v6151
        %v6873 = vpop.f32.mrf.mxu0
        %v6874 = vadd.f32 0.0, %v6873
        %v6875 = vpop.f32.mrf.mxu0
        %6876 = vmatprep.mubr.f32.mxu0 %v6277
        %6877 = vmatmul.mubr.f32.gmra.mxu0 %v6152
        %v6878 = vpop.f32.mrf.mxu0
        %v6879 = vadd.f32 0.0, %v6878
        %v6880 = vpop.f32.mrf.mxu0
        %6881 = vmatprep.mubr.f32.mxu0 %v6280
        %6882 = vmatmul.mubr.f32.gmra.mxu0 %v6154
        %v6883 = vpop.f32.mrf.mxu0
        %v6884 = vadd.f32 0.0, %v6883
        %v6885 = vpop.f32.mrf.mxu0
        %6886 = vmatprep.mubr.f32.mxu0 %v6282
        %6887 = vmatmul.mubr.f32.gmra.mxu0 %v6155
        %v6888 = vpop.f32.mrf.mxu0
        %v6889 = vadd.f32 0.0, %v6888
        %v6890 = vpop.f32.mrf.mxu0
        %6891 = vmatprep.mubr.f32.mxu0 %v6285
        %6892 = vmatmul.mubr.f32.gmra.mxu0 %v6157
        %v6893 = vpop.f32.mrf.mxu0
        %v6894 = vadd.f32 0.0, %v6893
        %v6895 = vpop.f32.mrf.mxu0
        %6896 = vmatprep.mubr.f32.mxu0 %v6287
        %6897 = vmatmul.mubr.f32.gmra.mxu0 %v6158
        %v6898 = vpop.f32.mrf.mxu0
        %v6899 = vadd.f32 0.0, %v6898
        %v6900 = vpop.f32.mrf.mxu0
        %6901 = vmatprep.mubr.f32.mxu0 %v6290
        %6902 = vmatmul.mubr.f32.gmra.mxu0 %v6160
        %v6903 = vpop.f32.mrf.mxu0
        %v6904 = vadd.f32 0.0, %v6903
        %v6905 = vpop.f32.mrf.mxu0
        %6906 = vmatprep.mubr.f32.mxu0 %v6292
        %6907 = vmatmul.mubr.f32.gmra.mxu0 %v6161
        %v6908 = vpop.f32.mrf.mxu0
        %v6909 = vadd.f32 0.0, %v6908
        %v6910 = vpop.f32.mrf.mxu0
        %6911 = vmatprep.mubr.f32.mxu0 %v6295
        %6912 = vmatmul.mubr.f32.gmra.mxu0 %v6163
        %v6913 = vpop.f32.mrf.mxu0
        %v6914 = vadd.f32 0.0, %v6913
        %v6915 = vpop.f32.mrf.mxu0
        %6916 = vmatprep.mubr.f32.mxu0 %v6297
        %6917 = vmatmul.mubr.f32.gmra.mxu0 %v6164
        %v6918 = vpop.f32.mrf.mxu0
        %v6919 = vadd.f32 0.0, %v6918
        %v6920 = vpop.f32.mrf.mxu0
        %6921 = vmatprep.mubr.f32.mxu0 %v6300
        %6922 = vmatmul.mubr.f32.gmra.mxu0 %v6166
        %v6923 = vpop.f32.mrf.mxu0
        %v6924 = vadd.f32 0.0, %v6923
        %v6925 = vpop.f32.mrf.mxu0
        %6926 = vmatprep.mubr.f32.mxu0 %v6302
        %6927 = vmatmul.mubr.f32.gmra.mxu0 %v6167
        %v6928 = vpop.f32.mrf.mxu0
        %v6929 = vadd.f32 0.0, %v6928
        %v6930 = vpop.f32.mrf.mxu0
        %6931 = vmatprep.mubr.f32.mxu0 %v6305
        %6932 = vmatmul.mubr.f32.gmra.mxu0 %v6169
        %v6933 = vpop.f32.mrf.mxu0
        %v6934 = vadd.f32 0.0, %v6933
        %v6935 = vpop.f32.mrf.mxu0
        %6936 = vmatprep.mubr.f32.mxu0 %v6307
        %6937 = vmatmul.mubr.f32.gmra.mxu0 %v6170
        %v6938 = vpop.f32.mrf.mxu0
        %v6939 = vadd.f32 0.0, %v6938
        %v6940 = vpop.f32.mrf.mxu0
        %6941 = vmatprep.mubr.f32.mxu0 %v6310
        %6942 = vmatmul.mubr.f32.gmra.mxu0 %v6172
        %v6943 = vpop.f32.mrf.mxu0
        %v6944 = vadd.f32 0.0, %v6943
        %v6945 = vpop.f32.mrf.mxu0
        %6946 = vmatprep.mubr.f32.mxu0 %v6312
        %6947 = vmatmul.mubr.f32.gmra.mxu0 %v6173
        %v6948 = vpop.f32.mrf.mxu0
        %v6949 = vadd.f32 0.0, %v6948
        %v6950 = vpop.f32.mrf.mxu0
        %6951 = vmatprep.mubr.f32.mxu0 %v6315
        %6952 = vmatmul.mubr.f32.gmra.mxu0 %v6175
        %v6953 = vpop.f32.mrf.mxu0
        %v6954 = vadd.f32 0.0, %v6953
        %v6955 = vpop.f32.mrf.mxu0
        %6956 = vmatprep.mubr.f32.mxu0 %v6317
        %6957 = vmatmul.mubr.f32.gmra.mxu0 %v6176
        %v6958 = vpop.f32.mrf.mxu0
        %v6959 = vadd.f32 0.0, %v6958
        %v6960 = vpop.f32.mrf.mxu0
        %6961 = vmatprep.mubr.f32.mxu0 %v6320
        %6962 = vmatmul.mubr.f32.gmra.mxu0 %v6178
        %v6963 = vpop.f32.mrf.mxu0
        %v6964 = vadd.f32 0.0, %v6963
        %v6965 = vpop.f32.mrf.mxu0
        %6966 = vmatprep.mubr.f32.mxu0 %v6322
        %6967 = vmatmul.mubr.f32.gmra.mxu0 %v6179
        %v6968 = vpop.f32.mrf.mxu0
        %v6969 = vadd.f32 0.0, %v6968
        %v6970 = vpop.f32.mrf.mxu0
        %6971 = vdwg.mxu0
        %6972 = vmatprep.subr.mxu0 0.0
        %6973 = vmatpush1.msra.mxu0 %v6586
        %6974 = vmatprep.subr.mxu0 0.0
        %6975 = vmatpush1.msra.mxu0 %v6585
        %6976 = vmatprep.subr.mxu0 0.0
        %6977 = vmatpush1.msra.mxu0 %v6584
        %6978 = vmatprep.subr.mxu0 0.0
        %6979 = vmatpush1.msra.mxu0 %v6583
        %6980 = vmatprep.subr.mxu0 0.0
        %6981 = vmatpush1.msra.mxu0 %v6582
        %6982 = vmatprep.subr.mxu0 0.0
        %6983 = vmatpush1.msra.mxu0 %v6581
        %6984 = vmatprep.subr.mxu0 0.0
        %6985 = vmatpush1.msra.mxu0 %v6580
        %6986 = vmatprep.subr.mxu0 0.0
        %6987 = vmatpush1.msra.mxu0 %v6579
        %6988 = vmatprep.subr.mxu0 0.0
        %6989 = vmatpush1.msra.mxu0 %v6578
        %6990 = vmatprep.subr.mxu0 0.0
        %6991 = vmatpush1.msra.mxu0 %v6577
        %6992 = vmatprep.subr.mxu0 0.0
        %6993 = vmatpush1.msra.mxu0 %v6576
        %6994 = vmatprep.subr.mxu0 0.0
        %6995 = vmatpush1.msra.mxu0 %v6575
        %6996 = vmatprep.subr.mxu0 0.0
        %6997 = vmatpush1.msra.mxu0 %v6574
        %6998 = vmatprep.subr.mxu0 0.0
        %6999 = vmatpush1.msra.mxu0 %v6573
        %7000 = vmatprep.subr.mxu0 0.0
        %7001 = vmatpush1.msra.mxu0 %v6572
        %7002 = vmatprep.subr.mxu0 0.0
        %7003 = vmatpush1.msra.mxu0 %v6571
        %7004 = vmatprep.subr.mxu0 0.0
        %7005 = vmatpush2.msra.mxu0 0.0
        %7006 = vmatprep.subr.mxu0 0.0
        %7007 = vmatpush2.msra.mxu0 0.0
        %7008 = vmatprep.subr.mxu0 0.0
        %7009 = vmatpush2.msra.mxu0 0.0
        %7010 = vmatprep.subr.mxu0 0.0
        %7011 = vmatpush2.msra.mxu0 0.0
        %7012 = vmatprep.subr.mxu0 0.0
        %7013 = vmatpush2.msra.mxu0 0.0
        %7014 = vmatprep.subr.mxu0 0.0
        %7015 = vmatpush2.msra.mxu0 0.0
        %7016 = vmatprep.subr.mxu0 0.0
        %7017 = vmatpush2.msra.mxu0 0.0
        %7018 = vmatprep.subr.mxu0 0.0
        %7019 = vmatpush2.msra.mxu0 0.0
        %7020 = vmatprep.subr.mxu0 0.0
        %7021 = vmatpush2.msra.mxu0 0.0
        %7022 = vmatprep.subr.mxu0 0.0
        %7023 = vmatpush2.msra.mxu0 0.0
        %7024 = vmatprep.subr.mxu0 0.0
        %7025 = vmatpush2.msra.mxu0 0.0
        %7026 = vmatprep.subr.mxu0 0.0
        %7027 = vmatpush2.msra.mxu0 0.0
        %7028 = vmatprep.subr.mxu0 0.0
        %7029 = vmatpush2.msra.mxu0 0.0
        %7030 = vmatprep.subr.mxu0 0.0
        %7031 = vmatpush2.msra.mxu0 0.0
        %7032 = vmatprep.subr.mxu0 0.0
        %7033 = vmatpush2.msra.mxu0 0.0
        %7034 = vmatprep.subr.mxu0 0.0
        %7035 = vmatpush2.msra.mxu0 0.0
        %7036 = vmatprep.mubr.f32.mxu0 0.0
        %7037 = vmatmul.mubr.f32.gmra.mxu0 %v6011
        %v7038 = vpop.f32.mrf.mxu0
        %v7039 = vadd.f32 %v6654, %v7038
        %v7040 = vpop.f32.mrf.mxu0
        %7041 = vmatprep.mubr.f32.mxu0 0.0
        %7042 = vmatmul.mubr.f32.gmra.mxu0 %v6013
        %v7043 = vpop.f32.mrf.mxu0
        %v7044 = vadd.f32 %v6659, %v7043
        %v7045 = vpop.f32.mrf.mxu0
        %7046 = vmatprep.mubr.f32.mxu0 0.0
        %7047 = vmatmul.mubr.f32.gmra.mxu0 %v6016
        %v7048 = vpop.f32.mrf.mxu0
        %v7049 = vadd.f32 %v6664, %v7048
        %v7050 = vpop.f32.mrf.mxu0
        %7051 = vmatprep.mubr.f32.mxu0 0.0
        %7052 = vmatmul.mubr.f32.gmra.mxu0 %v6018
        %v7053 = vpop.f32.mrf.mxu0
        %v7054 = vadd.f32 %v6669, %v7053
        %v7055 = vpop.f32.mrf.mxu0
        %7056 = vmatprep.mubr.f32.mxu0 0.0
        %7057 = vmatmul.mubr.f32.gmra.mxu0 %v6021
        %v7058 = vpop.f32.mrf.mxu0
        %v7059 = vadd.f32 %v6674, %v7058
        %v7060 = vpop.f32.mrf.mxu0
        %7061 = vmatprep.mubr.f32.mxu0 0.0
        %7062 = vmatmul.mubr.f32.gmra.mxu0 %v6023
        %v7063 = vpop.f32.mrf.mxu0
        %v7064 = vadd.f32 %v6679, %v7063
        %v7065 = vpop.f32.mrf.mxu0
        %7066 = vmatprep.mubr.f32.mxu0 0.0
        %7067 = vmatmul.mubr.f32.gmra.mxu0 %v6026
        %v7068 = vpop.f32.mrf.mxu0
        %v7069 = vadd.f32 %v6684, %v7068
        %v7070 = vpop.f32.mrf.mxu0
        %7071 = vmatprep.mubr.f32.mxu0 0.0
        %7072 = vmatmul.mubr.f32.gmra.mxu0 %v6028
        %v7073 = vpop.f32.mrf.mxu0
        %v7074 = vadd.f32 %v6689, %v7073
        %v7075 = vpop.f32.mrf.mxu0
        %7076 = vmatprep.mubr.f32.mxu0 0.0
        %7077 = vmatmul.mubr.f32.gmra.mxu0 %v6031
        %v7078 = vpop.f32.mrf.mxu0
        %v7079 = vadd.f32 %v6694, %v7078
        %v7080 = vpop.f32.mrf.mxu0
        %7081 = vmatprep.mubr.f32.mxu0 0.0
        %7082 = vmatmul.mubr.f32.gmra.mxu0 %v6033
        %v7083 = vpop.f32.mrf.mxu0
        %v7084 = vadd.f32 %v6699, %v7083
        %v7085 = vpop.f32.mrf.mxu0
        %7086 = vmatprep.mubr.f32.mxu0 0.0
        %7087 = vmatmul.mubr.f32.gmra.mxu0 %v6036
        %v7088 = vpop.f32.mrf.mxu0
        %v7089 = vadd.f32 %v6704, %v7088
        %v7090 = vpop.f32.mrf.mxu0
        %7091 = vmatprep.mubr.f32.mxu0 0.0
        %7092 = vmatmul.mubr.f32.gmra.mxu0 %v6038
        %v7093 = vpop.f32.mrf.mxu0
        %v7094 = vadd.f32 %v6709, %v7093
        %v7095 = vpop.f32.mrf.mxu0
        %7096 = vmatprep.mubr.f32.mxu0 0.0
        %7097 = vmatmul.mubr.f32.gmra.mxu0 %v6041
        %v7098 = vpop.f32.mrf.mxu0
        %v7099 = vadd.f32 %v6714, %v7098
        %v7100 = vpop.f32.mrf.mxu0
        %7101 = vmatprep.mubr.f32.mxu0 0.0
        %7102 = vmatmul.mubr.f32.gmra.mxu0 %v6043
        %v7103 = vpop.f32.mrf.mxu0
        %v7104 = vadd.f32 %v6719, %v7103
        %v7105 = vpop.f32.mrf.mxu0
        %7106 = vmatprep.mubr.f32.mxu0 0.0
        %7107 = vmatmul.mubr.f32.gmra.mxu0 %v6046
        %v7108 = vpop.f32.mrf.mxu0
        %v7109 = vadd.f32 %v6724, %v7108
        %v7110 = vpop.f32.mrf.mxu0
        %7111 = vmatprep.mubr.f32.mxu0 0.0
        %7112 = vmatmul.mubr.f32.gmra.mxu0 %v6048
        %v7113 = vpop.f32.mrf.mxu0
        %v7114 = vadd.f32 %v6729, %v7113
        %v7115 = vpop.f32.mrf.mxu0
        %7116 = vmatprep.mubr.f32.mxu0 0.0
        %7117 = vmatmul.mubr.f32.gmra.mxu0 %v6051
        %v7118 = vpop.f32.mrf.mxu0
        %v7119 = vadd.f32 %v6734, %v7118
        %v7120 = vpop.f32.mrf.mxu0
        %7121 = vmatprep.mubr.f32.mxu0 0.0
        %7122 = vmatmul.mubr.f32.gmra.mxu0 %v6053
        %v7123 = vpop.f32.mrf.mxu0
        %v7124 = vadd.f32 %v6739, %v7123
        %v7125 = vpop.f32.mrf.mxu0
        %7126 = vmatprep.mubr.f32.mxu0 0.0
        %7127 = vmatmul.mubr.f32.gmra.mxu0 %v6056
        %v7128 = vpop.f32.mrf.mxu0
        %v7129 = vadd.f32 %v6744, %v7128
        %v7130 = vpop.f32.mrf.mxu0
        %7131 = vmatprep.mubr.f32.mxu0 0.0
        %7132 = vmatmul.mubr.f32.gmra.mxu0 %v6058
        %v7133 = vpop.f32.mrf.mxu0
        %v7134 = vadd.f32 %v6749, %v7133
        %v7135 = vpop.f32.mrf.mxu0
        %7136 = vmatprep.mubr.f32.mxu0 0.0
        %7137 = vmatmul.mubr.f32.gmra.mxu0 %v6061
        %v7138 = vpop.f32.mrf.mxu0
        %v7139 = vadd.f32 %v6754, %v7138
        %v7140 = vpop.f32.mrf.mxu0
        %7141 = vmatprep.mubr.f32.mxu0 0.0
        %7142 = vmatmul.mubr.f32.gmra.mxu0 %v6063
        %v7143 = vpop.f32.mrf.mxu0
        %v7144 = vadd.f32 %v6759, %v7143
        %v7145 = vpop.f32.mrf.mxu0
        %7146 = vmatprep.mubr.f32.mxu0 0.0
        %7147 = vmatmul.mubr.f32.gmra.mxu0 %v6066
        %v7148 = vpop.f32.mrf.mxu0
        %v7149 = vadd.f32 %v6764, %v7148
        %v7150 = vpop.f32.mrf.mxu0
        %7151 = vmatprep.mubr.f32.mxu0 0.0
        %7152 = vmatmul.mubr.f32.gmra.mxu0 %v6068
        %v7153 = vpop.f32.mrf.mxu0
        %v7154 = vadd.f32 %v6769, %v7153
        %v7155 = vpop.f32.mrf.mxu0
        %7156 = vmatprep.mubr.f32.mxu0 0.0
        %7157 = vmatmul.mubr.f32.gmra.mxu0 %v6071
        %v7158 = vpop.f32.mrf.mxu0
        %v7159 = vadd.f32 %v6774, %v7158
        %v7160 = vpop.f32.mrf.mxu0
        %7161 = vmatprep.mubr.f32.mxu0 0.0
        %7162 = vmatmul.mubr.f32.gmra.mxu0 %v6073
        %v7163 = vpop.f32.mrf.mxu0
        %v7164 = vadd.f32 %v6779, %v7163
        %v7165 = vpop.f32.mrf.mxu0
        %7166 = vmatprep.mubr.f32.mxu0 0.0
        %7167 = vmatmul.mubr.f32.gmra.mxu0 %v6076
        %v7168 = vpop.f32.mrf.mxu0
        %v7169 = vadd.f32 %v6784, %v7168
        %v7170 = vpop.f32.mrf.mxu0
        %7171 = vmatprep.mubr.f32.mxu0 0.0
        %7172 = vmatmul.mubr.f32.gmra.mxu0 %v6078
        %v7173 = vpop.f32.mrf.mxu0
        %v7174 = vadd.f32 %v6789, %v7173
        %v7175 = vpop.f32.mrf.mxu0
        %7176 = vmatprep.mubr.f32.mxu0 0.0
        %7177 = vmatmul.mubr.f32.gmra.mxu0 %v6081
        %v7178 = vpop.f32.mrf.mxu0
        %v7179 = vadd.f32 %v6794, %v7178
        %v7180 = vpop.f32.mrf.mxu0
        %7181 = vmatprep.mubr.f32.mxu0 0.0
        %7182 = vmatmul.mubr.f32.gmra.mxu0 %v6083
        %v7183 = vpop.f32.mrf.mxu0
        %v7184 = vadd.f32 %v6799, %v7183
        %v7185 = vpop.f32.mrf.mxu0
        %7186 = vmatprep.mubr.f32.mxu0 0.0
        %7187 = vmatmul.mubr.f32.gmra.mxu0 %v6086
        %v7188 = vpop.f32.mrf.mxu0
        %v7189 = vadd.f32 %v6804, %v7188
        %v7190 = vpop.f32.mrf.mxu0
        %7191 = vmatprep.mubr.f32.mxu0 0.0
        %7192 = vmatmul.mubr.f32.gmra.mxu0 %v6088
        %v7193 = vpop.f32.mrf.mxu0
        %v7194 = vadd.f32 %v6809, %v7193
        %v7195 = vpop.f32.mrf.mxu0
        %7196 = vmatprep.mubr.f32.mxu0 0.0
        %7197 = vmatmul.mubr.f32.gmra.mxu0 %v6371
        %v7198 = vpop.f32.mrf.mxu0
        %v7199 = vadd.f32 %v6814, %v7198
        %v7200 = vpop.f32.mrf.mxu0
        %7201 = vmatprep.mubr.f32.mxu0 0.0
        %7202 = vmatmul.mubr.f32.gmra.mxu0 %v6373
        %v7203 = vpop.f32.mrf.mxu0
        %v7204 = vadd.f32 %v6819, %v7203
        %v7205 = vpop.f32.mrf.mxu0
        %7206 = vmatprep.mubr.f32.mxu0 0.0
        %7207 = vmatmul.mubr.f32.gmra.mxu0 %v6376
        %v7208 = vpop.f32.mrf.mxu0
        %v7209 = vadd.f32 %v6824, %v7208
        %v7210 = vpop.f32.mrf.mxu0
        %7211 = vmatprep.mubr.f32.mxu0 0.0
        %7212 = vmatmul.mubr.f32.gmra.mxu0 %v6378
        %v7213 = vpop.f32.mrf.mxu0
        %v7214 = vadd.f32 %v6829, %v7213
        %v7215 = vpop.f32.mrf.mxu0
        %7216 = vmatprep.mubr.f32.mxu0 0.0
        %7217 = vmatmul.mubr.f32.gmra.mxu0 %v6381
        %v7218 = vpop.f32.mrf.mxu0
        %v7219 = vadd.f32 %v6834, %v7218
        %v7220 = vpop.f32.mrf.mxu0
        %7221 = vmatprep.mubr.f32.mxu0 0.0
        %7222 = vmatmul.mubr.f32.gmra.mxu0 %v6383
        %v7223 = vpop.f32.mrf.mxu0
        %v7224 = vadd.f32 %v6839, %v7223
        %v7225 = vpop.f32.mrf.mxu0
        %7226 = vmatprep.mubr.f32.mxu0 0.0
        %7227 = vmatmul.mubr.f32.gmra.mxu0 %v6386
        %v7228 = vpop.f32.mrf.mxu0
        %v7229 = vadd.f32 %v6844, %v7228
        %v7230 = vpop.f32.mrf.mxu0
        %7231 = vmatprep.mubr.f32.mxu0 0.0
        %7232 = vmatmul.mubr.f32.gmra.mxu0 %v6388
        %v7233 = vpop.f32.mrf.mxu0
        %v7234 = vadd.f32 %v6849, %v7233
        %v7235 = vpop.f32.mrf.mxu0
        %7236 = vmatprep.mubr.f32.mxu0 0.0
        %7237 = vmatmul.mubr.f32.gmra.mxu0 %v6391
        %v7238 = vpop.f32.mrf.mxu0
        %v7239 = vadd.f32 %v6854, %v7238
        %v7240 = vpop.f32.mrf.mxu0
        %7241 = vmatprep.mubr.f32.mxu0 0.0
        %7242 = vmatmul.mubr.f32.gmra.mxu0 %v6393
        %v7243 = vpop.f32.mrf.mxu0
        %v7244 = vadd.f32 %v6859, %v7243
        %v7245 = vpop.f32.mrf.mxu0
        %7246 = vmatprep.mubr.f32.mxu0 0.0
        %7247 = vmatmul.mubr.f32.gmra.mxu0 %v6396
        %v7248 = vpop.f32.mrf.mxu0
        %v7249 = vadd.f32 %v6864, %v7248
        %v7250 = vpop.f32.mrf.mxu0
        %7251 = vmatprep.mubr.f32.mxu0 0.0
        %7252 = vmatmul.mubr.f32.gmra.mxu0 %v6398
        %v7253 = vpop.f32.mrf.mxu0
        %v7254 = vadd.f32 %v6869, %v7253
        %v7255 = vpop.f32.mrf.mxu0
        %7256 = vmatprep.mubr.f32.mxu0 0.0
        %7257 = vmatmul.mubr.f32.gmra.mxu0 %v6401
        %v7258 = vpop.f32.mrf.mxu0
        %v7259 = vadd.f32 %v6874, %v7258
        %v7260 = vpop.f32.mrf.mxu0
        %7261 = vmatprep.mubr.f32.mxu0 0.0
        %7262 = vmatmul.mubr.f32.gmra.mxu0 %v6403
        %v7263 = vpop.f32.mrf.mxu0
        %v7264 = vadd.f32 %v6879, %v7263
        %v7265 = vpop.f32.mrf.mxu0
        %7266 = vmatprep.mubr.f32.mxu0 0.0
        %7267 = vmatmul.mubr.f32.gmra.mxu0 %v6406
        %v7268 = vpop.f32.mrf.mxu0
        %v7269 = vadd.f32 %v6884, %v7268
        %v7270 = vpop.f32.mrf.mxu0
        %7271 = vmatprep.mubr.f32.mxu0 0.0
        %7272 = vmatmul.mubr.f32.gmra.mxu0 %v6408
        %v7273 = vpop.f32.mrf.mxu0
        %v7274 = vadd.f32 %v6889, %v7273
        %v7275 = vpop.f32.mrf.mxu0
        %7276 = vmatprep.mubr.f32.mxu0 0.0
        %7277 = vmatmul.mubr.f32.gmra.mxu0 %v6411
        %v7278 = vpop.f32.mrf.mxu0
        %v7279 = vadd.f32 %v6894, %v7278
        %v7280 = vpop.f32.mrf.mxu0
        %7281 = vmatprep.mubr.f32.mxu0 0.0
        %7282 = vmatmul.mubr.f32.gmra.mxu0 %v6413
        %v7283 = vpop.f32.mrf.mxu0
        %v7284 = vadd.f32 %v6899, %v7283
        %v7285 = vpop.f32.mrf.mxu0
        %7286 = vmatprep.mubr.f32.mxu0 0.0
        %7287 = vmatmul.mubr.f32.gmra.mxu0 %v6416
        %v7288 = vpop.f32.mrf.mxu0
        %v7289 = vadd.f32 %v6904, %v7288
        %v7290 = vpop.f32.mrf.mxu0
        %7291 = vmatprep.mubr.f32.mxu0 0.0
        %7292 = vmatmul.mubr.f32.gmra.mxu0 %v6418
        %v7293 = vpop.f32.mrf.mxu0
        %v7294 = vadd.f32 %v6909, %v7293
        %v7295 = vpop.f32.mrf.mxu0
        %7296 = vmatprep.mubr.f32.mxu0 0.0
        %7297 = vmatmul.mubr.f32.gmra.mxu0 %v6421
        %v7298 = vpop.f32.mrf.mxu0
        %v7299 = vadd.f32 %v6914, %v7298
        %v7300 = vpop.f32.mrf.mxu0
        %7301 = vmatprep.mubr.f32.mxu0 0.0
        %7302 = vmatmul.mubr.f32.gmra.mxu0 %v6423
        %v7303 = vpop.f32.mrf.mxu0
        %v7304 = vadd.f32 %v6919, %v7303
        %v7305 = vpop.f32.mrf.mxu0
        %7306 = vmatprep.mubr.f32.mxu0 0.0
        %7307 = vmatmul.mubr.f32.gmra.mxu0 %v6426
        %v7308 = vpop.f32.mrf.mxu0
        %v7309 = vadd.f32 %v6924, %v7308
        %v7310 = vpop.f32.mrf.mxu0
        %7311 = vmatprep.mubr.f32.mxu0 0.0
        %7312 = vmatmul.mubr.f32.gmra.mxu0 %v6428
        %v7313 = vpop.f32.mrf.mxu0
        %v7314 = vadd.f32 %v6929, %v7313
        %v7315 = vpop.f32.mrf.mxu0
        %7316 = vmatprep.mubr.f32.mxu0 0.0
        %7317 = vmatmul.mubr.f32.gmra.mxu0 %v6431
        %v7318 = vpop.f32.mrf.mxu0
        %v7319 = vadd.f32 %v6934, %v7318
        %v7320 = vpop.f32.mrf.mxu0
        %7321 = vmatprep.mubr.f32.mxu0 0.0
        %7322 = vmatmul.mubr.f32.gmra.mxu0 %v6433
        %v7323 = vpop.f32.mrf.mxu0
        %v7324 = vadd.f32 %v6939, %v7323
        %v7325 = vpop.f32.mrf.mxu0
        %7326 = vmatprep.mubr.f32.mxu0 0.0
        %7327 = vmatmul.mubr.f32.gmra.mxu0 %v6436
        %v7328 = vpop.f32.mrf.mxu0
        %v7329 = vadd.f32 %v6944, %v7328
        %v7330 = vpop.f32.mrf.mxu0
        %7331 = vmatprep.mubr.f32.mxu0 0.0
        %7332 = vmatmul.mubr.f32.gmra.mxu0 %v6438
        %v7333 = vpop.f32.mrf.mxu0
        %v7334 = vadd.f32 %v6949, %v7333
        %v7335 = vpop.f32.mrf.mxu0
        %7336 = vmatprep.mubr.f32.mxu0 0.0
        %7337 = vmatmul.mubr.f32.gmra.mxu0 %v6441
        %v7338 = vpop.f32.mrf.mxu0
        %v7339 = vadd.f32 %v6954, %v7338
        %v7340 = vpop.f32.mrf.mxu0
        %7341 = vmatprep.mubr.f32.mxu0 0.0
        %7342 = vmatmul.mubr.f32.gmra.mxu0 %v6443
        %v7343 = vpop.f32.mrf.mxu0
        %v7344 = vadd.f32 %v6959, %v7343
        %v7345 = vpop.f32.mrf.mxu0
        %7346 = vmatprep.mubr.f32.mxu0 0.0
        %7347 = vmatmul.mubr.f32.gmra.mxu0 %v6446
        %v7348 = vpop.f32.mrf.mxu0
        %v7349 = vadd.f32 %v6964, %v7348
        %v7350 = vpop.f32.mrf.mxu0
        %7351 = vmatprep.mubr.f32.mxu0 0.0
        %7352 = vmatmul.mubr.f32.gmra.mxu0 %v6448
        %v7353 = vpop.f32.mrf.mxu0
        %v7354 = vadd.f32 %v6969, %v7353
        %v7355 = vpop.f32.mrf.mxu0
        %7356 = vdwg.mxu0
        %7357 = vmatprep.subr.mxu0 0.0
        %7358 = vmatpush1.msra.mxu0 %v6505
        %7359 = vmatprep.subr.mxu0 0.0
        %7360 = vmatpush1.msra.mxu0 %v6504
        %7361 = vmatprep.subr.mxu0 0.0
        %7362 = vmatpush1.msra.mxu0 %v6503
        %7363 = vmatprep.subr.mxu0 0.0
        %7364 = vmatpush1.msra.mxu0 %v6502
        %7365 = vmatprep.subr.mxu0 0.0
        %7366 = vmatpush1.msra.mxu0 %v6501
        %7367 = vmatprep.subr.mxu0 0.0
        %7368 = vmatpush1.msra.mxu0 %v6500
        %7369 = vmatprep.subr.mxu0 0.0
        %7370 = vmatpush1.msra.mxu0 %v6499
        %7371 = vmatprep.subr.mxu0 0.0
        %7372 = vmatpush1.msra.mxu0 %v6498
        %7373 = vmatprep.subr.mxu0 0.0
        %7374 = vmatpush1.msra.mxu0 %v6497
        %7375 = vmatprep.subr.mxu0 0.0
        %7376 = vmatpush1.msra.mxu0 %v6496
        %7377 = vmatprep.subr.mxu0 0.0
        %7378 = vmatpush1.msra.mxu0 %v6495
        %7379 = vmatprep.subr.mxu0 0.0
        %7380 = vmatpush1.msra.mxu0 %v6494
        %7381 = vmatprep.subr.mxu0 0.0
        %7382 = vmatpush1.msra.mxu0 %v6493
        %7383 = vmatprep.subr.mxu0 0.0
        %7384 = vmatpush1.msra.mxu0 %v6492
        %7385 = vmatprep.subr.mxu0 0.0
        %7386 = vmatpush1.msra.mxu0 %v6491
        %7387 = vmatprep.subr.mxu0 0.0
        %7388 = vmatpush1.msra.mxu0 %v6490
        %7389 = vmatprep.subr.mxu0 0.0
        %7390 = vmatpush2.msra.mxu0 %v6521
        %7391 = vmatprep.subr.mxu0 0.0
        %7392 = vmatpush2.msra.mxu0 %v6520
        %7393 = vmatprep.subr.mxu0 0.0
        %7394 = vmatpush2.msra.mxu0 %v6519
        %7395 = vmatprep.subr.mxu0 0.0
        %7396 = vmatpush2.msra.mxu0 %v6518
        %7397 = vmatprep.subr.mxu0 0.0
        %7398 = vmatpush2.msra.mxu0 %v6517
        %7399 = vmatprep.subr.mxu0 0.0
        %7400 = vmatpush2.msra.mxu0 %v6516
        %7401 = vmatprep.subr.mxu0 0.0
        %7402 = vmatpush2.msra.mxu0 %v6515
        %7403 = vmatprep.subr.mxu0 0.0
        %7404 = vmatpush2.msra.mxu0 %v6514
        %7405 = vmatprep.subr.mxu0 0.0
        %7406 = vmatpush2.msra.mxu0 %v6513
        %7407 = vmatprep.subr.mxu0 0.0
        %7408 = vmatpush2.msra.mxu0 %v6512
        %7409 = vmatprep.subr.mxu0 0.0
        %7410 = vmatpush2.msra.mxu0 %v6511
        %7411 = vmatprep.subr.mxu0 0.0
        %7412 = vmatpush2.msra.mxu0 %v6510
        %7413 = vmatprep.subr.mxu0 0.0
        %7414 = vmatpush2.msra.mxu0 %v6509
        %7415 = vmatprep.subr.mxu0 0.0
        %7416 = vmatpush2.msra.mxu0 %v6508
        %7417 = vmatprep.subr.mxu0 0.0
        %7418 = vmatpush2.msra.mxu0 %v6507
        %7419 = vmatprep.subr.mxu0 0.0
        %7420 = vmatpush2.msra.mxu0 %v6506
        %7421 = vmatprep.mubr.f32.mxu0 %v5880
        %7422 = vmatmul.mubr.f32.gmra.mxu0 %v5770
        %v7423 = vpop.f32.mrf.mxu0
        %v7424 = vadd.f32 %v7039, %v7423
        %v7425 = vpop.f32.mrf.mxu0
        %7426 = vmatprep.mubr.f32.mxu0 %v5882
        %7427 = vmatmul.mubr.f32.gmra.mxu0 %v5771
        %v7428 = vpop.f32.mrf.mxu0
        %v7429 = vadd.f32 %v7044, %v7428
        %v7430 = vpop.f32.mrf.mxu0
        %7431 = vmatprep.mubr.f32.mxu0 %v5885
        %7432 = vmatmul.mubr.f32.gmra.mxu0 %v5773
        %v7433 = vpop.f32.mrf.mxu0
        %v7434 = vadd.f32 %v7049, %v7433
        %v7435 = vpop.f32.mrf.mxu0
        %7436 = vmatprep.mubr.f32.mxu0 %v5887
        %7437 = vmatmul.mubr.f32.gmra.mxu0 %v5774
        %v7438 = vpop.f32.mrf.mxu0
        %v7439 = vadd.f32 %v7054, %v7438
        %v7440 = vpop.f32.mrf.mxu0
        %7441 = vmatprep.mubr.f32.mxu0 %v5890
        %7442 = vmatmul.mubr.f32.gmra.mxu0 %v5776
        %v7443 = vpop.f32.mrf.mxu0
        %v7444 = vadd.f32 %v7059, %v7443
        %v7445 = vpop.f32.mrf.mxu0
        %7446 = vmatprep.mubr.f32.mxu0 %v5892
        %7447 = vmatmul.mubr.f32.gmra.mxu0 %v5777
        %v7448 = vpop.f32.mrf.mxu0
        %v7449 = vadd.f32 %v7064, %v7448
        %v7450 = vpop.f32.mrf.mxu0
        %7451 = vmatprep.mubr.f32.mxu0 %v5895
        %7452 = vmatmul.mubr.f32.gmra.mxu0 %v5779
        %v7453 = vpop.f32.mrf.mxu0
        %v7454 = vadd.f32 %v7069, %v7453
        %v7455 = vpop.f32.mrf.mxu0
        %7456 = vmatprep.mubr.f32.mxu0 %v5897
        %7457 = vmatmul.mubr.f32.gmra.mxu0 %v5780
        %v7458 = vpop.f32.mrf.mxu0
        %v7459 = vadd.f32 %v7074, %v7458
        %v7460 = vpop.f32.mrf.mxu0
        %7461 = vmatprep.mubr.f32.mxu0 %v5900
        %7462 = vmatmul.mubr.f32.gmra.mxu0 %v5782
        %v7463 = vpop.f32.mrf.mxu0
        %v7464 = vadd.f32 %v7079, %v7463
        %v7465 = vpop.f32.mrf.mxu0
        %7466 = vmatprep.mubr.f32.mxu0 %v5902
        %7467 = vmatmul.mubr.f32.gmra.mxu0 %v5783
        %v7468 = vpop.f32.mrf.mxu0
        %v7469 = vadd.f32 %v7084, %v7468
        %v7470 = vpop.f32.mrf.mxu0
        %7471 = vmatprep.mubr.f32.mxu0 %v5905
        %7472 = vmatmul.mubr.f32.gmra.mxu0 %v5785
        %v7473 = vpop.f32.mrf.mxu0
        %v7474 = vadd.f32 %v7089, %v7473
        %v7475 = vpop.f32.mrf.mxu0
        %7476 = vmatprep.mubr.f32.mxu0 %v5907
        %7477 = vmatmul.mubr.f32.gmra.mxu0 %v5786
        %v7478 = vpop.f32.mrf.mxu0
        %v7479 = vadd.f32 %v7094, %v7478
        %v7480 = vpop.f32.mrf.mxu0
        %7481 = vmatprep.mubr.f32.mxu0 %v5910
        %7482 = vmatmul.mubr.f32.gmra.mxu0 %v5788
        %v7483 = vpop.f32.mrf.mxu0
        %v7484 = vadd.f32 %v7099, %v7483
        %v7485 = vpop.f32.mrf.mxu0
        %7486 = vmatprep.mubr.f32.mxu0 %v5912
        %7487 = vmatmul.mubr.f32.gmra.mxu0 %v5789
        %v7488 = vpop.f32.mrf.mxu0
        %v7489 = vadd.f32 %v7104, %v7488
        %v7490 = vpop.f32.mrf.mxu0
        %7491 = vmatprep.mubr.f32.mxu0 %v5915
        %7492 = vmatmul.mubr.f32.gmra.mxu0 %v5791
        %v7493 = vpop.f32.mrf.mxu0
        %v7494 = vadd.f32 %v7109, %v7493
        %v7495 = vpop.f32.mrf.mxu0
        %7496 = vmatprep.mubr.f32.mxu0 %v5917
        %7497 = vmatmul.mubr.f32.gmra.mxu0 %v5792
        %v7498 = vpop.f32.mrf.mxu0
        %v7499 = vadd.f32 %v7114, %v7498
        %v7500 = vpop.f32.mrf.mxu0
        %7501 = vmatprep.mubr.f32.mxu0 %v5920
        %7502 = vmatmul.mubr.f32.gmra.mxu0 %v5794
        %v7503 = vpop.f32.mrf.mxu0
        %v7504 = vadd.f32 %v7119, %v7503
        %v7505 = vpop.f32.mrf.mxu0
        %7506 = vmatprep.mubr.f32.mxu0 %v5922
        %7507 = vmatmul.mubr.f32.gmra.mxu0 %v5795
        %v7508 = vpop.f32.mrf.mxu0
        %v7509 = vadd.f32 %v7124, %v7508
        %v7510 = vpop.f32.mrf.mxu0
        %7511 = vmatprep.mubr.f32.mxu0 %v5925
        %7512 = vmatmul.mubr.f32.gmra.mxu0 %v5797
        %v7513 = vpop.f32.mrf.mxu0
        %v7514 = vadd.f32 %v7129, %v7513
        %v7515 = vpop.f32.mrf.mxu0
        %7516 = vmatprep.mubr.f32.mxu0 %v5927
        %7517 = vmatmul.mubr.f32.gmra.mxu0 %v5798
        %v7518 = vpop.f32.mrf.mxu0
        %v7519 = vadd.f32 %v7134, %v7518
        %v7520 = vpop.f32.mrf.mxu0
        %7521 = vmatprep.mubr.f32.mxu0 %v5930
        %7522 = vmatmul.mubr.f32.gmra.mxu0 %v5800
        %v7523 = vpop.f32.mrf.mxu0
        %v7524 = vadd.f32 %v7139, %v7523
        %v7525 = vpop.f32.mrf.mxu0
        %7526 = vmatprep.mubr.f32.mxu0 %v5932
        %7527 = vmatmul.mubr.f32.gmra.mxu0 %v5801
        %v7528 = vpop.f32.mrf.mxu0
        %v7529 = vadd.f32 %v7144, %v7528
        %v7530 = vpop.f32.mrf.mxu0
        %7531 = vmatprep.mubr.f32.mxu0 %v5935
        %7532 = vmatmul.mubr.f32.gmra.mxu0 %v5803
        %v7533 = vpop.f32.mrf.mxu0
        %v7534 = vadd.f32 %v7149, %v7533
        %v7535 = vpop.f32.mrf.mxu0
        %7536 = vmatprep.mubr.f32.mxu0 %v5937
        %7537 = vmatmul.mubr.f32.gmra.mxu0 %v5804
        %v7538 = vpop.f32.mrf.mxu0
        %v7539 = vadd.f32 %v7154, %v7538
        %v7540 = vpop.f32.mrf.mxu0
        %7541 = vmatprep.mubr.f32.mxu0 %v5940
        %7542 = vmatmul.mubr.f32.gmra.mxu0 %v5806
        %v7543 = vpop.f32.mrf.mxu0
        %v7544 = vadd.f32 %v7159, %v7543
        %v7545 = vpop.f32.mrf.mxu0
        %7546 = vmatprep.mubr.f32.mxu0 %v5942
        %7547 = vmatmul.mubr.f32.gmra.mxu0 %v5807
        %v7548 = vpop.f32.mrf.mxu0
        %v7549 = vadd.f32 %v7164, %v7548
        %v7550 = vpop.f32.mrf.mxu0
        %7551 = vmatprep.mubr.f32.mxu0 %v5945
        %7552 = vmatmul.mubr.f32.gmra.mxu0 %v5809
        %v7553 = vpop.f32.mrf.mxu0
        %v7554 = vadd.f32 %v7169, %v7553
        %v7555 = vpop.f32.mrf.mxu0
        %7556 = vmatprep.mubr.f32.mxu0 %v5947
        %7557 = vmatmul.mubr.f32.gmra.mxu0 %v5810
        %v7558 = vpop.f32.mrf.mxu0
        %v7559 = vadd.f32 %v7174, %v7558
        %v7560 = vpop.f32.mrf.mxu0
        %7561 = vmatprep.mubr.f32.mxu0 %v5950
        %7562 = vmatmul.mubr.f32.gmra.mxu0 %v5812
        %v7563 = vpop.f32.mrf.mxu0
        %v7564 = vadd.f32 %v7179, %v7563
        %v7565 = vpop.f32.mrf.mxu0
        %7566 = vmatprep.mubr.f32.mxu0 %v5952
        %7567 = vmatmul.mubr.f32.gmra.mxu0 %v5813
        %v7568 = vpop.f32.mrf.mxu0
        %v7569 = vadd.f32 %v7184, %v7568
        %v7570 = vpop.f32.mrf.mxu0
        %7571 = vmatprep.mubr.f32.mxu0 %v5955
        %7572 = vmatmul.mubr.f32.gmra.mxu0 %v5815
        %v7573 = vpop.f32.mrf.mxu0
        %v7574 = vadd.f32 %v7189, %v7573
        %v7575 = vpop.f32.mrf.mxu0
        %7576 = vmatprep.mubr.f32.mxu0 %v5957
        %7577 = vmatmul.mubr.f32.gmra.mxu0 %v5816
        %v7578 = vpop.f32.mrf.mxu0
        %v7579 = vadd.f32 %v7194, %v7578
        %v7580 = vpop.f32.mrf.mxu0
        %7581 = vmatprep.mubr.f32.mxu0 %v6240
        %7582 = vmatmul.mubr.f32.gmra.mxu0 %v6130
        %v7583 = vpop.f32.mrf.mxu0
        %v7584 = vadd.f32 %v7199, %v7583
        %v7585 = vpop.f32.mrf.mxu0
        %7586 = vmatprep.mubr.f32.mxu0 %v6242
        %7587 = vmatmul.mubr.f32.gmra.mxu0 %v6131
        %v7588 = vpop.f32.mrf.mxu0
        %v7589 = vadd.f32 %v7204, %v7588
        %v7590 = vpop.f32.mrf.mxu0
        %7591 = vmatprep.mubr.f32.mxu0 %v6245
        %7592 = vmatmul.mubr.f32.gmra.mxu0 %v6133
        %v7593 = vpop.f32.mrf.mxu0
        %v7594 = vadd.f32 %v7209, %v7593
        %v7595 = vpop.f32.mrf.mxu0
        %7596 = vmatprep.mubr.f32.mxu0 %v6247
        %7597 = vmatmul.mubr.f32.gmra.mxu0 %v6134
        %v7598 = vpop.f32.mrf.mxu0
        %v7599 = vadd.f32 %v7214, %v7598
        %v7600 = vpop.f32.mrf.mxu0
        %7601 = vmatprep.mubr.f32.mxu0 %v6250
        %7602 = vmatmul.mubr.f32.gmra.mxu0 %v6136
        %v7603 = vpop.f32.mrf.mxu0
        %v7604 = vadd.f32 %v7219, %v7603
        %v7605 = vpop.f32.mrf.mxu0
        %7606 = vmatprep.mubr.f32.mxu0 %v6252
        %7607 = vmatmul.mubr.f32.gmra.mxu0 %v6137
        %v7608 = vpop.f32.mrf.mxu0
        %v7609 = vadd.f32 %v7224, %v7608
        %v7610 = vpop.f32.mrf.mxu0
        %7611 = vmatprep.mubr.f32.mxu0 %v6255
        %7612 = vmatmul.mubr.f32.gmra.mxu0 %v6139
        %v7613 = vpop.f32.mrf.mxu0
        %v7614 = vadd.f32 %v7229, %v7613
        %v7615 = vpop.f32.mrf.mxu0
        %7616 = vmatprep.mubr.f32.mxu0 %v6257
        %7617 = vmatmul.mubr.f32.gmra.mxu0 %v6140
        %v7618 = vpop.f32.mrf.mxu0
        %v7619 = vadd.f32 %v7234, %v7618
        %v7620 = vpop.f32.mrf.mxu0
        %7621 = vmatprep.mubr.f32.mxu0 %v6260
        %7622 = vmatmul.mubr.f32.gmra.mxu0 %v6142
        %v7623 = vpop.f32.mrf.mxu0
        %v7624 = vadd.f32 %v7239, %v7623
        %v7625 = vpop.f32.mrf.mxu0
        %7626 = vmatprep.mubr.f32.mxu0 %v6262
        %7627 = vmatmul.mubr.f32.gmra.mxu0 %v6143
        %v7628 = vpop.f32.mrf.mxu0
        %v7629 = vadd.f32 %v7244, %v7628
        %v7630 = vpop.f32.mrf.mxu0
        %7631 = vmatprep.mubr.f32.mxu0 %v6265
        %7632 = vmatmul.mubr.f32.gmra.mxu0 %v6145
        %v7633 = vpop.f32.mrf.mxu0
        %v7634 = vadd.f32 %v7249, %v7633
        %v7635 = vpop.f32.mrf.mxu0
        %7636 = vmatprep.mubr.f32.mxu0 %v6267
        %7637 = vmatmul.mubr.f32.gmra.mxu0 %v6146
        %v7638 = vpop.f32.mrf.mxu0
        %v7639 = vadd.f32 %v7254, %v7638
        %v7640 = vpop.f32.mrf.mxu0
        %7641 = vmatprep.mubr.f32.mxu0 %v6270
        %7642 = vmatmul.mubr.f32.gmra.mxu0 %v6148
        %v7643 = vpop.f32.mrf.mxu0
        %v7644 = vadd.f32 %v7259, %v7643
        %v7645 = vpop.f32.mrf.mxu0
        %7646 = vmatprep.mubr.f32.mxu0 %v6272
        %7647 = vmatmul.mubr.f32.gmra.mxu0 %v6149
        %v7648 = vpop.f32.mrf.mxu0
        %v7649 = vadd.f32 %v7264, %v7648
        %v7650 = vpop.f32.mrf.mxu0
        %7651 = vmatprep.mubr.f32.mxu0 %v6275
        %7652 = vmatmul.mubr.f32.gmra.mxu0 %v6151
        %v7653 = vpop.f32.mrf.mxu0
        %v7654 = vadd.f32 %v7269, %v7653
        %v7655 = vpop.f32.mrf.mxu0
        %7656 = vmatprep.mubr.f32.mxu0 %v6277
        %7657 = vmatmul.mubr.f32.gmra.mxu0 %v6152
        %v7658 = vpop.f32.mrf.mxu0
        %v7659 = vadd.f32 %v7274, %v7658
        %v7660 = vpop.f32.mrf.mxu0
        %7661 = vmatprep.mubr.f32.mxu0 %v6280
        %7662 = vmatmul.mubr.f32.gmra.mxu0 %v6154
        %v7663 = vpop.f32.mrf.mxu0
        %v7664 = vadd.f32 %v7279, %v7663
        %v7665 = vpop.f32.mrf.mxu0
        %7666 = vmatprep.mubr.f32.mxu0 %v6282
        %7667 = vmatmul.mubr.f32.gmra.mxu0 %v6155
        %v7668 = vpop.f32.mrf.mxu0
        %v7669 = vadd.f32 %v7284, %v7668
        %v7670 = vpop.f32.mrf.mxu0
        %7671 = vmatprep.mubr.f32.mxu0 %v6285
        %7672 = vmatmul.mubr.f32.gmra.mxu0 %v6157
        %v7673 = vpop.f32.mrf.mxu0
        %v7674 = vadd.f32 %v7289, %v7673
        %v7675 = vpop.f32.mrf.mxu0
        %7676 = vmatprep.mubr.f32.mxu0 %v6287
        %7677 = vmatmul.mubr.f32.gmra.mxu0 %v6158
        %v7678 = vpop.f32.mrf.mxu0
        %v7679 = vadd.f32 %v7294, %v7678
        %v7680 = vpop.f32.mrf.mxu0
        %7681 = vmatprep.mubr.f32.mxu0 %v6290
        %7682 = vmatmul.mubr.f32.gmra.mxu0 %v6160
        %v7683 = vpop.f32.mrf.mxu0
        %v7684 = vadd.f32 %v7299, %v7683
        %v7685 = vpop.f32.mrf.mxu0
        %7686 = vmatprep.mubr.f32.mxu0 %v6292
        %7687 = vmatmul.mubr.f32.gmra.mxu0 %v6161
        %v7688 = vpop.f32.mrf.mxu0
        %v7689 = vadd.f32 %v7304, %v7688
        %v7690 = vpop.f32.mrf.mxu0
        %7691 = vmatprep.mubr.f32.mxu0 %v6295
        %7692 = vmatmul.mubr.f32.gmra.mxu0 %v6163
        %v7693 = vpop.f32.mrf.mxu0
        %v7694 = vadd.f32 %v7309, %v7693
        %v7695 = vpop.f32.mrf.mxu0
        %7696 = vmatprep.mubr.f32.mxu0 %v6297
        %7697 = vmatmul.mubr.f32.gmra.mxu0 %v6164
        %v7698 = vpop.f32.mrf.mxu0
        %v7699 = vadd.f32 %v7314, %v7698
        %v7700 = vpop.f32.mrf.mxu0
        %7701 = vmatprep.mubr.f32.mxu0 %v6300
        %7702 = vmatmul.mubr.f32.gmra.mxu0 %v6166
        %v7703 = vpop.f32.mrf.mxu0
        %v7704 = vadd.f32 %v7319, %v7703
        %v7705 = vpop.f32.mrf.mxu0
        %7706 = vmatprep.mubr.f32.mxu0 %v6302
        %7707 = vmatmul.mubr.f32.gmra.mxu0 %v6167
        %v7708 = vpop.f32.mrf.mxu0
        %v7709 = vadd.f32 %v7324, %v7708
        %v7710 = vpop.f32.mrf.mxu0
        %7711 = vmatprep.mubr.f32.mxu0 %v6305
        %7712 = vmatmul.mubr.f32.gmra.mxu0 %v6169
        %v7713 = vpop.f32.mrf.mxu0
        %v7714 = vadd.f32 %v7329, %v7713
        %v7715 = vpop.f32.mrf.mxu0
        %7716 = vmatprep.mubr.f32.mxu0 %v6307
        %7717 = vmatmul.mubr.f32.gmra.mxu0 %v6170
        %v7718 = vpop.f32.mrf.mxu0
        %v7719 = vadd.f32 %v7334, %v7718
        %v7720 = vpop.f32.mrf.mxu0
        %7721 = vmatprep.mubr.f32.mxu0 %v6310
        %7722 = vmatmul.mubr.f32.gmra.mxu0 %v6172
        %v7723 = vpop.f32.mrf.mxu0
        %v7724 = vadd.f32 %v7339, %v7723
        %v7725 = vpop.f32.mrf.mxu0
        %7726 = vmatprep.mubr.f32.mxu0 %v6312
        %7727 = vmatmul.mubr.f32.gmra.mxu0 %v6173
        %v7728 = vpop.f32.mrf.mxu0
        %v7729 = vadd.f32 %v7344, %v7728
        %v7730 = vpop.f32.mrf.mxu0
        %7731 = vmatprep.mubr.f32.mxu0 %v6315
        %7732 = vmatmul.mubr.f32.gmra.mxu0 %v6175
        %v7733 = vpop.f32.mrf.mxu0
        %v7734 = vadd.f32 %v7349, %v7733
        %v7735 = vpop.f32.mrf.mxu0
        %7736 = vmatprep.mubr.f32.mxu0 %v6317
        %7737 = vmatmul.mubr.f32.gmra.mxu0 %v6176
        %v7738 = vpop.f32.mrf.mxu0
        %v7739 = vadd.f32 %v7354, %v7738
        %v7740 = vpop.f32.mrf.mxu0
        %7741 = vdwg.mxu0
        %7742 = vmatprep.subr.mxu0 0.0
        %7743 = vmatpush1.msra.mxu0 %v6537
        %7744 = vmatprep.subr.mxu0 0.0
        %7745 = vmatpush1.msra.mxu0 %v6536
        %7746 = vmatprep.subr.mxu0 0.0
        %7747 = vmatpush1.msra.mxu0 %v6535
        %7748 = vmatprep.subr.mxu0 0.0
        %7749 = vmatpush1.msra.mxu0 %v6534
        %7750 = vmatprep.subr.mxu0 0.0
        %7751 = vmatpush1.msra.mxu0 %v6533
        %7752 = vmatprep.subr.mxu0 0.0
        %7753 = vmatpush1.msra.mxu0 %v6532
        %7754 = vmatprep.subr.mxu0 0.0
        %7755 = vmatpush1.msra.mxu0 %v6531
        %7756 = vmatprep.subr.mxu0 0.0
        %7757 = vmatpush1.msra.mxu0 %v6530
        %7758 = vmatprep.subr.mxu0 0.0
        %7759 = vmatpush1.msra.mxu0 %v6529
        %7760 = vmatprep.subr.mxu0 0.0
        %7761 = vmatpush1.msra.mxu0 %v6528
        %7762 = vmatprep.subr.mxu0 0.0
        %7763 = vmatpush1.msra.mxu0 %v6527
        %7764 = vmatprep.subr.mxu0 0.0
        %7765 = vmatpush1.msra.mxu0 %v6526
        %7766 = vmatprep.subr.mxu0 0.0
        %7767 = vmatpush1.msra.mxu0 %v6525
        %7768 = vmatprep.subr.mxu0 0.0
        %7769 = vmatpush1.msra.mxu0 %v6524
        %7770 = vmatprep.subr.mxu0 0.0
        %7771 = vmatpush1.msra.mxu0 %v6523
        %7772 = vmatprep.subr.mxu0 0.0
        %7773 = vmatpush1.msra.mxu0 %v6522
        %7774 = vmatprep.subr.mxu0 0.0
        %7775 = vmatpush2.msra.mxu0 0.0
        %7776 = vmatprep.subr.mxu0 0.0
        %7777 = vmatpush2.msra.mxu0 0.0
        %7778 = vmatprep.subr.mxu0 0.0
        %7779 = vmatpush2.msra.mxu0 0.0
        %7780 = vmatprep.subr.mxu0 0.0
        %7781 = vmatpush2.msra.mxu0 0.0
        %7782 = vmatprep.subr.mxu0 0.0
        %7783 = vmatpush2.msra.mxu0 0.0
        %7784 = vmatprep.subr.mxu0 0.0
        %7785 = vmatpush2.msra.mxu0 0.0
        %7786 = vmatprep.subr.mxu0 0.0
        %7787 = vmatpush2.msra.mxu0 0.0
        %7788 = vmatprep.subr.mxu0 0.0
        %7789 = vmatpush2.msra.mxu0 0.0
        %7790 = vmatprep.subr.mxu0 0.0
        %7791 = vmatpush2.msra.mxu0 0.0
        %7792 = vmatprep.subr.mxu0 0.0
        %7793 = vmatpush2.msra.mxu0 0.0
        %7794 = vmatprep.subr.mxu0 0.0
        %7795 = vmatpush2.msra.mxu0 0.0
        %7796 = vmatprep.subr.mxu0 0.0
        %7797 = vmatpush2.msra.mxu0 0.0
        %7798 = vmatprep.subr.mxu0 0.0
        %7799 = vmatpush2.msra.mxu0 0.0
        %7800 = vmatprep.subr.mxu0 0.0
        %7801 = vmatpush2.msra.mxu0 0.0
        %7802 = vmatprep.subr.mxu0 0.0
        %7803 = vmatpush2.msra.mxu0 0.0
        %7804 = vmatprep.subr.mxu0 0.0
        %7805 = vmatpush2.msra.mxu0 0.0
        %7806 = vmatprep.mubr.f32.mxu0 0.0
        %7807 = vmatmul.mubr.f32.gmra.mxu0 %v6006
        %v7808 = vpop.f32.mrf.mxu0
        %v7809 = vadd.f32 %v7424, %v7808
        %v7810 = vpop.f32.mrf.mxu0
        %7811 = vmatprep.mubr.f32.mxu0 0.0
        %7812 = vmatmul.mubr.f32.gmra.mxu0 %v6008
        %v7813 = vpop.f32.mrf.mxu0
        %v7814 = vadd.f32 %v7429, %v7813
        %v7815 = vpop.f32.mrf.mxu0
        %7816 = vmatprep.mubr.f32.mxu0 0.0
        %7817 = vmatmul.mubr.f32.gmra.mxu0 %v6011
        %v7818 = vpop.f32.mrf.mxu0
        %v7819 = vadd.f32 %v7434, %v7818
        %v7820 = vpop.f32.mrf.mxu0
        %7821 = vmatprep.mubr.f32.mxu0 0.0
        %7822 = vmatmul.mubr.f32.gmra.mxu0 %v6013
        %v7823 = vpop.f32.mrf.mxu0
        %v7824 = vadd.f32 %v7439, %v7823
        %v7825 = vpop.f32.mrf.mxu0
        %7826 = vmatprep.mubr.f32.mxu0 0.0
        %7827 = vmatmul.mubr.f32.gmra.mxu0 %v6016
        %v7828 = vpop.f32.mrf.mxu0
        %v7829 = vadd.f32 %v7444, %v7828
        %v7830 = vpop.f32.mrf.mxu0
        %7831 = vmatprep.mubr.f32.mxu0 0.0
        %7832 = vmatmul.mubr.f32.gmra.mxu0 %v6018
        %v7833 = vpop.f32.mrf.mxu0
        %v7834 = vadd.f32 %v7449, %v7833
        %v7835 = vpop.f32.mrf.mxu0
        %7836 = vmatprep.mubr.f32.mxu0 0.0
        %7837 = vmatmul.mubr.f32.gmra.mxu0 %v6021
        %v7838 = vpop.f32.mrf.mxu0
        %v7839 = vadd.f32 %v7454, %v7838
        %v7840 = vpop.f32.mrf.mxu0
        %7841 = vmatprep.mubr.f32.mxu0 0.0
        %7842 = vmatmul.mubr.f32.gmra.mxu0 %v6023
        %v7843 = vpop.f32.mrf.mxu0
        %v7844 = vadd.f32 %v7459, %v7843
        %v7845 = vpop.f32.mrf.mxu0
        %7846 = vmatprep.mubr.f32.mxu0 0.0
        %7847 = vmatmul.mubr.f32.gmra.mxu0 %v6026
        %v7848 = vpop.f32.mrf.mxu0
        %v7849 = vadd.f32 %v7464, %v7848
        %v7850 = vpop.f32.mrf.mxu0
        %7851 = vmatprep.mubr.f32.mxu0 0.0
        %7852 = vmatmul.mubr.f32.gmra.mxu0 %v6028
        %v7853 = vpop.f32.mrf.mxu0
        %v7854 = vadd.f32 %v7469, %v7853
        %v7855 = vpop.f32.mrf.mxu0
        %7856 = vmatprep.mubr.f32.mxu0 0.0
        %7857 = vmatmul.mubr.f32.gmra.mxu0 %v6031
        %v7858 = vpop.f32.mrf.mxu0
        %v7859 = vadd.f32 %v7474, %v7858
        %v7860 = vpop.f32.mrf.mxu0
        %7861 = vmatprep.mubr.f32.mxu0 0.0
        %7862 = vmatmul.mubr.f32.gmra.mxu0 %v6033
        %v7863 = vpop.f32.mrf.mxu0
        %v7864 = vadd.f32 %v7479, %v7863
        %v7865 = vpop.f32.mrf.mxu0
        %7866 = vmatprep.mubr.f32.mxu0 0.0
        %7867 = vmatmul.mubr.f32.gmra.mxu0 %v6036
        %v7868 = vpop.f32.mrf.mxu0
        %v7869 = vadd.f32 %v7484, %v7868
        %v7870 = vpop.f32.mrf.mxu0
        %7871 = vmatprep.mubr.f32.mxu0 0.0
        %7872 = vmatmul.mubr.f32.gmra.mxu0 %v6038
        %v7873 = vpop.f32.mrf.mxu0
        %v7874 = vadd.f32 %v7489, %v7873
        %v7875 = vpop.f32.mrf.mxu0
        %7876 = vmatprep.mubr.f32.mxu0 0.0
        %7877 = vmatmul.mubr.f32.gmra.mxu0 %v6041
        %v7878 = vpop.f32.mrf.mxu0
        %v7879 = vadd.f32 %v7494, %v7878
        %v7880 = vpop.f32.mrf.mxu0
        %7881 = vmatprep.mubr.f32.mxu0 0.0
        %7882 = vmatmul.mubr.f32.gmra.mxu0 %v6043
        %v7883 = vpop.f32.mrf.mxu0
        %v7884 = vadd.f32 %v7499, %v7883
        %v7885 = vpop.f32.mrf.mxu0
        %7886 = vmatprep.mubr.f32.mxu0 0.0
        %7887 = vmatmul.mubr.f32.gmra.mxu0 %v6046
        %v7888 = vpop.f32.mrf.mxu0
        %v7889 = vadd.f32 %v7504, %v7888
        %v7890 = vpop.f32.mrf.mxu0
        %7891 = vmatprep.mubr.f32.mxu0 0.0
        %7892 = vmatmul.mubr.f32.gmra.mxu0 %v6048
        %v7893 = vpop.f32.mrf.mxu0
        %v7894 = vadd.f32 %v7509, %v7893
        %v7895 = vpop.f32.mrf.mxu0
        %7896 = vmatprep.mubr.f32.mxu0 0.0
        %7897 = vmatmul.mubr.f32.gmra.mxu0 %v6051
        %v7898 = vpop.f32.mrf.mxu0
        %v7899 = vadd.f32 %v7514, %v7898
        %v7900 = vpop.f32.mrf.mxu0
        %7901 = vmatprep.mubr.f32.mxu0 0.0
        %7902 = vmatmul.mubr.f32.gmra.mxu0 %v6053
        %v7903 = vpop.f32.mrf.mxu0
        %v7904 = vadd.f32 %v7519, %v7903
        %v7905 = vpop.f32.mrf.mxu0
        %7906 = vmatprep.mubr.f32.mxu0 0.0
        %7907 = vmatmul.mubr.f32.gmra.mxu0 %v6056
        %v7908 = vpop.f32.mrf.mxu0
        %v7909 = vadd.f32 %v7524, %v7908
        %v7910 = vpop.f32.mrf.mxu0
        %7911 = vmatprep.mubr.f32.mxu0 0.0
        %7912 = vmatmul.mubr.f32.gmra.mxu0 %v6058
        %v7913 = vpop.f32.mrf.mxu0
        %v7914 = vadd.f32 %v7529, %v7913
        %v7915 = vpop.f32.mrf.mxu0
        %7916 = vmatprep.mubr.f32.mxu0 0.0
        %7917 = vmatmul.mubr.f32.gmra.mxu0 %v6061
        %v7918 = vpop.f32.mrf.mxu0
        %v7919 = vadd.f32 %v7534, %v7918
        %v7920 = vpop.f32.mrf.mxu0
        %7921 = vmatprep.mubr.f32.mxu0 0.0
        %7922 = vmatmul.mubr.f32.gmra.mxu0 %v6063
        %v7923 = vpop.f32.mrf.mxu0
        %v7924 = vadd.f32 %v7539, %v7923
        %v7925 = vpop.f32.mrf.mxu0
        %7926 = vmatprep.mubr.f32.mxu0 0.0
        %7927 = vmatmul.mubr.f32.gmra.mxu0 %v6066
        %v7928 = vpop.f32.mrf.mxu0
        %v7929 = vadd.f32 %v7544, %v7928
        %v7930 = vpop.f32.mrf.mxu0
        %7931 = vmatprep.mubr.f32.mxu0 0.0
        %7932 = vmatmul.mubr.f32.gmra.mxu0 %v6068
        %v7933 = vpop.f32.mrf.mxu0
        %v7934 = vadd.f32 %v7549, %v7933
        %v7935 = vpop.f32.mrf.mxu0
        %7936 = vmatprep.mubr.f32.mxu0 0.0
        %7937 = vmatmul.mubr.f32.gmra.mxu0 %v6071
        %v7938 = vpop.f32.mrf.mxu0
        %v7939 = vadd.f32 %v7554, %v7938
        %v7940 = vpop.f32.mrf.mxu0
        %7941 = vmatprep.mubr.f32.mxu0 0.0
        %7942 = vmatmul.mubr.f32.gmra.mxu0 %v6073
        %v7943 = vpop.f32.mrf.mxu0
        %v7944 = vadd.f32 %v7559, %v7943
        %v7945 = vpop.f32.mrf.mxu0
        %7946 = vmatprep.mubr.f32.mxu0 0.0
        %7947 = vmatmul.mubr.f32.gmra.mxu0 %v6076
        %v7948 = vpop.f32.mrf.mxu0
        %v7949 = vadd.f32 %v7564, %v7948
        %v7950 = vpop.f32.mrf.mxu0
        %7951 = vmatprep.mubr.f32.mxu0 0.0
        %7952 = vmatmul.mubr.f32.gmra.mxu0 %v6078
        %v7953 = vpop.f32.mrf.mxu0
        %v7954 = vadd.f32 %v7569, %v7953
        %v7955 = vpop.f32.mrf.mxu0
        %7956 = vmatprep.mubr.f32.mxu0 0.0
        %7957 = vmatmul.mubr.f32.gmra.mxu0 %v6081
        %v7958 = vpop.f32.mrf.mxu0
        %v7959 = vadd.f32 %v7574, %v7958
        %v7960 = vpop.f32.mrf.mxu0
        %7961 = vmatprep.mubr.f32.mxu0 0.0
        %7962 = vmatmul.mubr.f32.gmra.mxu0 %v6083
        %v7963 = vpop.f32.mrf.mxu0
        %v7964 = vadd.f32 %v7579, %v7963
        %v7965 = vpop.f32.mrf.mxu0
        %7966 = vmatprep.mubr.f32.mxu0 0.0
        %7967 = vmatmul.mubr.f32.gmra.mxu0 %v6366
        %v7968 = vpop.f32.mrf.mxu0
        %v7969 = vadd.f32 %v7584, %v7968
        %v7970 = vpop.f32.mrf.mxu0
        %7971 = vmatprep.mubr.f32.mxu0 0.0
        %7972 = vmatmul.mubr.f32.gmra.mxu0 %v6368
        %v7973 = vpop.f32.mrf.mxu0
        %v7974 = vadd.f32 %v7589, %v7973
        %v7975 = vpop.f32.mrf.mxu0
        %7976 = vmatprep.mubr.f32.mxu0 0.0
        %7977 = vmatmul.mubr.f32.gmra.mxu0 %v6371
        %v7978 = vpop.f32.mrf.mxu0
        %v7979 = vadd.f32 %v7594, %v7978
        %v7980 = vpop.f32.mrf.mxu0
        %7981 = vmatprep.mubr.f32.mxu0 0.0
        %7982 = vmatmul.mubr.f32.gmra.mxu0 %v6373
        %v7983 = vpop.f32.mrf.mxu0
        %v7984 = vadd.f32 %v7599, %v7983
        %v7985 = vpop.f32.mrf.mxu0
        %7986 = vmatprep.mubr.f32.mxu0 0.0
        %7987 = vmatmul.mubr.f32.gmra.mxu0 %v6376
        %v7988 = vpop.f32.mrf.mxu0
        %v7989 = vadd.f32 %v7604, %v7988
        %v7990 = vpop.f32.mrf.mxu0
        %7991 = vmatprep.mubr.f32.mxu0 0.0
        %7992 = vmatmul.mubr.f32.gmra.mxu0 %v6378
        %v7993 = vpop.f32.mrf.mxu0
        %v7994 = vadd.f32 %v7609, %v7993
        %v7995 = vpop.f32.mrf.mxu0
        %7996 = vmatprep.mubr.f32.mxu0 0.0
        %7997 = vmatmul.mubr.f32.gmra.mxu0 %v6381
        %v7998 = vpop.f32.mrf.mxu0
        %v7999 = vadd.f32 %v7614, %v7998
        %v8000 = vpop.f32.mrf.mxu0
        %8001 = vmatprep.mubr.f32.mxu0 0.0
        %8002 = vmatmul.mubr.f32.gmra.mxu0 %v6383
        %v8003 = vpop.f32.mrf.mxu0
        %v8004 = vadd.f32 %v7619, %v8003
        %v8005 = vpop.f32.mrf.mxu0
        %8006 = vmatprep.mubr.f32.mxu0 0.0
        %8007 = vmatmul.mubr.f32.gmra.mxu0 %v6386
        %v8008 = vpop.f32.mrf.mxu0
        %v8009 = vadd.f32 %v7624, %v8008
        %v8010 = vpop.f32.mrf.mxu0
        %8011 = vmatprep.mubr.f32.mxu0 0.0
        %8012 = vmatmul.mubr.f32.gmra.mxu0 %v6388
        %v8013 = vpop.f32.mrf.mxu0
        %v8014 = vadd.f32 %v7629, %v8013
        %v8015 = vpop.f32.mrf.mxu0
        %8016 = vmatprep.mubr.f32.mxu0 0.0
        %8017 = vmatmul.mubr.f32.gmra.mxu0 %v6391
        %v8018 = vpop.f32.mrf.mxu0
        %v8019 = vadd.f32 %v7634, %v8018
        %v8020 = vpop.f32.mrf.mxu0
        %8021 = vmatprep.mubr.f32.mxu0 0.0
        %8022 = vmatmul.mubr.f32.gmra.mxu0 %v6393
        %v8023 = vpop.f32.mrf.mxu0
        %v8024 = vadd.f32 %v7639, %v8023
        %v8025 = vpop.f32.mrf.mxu0
        %8026 = vmatprep.mubr.f32.mxu0 0.0
        %8027 = vmatmul.mubr.f32.gmra.mxu0 %v6396
        %v8028 = vpop.f32.mrf.mxu0
        %v8029 = vadd.f32 %v7644, %v8028
        %v8030 = vpop.f32.mrf.mxu0
        %8031 = vmatprep.mubr.f32.mxu0 0.0
        %8032 = vmatmul.mubr.f32.gmra.mxu0 %v6398
        %v8033 = vpop.f32.mrf.mxu0
        %v8034 = vadd.f32 %v7649, %v8033
        %v8035 = vpop.f32.mrf.mxu0
        %8036 = vmatprep.mubr.f32.mxu0 0.0
        %8037 = vmatmul.mubr.f32.gmra.mxu0 %v6401
        %v8038 = vpop.f32.mrf.mxu0
        %v8039 = vadd.f32 %v7654, %v8038
        %v8040 = vpop.f32.mrf.mxu0
        %8041 = vmatprep.mubr.f32.mxu0 0.0
        %8042 = vmatmul.mubr.f32.gmra.mxu0 %v6403
        %v8043 = vpop.f32.mrf.mxu0
        %v8044 = vadd.f32 %v7659, %v8043
        %v8045 = vpop.f32.mrf.mxu0
        %8046 = vmatprep.mubr.f32.mxu0 0.0
        %8047 = vmatmul.mubr.f32.gmra.mxu0 %v6406
        %v8048 = vpop.f32.mrf.mxu0
        %v8049 = vadd.f32 %v7664, %v8048
        %v8050 = vpop.f32.mrf.mxu0
        %8051 = vmatprep.mubr.f32.mxu0 0.0
        %8052 = vmatmul.mubr.f32.gmra.mxu0 %v6408
        %v8053 = vpop.f32.mrf.mxu0
        %v8054 = vadd.f32 %v7669, %v8053
        %v8055 = vpop.f32.mrf.mxu0
        %8056 = vmatprep.mubr.f32.mxu0 0.0
        %8057 = vmatmul.mubr.f32.gmra.mxu0 %v6411
        %v8058 = vpop.f32.mrf.mxu0
        %v8059 = vadd.f32 %v7674, %v8058
        %v8060 = vpop.f32.mrf.mxu0
        %8061 = vmatprep.mubr.f32.mxu0 0.0
        %8062 = vmatmul.mubr.f32.gmra.mxu0 %v6413
        %v8063 = vpop.f32.mrf.mxu0
        %v8064 = vadd.f32 %v7679, %v8063
        %v8065 = vpop.f32.mrf.mxu0
        %8066 = vmatprep.mubr.f32.mxu0 0.0
        %8067 = vmatmul.mubr.f32.gmra.mxu0 %v6416
        %v8068 = vpop.f32.mrf.mxu0
        %v8069 = vadd.f32 %v7684, %v8068
        %v8070 = vpop.f32.mrf.mxu0
        %8071 = vmatprep.mubr.f32.mxu0 0.0
        %8072 = vmatmul.mubr.f32.gmra.mxu0 %v6418
        %v8073 = vpop.f32.mrf.mxu0
        %v8074 = vadd.f32 %v7689, %v8073
        %v8075 = vpop.f32.mrf.mxu0
        %8076 = vmatprep.mubr.f32.mxu0 0.0
        %8077 = vmatmul.mubr.f32.gmra.mxu0 %v6421
        %v8078 = vpop.f32.mrf.mxu0
        %v8079 = vadd.f32 %v7694, %v8078
        %v8080 = vpop.f32.mrf.mxu0
        %8081 = vmatprep.mubr.f32.mxu0 0.0
        %8082 = vmatmul.mubr.f32.gmra.mxu0 %v6423
        %v8083 = vpop.f32.mrf.mxu0
        %v8084 = vadd.f32 %v7699, %v8083
        %v8085 = vpop.f32.mrf.mxu0
        %8086 = vmatprep.mubr.f32.mxu0 0.0
        %8087 = vmatmul.mubr.f32.gmra.mxu0 %v6426
        %v8088 = vpop.f32.mrf.mxu0
        %v8089 = vadd.f32 %v7704, %v8088
        %v8090 = vpop.f32.mrf.mxu0
        %8091 = vmatprep.mubr.f32.mxu0 0.0
        %8092 = vmatmul.mubr.f32.gmra.mxu0 %v6428
        %v8093 = vpop.f32.mrf.mxu0
        %v8094 = vadd.f32 %v7709, %v8093
        %v8095 = vpop.f32.mrf.mxu0
        %8096 = vmatprep.mubr.f32.mxu0 0.0
        %8097 = vmatmul.mubr.f32.gmra.mxu0 %v6431
        %v8098 = vpop.f32.mrf.mxu0
        %v8099 = vadd.f32 %v7714, %v8098
        %v8100 = vpop.f32.mrf.mxu0
        %8101 = vmatprep.mubr.f32.mxu0 0.0
        %8102 = vmatmul.mubr.f32.gmra.mxu0 %v6433
        %v8103 = vpop.f32.mrf.mxu0
        %v8104 = vadd.f32 %v7719, %v8103
        %v8105 = vpop.f32.mrf.mxu0
        %8106 = vmatprep.mubr.f32.mxu0 0.0
        %8107 = vmatmul.mubr.f32.gmra.mxu0 %v6436
        %v8108 = vpop.f32.mrf.mxu0
        %v8109 = vadd.f32 %v7724, %v8108
        %v8110 = vpop.f32.mrf.mxu0
        %8111 = vmatprep.mubr.f32.mxu0 0.0
        %8112 = vmatmul.mubr.f32.gmra.mxu0 %v6438
        %v8113 = vpop.f32.mrf.mxu0
        %v8114 = vadd.f32 %v7729, %v8113
        %v8115 = vpop.f32.mrf.mxu0
        %8116 = vmatprep.mubr.f32.mxu0 0.0
        %8117 = vmatmul.mubr.f32.gmra.mxu0 %v6441
        %v8118 = vpop.f32.mrf.mxu0
        %v8119 = vadd.f32 %v7734, %v8118
        %v8120 = vpop.f32.mrf.mxu0
        %8121 = vmatprep.mubr.f32.mxu0 0.0
        %8122 = vmatmul.mubr.f32.gmra.mxu0 %v6443
        %v8123 = vpop.f32.mrf.mxu0
        %v8124 = vadd.f32 %v7739, %v8123
        %v8125 = vpop.f32.mrf.mxu0
        %8126 = vdwg.mxu0
        %s8127 = scalar_lea.vmem %s3, 768
        %v8128 = vld [vmem:[%s8127] sm:$0xff]
        %v8129 = vld [vmem:[%s8127 + $0x8] sm:$0xff]
        %v8130 = vld [vmem:[%s8127 + $0x10] sm:$0xff]
        %v8131 = vld [vmem:[%s8127 + $0x18] sm:$0xff]
        %v8132 = vld [vmem:[%s8127 + $0x20] sm:$0xff]
        %v8133 = vld [vmem:[%s8127 + $0x28] sm:$0xff]
        %v8134 = vld [vmem:[%s8127 + $0x30] sm:$0xff]
        %v8135 = vld [vmem:[%s8127 + $0x38] sm:$0xff]
        %v8136 = vld [vmem:[%s8127 + $0x40] sm:$0xff]
        %v8137 = vld [vmem:[%s8127 + $0x48] sm:$0xff]
        %v8138 = vld [vmem:[%s8127 + $0x50] sm:$0xff]
        %v8139 = vld [vmem:[%s8127 + $0x58] sm:$0xff]
        %v8140 = vld [vmem:[%s8127 + $0x60] sm:$0xff]
        %v8141 = vld [vmem:[%s8127 + $0x68] sm:$0xff]
        %v8142 = vld [vmem:[%s8127 + $0x70] sm:$0xff]
        %v8143 = vld [vmem:[%s8127 + $0x78] sm:$0xff]
        %v8144 = vld [vmem:[%s8127 + $0x80] sm:$0xff]
        %v8145 = vld [vmem:[%s8127 + $0x88] sm:$0xff]
        %v8146 = vld [vmem:[%s8127 + $0x90] sm:$0xff]
        %v8147 = vld [vmem:[%s8127 + $0x98] sm:$0xff]
        %v8148 = vld [vmem:[%s8127 + $0xa0] sm:$0xff]
        %v8149 = vld [vmem:[%s8127 + $0xa8] sm:$0xff]
        %v8150 = vld [vmem:[%s8127 + $0xb0] sm:$0xff]
        %v8151 = vld [vmem:[%s8127 + $0xb8] sm:$0xff]
        %v8152 = vld [vmem:[%s8127 + $0xc0] sm:$0xff]
        %v8153 = vld [vmem:[%s8127 + $0xc8] sm:$0xff]
        %v8154 = vld [vmem:[%s8127 + $0xd0] sm:$0xff]
        %v8155 = vld [vmem:[%s8127 + $0xd8] sm:$0xff]
        %v8156 = vld [vmem:[%s8127 + $0xe0] sm:$0xff]
        %v8157 = vld [vmem:[%s8127 + $0xe8] sm:$0xff]
        %v8158 = vld [vmem:[%s8127 + $0xf0] sm:$0xff]
        %v8159 = vld [vmem:[%s8127 + $0xf8] sm:$0xff]
        %v8160 = vld [vmem:[%s8127 + $0x100] sm:$0xff]
        %v8161 = vld [vmem:[%s8127 + $0x108] sm:$0xff]
        %v8162 = vld [vmem:[%s8127 + $0x110] sm:$0xff]
        %v8163 = vld [vmem:[%s8127 + $0x118] sm:$0xff]
        %v8164 = vld [vmem:[%s8127 + $0x120] sm:$0xff]
        %v8165 = vld [vmem:[%s8127 + $0x128] sm:$0xff]
        %v8166 = vld [vmem:[%s8127 + $0x130] sm:$0xff]
        %v8167 = vld [vmem:[%s8127 + $0x138] sm:$0xff]
        %v8168 = vld [vmem:[%s8127 + $0x140] sm:$0xff]
        %v8169 = vld [vmem:[%s8127 + $0x148] sm:$0xff]
        %v8170 = vld [vmem:[%s8127 + $0x150] sm:$0xff]
        %v8171 = vld [vmem:[%s8127 + $0x158] sm:$0xff]
        %v8172 = vld [vmem:[%s8127 + $0x160] sm:$0xff]
        %v8173 = vld [vmem:[%s8127 + $0x168] sm:$0xff]
        %v8174 = vld [vmem:[%s8127 + $0x170] sm:$0xff]
        %v8175 = vld [vmem:[%s8127 + $0x178] sm:$0xff]
        %8176 = vmatprep.subr.mxu0 0.0
        %8177 = vmatpush1.msra.mxu0 %v8143
        %8178 = vmatprep.subr.mxu0 0.0
        %8179 = vmatpush1.msra.mxu0 %v8142
        %8180 = vmatprep.subr.mxu0 0.0
        %8181 = vmatpush1.msra.mxu0 %v8141
        %8182 = vmatprep.subr.mxu0 0.0
        %8183 = vmatpush1.msra.mxu0 %v8140
        %8184 = vmatprep.subr.mxu0 0.0
        %8185 = vmatpush1.msra.mxu0 %v8139
        %8186 = vmatprep.subr.mxu0 0.0
        %8187 = vmatpush1.msra.mxu0 %v8138
        %8188 = vmatprep.subr.mxu0 0.0
        %8189 = vmatpush1.msra.mxu0 %v8137
        %8190 = vmatprep.subr.mxu0 0.0
        %8191 = vmatpush1.msra.mxu0 %v8136
        %8192 = vmatprep.subr.mxu0 0.0
        %8193 = vmatpush1.msra.mxu0 %v8135
        %8194 = vmatprep.subr.mxu0 0.0
        %8195 = vmatpush1.msra.mxu0 %v8134
        %8196 = vmatprep.subr.mxu0 0.0
        %8197 = vmatpush1.msra.mxu0 %v8133
        %8198 = vmatprep.subr.mxu0 0.0
        %8199 = vmatpush1.msra.mxu0 %v8132
        %8200 = vmatprep.subr.mxu0 0.0
        %8201 = vmatpush1.msra.mxu0 %v8131
        %8202 = vmatprep.subr.mxu0 0.0
        %8203 = vmatpush1.msra.mxu0 %v8130
        %8204 = vmatprep.subr.mxu0 0.0
        %8205 = vmatpush1.msra.mxu0 %v8129
        %8206 = vmatprep.subr.mxu0 0.0
        %8207 = vmatpush1.msra.mxu0 %v8128
        %8208 = vmatprep.subr.mxu0 0.0
        %8209 = vmatpush2.msra.mxu0 %v8159
        %8210 = vmatprep.subr.mxu0 0.0
        %8211 = vmatpush2.msra.mxu0 %v8158
        %8212 = vmatprep.subr.mxu0 0.0
        %8213 = vmatpush2.msra.mxu0 %v8157
        %8214 = vmatprep.subr.mxu0 0.0
        %8215 = vmatpush2.msra.mxu0 %v8156
        %8216 = vmatprep.subr.mxu0 0.0
        %8217 = vmatpush2.msra.mxu0 %v8155
        %8218 = vmatprep.subr.mxu0 0.0
        %8219 = vmatpush2.msra.mxu0 %v8154
        %8220 = vmatprep.subr.mxu0 0.0
        %8221 = vmatpush2.msra.mxu0 %v8153
        %8222 = vmatprep.subr.mxu0 0.0
        %8223 = vmatpush2.msra.mxu0 %v8152
        %8224 = vmatprep.subr.mxu0 0.0
        %8225 = vmatpush2.msra.mxu0 %v8151
        %8226 = vmatprep.subr.mxu0 0.0
        %8227 = vmatpush2.msra.mxu0 %v8150
        %8228 = vmatprep.subr.mxu0 0.0
        %8229 = vmatpush2.msra.mxu0 %v8149
        %8230 = vmatprep.subr.mxu0 0.0
        %8231 = vmatpush2.msra.mxu0 %v8148
        %8232 = vmatprep.subr.mxu0 0.0
        %8233 = vmatpush2.msra.mxu0 %v8147
        %8234 = vmatprep.subr.mxu0 0.0
        %8235 = vmatpush2.msra.mxu0 %v8146
        %8236 = vmatprep.subr.mxu0 0.0
        %8237 = vmatpush2.msra.mxu0 %v8145
        %8238 = vmatprep.subr.mxu0 0.0
        %8239 = vmatpush2.msra.mxu0 %v8144
        %8240 = vmatprep.mubr.f32.mxu0 %v5890
        %8241 = vmatmul.mubr.f32.gmra.mxu0 %v5776
        %v8242 = vpop.f32.mrf.mxu0
        %v8243 = vadd.f32 0.0, %v8242
        %v8244 = vpop.f32.mrf.mxu0
        %8245 = vmatprep.mubr.f32.mxu0 %v5892
        %8246 = vmatmul.mubr.f32.gmra.mxu0 %v5777
        %v8247 = vpop.f32.mrf.mxu0
        %v8248 = vadd.f32 0.0, %v8247
        %v8249 = vpop.f32.mrf.mxu0
        %8250 = vmatprep.mubr.f32.mxu0 %v5895
        %8251 = vmatmul.mubr.f32.gmra.mxu0 %v5779
        %v8252 = vpop.f32.mrf.mxu0
        %v8253 = vadd.f32 0.0, %v8252
        %v8254 = vpop.f32.mrf.mxu0
        %8255 = vmatprep.mubr.f32.mxu0 %v5897
        %8256 = vmatmul.mubr.f32.gmra.mxu0 %v5780
        %v8257 = vpop.f32.mrf.mxu0
        %v8258 = vadd.f32 0.0, %v8257
        %v8259 = vpop.f32.mrf.mxu0
        %8260 = vmatprep.mubr.f32.mxu0 %v5900
        %8261 = vmatmul.mubr.f32.gmra.mxu0 %v5782
        %v8262 = vpop.f32.mrf.mxu0
        %v8263 = vadd.f32 0.0, %v8262
        %v8264 = vpop.f32.mrf.mxu0
        %8265 = vmatprep.mubr.f32.mxu0 %v5902
        %8266 = vmatmul.mubr.f32.gmra.mxu0 %v5783
        %v8267 = vpop.f32.mrf.mxu0
        %v8268 = vadd.f32 0.0, %v8267
        %v8269 = vpop.f32.mrf.mxu0
        %8270 = vmatprep.mubr.f32.mxu0 %v5905
        %8271 = vmatmul.mubr.f32.gmra.mxu0 %v5785
        %v8272 = vpop.f32.mrf.mxu0
        %v8273 = vadd.f32 0.0, %v8272
        %v8274 = vpop.f32.mrf.mxu0
        %8275 = vmatprep.mubr.f32.mxu0 %v5907
        %8276 = vmatmul.mubr.f32.gmra.mxu0 %v5786
        %v8277 = vpop.f32.mrf.mxu0
        %v8278 = vadd.f32 0.0, %v8277
        %v8279 = vpop.f32.mrf.mxu0
        %8280 = vmatprep.mubr.f32.mxu0 %v5910
        %8281 = vmatmul.mubr.f32.gmra.mxu0 %v5788
        %v8282 = vpop.f32.mrf.mxu0
        %v8283 = vadd.f32 0.0, %v8282
        %v8284 = vpop.f32.mrf.mxu0
        %8285 = vmatprep.mubr.f32.mxu0 %v5912
        %8286 = vmatmul.mubr.f32.gmra.mxu0 %v5789
        %v8287 = vpop.f32.mrf.mxu0
        %v8288 = vadd.f32 0.0, %v8287
        %v8289 = vpop.f32.mrf.mxu0
        %8290 = vmatprep.mubr.f32.mxu0 %v5915
        %8291 = vmatmul.mubr.f32.gmra.mxu0 %v5791
        %v8292 = vpop.f32.mrf.mxu0
        %v8293 = vadd.f32 0.0, %v8292
        %v8294 = vpop.f32.mrf.mxu0
        %8295 = vmatprep.mubr.f32.mxu0 %v5917
        %8296 = vmatmul.mubr.f32.gmra.mxu0 %v5792
        %v8297 = vpop.f32.mrf.mxu0
        %v8298 = vadd.f32 0.0, %v8297
        %v8299 = vpop.f32.mrf.mxu0
        %8300 = vmatprep.mubr.f32.mxu0 %v5920
        %8301 = vmatmul.mubr.f32.gmra.mxu0 %v5794
        %v8302 = vpop.f32.mrf.mxu0
        %v8303 = vadd.f32 0.0, %v8302
        %v8304 = vpop.f32.mrf.mxu0
        %8305 = vmatprep.mubr.f32.mxu0 %v5922
        %8306 = vmatmul.mubr.f32.gmra.mxu0 %v5795
        %v8307 = vpop.f32.mrf.mxu0
        %v8308 = vadd.f32 0.0, %v8307
        %v8309 = vpop.f32.mrf.mxu0
        %8310 = vmatprep.mubr.f32.mxu0 %v5925
        %8311 = vmatmul.mubr.f32.gmra.mxu0 %v5797
        %v8312 = vpop.f32.mrf.mxu0
        %v8313 = vadd.f32 0.0, %v8312
        %v8314 = vpop.f32.mrf.mxu0
        %8315 = vmatprep.mubr.f32.mxu0 %v5927
        %8316 = vmatmul.mubr.f32.gmra.mxu0 %v5798
        %v8317 = vpop.f32.mrf.mxu0
        %v8318 = vadd.f32 0.0, %v8317
        %v8319 = vpop.f32.mrf.mxu0
        %8320 = vmatprep.mubr.f32.mxu0 %v5930
        %8321 = vmatmul.mubr.f32.gmra.mxu0 %v5800
        %v8322 = vpop.f32.mrf.mxu0
        %v8323 = vadd.f32 0.0, %v8322
        %v8324 = vpop.f32.mrf.mxu0
        %8325 = vmatprep.mubr.f32.mxu0 %v5932
        %8326 = vmatmul.mubr.f32.gmra.mxu0 %v5801
        %v8327 = vpop.f32.mrf.mxu0
        %v8328 = vadd.f32 0.0, %v8327
        %v8329 = vpop.f32.mrf.mxu0
        %8330 = vmatprep.mubr.f32.mxu0 %v5935
        %8331 = vmatmul.mubr.f32.gmra.mxu0 %v5803
        %v8332 = vpop.f32.mrf.mxu0
        %v8333 = vadd.f32 0.0, %v8332
        %v8334 = vpop.f32.mrf.mxu0
        %8335 = vmatprep.mubr.f32.mxu0 %v5937
        %8336 = vmatmul.mubr.f32.gmra.mxu0 %v5804
        %v8337 = vpop.f32.mrf.mxu0
        %v8338 = vadd.f32 0.0, %v8337
        %v8339 = vpop.f32.mrf.mxu0
        %8340 = vmatprep.mubr.f32.mxu0 %v5940
        %8341 = vmatmul.mubr.f32.gmra.mxu0 %v5806
        %v8342 = vpop.f32.mrf.mxu0
        %v8343 = vadd.f32 0.0, %v8342
        %v8344 = vpop.f32.mrf.mxu0
        %8345 = vmatprep.mubr.f32.mxu0 %v5942
        %8346 = vmatmul.mubr.f32.gmra.mxu0 %v5807
        %v8347 = vpop.f32.mrf.mxu0
        %v8348 = vadd.f32 0.0, %v8347
        %v8349 = vpop.f32.mrf.mxu0
        %8350 = vmatprep.mubr.f32.mxu0 %v5945
        %8351 = vmatmul.mubr.f32.gmra.mxu0 %v5809
        %v8352 = vpop.f32.mrf.mxu0
        %v8353 = vadd.f32 0.0, %v8352
        %v8354 = vpop.f32.mrf.mxu0
        %8355 = vmatprep.mubr.f32.mxu0 %v5947
        %8356 = vmatmul.mubr.f32.gmra.mxu0 %v5810
        %v8357 = vpop.f32.mrf.mxu0
        %v8358 = vadd.f32 0.0, %v8357
        %v8359 = vpop.f32.mrf.mxu0
        %8360 = vmatprep.mubr.f32.mxu0 %v5950
        %8361 = vmatmul.mubr.f32.gmra.mxu0 %v5812
        %v8362 = vpop.f32.mrf.mxu0
        %v8363 = vadd.f32 0.0, %v8362
        %v8364 = vpop.f32.mrf.mxu0
        %8365 = vmatprep.mubr.f32.mxu0 %v5952
        %8366 = vmatmul.mubr.f32.gmra.mxu0 %v5813
        %v8367 = vpop.f32.mrf.mxu0
        %v8368 = vadd.f32 0.0, %v8367
        %v8369 = vpop.f32.mrf.mxu0
        %8370 = vmatprep.mubr.f32.mxu0 %v5955
        %8371 = vmatmul.mubr.f32.gmra.mxu0 %v5815
        %v8372 = vpop.f32.mrf.mxu0
        %v8373 = vadd.f32 0.0, %v8372
        %v8374 = vpop.f32.mrf.mxu0
        %8375 = vmatprep.mubr.f32.mxu0 %v5957
        %8376 = vmatmul.mubr.f32.gmra.mxu0 %v5816
        %v8377 = vpop.f32.mrf.mxu0
        %v8378 = vadd.f32 0.0, %v8377
        %v8379 = vpop.f32.mrf.mxu0
        %8380 = vmatprep.mubr.f32.mxu0 %v5960
        %8381 = vmatmul.mubr.f32.gmra.mxu0 %v5818
        %v8382 = vpop.f32.mrf.mxu0
        %v8383 = vadd.f32 0.0, %v8382
        %v8384 = vpop.f32.mrf.mxu0
        %8385 = vmatprep.mubr.f32.mxu0 %v5962
        %8386 = vmatmul.mubr.f32.gmra.mxu0 %v5819
        %v8387 = vpop.f32.mrf.mxu0
        %v8388 = vadd.f32 0.0, %v8387
        %v8389 = vpop.f32.mrf.mxu0
        %8390 = vmatprep.mubr.f32.mxu0 %v5965
        %8391 = vmatmul.mubr.f32.gmra.mxu0 %v5821
        %v8392 = vpop.f32.mrf.mxu0
        %v8393 = vadd.f32 0.0, %v8392
        %v8394 = vpop.f32.mrf.mxu0
        %8395 = vmatprep.mubr.f32.mxu0 %v5967
        %8396 = vmatmul.mubr.f32.gmra.mxu0 %v5822
        %v8397 = vpop.f32.mrf.mxu0
        %v8398 = vadd.f32 0.0, %v8397
        %v8399 = vpop.f32.mrf.mxu0
        %8400 = vmatprep.mubr.f32.mxu0 %v6250
        %8401 = vmatmul.mubr.f32.gmra.mxu0 %v6136
        %v8402 = vpop.f32.mrf.mxu0
        %v8403 = vadd.f32 0.0, %v8402
        %v8404 = vpop.f32.mrf.mxu0
        %8405 = vmatprep.mubr.f32.mxu0 %v6252
        %8406 = vmatmul.mubr.f32.gmra.mxu0 %v6137
        %v8407 = vpop.f32.mrf.mxu0
        %v8408 = vadd.f32 0.0, %v8407
        %v8409 = vpop.f32.mrf.mxu0
        %8410 = vmatprep.mubr.f32.mxu0 %v6255
        %8411 = vmatmul.mubr.f32.gmra.mxu0 %v6139
        %v8412 = vpop.f32.mrf.mxu0
        %v8413 = vadd.f32 0.0, %v8412
        %v8414 = vpop.f32.mrf.mxu0
        %8415 = vmatprep.mubr.f32.mxu0 %v6257
        %8416 = vmatmul.mubr.f32.gmra.mxu0 %v6140
        %v8417 = vpop.f32.mrf.mxu0
        %v8418 = vadd.f32 0.0, %v8417
        %v8419 = vpop.f32.mrf.mxu0
        %8420 = vmatprep.mubr.f32.mxu0 %v6260
        %8421 = vmatmul.mubr.f32.gmra.mxu0 %v6142
        %v8422 = vpop.f32.mrf.mxu0
        %v8423 = vadd.f32 0.0, %v8422
        %v8424 = vpop.f32.mrf.mxu0
        %8425 = vmatprep.mubr.f32.mxu0 %v6262
        %8426 = vmatmul.mubr.f32.gmra.mxu0 %v6143
        %v8427 = vpop.f32.mrf.mxu0
        %v8428 = vadd.f32 0.0, %v8427
        %v8429 = vpop.f32.mrf.mxu0
        %8430 = vmatprep.mubr.f32.mxu0 %v6265
        %8431 = vmatmul.mubr.f32.gmra.mxu0 %v6145
        %v8432 = vpop.f32.mrf.mxu0
        %v8433 = vadd.f32 0.0, %v8432
        %v8434 = vpop.f32.mrf.mxu0
        %8435 = vmatprep.mubr.f32.mxu0 %v6267
        %8436 = vmatmul.mubr.f32.gmra.mxu0 %v6146
        %v8437 = vpop.f32.mrf.mxu0
        %v8438 = vadd.f32 0.0, %v8437
        %v8439 = vpop.f32.mrf.mxu0
        %8440 = vmatprep.mubr.f32.mxu0 %v6270
        %8441 = vmatmul.mubr.f32.gmra.mxu0 %v6148
        %v8442 = vpop.f32.mrf.mxu0
        %v8443 = vadd.f32 0.0, %v8442
        %v8444 = vpop.f32.mrf.mxu0
        %8445 = vmatprep.mubr.f32.mxu0 %v6272
        %8446 = vmatmul.mubr.f32.gmra.mxu0 %v6149
        %v8447 = vpop.f32.mrf.mxu0
        %v8448 = vadd.f32 0.0, %v8447
        %v8449 = vpop.f32.mrf.mxu0
        %8450 = vmatprep.mubr.f32.mxu0 %v6275
        %8451 = vmatmul.mubr.f32.gmra.mxu0 %v6151
        %v8452 = vpop.f32.mrf.mxu0
        %v8453 = vadd.f32 0.0, %v8452
        %v8454 = vpop.f32.mrf.mxu0
        %8455 = vmatprep.mubr.f32.mxu0 %v6277
        %8456 = vmatmul.mubr.f32.gmra.mxu0 %v6152
        %v8457 = vpop.f32.mrf.mxu0
        %v8458 = vadd.f32 0.0, %v8457
        %v8459 = vpop.f32.mrf.mxu0
        %8460 = vmatprep.mubr.f32.mxu0 %v6280
        %8461 = vmatmul.mubr.f32.gmra.mxu0 %v6154
        %v8462 = vpop.f32.mrf.mxu0
        %v8463 = vadd.f32 0.0, %v8462
        %v8464 = vpop.f32.mrf.mxu0
        %8465 = vmatprep.mubr.f32.mxu0 %v6282
        %8466 = vmatmul.mubr.f32.gmra.mxu0 %v6155
        %v8467 = vpop.f32.mrf.mxu0
        %v8468 = vadd.f32 0.0, %v8467
        %v8469 = vpop.f32.mrf.mxu0
        %8470 = vmatprep.mubr.f32.mxu0 %v6285
        %8471 = vmatmul.mubr.f32.gmra.mxu0 %v6157
        %v8472 = vpop.f32.mrf.mxu0
        %v8473 = vadd.f32 0.0, %v8472
        %v8474 = vpop.f32.mrf.mxu0
        %8475 = vmatprep.mubr.f32.mxu0 %v6287
        %8476 = vmatmul.mubr.f32.gmra.mxu0 %v6158
        %v8477 = vpop.f32.mrf.mxu0
        %v8478 = vadd.f32 0.0, %v8477
        %v8479 = vpop.f32.mrf.mxu0
        %8480 = vmatprep.mubr.f32.mxu0 %v6290
        %8481 = vmatmul.mubr.f32.gmra.mxu0 %v6160
        %v8482 = vpop.f32.mrf.mxu0
        %v8483 = vadd.f32 0.0, %v8482
        %v8484 = vpop.f32.mrf.mxu0
        %8485 = vmatprep.mubr.f32.mxu0 %v6292
        %8486 = vmatmul.mubr.f32.gmra.mxu0 %v6161
        %v8487 = vpop.f32.mrf.mxu0
        %v8488 = vadd.f32 0.0, %v8487
        %v8489 = vpop.f32.mrf.mxu0
        %8490 = vmatprep.mubr.f32.mxu0 %v6295
        %8491 = vmatmul.mubr.f32.gmra.mxu0 %v6163
        %v8492 = vpop.f32.mrf.mxu0
        %v8493 = vadd.f32 0.0, %v8492
        %v8494 = vpop.f32.mrf.mxu0
        %8495 = vmatprep.mubr.f32.mxu0 %v6297
        %8496 = vmatmul.mubr.f32.gmra.mxu0 %v6164
        %v8497 = vpop.f32.mrf.mxu0
        %v8498 = vadd.f32 0.0, %v8497
        %v8499 = vpop.f32.mrf.mxu0
        %8500 = vmatprep.mubr.f32.mxu0 %v6300
        %8501 = vmatmul.mubr.f32.gmra.mxu0 %v6166
        %v8502 = vpop.f32.mrf.mxu0
        %v8503 = vadd.f32 0.0, %v8502
        %v8504 = vpop.f32.mrf.mxu0
        %8505 = vmatprep.mubr.f32.mxu0 %v6302
        %8506 = vmatmul.mubr.f32.gmra.mxu0 %v6167
        %v8507 = vpop.f32.mrf.mxu0
        %v8508 = vadd.f32 0.0, %v8507
        %v8509 = vpop.f32.mrf.mxu0
        %8510 = vmatprep.mubr.f32.mxu0 %v6305
        %8511 = vmatmul.mubr.f32.gmra.mxu0 %v6169
        %v8512 = vpop.f32.mrf.mxu0
        %v8513 = vadd.f32 0.0, %v8512
        %v8514 = vpop.f32.mrf.mxu0
        %8515 = vmatprep.mubr.f32.mxu0 %v6307
        %8516 = vmatmul.mubr.f32.gmra.mxu0 %v6170
        %v8517 = vpop.f32.mrf.mxu0
        %v8518 = vadd.f32 0.0, %v8517
        %v8519 = vpop.f32.mrf.mxu0
        %8520 = vmatprep.mubr.f32.mxu0 %v6310
        %8521 = vmatmul.mubr.f32.gmra.mxu0 %v6172
        %v8522 = vpop.f32.mrf.mxu0
        %v8523 = vadd.f32 0.0, %v8522
        %v8524 = vpop.f32.mrf.mxu0
        %8525 = vmatprep.mubr.f32.mxu0 %v6312
        %8526 = vmatmul.mubr.f32.gmra.mxu0 %v6173
        %v8527 = vpop.f32.mrf.mxu0
        %v8528 = vadd.f32 0.0, %v8527
        %v8529 = vpop.f32.mrf.mxu0
        %8530 = vmatprep.mubr.f32.mxu0 %v6315
        %8531 = vmatmul.mubr.f32.gmra.mxu0 %v6175
        %v8532 = vpop.f32.mrf.mxu0
        %v8533 = vadd.f32 0.0, %v8532
        %v8534 = vpop.f32.mrf.mxu0
        %8535 = vmatprep.mubr.f32.mxu0 %v6317
        %8536 = vmatmul.mubr.f32.gmra.mxu0 %v6176
        %v8537 = vpop.f32.mrf.mxu0
        %v8538 = vadd.f32 0.0, %v8537
        %v8539 = vpop.f32.mrf.mxu0
        %8540 = vmatprep.mubr.f32.mxu0 %v6320
        %8541 = vmatmul.mubr.f32.gmra.mxu0 %v6178
        %v8542 = vpop.f32.mrf.mxu0
        %v8543 = vadd.f32 0.0, %v8542
        %v8544 = vpop.f32.mrf.mxu0
        %8545 = vmatprep.mubr.f32.mxu0 %v6322
        %8546 = vmatmul.mubr.f32.gmra.mxu0 %v6179
        %v8547 = vpop.f32.mrf.mxu0
        %v8548 = vadd.f32 0.0, %v8547
        %v8549 = vpop.f32.mrf.mxu0
        %8550 = vmatprep.mubr.f32.mxu0 %v6325
        %8551 = vmatmul.mubr.f32.gmra.mxu0 %v6181
        %v8552 = vpop.f32.mrf.mxu0
        %v8553 = vadd.f32 0.0, %v8552
        %v8554 = vpop.f32.mrf.mxu0
        %8555 = vmatprep.mubr.f32.mxu0 %v6327
        %8556 = vmatmul.mubr.f32.gmra.mxu0 %v6182
        %v8557 = vpop.f32.mrf.mxu0
        %v8558 = vadd.f32 0.0, %v8557
        %v8559 = vpop.f32.mrf.mxu0
        %8560 = vdwg.mxu0
        %8561 = vmatprep.subr.mxu0 0.0
        %8562 = vmatpush1.msra.mxu0 %v8175
        %8563 = vmatprep.subr.mxu0 0.0
        %8564 = vmatpush1.msra.mxu0 %v8174
        %8565 = vmatprep.subr.mxu0 0.0
        %8566 = vmatpush1.msra.mxu0 %v8173
        %8567 = vmatprep.subr.mxu0 0.0
        %8568 = vmatpush1.msra.mxu0 %v8172
        %8569 = vmatprep.subr.mxu0 0.0
        %8570 = vmatpush1.msra.mxu0 %v8171
        %8571 = vmatprep.subr.mxu0 0.0
        %8572 = vmatpush1.msra.mxu0 %v8170
        %8573 = vmatprep.subr.mxu0 0.0
        %8574 = vmatpush1.msra.mxu0 %v8169
        %8575 = vmatprep.subr.mxu0 0.0
        %8576 = vmatpush1.msra.mxu0 %v8168
        %8577 = vmatprep.subr.mxu0 0.0
        %8578 = vmatpush1.msra.mxu0 %v8167
        %8579 = vmatprep.subr.mxu0 0.0
        %8580 = vmatpush1.msra.mxu0 %v8166
        %8581 = vmatprep.subr.mxu0 0.0
        %8582 = vmatpush1.msra.mxu0 %v8165
        %8583 = vmatprep.subr.mxu0 0.0
        %8584 = vmatpush1.msra.mxu0 %v8164
        %8585 = vmatprep.subr.mxu0 0.0
        %8586 = vmatpush1.msra.mxu0 %v8163
        %8587 = vmatprep.subr.mxu0 0.0
        %8588 = vmatpush1.msra.mxu0 %v8162
        %8589 = vmatprep.subr.mxu0 0.0
        %8590 = vmatpush1.msra.mxu0 %v8161
        %8591 = vmatprep.subr.mxu0 0.0
        %8592 = vmatpush1.msra.mxu0 %v8160
        %8593 = vmatprep.subr.mxu0 0.0
        %8594 = vmatpush2.msra.mxu0 0.0
        %8595 = vmatprep.subr.mxu0 0.0
        %8596 = vmatpush2.msra.mxu0 0.0
        %8597 = vmatprep.subr.mxu0 0.0
        %8598 = vmatpush2.msra.mxu0 0.0
        %8599 = vmatprep.subr.mxu0 0.0
        %8600 = vmatpush2.msra.mxu0 0.0
        %8601 = vmatprep.subr.mxu0 0.0
        %8602 = vmatpush2.msra.mxu0 0.0
        %8603 = vmatprep.subr.mxu0 0.0
        %8604 = vmatpush2.msra.mxu0 0.0
        %8605 = vmatprep.subr.mxu0 0.0
        %8606 = vmatpush2.msra.mxu0 0.0
        %8607 = vmatprep.subr.mxu0 0.0
        %8608 = vmatpush2.msra.mxu0 0.0
        %8609 = vmatprep.subr.mxu0 0.0
        %8610 = vmatpush2.msra.mxu0 0.0
        %8611 = vmatprep.subr.mxu0 0.0
        %8612 = vmatpush2.msra.mxu0 0.0
        %8613 = vmatprep.subr.mxu0 0.0
        %8614 = vmatpush2.msra.mxu0 0.0
        %8615 = vmatprep.subr.mxu0 0.0
        %8616 = vmatpush2.msra.mxu0 0.0
        %8617 = vmatprep.subr.mxu0 0.0
        %8618 = vmatpush2.msra.mxu0 0.0
        %8619 = vmatprep.subr.mxu0 0.0
        %8620 = vmatpush2.msra.mxu0 0.0
        %8621 = vmatprep.subr.mxu0 0.0
        %8622 = vmatpush2.msra.mxu0 0.0
        %8623 = vmatprep.subr.mxu0 0.0
        %8624 = vmatpush2.msra.mxu0 0.0
        %8625 = vmatprep.mubr.f32.mxu0 0.0
        %8626 = vmatmul.mubr.f32.gmra.mxu0 %v6016
        %v8627 = vpop.f32.mrf.mxu0
        %v8628 = vadd.f32 %v8243, %v8627
        %v8629 = vpop.f32.mrf.mxu0
        %8630 = vmatprep.mubr.f32.mxu0 0.0
        %8631 = vmatmul.mubr.f32.gmra.mxu0 %v6018
        %v8632 = vpop.f32.mrf.mxu0
        %v8633 = vadd.f32 %v8248, %v8632
        %v8634 = vpop.f32.mrf.mxu0
        %8635 = vmatprep.mubr.f32.mxu0 0.0
        %8636 = vmatmul.mubr.f32.gmra.mxu0 %v6021
        %v8637 = vpop.f32.mrf.mxu0
        %v8638 = vadd.f32 %v8253, %v8637
        %v8639 = vpop.f32.mrf.mxu0
        %8640 = vmatprep.mubr.f32.mxu0 0.0
        %8641 = vmatmul.mubr.f32.gmra.mxu0 %v6023
        %v8642 = vpop.f32.mrf.mxu0
        %v8643 = vadd.f32 %v8258, %v8642
        %v8644 = vpop.f32.mrf.mxu0
        %8645 = vmatprep.mubr.f32.mxu0 0.0
        %8646 = vmatmul.mubr.f32.gmra.mxu0 %v6026
        %v8647 = vpop.f32.mrf.mxu0
        %v8648 = vadd.f32 %v8263, %v8647
        %v8649 = vpop.f32.mrf.mxu0
        %8650 = vmatprep.mubr.f32.mxu0 0.0
        %8651 = vmatmul.mubr.f32.gmra.mxu0 %v6028
        %v8652 = vpop.f32.mrf.mxu0
        %v8653 = vadd.f32 %v8268, %v8652
        %v8654 = vpop.f32.mrf.mxu0
        %8655 = vmatprep.mubr.f32.mxu0 0.0
        %8656 = vmatmul.mubr.f32.gmra.mxu0 %v6031
        %v8657 = vpop.f32.mrf.mxu0
        %v8658 = vadd.f32 %v8273, %v8657
        %v8659 = vpop.f32.mrf.mxu0
        %8660 = vmatprep.mubr.f32.mxu0 0.0
        %8661 = vmatmul.mubr.f32.gmra.mxu0 %v6033
        %v8662 = vpop.f32.mrf.mxu0
        %v8663 = vadd.f32 %v8278, %v8662
        %v8664 = vpop.f32.mrf.mxu0
        %8665 = vmatprep.mubr.f32.mxu0 0.0
        %8666 = vmatmul.mubr.f32.gmra.mxu0 %v6036
        %v8667 = vpop.f32.mrf.mxu0
        %v8668 = vadd.f32 %v8283, %v8667
        %v8669 = vpop.f32.mrf.mxu0
        %8670 = vmatprep.mubr.f32.mxu0 0.0
        %8671 = vmatmul.mubr.f32.gmra.mxu0 %v6038
        %v8672 = vpop.f32.mrf.mxu0
        %v8673 = vadd.f32 %v8288, %v8672
        %v8674 = vpop.f32.mrf.mxu0
        %8675 = vmatprep.mubr.f32.mxu0 0.0
        %8676 = vmatmul.mubr.f32.gmra.mxu0 %v6041
        %v8677 = vpop.f32.mrf.mxu0
        %v8678 = vadd.f32 %v8293, %v8677
        %v8679 = vpop.f32.mrf.mxu0
        %8680 = vmatprep.mubr.f32.mxu0 0.0
        %8681 = vmatmul.mubr.f32.gmra.mxu0 %v6043
        %v8682 = vpop.f32.mrf.mxu0
        %v8683 = vadd.f32 %v8298, %v8682
        %v8684 = vpop.f32.mrf.mxu0
        %8685 = vmatprep.mubr.f32.mxu0 0.0
        %8686 = vmatmul.mubr.f32.gmra.mxu0 %v6046
        %v8687 = vpop.f32.mrf.mxu0
        %v8688 = vadd.f32 %v8303, %v8687
        %v8689 = vpop.f32.mrf.mxu0
        %8690 = vmatprep.mubr.f32.mxu0 0.0
        %8691 = vmatmul.mubr.f32.gmra.mxu0 %v6048
        %v8692 = vpop.f32.mrf.mxu0
        %v8693 = vadd.f32 %v8308, %v8692
        %v8694 = vpop.f32.mrf.mxu0
        %8695 = vmatprep.mubr.f32.mxu0 0.0
        %8696 = vmatmul.mubr.f32.gmra.mxu0 %v6051
        %v8697 = vpop.f32.mrf.mxu0
        %v8698 = vadd.f32 %v8313, %v8697
        %v8699 = vpop.f32.mrf.mxu0
        %8700 = vmatprep.mubr.f32.mxu0 0.0
        %8701 = vmatmul.mubr.f32.gmra.mxu0 %v6053
        %v8702 = vpop.f32.mrf.mxu0
        %v8703 = vadd.f32 %v8318, %v8702
        %v8704 = vpop.f32.mrf.mxu0
        %8705 = vmatprep.mubr.f32.mxu0 0.0
        %8706 = vmatmul.mubr.f32.gmra.mxu0 %v6056
        %v8707 = vpop.f32.mrf.mxu0
        %v8708 = vadd.f32 %v8323, %v8707
        %v8709 = vpop.f32.mrf.mxu0
        %8710 = vmatprep.mubr.f32.mxu0 0.0
        %8711 = vmatmul.mubr.f32.gmra.mxu0 %v6058
        %v8712 = vpop.f32.mrf.mxu0
        %v8713 = vadd.f32 %v8328, %v8712
        %v8714 = vpop.f32.mrf.mxu0
        %8715 = vmatprep.mubr.f32.mxu0 0.0
        %8716 = vmatmul.mubr.f32.gmra.mxu0 %v6061
        %v8717 = vpop.f32.mrf.mxu0
        %v8718 = vadd.f32 %v8333, %v8717
        %v8719 = vpop.f32.mrf.mxu0
        %8720 = vmatprep.mubr.f32.mxu0 0.0
        %8721 = vmatmul.mubr.f32.gmra.mxu0 %v6063
        %v8722 = vpop.f32.mrf.mxu0
        %v8723 = vadd.f32 %v8338, %v8722
        %v8724 = vpop.f32.mrf.mxu0
        %8725 = vmatprep.mubr.f32.mxu0 0.0
        %8726 = vmatmul.mubr.f32.gmra.mxu0 %v6066
        %v8727 = vpop.f32.mrf.mxu0
        %v8728 = vadd.f32 %v8343, %v8727
        %v8729 = vpop.f32.mrf.mxu0
        %8730 = vmatprep.mubr.f32.mxu0 0.0
        %8731 = vmatmul.mubr.f32.gmra.mxu0 %v6068
        %v8732 = vpop.f32.mrf.mxu0
        %v8733 = vadd.f32 %v8348, %v8732
        %v8734 = vpop.f32.mrf.mxu0
        %8735 = vmatprep.mubr.f32.mxu0 0.0
        %8736 = vmatmul.mubr.f32.gmra.mxu0 %v6071
        %v8737 = vpop.f32.mrf.mxu0
        %v8738 = vadd.f32 %v8353, %v8737
        %v8739 = vpop.f32.mrf.mxu0
        %8740 = vmatprep.mubr.f32.mxu0 0.0
        %8741 = vmatmul.mubr.f32.gmra.mxu0 %v6073
        %v8742 = vpop.f32.mrf.mxu0
        %v8743 = vadd.f32 %v8358, %v8742
        %v8744 = vpop.f32.mrf.mxu0
        %8745 = vmatprep.mubr.f32.mxu0 0.0
        %8746 = vmatmul.mubr.f32.gmra.mxu0 %v6076
        %v8747 = vpop.f32.mrf.mxu0
        %v8748 = vadd.f32 %v8363, %v8747
        %v8749 = vpop.f32.mrf.mxu0
        %8750 = vmatprep.mubr.f32.mxu0 0.0
        %8751 = vmatmul.mubr.f32.gmra.mxu0 %v6078
        %v8752 = vpop.f32.mrf.mxu0
        %v8753 = vadd.f32 %v8368, %v8752
        %v8754 = vpop.f32.mrf.mxu0
        %8755 = vmatprep.mubr.f32.mxu0 0.0
        %8756 = vmatmul.mubr.f32.gmra.mxu0 %v6081
        %v8757 = vpop.f32.mrf.mxu0
        %v8758 = vadd.f32 %v8373, %v8757
        %v8759 = vpop.f32.mrf.mxu0
        %8760 = vmatprep.mubr.f32.mxu0 0.0
        %8761 = vmatmul.mubr.f32.gmra.mxu0 %v6083
        %v8762 = vpop.f32.mrf.mxu0
        %v8763 = vadd.f32 %v8378, %v8762
        %v8764 = vpop.f32.mrf.mxu0
        %8765 = vmatprep.mubr.f32.mxu0 0.0
        %8766 = vmatmul.mubr.f32.gmra.mxu0 %v6086
        %v8767 = vpop.f32.mrf.mxu0
        %v8768 = vadd.f32 %v8383, %v8767
        %v8769 = vpop.f32.mrf.mxu0
        %8770 = vmatprep.mubr.f32.mxu0 0.0
        %8771 = vmatmul.mubr.f32.gmra.mxu0 %v6088
        %v8772 = vpop.f32.mrf.mxu0
        %v8773 = vadd.f32 %v8388, %v8772
        %v8774 = vpop.f32.mrf.mxu0
        %8775 = vmatprep.mubr.f32.mxu0 0.0
        %8776 = vmatmul.mubr.f32.gmra.mxu0 %v6091
        %v8777 = vpop.f32.mrf.mxu0
        %v8778 = vadd.f32 %v8393, %v8777
        %v8779 = vpop.f32.mrf.mxu0
        %8780 = vmatprep.mubr.f32.mxu0 0.0
        %8781 = vmatmul.mubr.f32.gmra.mxu0 %v6093
        %v8782 = vpop.f32.mrf.mxu0
        %v8783 = vadd.f32 %v8398, %v8782
        %v8784 = vpop.f32.mrf.mxu0
        %8785 = vmatprep.mubr.f32.mxu0 0.0
        %8786 = vmatmul.mubr.f32.gmra.mxu0 %v6376
        %v8787 = vpop.f32.mrf.mxu0
        %v8788 = vadd.f32 %v8403, %v8787
        %v8789 = vpop.f32.mrf.mxu0
        %8790 = vmatprep.mubr.f32.mxu0 0.0
        %8791 = vmatmul.mubr.f32.gmra.mxu0 %v6378
        %v8792 = vpop.f32.mrf.mxu0
        %v8793 = vadd.f32 %v8408, %v8792
        %v8794 = vpop.f32.mrf.mxu0
        %8795 = vmatprep.mubr.f32.mxu0 0.0
        %8796 = vmatmul.mubr.f32.gmra.mxu0 %v6381
        %v8797 = vpop.f32.mrf.mxu0
        %v8798 = vadd.f32 %v8413, %v8797
        %v8799 = vpop.f32.mrf.mxu0
        %8800 = vmatprep.mubr.f32.mxu0 0.0
        %8801 = vmatmul.mubr.f32.gmra.mxu0 %v6383
        %v8802 = vpop.f32.mrf.mxu0
        %v8803 = vadd.f32 %v8418, %v8802
        %v8804 = vpop.f32.mrf.mxu0
        %8805 = vmatprep.mubr.f32.mxu0 0.0
        %8806 = vmatmul.mubr.f32.gmra.mxu0 %v6386
        %v8807 = vpop.f32.mrf.mxu0
        %v8808 = vadd.f32 %v8423, %v8807
        %v8809 = vpop.f32.mrf.mxu0
        %8810 = vmatprep.mubr.f32.mxu0 0.0
        %8811 = vmatmul.mubr.f32.gmra.mxu0 %v6388
        %v8812 = vpop.f32.mrf.mxu0
        %v8813 = vadd.f32 %v8428, %v8812
        %v8814 = vpop.f32.mrf.mxu0
        %8815 = vmatprep.mubr.f32.mxu0 0.0
        %8816 = vmatmul.mubr.f32.gmra.mxu0 %v6391
        %v8817 = vpop.f32.mrf.mxu0
        %v8818 = vadd.f32 %v8433, %v8817
        %v8819 = vpop.f32.mrf.mxu0
        %8820 = vmatprep.mubr.f32.mxu0 0.0
        %8821 = vmatmul.mubr.f32.gmra.mxu0 %v6393
        %v8822 = vpop.f32.mrf.mxu0
        %v8823 = vadd.f32 %v8438, %v8822
        %v8824 = vpop.f32.mrf.mxu0
        %8825 = vmatprep.mubr.f32.mxu0 0.0
        %8826 = vmatmul.mubr.f32.gmra.mxu0 %v6396
        %v8827 = vpop.f32.mrf.mxu0
        %v8828 = vadd.f32 %v8443, %v8827
        %v8829 = vpop.f32.mrf.mxu0
        %8830 = vmatprep.mubr.f32.mxu0 0.0
        %8831 = vmatmul.mubr.f32.gmra.mxu0 %v6398
        %v8832 = vpop.f32.mrf.mxu0
        %v8833 = vadd.f32 %v8448, %v8832
        %v8834 = vpop.f32.mrf.mxu0
        %8835 = vmatprep.mubr.f32.mxu0 0.0
        %8836 = vmatmul.mubr.f32.gmra.mxu0 %v6401
        %v8837 = vpop.f32.mrf.mxu0
        %v8838 = vadd.f32 %v8453, %v8837
        %v8839 = vpop.f32.mrf.mxu0
        %8840 = vmatprep.mubr.f32.mxu0 0.0
        %8841 = vmatmul.mubr.f32.gmra.mxu0 %v6403
        %v8842 = vpop.f32.mrf.mxu0
        %v8843 = vadd.f32 %v8458, %v8842
        %v8844 = vpop.f32.mrf.mxu0
        %8845 = vmatprep.mubr.f32.mxu0 0.0
        %8846 = vmatmul.mubr.f32.gmra.mxu0 %v6406
        %v8847 = vpop.f32.mrf.mxu0
        %v8848 = vadd.f32 %v8463, %v8847
        %v8849 = vpop.f32.mrf.mxu0
        %8850 = vmatprep.mubr.f32.mxu0 0.0
        %8851 = vmatmul.mubr.f32.gmra.mxu0 %v6408
        %v8852 = vpop.f32.mrf.mxu0
        %v8853 = vadd.f32 %v8468, %v8852
        %v8854 = vpop.f32.mrf.mxu0
        %8855 = vmatprep.mubr.f32.mxu0 0.0
        %8856 = vmatmul.mubr.f32.gmra.mxu0 %v6411
        %v8857 = vpop.f32.mrf.mxu0
        %v8858 = vadd.f32 %v8473, %v8857
        %v8859 = vpop.f32.mrf.mxu0
        %8860 = vmatprep.mubr.f32.mxu0 0.0
        %8861 = vmatmul.mubr.f32.gmra.mxu0 %v6413
        %v8862 = vpop.f32.mrf.mxu0
        %v8863 = vadd.f32 %v8478, %v8862
        %v8864 = vpop.f32.mrf.mxu0
        %8865 = vmatprep.mubr.f32.mxu0 0.0
        %8866 = vmatmul.mubr.f32.gmra.mxu0 %v6416
        %v8867 = vpop.f32.mrf.mxu0
        %v8868 = vadd.f32 %v8483, %v8867
        %v8869 = vpop.f32.mrf.mxu0
        %8870 = vmatprep.mubr.f32.mxu0 0.0
        %8871 = vmatmul.mubr.f32.gmra.mxu0 %v6418
        %v8872 = vpop.f32.mrf.mxu0
        %v8873 = vadd.f32 %v8488, %v8872
        %v8874 = vpop.f32.mrf.mxu0
        %8875 = vmatprep.mubr.f32.mxu0 0.0
        %8876 = vmatmul.mubr.f32.gmra.mxu0 %v6421
        %v8877 = vpop.f32.mrf.mxu0
        %v8878 = vadd.f32 %v8493, %v8877
        %v8879 = vpop.f32.mrf.mxu0
        %8880 = vmatprep.mubr.f32.mxu0 0.0
        %8881 = vmatmul.mubr.f32.gmra.mxu0 %v6423
        %v8882 = vpop.f32.mrf.mxu0
        %v8883 = vadd.f32 %v8498, %v8882
        %v8884 = vpop.f32.mrf.mxu0
        %8885 = vmatprep.mubr.f32.mxu0 0.0
        %8886 = vmatmul.mubr.f32.gmra.mxu0 %v6426
        %v8887 = vpop.f32.mrf.mxu0
        %v8888 = vadd.f32 %v8503, %v8887
        %v8889 = vpop.f32.mrf.mxu0
        %8890 = vmatprep.mubr.f32.mxu0 0.0
        %8891 = vmatmul.mubr.f32.gmra.mxu0 %v6428
        %v8892 = vpop.f32.mrf.mxu0
        %v8893 = vadd.f32 %v8508, %v8892
        %v8894 = vpop.f32.mrf.mxu0
        %8895 = vmatprep.mubr.f32.mxu0 0.0
        %8896 = vmatmul.mubr.f32.gmra.mxu0 %v6431
        %v8897 = vpop.f32.mrf.mxu0
        %v8898 = vadd.f32 %v8513, %v8897
        %v8899 = vpop.f32.mrf.mxu0
        %8900 = vmatprep.mubr.f32.mxu0 0.0
        %8901 = vmatmul.mubr.f32.gmra.mxu0 %v6433
        %v8902 = vpop.f32.mrf.mxu0
        %v8903 = vadd.f32 %v8518, %v8902
        %v8904 = vpop.f32.mrf.mxu0
        %8905 = vmatprep.mubr.f32.mxu0 0.0
        %8906 = vmatmul.mubr.f32.gmra.mxu0 %v6436
        %v8907 = vpop.f32.mrf.mxu0
        %v8908 = vadd.f32 %v8523, %v8907
        %v8909 = vpop.f32.mrf.mxu0
        %8910 = vmatprep.mubr.f32.mxu0 0.0
        %8911 = vmatmul.mubr.f32.gmra.mxu0 %v6438
        %v8912 = vpop.f32.mrf.mxu0
        %v8913 = vadd.f32 %v8528, %v8912
        %v8914 = vpop.f32.mrf.mxu0
        %8915 = vmatprep.mubr.f32.mxu0 0.0
        %8916 = vmatmul.mubr.f32.gmra.mxu0 %v6441
        %v8917 = vpop.f32.mrf.mxu0
        %v8918 = vadd.f32 %v8533, %v8917
        %v8919 = vpop.f32.mrf.mxu0
        %8920 = vmatprep.mubr.f32.mxu0 0.0
        %8921 = vmatmul.mubr.f32.gmra.mxu0 %v6443
        %v8922 = vpop.f32.mrf.mxu0
        %v8923 = vadd.f32 %v8538, %v8922
        %v8924 = vpop.f32.mrf.mxu0
        %8925 = vmatprep.mubr.f32.mxu0 0.0
        %8926 = vmatmul.mubr.f32.gmra.mxu0 %v6446
        %v8927 = vpop.f32.mrf.mxu0
        %v8928 = vadd.f32 %v8543, %v8927
        %v8929 = vpop.f32.mrf.mxu0
        %8930 = vmatprep.mubr.f32.mxu0 0.0
        %8931 = vmatmul.mubr.f32.gmra.mxu0 %v6448
        %v8932 = vpop.f32.mrf.mxu0
        %v8933 = vadd.f32 %v8548, %v8932
        %v8934 = vpop.f32.mrf.mxu0
        %8935 = vmatprep.mubr.f32.mxu0 0.0
        %8936 = vmatmul.mubr.f32.gmra.mxu0 %v6451
        %v8937 = vpop.f32.mrf.mxu0
        %v8938 = vadd.f32 %v8553, %v8937
        %v8939 = vpop.f32.mrf.mxu0
        %8940 = vmatprep.mubr.f32.mxu0 0.0
        %8941 = vmatmul.mubr.f32.gmra.mxu0 %v6453
        %v8942 = vpop.f32.mrf.mxu0
        %v8943 = vadd.f32 %v8558, %v8942
        %v8944 = vpop.f32.mrf.mxu0
        %8945 = vdwg.mxu0
        %v8946 = vadd.f32 %v7809, %v8628
        %v8947 = vadd.f32 %v7814, %v8633
        %v8948 = vadd.f32 %v7819, %v8638
        %v8949 = vadd.f32 %v7824, %v8643
        %v8950 = vadd.f32 %v7829, %v8648
        %v8951 = vadd.f32 %v7834, %v8653
        %v8952 = vadd.f32 %v7839, %v8658
        %v8953 = vadd.f32 %v7844, %v8663
        %v8954 = vadd.f32 %v7849, %v8668
        %v8955 = vadd.f32 %v7854, %v8673
        %v8956 = vadd.f32 %v7859, %v8678
        %v8957 = vadd.f32 %v7864, %v8683
        %v8958 = vadd.f32 %v7869, %v8688
        %v8959 = vadd.f32 %v7874, %v8693
        %v8960 = vadd.f32 %v7879, %v8698
        %v8961 = vadd.f32 %v7884, %v8703
        %v8962 = vadd.f32 %v7889, %v8708
        %v8963 = vadd.f32 %v7894, %v8713
        %v8964 = vadd.f32 %v7899, %v8718
        %v8965 = vadd.f32 %v7904, %v8723
        %v8966 = vadd.f32 %v7909, %v8728
        %v8967 = vadd.f32 %v7914, %v8733
        %v8968 = vadd.f32 %v7919, %v8738
        %v8969 = vadd.f32 %v7924, %v8743
        %v8970 = vadd.f32 %v7929, %v8748
        %v8971 = vadd.f32 %v7934, %v8753
        %v8972 = vadd.f32 %v7939, %v8758
        %v8973 = vadd.f32 %v7944, %v8763
        %v8974 = vadd.f32 %v7949, %v8768
        %v8975 = vadd.f32 %v7954, %v8773
        %v8976 = vadd.f32 %v7959, %v8778
        %v8977 = vadd.f32 %v7964, %v8783
        %v8978 = vadd.f32 %v7969, %v8788
        %v8979 = vadd.f32 %v7974, %v8793
        %v8980 = vadd.f32 %v7979, %v8798
        %v8981 = vadd.f32 %v7984, %v8803
        %v8982 = vadd.f32 %v7989, %v8808
        %v8983 = vadd.f32 %v7994, %v8813
        %v8984 = vadd.f32 %v7999, %v8818
        %v8985 = vadd.f32 %v8004, %v8823
        %v8986 = vadd.f32 %v8009, %v8828
        %v8987 = vadd.f32 %v8014, %v8833
        %v8988 = vadd.f32 %v8019, %v8838
        %v8989 = vadd.f32 %v8024, %v8843
        %v8990 = vadd.f32 %v8029, %v8848
        %v8991 = vadd.f32 %v8034, %v8853
        %v8992 = vadd.f32 %v8039, %v8858
        %v8993 = vadd.f32 %v8044, %v8863
        %v8994 = vadd.f32 %v8049, %v8868
        %v8995 = vadd.f32 %v8054, %v8873
        %v8996 = vadd.f32 %v8059, %v8878
        %v8997 = vadd.f32 %v8064, %v8883
        %v8998 = vadd.f32 %v8069, %v8888
        %v8999 = vadd.f32 %v8074, %v8893
        %v9000 = vadd.f32 %v8079, %v8898
        %v9001 = vadd.f32 %v8084, %v8903
        %v9002 = vadd.f32 %v8089, %v8908
        %v9003 = vadd.f32 %v8094, %v8913
        %v9004 = vadd.f32 %v8099, %v8918
        %v9005 = vadd.f32 %v8104, %v8923
        %v9006 = vadd.f32 %v8109, %v8928
        %v9007 = vadd.f32 %v8114, %v8933
        %v9008 = vadd.f32 %v8119, %v8938
        %v9009 = vadd.f32 %v8124, %v8943
        %v9010 = vld [vmem:[%s5] sm:$0xf]
        %v9011 = vld [vmem:[%s4] sm:$0x1]
        %v9013 = vlaneseq
        %v9014 = vshrl.u32 %v9013, 7
        %v9015 = vsub.s32 0, %v9014
        %v9016 = vrot.slane %v9011, %v9015
        %v9019 = vsel %vm2129, %v283, 0
        %v9022 = vsel %vm2129, %v284, 0
        %v9025 = vsel %vm2129, %v285, 0
        %v9028 = vsel %vm2129, %v286, 0
        %v9031 = vsel %vm2129, %v287, 0
        %v9034 = vsel %vm2129, %v288, 0
        %v9037 = vsel %vm2129, %v289, 0
        %v9040 = vsel %vm2129, %v290, 0
        %v9043 = vsel %vm2129, %v291, 0
        %v9046 = vsel %vm2129, %v292, 0
        %v9049 = vsel %vm2129, %v293, 0
        %v9052 = vsel %vm2129, %v294, 0
        %v9055 = vsel %vm2129, %v295, 0
        %v9058 = vsel %vm2129, %v296, 0
        %v9061 = vsel %vm2129, %v297, 0
        %v9064 = vsel %vm2129, %v298, 0
        %v9067 = vsel %vm2129, %v299, 0
        %v9070 = vsel %vm2129, %v300, 0
        %v9073 = vsel %vm2129, %v301, 0
        %v9076 = vsel %vm2129, %v302, 0
        %v9079 = vsel %vm2129, %v303, 0
        %v9082 = vsel %vm2129, %v304, 0
        %v9085 = vsel %vm2129, %v305, 0
        %v9088 = vsel %vm2129, %v306, 0
        %v9091 = vsel %vm2129, %v307, 0
        %v9094 = vsel %vm2129, %v308, 0
        %v9097 = vsel %vm2129, %v309, 0
        %v9100 = vsel %vm2129, %v310, 0
        %v9103 = vsel %vm2129, %v311, 0
        %v9106 = vsel %vm2129, %v312, 0
        %v9109 = vsel %vm2129, %v313, 0
        %v9112 = vsel %vm2129, %v314, 0
        %v9115 = vsel %vm2129, %v315, 0
        %v9118 = vsel %vm2129, %v316, 0
        %v9121 = vsel %vm2129, %v317, 0
        %v9124 = vsel %vm2129, %v318, 0
        %v9127 = vsel %vm2129, %v319, 0
        %v9130 = vsel %vm2129, %v320, 0
        %v9133 = vsel %vm2129, %v321, 0
        %v9136 = vsel %vm2129, %v322, 0
        %v9139 = vsel %vm2129, %v323, 0
        %v9142 = vsel %vm2129, %v324, 0
        %v9145 = vsel %vm2129, %v325, 0
        %v9148 = vsel %vm2129, %v326, 0
        %v9151 = vsel %vm2129, %v327, 0
        %v9154 = vsel %vm2129, %v328, 0
        %v9157 = vsel %vm2129, %v329, 0
        %v9160 = vsel %vm2129, %v330, 0
        %v9163 = vsel %vm2129, %v331, 0
        %v9166 = vsel %vm2129, %v332, 0
        %v9169 = vsel %vm2129, %v333, 0
        %v9172 = vsel %vm2129, %v334, 0
        %v9175 = vsel %vm2129, %v335, 0
        %v9178 = vsel %vm2129, %v336, 0
        %v9181 = vsel %vm2129, %v337, 0
        %v9184 = vsel %vm2129, %v338, 0
        %v9187 = vsel %vm2129, %v339, 0
        %v9190 = vsel %vm2129, %v340, 0
        %v9193 = vsel %vm2129, %v341, 0
        %v9196 = vsel %vm2129, %v342, 0
        %v9199 = vsel %vm2129, %v343, 0
        %v9202 = vsel %vm2129, %v344, 0
        %v9205 = vsel %vm2129, %v345, 0
        %v9208 = vsel %vm2129, %v346, 0
        %v9211 = vsel %vm4837, %v9010, 0
        %9213 = vmatprep.subr.mxu0 0.0
        %9214 = vmatpush1.msra.mxu0 0.0
        %9215 = vmatprep.subr.mxu0 0.0
        %9216 = vmatpush1.msra.mxu0 0.0
        %9217 = vmatprep.subr.mxu0 0.0
        %9218 = vmatpush1.msra.mxu0 0.0
        %9219 = vmatprep.subr.mxu0 0.0
        %9220 = vmatpush1.msra.mxu0 0.0
        %9221 = vmatprep.subr.mxu0 0.0
        %9222 = vmatpush1.msra.mxu0 0.0
        %9223 = vmatprep.subr.mxu0 0.0
        %9224 = vmatpush1.msra.mxu0 0.0
        %9225 = vmatprep.subr.mxu0 0.0
        %9226 = vmatpush1.msra.mxu0 0.0
        %9227 = vmatprep.subr.mxu0 0.0
        %9228 = vmatpush1.msra.mxu0 0.0
        %9229 = vmatprep.subr.mxu0 0.0
        %9230 = vmatpush1.msra.mxu0 0.0
        %9231 = vmatprep.subr.mxu0 0.0
        %9232 = vmatpush1.msra.mxu0 0.0
        %9233 = vmatprep.subr.mxu0 0.0
        %9234 = vmatpush1.msra.mxu0 0.0
        %9235 = vmatprep.subr.mxu0 0.0
        %9236 = vmatpush1.msra.mxu0 0.0
        %9237 = vmatprep.subr.mxu0 0.0
        %9238 = vmatpush1.msra.mxu0 0.0
        %9239 = vmatprep.subr.mxu0 0.0
        %9240 = vmatpush1.msra.mxu0 0.0
        %9241 = vmatprep.subr.mxu0 0.0
        %9242 = vmatpush1.msra.mxu0 0.0
        %9243 = vmatprep.subr.mxu0 0.0
        %9244 = vmatpush1.msra.mxu0 %v9211
        %9245 = vmatprep.subr.mxu0 0.0
        %9246 = vmatpush2.msra.mxu0 0.0
        %9247 = vmatprep.subr.mxu0 0.0
        %9248 = vmatpush2.msra.mxu0 0.0
        %9249 = vmatprep.subr.mxu0 0.0
        %9250 = vmatpush2.msra.mxu0 0.0
        %9251 = vmatprep.subr.mxu0 0.0
        %9252 = vmatpush2.msra.mxu0 0.0
        %9253 = vmatprep.subr.mxu0 0.0
        %9254 = vmatpush2.msra.mxu0 0.0
        %9255 = vmatprep.subr.mxu0 0.0
        %9256 = vmatpush2.msra.mxu0 0.0
        %9257 = vmatprep.subr.mxu0 0.0
        %9258 = vmatpush2.msra.mxu0 0.0
        %9259 = vmatprep.subr.mxu0 0.0
        %9260 = vmatpush2.msra.mxu0 0.0
        %9261 = vmatprep.subr.mxu0 0.0
        %9262 = vmatpush2.msra.mxu0 0.0
        %9263 = vmatprep.subr.mxu0 0.0
        %9264 = vmatpush2.msra.mxu0 0.0
        %9265 = vmatprep.subr.mxu0 0.0
        %9266 = vmatpush2.msra.mxu0 0.0
        %9267 = vmatprep.subr.mxu0 0.0
        %9268 = vmatpush2.msra.mxu0 0.0
        %9269 = vmatprep.subr.mxu0 0.0
        %9270 = vmatpush2.msra.mxu0 0.0
        %9271 = vmatprep.subr.mxu0 0.0
        %9272 = vmatpush2.msra.mxu0 0.0
        %9273 = vmatprep.subr.mxu0 0.0
        %9274 = vmatpush2.msra.mxu0 0.0
        %9275 = vmatprep.subr.mxu0 0.0
        %9276 = vmatpush2.msra.mxu0 0.0
        %9277 = vmatprep.mubr.f32.mxu0 0.0
        %9278 = vmatmul.mubr.f32.gmra.mxu0 %v9019
        %v9279 = vpop.f32.mrf.mxu0
        %v9280 = vadd.f32 %v9016, %v9279
        %v9281 = vpop.f32.mrf.mxu0
        %9282 = vmatprep.mubr.f32.mxu0 0.0
        %9283 = vmatmul.mubr.f32.gmra.mxu0 %v9022
        %v9284 = vpop.f32.mrf.mxu0
        %v9285 = vadd.f32 %v9016, %v9284
        %v9286 = vpop.f32.mrf.mxu0
        %9287 = vmatprep.mubr.f32.mxu0 0.0
        %9288 = vmatmul.mubr.f32.gmra.mxu0 %v9025
        %v9289 = vpop.f32.mrf.mxu0
        %v9290 = vadd.f32 %v9016, %v9289
        %v9291 = vpop.f32.mrf.mxu0
        %9292 = vmatprep.mubr.f32.mxu0 0.0
        %9293 = vmatmul.mubr.f32.gmra.mxu0 %v9028
        %v9294 = vpop.f32.mrf.mxu0
        %v9295 = vadd.f32 %v9016, %v9294
        %v9296 = vpop.f32.mrf.mxu0
        %9297 = vmatprep.mubr.f32.mxu0 0.0
        %9298 = vmatmul.mubr.f32.gmra.mxu0 %v9031
        %v9299 = vpop.f32.mrf.mxu0
        %v9300 = vadd.f32 %v9016, %v9299
        %v9301 = vpop.f32.mrf.mxu0
        %9302 = vmatprep.mubr.f32.mxu0 0.0
        %9303 = vmatmul.mubr.f32.gmra.mxu0 %v9034
        %v9304 = vpop.f32.mrf.mxu0
        %v9305 = vadd.f32 %v9016, %v9304
        %v9306 = vpop.f32.mrf.mxu0
        %9307 = vmatprep.mubr.f32.mxu0 0.0
        %9308 = vmatmul.mubr.f32.gmra.mxu0 %v9037
        %v9309 = vpop.f32.mrf.mxu0
        %v9310 = vadd.f32 %v9016, %v9309
        %v9311 = vpop.f32.mrf.mxu0
        %9312 = vmatprep.mubr.f32.mxu0 0.0
        %9313 = vmatmul.mubr.f32.gmra.mxu0 %v9040
        %v9314 = vpop.f32.mrf.mxu0
        %v9315 = vadd.f32 %v9016, %v9314
        %v9316 = vpop.f32.mrf.mxu0
        %9317 = vmatprep.mubr.f32.mxu0 0.0
        %9318 = vmatmul.mubr.f32.gmra.mxu0 %v9043
        %v9319 = vpop.f32.mrf.mxu0
        %v9320 = vadd.f32 %v9016, %v9319
        %v9321 = vpop.f32.mrf.mxu0
        %9322 = vmatprep.mubr.f32.mxu0 0.0
        %9323 = vmatmul.mubr.f32.gmra.mxu0 %v9046
        %v9324 = vpop.f32.mrf.mxu0
        %v9325 = vadd.f32 %v9016, %v9324
        %v9326 = vpop.f32.mrf.mxu0
        %9327 = vmatprep.mubr.f32.mxu0 0.0
        %9328 = vmatmul.mubr.f32.gmra.mxu0 %v9049
        %v9329 = vpop.f32.mrf.mxu0
        %v9330 = vadd.f32 %v9016, %v9329
        %v9331 = vpop.f32.mrf.mxu0
        %9332 = vmatprep.mubr.f32.mxu0 0.0
        %9333 = vmatmul.mubr.f32.gmra.mxu0 %v9052
        %v9334 = vpop.f32.mrf.mxu0
        %v9335 = vadd.f32 %v9016, %v9334
        %v9336 = vpop.f32.mrf.mxu0
        %9337 = vmatprep.mubr.f32.mxu0 0.0
        %9338 = vmatmul.mubr.f32.gmra.mxu0 %v9055
        %v9339 = vpop.f32.mrf.mxu0
        %v9340 = vadd.f32 %v9016, %v9339
        %v9341 = vpop.f32.mrf.mxu0
        %9342 = vmatprep.mubr.f32.mxu0 0.0
        %9343 = vmatmul.mubr.f32.gmra.mxu0 %v9058
        %v9344 = vpop.f32.mrf.mxu0
        %v9345 = vadd.f32 %v9016, %v9344
        %v9346 = vpop.f32.mrf.mxu0
        %9347 = vmatprep.mubr.f32.mxu0 0.0
        %9348 = vmatmul.mubr.f32.gmra.mxu0 %v9061
        %v9349 = vpop.f32.mrf.mxu0
        %v9350 = vadd.f32 %v9016, %v9349
        %v9351 = vpop.f32.mrf.mxu0
        %9352 = vmatprep.mubr.f32.mxu0 0.0
        %9353 = vmatmul.mubr.f32.gmra.mxu0 %v9064
        %v9354 = vpop.f32.mrf.mxu0
        %v9355 = vadd.f32 %v9016, %v9354
        %v9356 = vpop.f32.mrf.mxu0
        %9357 = vmatprep.mubr.f32.mxu0 0.0
        %9358 = vmatmul.mubr.f32.gmra.mxu0 %v9067
        %v9359 = vpop.f32.mrf.mxu0
        %v9360 = vadd.f32 %v9016, %v9359
        %v9361 = vpop.f32.mrf.mxu0
        %9362 = vmatprep.mubr.f32.mxu0 0.0
        %9363 = vmatmul.mubr.f32.gmra.mxu0 %v9070
        %v9364 = vpop.f32.mrf.mxu0
        %v9365 = vadd.f32 %v9016, %v9364
        %v9366 = vpop.f32.mrf.mxu0
        %9367 = vmatprep.mubr.f32.mxu0 0.0
        %9368 = vmatmul.mubr.f32.gmra.mxu0 %v9073
        %v9369 = vpop.f32.mrf.mxu0
        %v9370 = vadd.f32 %v9016, %v9369
        %v9371 = vpop.f32.mrf.mxu0
        %9372 = vmatprep.mubr.f32.mxu0 0.0
        %9373 = vmatmul.mubr.f32.gmra.mxu0 %v9076
        %v9374 = vpop.f32.mrf.mxu0
        %v9375 = vadd.f32 %v9016, %v9374
        %v9376 = vpop.f32.mrf.mxu0
        %9377 = vmatprep.mubr.f32.mxu0 0.0
        %9378 = vmatmul.mubr.f32.gmra.mxu0 %v9079
        %v9379 = vpop.f32.mrf.mxu0
        %v9380 = vadd.f32 %v9016, %v9379
        %v9381 = vpop.f32.mrf.mxu0
        %9382 = vmatprep.mubr.f32.mxu0 0.0
        %9383 = vmatmul.mubr.f32.gmra.mxu0 %v9082
        %v9384 = vpop.f32.mrf.mxu0
        %v9385 = vadd.f32 %v9016, %v9384
        %v9386 = vpop.f32.mrf.mxu0
        %9387 = vmatprep.mubr.f32.mxu0 0.0
        %9388 = vmatmul.mubr.f32.gmra.mxu0 %v9085
        %v9389 = vpop.f32.mrf.mxu0
        %v9390 = vadd.f32 %v9016, %v9389
        %v9391 = vpop.f32.mrf.mxu0
        %9392 = vmatprep.mubr.f32.mxu0 0.0
        %9393 = vmatmul.mubr.f32.gmra.mxu0 %v9088
        %v9394 = vpop.f32.mrf.mxu0
        %v9395 = vadd.f32 %v9016, %v9394
        %v9396 = vpop.f32.mrf.mxu0
        %9397 = vmatprep.mubr.f32.mxu0 0.0
        %9398 = vmatmul.mubr.f32.gmra.mxu0 %v9091
        %v9399 = vpop.f32.mrf.mxu0
        %v9400 = vadd.f32 %v9016, %v9399
        %v9401 = vpop.f32.mrf.mxu0
        %9402 = vmatprep.mubr.f32.mxu0 0.0
        %9403 = vmatmul.mubr.f32.gmra.mxu0 %v9094
        %v9404 = vpop.f32.mrf.mxu0
        %v9405 = vadd.f32 %v9016, %v9404
        %v9406 = vpop.f32.mrf.mxu0
        %9407 = vmatprep.mubr.f32.mxu0 0.0
        %9408 = vmatmul.mubr.f32.gmra.mxu0 %v9097
        %v9409 = vpop.f32.mrf.mxu0
        %v9410 = vadd.f32 %v9016, %v9409
        %v9411 = vpop.f32.mrf.mxu0
        %9412 = vmatprep.mubr.f32.mxu0 0.0
        %9413 = vmatmul.mubr.f32.gmra.mxu0 %v9100
        %v9414 = vpop.f32.mrf.mxu0
        %v9415 = vadd.f32 %v9016, %v9414
        %v9416 = vpop.f32.mrf.mxu0
        %9417 = vmatprep.mubr.f32.mxu0 0.0
        %9418 = vmatmul.mubr.f32.gmra.mxu0 %v9103
        %v9419 = vpop.f32.mrf.mxu0
        %v9420 = vadd.f32 %v9016, %v9419
        %v9421 = vpop.f32.mrf.mxu0
        %9422 = vmatprep.mubr.f32.mxu0 0.0
        %9423 = vmatmul.mubr.f32.gmra.mxu0 %v9106
        %v9424 = vpop.f32.mrf.mxu0
        %v9425 = vadd.f32 %v9016, %v9424
        %v9426 = vpop.f32.mrf.mxu0
        %9427 = vmatprep.mubr.f32.mxu0 0.0
        %9428 = vmatmul.mubr.f32.gmra.mxu0 %v9109
        %v9429 = vpop.f32.mrf.mxu0
        %v9430 = vadd.f32 %v9016, %v9429
        %v9431 = vpop.f32.mrf.mxu0
        %9432 = vmatprep.mubr.f32.mxu0 0.0
        %9433 = vmatmul.mubr.f32.gmra.mxu0 %v9112
        %v9434 = vpop.f32.mrf.mxu0
        %v9435 = vadd.f32 %v9016, %v9434
        %v9436 = vpop.f32.mrf.mxu0
        %9437 = vmatprep.mubr.f32.mxu0 0.0
        %9438 = vmatmul.mubr.f32.gmra.mxu0 %v9115
        %v9439 = vpop.f32.mrf.mxu0
        %v9440 = vadd.f32 %v9016, %v9439
        %v9441 = vpop.f32.mrf.mxu0
        %9442 = vmatprep.mubr.f32.mxu0 0.0
        %9443 = vmatmul.mubr.f32.gmra.mxu0 %v9118
        %v9444 = vpop.f32.mrf.mxu0
        %v9445 = vadd.f32 %v9016, %v9444
        %v9446 = vpop.f32.mrf.mxu0
        %9447 = vmatprep.mubr.f32.mxu0 0.0
        %9448 = vmatmul.mubr.f32.gmra.mxu0 %v9121
        %v9449 = vpop.f32.mrf.mxu0
        %v9450 = vadd.f32 %v9016, %v9449
        %v9451 = vpop.f32.mrf.mxu0
        %9452 = vmatprep.mubr.f32.mxu0 0.0
        %9453 = vmatmul.mubr.f32.gmra.mxu0 %v9124
        %v9454 = vpop.f32.mrf.mxu0
        %v9455 = vadd.f32 %v9016, %v9454
        %v9456 = vpop.f32.mrf.mxu0
        %9457 = vmatprep.mubr.f32.mxu0 0.0
        %9458 = vmatmul.mubr.f32.gmra.mxu0 %v9127
        %v9459 = vpop.f32.mrf.mxu0
        %v9460 = vadd.f32 %v9016, %v9459
        %v9461 = vpop.f32.mrf.mxu0
        %9462 = vmatprep.mubr.f32.mxu0 0.0
        %9463 = vmatmul.mubr.f32.gmra.mxu0 %v9130
        %v9464 = vpop.f32.mrf.mxu0
        %v9465 = vadd.f32 %v9016, %v9464
        %v9466 = vpop.f32.mrf.mxu0
        %9467 = vmatprep.mubr.f32.mxu0 0.0
        %9468 = vmatmul.mubr.f32.gmra.mxu0 %v9133
        %v9469 = vpop.f32.mrf.mxu0
        %v9470 = vadd.f32 %v9016, %v9469
        %v9471 = vpop.f32.mrf.mxu0
        %9472 = vmatprep.mubr.f32.mxu0 0.0
        %9473 = vmatmul.mubr.f32.gmra.mxu0 %v9136
        %v9474 = vpop.f32.mrf.mxu0
        %v9475 = vadd.f32 %v9016, %v9474
        %v9476 = vpop.f32.mrf.mxu0
        %9477 = vmatprep.mubr.f32.mxu0 0.0
        %9478 = vmatmul.mubr.f32.gmra.mxu0 %v9139
        %v9479 = vpop.f32.mrf.mxu0
        %v9480 = vadd.f32 %v9016, %v9479
        %v9481 = vpop.f32.mrf.mxu0
        %9482 = vmatprep.mubr.f32.mxu0 0.0
        %9483 = vmatmul.mubr.f32.gmra.mxu0 %v9142
        %v9484 = vpop.f32.mrf.mxu0
        %v9485 = vadd.f32 %v9016, %v9484
        %v9486 = vpop.f32.mrf.mxu0
        %9487 = vmatprep.mubr.f32.mxu0 0.0
        %9488 = vmatmul.mubr.f32.gmra.mxu0 %v9145
        %v9489 = vpop.f32.mrf.mxu0
        %v9490 = vadd.f32 %v9016, %v9489
        %v9491 = vpop.f32.mrf.mxu0
        %9492 = vmatprep.mubr.f32.mxu0 0.0
        %9493 = vmatmul.mubr.f32.gmra.mxu0 %v9148
        %v9494 = vpop.f32.mrf.mxu0
        %v9495 = vadd.f32 %v9016, %v9494
        %v9496 = vpop.f32.mrf.mxu0
        %9497 = vmatprep.mubr.f32.mxu0 0.0
        %9498 = vmatmul.mubr.f32.gmra.mxu0 %v9151
        %v9499 = vpop.f32.mrf.mxu0
        %v9500 = vadd.f32 %v9016, %v9499
        %v9501 = vpop.f32.mrf.mxu0
        %9502 = vmatprep.mubr.f32.mxu0 0.0
        %9503 = vmatmul.mubr.f32.gmra.mxu0 %v9154
        %v9504 = vpop.f32.mrf.mxu0
        %v9505 = vadd.f32 %v9016, %v9504
        %v9506 = vpop.f32.mrf.mxu0
        %9507 = vmatprep.mubr.f32.mxu0 0.0
        %9508 = vmatmul.mubr.f32.gmra.mxu0 %v9157
        %v9509 = vpop.f32.mrf.mxu0
        %v9510 = vadd.f32 %v9016, %v9509
        %v9511 = vpop.f32.mrf.mxu0
        %9512 = vmatprep.mubr.f32.mxu0 0.0
        %9513 = vmatmul.mubr.f32.gmra.mxu0 %v9160
        %v9514 = vpop.f32.mrf.mxu0
        %v9515 = vadd.f32 %v9016, %v9514
        %v9516 = vpop.f32.mrf.mxu0
        %9517 = vmatprep.mubr.f32.mxu0 0.0
        %9518 = vmatmul.mubr.f32.gmra.mxu0 %v9163
        %v9519 = vpop.f32.mrf.mxu0
        %v9520 = vadd.f32 %v9016, %v9519
        %v9521 = vpop.f32.mrf.mxu0
        %9522 = vmatprep.mubr.f32.mxu0 0.0
        %9523 = vmatmul.mubr.f32.gmra.mxu0 %v9166
        %v9524 = vpop.f32.mrf.mxu0
        %v9525 = vadd.f32 %v9016, %v9524
        %v9526 = vpop.f32.mrf.mxu0
        %9527 = vmatprep.mubr.f32.mxu0 0.0
        %9528 = vmatmul.mubr.f32.gmra.mxu0 %v9169
        %v9529 = vpop.f32.mrf.mxu0
        %v9530 = vadd.f32 %v9016, %v9529
        %v9531 = vpop.f32.mrf.mxu0
        %9532 = vmatprep.mubr.f32.mxu0 0.0
        %9533 = vmatmul.mubr.f32.gmra.mxu0 %v9172
        %v9534 = vpop.f32.mrf.mxu0
        %v9535 = vadd.f32 %v9016, %v9534
        %v9536 = vpop.f32.mrf.mxu0
        %9537 = vmatprep.mubr.f32.mxu0 0.0
        %9538 = vmatmul.mubr.f32.gmra.mxu0 %v9175
        %v9539 = vpop.f32.mrf.mxu0
        %v9540 = vadd.f32 %v9016, %v9539
        %v9541 = vpop.f32.mrf.mxu0
        %9542 = vmatprep.mubr.f32.mxu0 0.0
        %9543 = vmatmul.mubr.f32.gmra.mxu0 %v9178
        %v9544 = vpop.f32.mrf.mxu0
        %v9545 = vadd.f32 %v9016, %v9544
        %v9546 = vpop.f32.mrf.mxu0
        %9547 = vmatprep.mubr.f32.mxu0 0.0
        %9548 = vmatmul.mubr.f32.gmra.mxu0 %v9181
        %v9549 = vpop.f32.mrf.mxu0
        %v9550 = vadd.f32 %v9016, %v9549
        %v9551 = vpop.f32.mrf.mxu0
        %9552 = vmatprep.mubr.f32.mxu0 0.0
        %9553 = vmatmul.mubr.f32.gmra.mxu0 %v9184
        %v9554 = vpop.f32.mrf.mxu0
        %v9555 = vadd.f32 %v9016, %v9554
        %v9556 = vpop.f32.mrf.mxu0
        %9557 = vmatprep.mubr.f32.mxu0 0.0
        %9558 = vmatmul.mubr.f32.gmra.mxu0 %v9187
        %v9559 = vpop.f32.mrf.mxu0
        %v9560 = vadd.f32 %v9016, %v9559
        %v9561 = vpop.f32.mrf.mxu0
        %9562 = vmatprep.mubr.f32.mxu0 0.0
        %9563 = vmatmul.mubr.f32.gmra.mxu0 %v9190
        %v9564 = vpop.f32.mrf.mxu0
        %v9565 = vadd.f32 %v9016, %v9564
        %v9566 = vpop.f32.mrf.mxu0
        %9567 = vmatprep.mubr.f32.mxu0 0.0
        %9568 = vmatmul.mubr.f32.gmra.mxu0 %v9193
        %v9569 = vpop.f32.mrf.mxu0
        %v9570 = vadd.f32 %v9016, %v9569
        %v9571 = vpop.f32.mrf.mxu0
        %9572 = vmatprep.mubr.f32.mxu0 0.0
        %9573 = vmatmul.mubr.f32.gmra.mxu0 %v9196
        %v9574 = vpop.f32.mrf.mxu0
        %v9575 = vadd.f32 %v9016, %v9574
        %v9576 = vpop.f32.mrf.mxu0
        %9577 = vmatprep.mubr.f32.mxu0 0.0
        %9578 = vmatmul.mubr.f32.gmra.mxu0 %v9199
        %v9579 = vpop.f32.mrf.mxu0
        %v9580 = vadd.f32 %v9016, %v9579
        %v9581 = vpop.f32.mrf.mxu0
        %9582 = vmatprep.mubr.f32.mxu0 0.0
        %9583 = vmatmul.mubr.f32.gmra.mxu0 %v9202
        %v9584 = vpop.f32.mrf.mxu0
        %v9585 = vadd.f32 %v9016, %v9584
        %v9586 = vpop.f32.mrf.mxu0
        %9587 = vmatprep.mubr.f32.mxu0 0.0
        %9588 = vmatmul.mubr.f32.gmra.mxu0 %v9205
        %v9589 = vpop.f32.mrf.mxu0
        %v9590 = vadd.f32 %v9016, %v9589
        %v9591 = vpop.f32.mrf.mxu0
        %9592 = vmatprep.mubr.f32.mxu0 0.0
        %9593 = vmatmul.mubr.f32.gmra.mxu0 %v9208
        %v9594 = vpop.f32.mrf.mxu0
        %v9595 = vadd.f32 %v9016, %v9594
        %v9596 = vpop.f32.mrf.mxu0
        %9597 = vdwg.mxu0
        %v9598 = vld [vmem:[%s6] sm:$0x1]
        %v9600 = vlaneseq
        %v9601 = vshrl.u32 %v9600, 7
        %v9602 = vsub.s32 0, %v9601
        %v9603 = vrot.slane %v9598, %v9602
        %v9605 = vadd.f32 %v9280, %v9603
        %v9606 = vadd.f32 %v9285, %v9603
        %v9607 = vadd.f32 %v9290, %v9603
        %v9608 = vadd.f32 %v9295, %v9603
        %v9609 = vadd.f32 %v9300, %v9603
        %v9610 = vadd.f32 %v9305, %v9603
        %v9611 = vadd.f32 %v9310, %v9603
        %v9612 = vadd.f32 %v9315, %v9603
        %v9613 = vadd.f32 %v9320, %v9603
        %v9614 = vadd.f32 %v9325, %v9603
        %v9615 = vadd.f32 %v9330, %v9603
        %v9616 = vadd.f32 %v9335, %v9603
        %v9617 = vadd.f32 %v9340, %v9603
        %v9618 = vadd.f32 %v9345, %v9603
        %v9619 = vadd.f32 %v9350, %v9603
        %v9620 = vadd.f32 %v9355, %v9603
        %v9621 = vadd.f32 %v9360, %v9603
        %v9622 = vadd.f32 %v9365, %v9603
        %v9623 = vadd.f32 %v9370, %v9603
        %v9624 = vadd.f32 %v9375, %v9603
        %v9625 = vadd.f32 %v9380, %v9603
        %v9626 = vadd.f32 %v9385, %v9603
        %v9627 = vadd.f32 %v9390, %v9603
        %v9628 = vadd.f32 %v9395, %v9603
        %v9629 = vadd.f32 %v9400, %v9603
        %v9630 = vadd.f32 %v9405, %v9603
        %v9631 = vadd.f32 %v9410, %v9603
        %v9632 = vadd.f32 %v9415, %v9603
        %v9633 = vadd.f32 %v9420, %v9603
        %v9634 = vadd.f32 %v9425, %v9603
        %v9635 = vadd.f32 %v9430, %v9603
        %v9636 = vadd.f32 %v9435, %v9603
        %v9637 = vadd.f32 %v9440, %v9603
        %v9638 = vadd.f32 %v9445, %v9603
        %v9639 = vadd.f32 %v9450, %v9603
        %v9640 = vadd.f32 %v9455, %v9603
        %v9641 = vadd.f32 %v9460, %v9603
        %v9642 = vadd.f32 %v9465, %v9603
        %v9643 = vadd.f32 %v9470, %v9603
        %v9644 = vadd.f32 %v9475, %v9603
        %v9645 = vadd.f32 %v9480, %v9603
        %v9646 = vadd.f32 %v9485, %v9603
        %v9647 = vadd.f32 %v9490, %v9603
        %v9648 = vadd.f32 %v9495, %v9603
        %v9649 = vadd.f32 %v9500, %v9603
        %v9650 = vadd.f32 %v9505, %v9603
        %v9651 = vadd.f32 %v9510, %v9603
        %v9652 = vadd.f32 %v9515, %v9603
        %v9653 = vadd.f32 %v9520, %v9603
        %v9654 = vadd.f32 %v9525, %v9603
        %v9655 = vadd.f32 %v9530, %v9603
        %v9656 = vadd.f32 %v9535, %v9603
        %v9657 = vadd.f32 %v9540, %v9603
        %v9658 = vadd.f32 %v9545, %v9603
        %v9659 = vadd.f32 %v9550, %v9603
        %v9660 = vadd.f32 %v9555, %v9603
        %v9661 = vadd.f32 %v9560, %v9603
        %v9662 = vadd.f32 %v9565, %v9603
        %v9663 = vadd.f32 %v9570, %v9603
        %v9664 = vadd.f32 %v9575, %v9603
        %v9665 = vadd.f32 %v9580, %v9603
        %v9666 = vadd.f32 %v9585, %v9603
        %v9667 = vadd.f32 %v9590, %v9603
        %v9668 = vadd.f32 %v9595, %v9603
        %v9669 = vadd.f32 %v8946, %v9605
        %v9670 = vadd.f32 %v8947, %v9606
        %v9671 = vadd.f32 %v8948, %v9607
        %v9672 = vadd.f32 %v8949, %v9608
        %v9673 = vadd.f32 %v8950, %v9609
        %v9674 = vadd.f32 %v8951, %v9610
        %v9675 = vadd.f32 %v8952, %v9611
        %v9676 = vadd.f32 %v8953, %v9612
        %v9677 = vadd.f32 %v8954, %v9613
        %v9678 = vadd.f32 %v8955, %v9614
        %v9679 = vadd.f32 %v8956, %v9615
        %v9680 = vadd.f32 %v8957, %v9616
        %v9681 = vadd.f32 %v8958, %v9617
        %v9682 = vadd.f32 %v8959, %v9618
        %v9683 = vadd.f32 %v8960, %v9619
        %v9684 = vadd.f32 %v8961, %v9620
        %v9685 = vadd.f32 %v8962, %v9621
        %v9686 = vadd.f32 %v8963, %v9622
        %v9687 = vadd.f32 %v8964, %v9623
        %v9688 = vadd.f32 %v8965, %v9624
        %v9689 = vadd.f32 %v8966, %v9625
        %v9690 = vadd.f32 %v8967, %v9626
        %v9691 = vadd.f32 %v8968, %v9627
        %v9692 = vadd.f32 %v8969, %v9628
        %v9693 = vadd.f32 %v8970, %v9629
        %v9694 = vadd.f32 %v8971, %v9630
        %v9695 = vadd.f32 %v8972, %v9631
        %v9696 = vadd.f32 %v8973, %v9632
        %v9697 = vadd.f32 %v8974, %v9633
        %v9698 = vadd.f32 %v8975, %v9634
        %v9699 = vadd.f32 %v8976, %v9635
        %v9700 = vadd.f32 %v8977, %v9636
        %v9701 = vadd.f32 %v8978, %v9637
        %v9702 = vadd.f32 %v8979, %v9638
        %v9703 = vadd.f32 %v8980, %v9639
        %v9704 = vadd.f32 %v8981, %v9640
        %v9705 = vadd.f32 %v8982, %v9641
        %v9706 = vadd.f32 %v8983, %v9642
        %v9707 = vadd.f32 %v8984, %v9643
        %v9708 = vadd.f32 %v8985, %v9644
        %v9709 = vadd.f32 %v8986, %v9645
        %v9710 = vadd.f32 %v8987, %v9646
        %v9711 = vadd.f32 %v8988, %v9647
        %v9712 = vadd.f32 %v8989, %v9648
        %v9713 = vadd.f32 %v8990, %v9649
        %v9714 = vadd.f32 %v8991, %v9650
        %v9715 = vadd.f32 %v8992, %v9651
        %v9716 = vadd.f32 %v8993, %v9652
        %v9717 = vadd.f32 %v8994, %v9653
        %v9718 = vadd.f32 %v8995, %v9654
        %v9719 = vadd.f32 %v8996, %v9655
        %v9720 = vadd.f32 %v8997, %v9656
        %v9721 = vadd.f32 %v8998, %v9657
        %v9722 = vadd.f32 %v8999, %v9658
        %v9723 = vadd.f32 %v9000, %v9659
        %v9724 = vadd.f32 %v9001, %v9660
        %v9725 = vadd.f32 %v9002, %v9661
        %v9726 = vadd.f32 %v9003, %v9662
        %v9727 = vadd.f32 %v9004, %v9663
        %v9728 = vadd.f32 %v9005, %v9664
        %v9729 = vadd.f32 %v9006, %v9665
        %v9730 = vadd.f32 %v9007, %v9666
        %v9731 = vadd.f32 %v9008, %v9667
        %v9732 = vadd.f32 %v9009, %v9668
        %9733 = vst [vmem:[%s274] sm:$0xff] %v9669
        %9734 = vst [vmem:[%s274 + $0x8] sm:$0xff] %v9670
        %9735 = vst [vmem:[%s274 + $0x10] sm:$0xff] %v9671
        %9736 = vst [vmem:[%s274 + $0x18] sm:$0xff] %v9672
        %9737 = vst [vmem:[%s274 + $0x20] sm:$0xff] %v9673
        %9738 = vst [vmem:[%s274 + $0x28] sm:$0xff] %v9674
        %9739 = vst [vmem:[%s274 + $0x30] sm:$0xff] %v9675
        %9740 = vst [vmem:[%s274 + $0x38] sm:$0xff] %v9676
        %9741 = vst [vmem:[%s274 + $0x40] sm:$0xff] %v9677
        %9742 = vst [vmem:[%s274 + $0x48] sm:$0xff] %v9678
        %9743 = vst [vmem:[%s274 + $0x50] sm:$0xff] %v9679
        %9744 = vst [vmem:[%s274 + $0x58] sm:$0xff] %v9680
        %9745 = vst [vmem:[%s274 + $0x60] sm:$0xff] %v9681
        %9746 = vst [vmem:[%s274 + $0x68] sm:$0xff] %v9682
        %9747 = vst [vmem:[%s274 + $0x70] sm:$0xff] %v9683
        %9748 = vst [vmem:[%s274 + $0x78] sm:$0xff] %v9684
        %9749 = vst [vmem:[%s274 + $0x80] sm:$0xff] %v9685
        %9750 = vst [vmem:[%s274 + $0x88] sm:$0xff] %v9686
        %9751 = vst [vmem:[%s274 + $0x90] sm:$0xff] %v9687
        %9752 = vst [vmem:[%s274 + $0x98] sm:$0xff] %v9688
        %9753 = vst [vmem:[%s274 + $0xa0] sm:$0xff] %v9689
        %9754 = vst [vmem:[%s274 + $0xa8] sm:$0xff] %v9690
        %9755 = vst [vmem:[%s274 + $0xb0] sm:$0xff] %v9691
        %9756 = vst [vmem:[%s274 + $0xb8] sm:$0xff] %v9692
        %9757 = vst [vmem:[%s274 + $0xc0] sm:$0xff] %v9693
        %9758 = vst [vmem:[%s274 + $0xc8] sm:$0xff] %v9694
        %9759 = vst [vmem:[%s274 + $0xd0] sm:$0xff] %v9695
        %9760 = vst [vmem:[%s274 + $0xd8] sm:$0xff] %v9696
        %9761 = vst [vmem:[%s274 + $0xe0] sm:$0xff] %v9697
        %9762 = vst [vmem:[%s274 + $0xe8] sm:$0xff] %v9698
        %9763 = vst [vmem:[%s274 + $0xf0] sm:$0xff] %v9699
        %9764 = vst [vmem:[%s274 + $0xf8] sm:$0xff] %v9700
        %9765 = vst [vmem:[%s274 + $0x100] sm:$0xff] %v9701
        %9766 = vst [vmem:[%s274 + $0x108] sm:$0xff] %v9702
        %9767 = vst [vmem:[%s274 + $0x110] sm:$0xff] %v9703
        %9768 = vst [vmem:[%s274 + $0x118] sm:$0xff] %v9704
        %9769 = vst [vmem:[%s274 + $0x120] sm:$0xff] %v9705
        %9770 = vst [vmem:[%s274 + $0x128] sm:$0xff] %v9706
        %9771 = vst [vmem:[%s274 + $0x130] sm:$0xff] %v9707
        %9772 = vst [vmem:[%s274 + $0x138] sm:$0xff] %v9708
        %9773 = vst [vmem:[%s274 + $0x140] sm:$0xff] %v9709
        %9774 = vst [vmem:[%s274 + $0x148] sm:$0xff] %v9710
        %9775 = vst [vmem:[%s274 + $0x150] sm:$0xff] %v9711
        %9776 = vst [vmem:[%s274 + $0x158] sm:$0xff] %v9712
        %9777 = vst [vmem:[%s274 + $0x160] sm:$0xff] %v9713
        %9778 = vst [vmem:[%s274 + $0x168] sm:$0xff] %v9714
        %9779 = vst [vmem:[%s274 + $0x170] sm:$0xff] %v9715
        %9780 = vst [vmem:[%s274 + $0x178] sm:$0xff] %v9716
        %9781 = vst [vmem:[%s274 + $0x180] sm:$0xff] %v9717
        %9782 = vst [vmem:[%s274 + $0x188] sm:$0xff] %v9718
        %9783 = vst [vmem:[%s274 + $0x190] sm:$0xff] %v9719
        %9784 = vst [vmem:[%s274 + $0x198] sm:$0xff] %v9720
        %9785 = vst [vmem:[%s274 + $0x1a0] sm:$0xff] %v9721
        %9786 = vst [vmem:[%s274 + $0x1a8] sm:$0xff] %v9722
        %9787 = vst [vmem:[%s274 + $0x1b0] sm:$0xff] %v9723
        %9788 = vst [vmem:[%s274 + $0x1b8] sm:$0xff] %v9724
        %9789 = vst [vmem:[%s274 + $0x1c0] sm:$0xff] %v9725
        %9790 = vst [vmem:[%s274 + $0x1c8] sm:$0xff] %v9726
        %9791 = vst [vmem:[%s274 + $0x1d0] sm:$0xff] %v9727
        %9792 = vst [vmem:[%s274 + $0x1d8] sm:$0xff] %v9728
        %9793 = vst [vmem:[%s274 + $0x1e0] sm:$0xff] %v9729
        %9794 = vst [vmem:[%s274 + $0x1e8] sm:$0xff] %v9730
        %9795 = vst [vmem:[%s274 + $0x1f0] sm:$0xff] %v9731
        %9796 = vst [vmem:[%s274 + $0x1f8] sm:$0xff] %v9732
        %s9797 = sand.u32 %s181, 1
        %s9798 = scalar_lea.sflag [#allocation3], %s9797
        %s9799 = sand.u32 %s181, 1
        %s9800 = smul.addr %s9799, 512
        %s9801 = scalar_lea.vmem [#allocation2], %s9800
        // Predicated region
        $region49: #{tpu_custom_call.1} parent=47 // pred_check
          %p9802 = pneg %p191
        $region50: #{tpu_custom_call.1} parent=47 // pred_check_branch
          %9804 = sbr.rel (%p9802) target = $region52
        $region51: #{tpu_custom_call.1} parent=47 // pred_region
          %s9805 = smul.u32 64, %s21
          %s9807 = ssub.s32 8192, 8192
          %9808 = vsyncadd %s9798, %s9807
          %s9809 = smul.addr %s9805, 128
          %s9810 = scalar_lea.hbm %s7, %s9809
          %s9811 = sshll.u32 %s9801, 4
          %s9812 = int_to_ptr.vmem [resolvable:$true] %s9811
          %9817 = dma.vmem_to_hbm [thread:$0]  %s9812, 8192, %s9810, %s9798, 128, 128, 8
        $region52: #{tpu_custom_call.1} parent=47 // pred_fallthru
          _
      $region48: #{tpu_custom_call.1} parent=5 // pred_fallthru
        _
      %p9818 = scmp.le.s32.totalorder 2, %s16
      // Predicated region
      $region53: #{tpu_custom_call.1} parent=5 // pred_check
        %p9819 = pneg %p9818
      $region54: #{tpu_custom_call.1} parent=5 // pred_check_branch
        %9821 = sbr.rel (%p9819) target = $region56
      $region55: #{tpu_custom_call.1} parent=5 // pred_region
        %s9822 = ssub.s32 %s16, 2
        // Predicated region
        $region57: #{tpu_custom_call.1} parent=55 // pred_check
          %p9823 = pneg %p197
        $region58: #{tpu_custom_call.1} parent=55 // pred_check_branch
          %9825 = sbr.rel (%p9823) target = $region60
        $region59: #{tpu_custom_call.1} parent=55 // pred_region
          %s9826 = sand.u32 %s182, 1
          %s9827 = scalar_lea.sflag [#allocation3], %s9826
          %s9828 = sand.u32 %s182, 1
          %s9829 = smul.addr %s9828, 512
          %s9830 = scalar_lea.vmem [#allocation2], %s9829
          %9831 = dma.done %s9827, 8192
        $region60: #{tpu_custom_call.1} parent=55 // pred_fallthru
          _
      $region56: #{tpu_custom_call.1} parent=5 // pred_fallthru
        _
    $region6: #{tpu_custom_call.1} parent=1 // loop_footer
      %s20 = sadd.s32 1, %s16
    $region7: #{tpu_custom_call.1} parent=1 // loop_footer_branch
      %15 = sbr.rel target = $region3
    $region8: #{tpu_custom_call.1} parent=1 // loop_exit
      _
    %9832 = vsyncpa [#allocation3], 1
    %s9833 = scalar_lea.sflag [#allocation3], 1
    %9834 = vsyncpa %s9833, 1

</llo_original>
